<compile_context>
chip_gen: v7x
topology: tpu7x:2x2x1
jax: 0.10.0
libtpu: 0.0.40
codegen_flags: <defaults>
</compile_context>

<pallas_src>
import functools

import numpy as np
import jax
import jax.numpy as jnp
from jax.experimental import pallas as pl
from jax.experimental.pallas import tpu as pltpu

CPAD = 128            # channel padding -> lane-dense matmul N/K dims
CONV_CH = (8, 8, 16)  # real output channels of the scaled-down backbone convs
FC_HIDDEN = 64        # real classifier hidden width
FC_PAD = 128          # padded classifier width (lane-dense)
EMBED_SIZE = 32
NORM_EPS = 1e-12


def _round_up(x, m):
    return (x + m - 1) // m * m


# -----------------------------------------------------------------------------
# Pallas kernels
# -----------------------------------------------------------------------------
def _backbone_kernel(p_ref, w1_ref, b1_ref, w2_ref, b2_ref, w3_ref, b3_ref,
                     p2_ref, p3_ref, o_ref, s2_ref, s3_ref, *, H, W):
    """Whole conv backbone for one image, entirely in VMEM.

    p_ref : (1, H*W, K1) bf16  -- conv1 3x3 patches (27 real features).
    w*_ref: slab weights (K, 128) bf16; b*_ref: (1, 128) f32.
    p2/p3 : 0/1 bf16 selection matrices compacting the fused 2x2 maxpool.
    o_ref : (1, 16, 128) bf16  -- pooled 4x4x128 features (padded channels = 0).
    s2/s3 : f32 VMEM scratch holding the zero-padded row-flat conv inputs.
    """
    bf16 = jnp.bfloat16

    # ---- conv1: single K=32 dot on wrapper-built patches -------------------
    y1 = jnp.dot(p_ref[0, :, :], w1_ref[...],
                 preferred_element_type=jnp.float32) + b1_ref[...]
    y1 = jnp.maximum(y1, 0.0)                       # (H*W, 128) f32, width W

    def conv_pool(y_real, h, w, s_ref, w_ref, b_ref, psel_ref):
        """3x3 'same' conv + bias + ReLU on a row-flat (h*w, 128) activation,
        with the 2x2 maxpool fused into the epilogue. Returns (h*w/4, 128) f32."""
        wp = w + 2
        m = h * wp
        me = m + wp + 1                              # extra rows so the pooling
        # slices below stay in-bounds (extra rows are finite and never selected)

        # zero halos / tail once, then copy the real rows into the padded layout
        s_ref[...] = jnp.zeros_like(s_ref)
        for r in range(h):
            s_ref[pl.ds((r + 1) * wp + 1, w), :] = y_real[r * w:(r + 1) * w, :]

        # deep-K slab: nine shifted row windows concatenated along lanes
        taps = [s_ref[pl.ds(di * wp + dj, me), :].astype(bf16)
                for di in range(3) for dj in range(3)]
        slab = jnp.concatenate(taps, axis=1)                    # (me, 9*128)
        y = jnp.dot(slab, w_ref[...],
                    preferred_element_type=jnp.float32) + b_ref[...]
        y = jnp.maximum(y, 0.0)                                 # (me, 128)

        # fused 2x2 maxpool: neighbour maxes via contiguous shifted slices,
        # then a 0/1 selection matmul compacts rows q = 2i*wp + 2j (MXU only).
        ym = jnp.maximum(y[0:m + wp, :], y[1:m + wp + 1, :])
        ymh = jnp.maximum(ym[0:m, :], ym[wp:m + wp, :])         # (m, 128)
        return jnp.dot(psel_ref[...], ymh.astype(bf16),
                       preferred_element_type=jnp.float32)

    y2p = conv_pool(y1, H, W, s2_ref, w2_ref, b2_ref, p2_ref)        # (H/2*W/2,128)
    y3p = conv_pool(y2p, H // 2, W // 2, s3_ref, w3_ref, b3_ref, p3_ref)  # (16,128)
    o_ref[0, :, :] = y3p.astype(o_ref.dtype)


def _head_kernel(x_ref, w1_ref, b1_ref, w2_ref, b2_ref, w3_ref, b3_ref, o_ref):
    """Fused classifier tail: fc1+ReLU -> fc2+ReLU -> fc -> L2 normalize.

    Weight columns past the real widths are zero, so padded lanes stay exactly
    zero and do not perturb the L2 norm."""
    h = jnp.dot(x_ref[...], w1_ref[...],
                preferred_element_type=jnp.float32) + b1_ref[...]
    h = jnp.maximum(h, 0.0)
    h = jnp.dot(h.astype(jnp.bfloat16), w2_ref[...],
                preferred_element_type=jnp.float32) + b2_ref[...]
    h = jnp.maximum(h, 0.0)
    y = jnp.dot(h.astype(jnp.bfloat16), w3_ref[...],
                preferred_element_type=jnp.float32) + b3_ref[...]
    ssq = jnp.sum(y * y, axis=1, keepdims=True)
    o_ref[...] = (y * jax.lax.rsqrt(ssq + NORM_EPS)).astype(o_ref.dtype)


def _full_spec(shape):
    # Single-block spec: block == full array (tiny fused classifier call).
    return pl.BlockSpec(shape, lambda: (0,) * len(shape))


# -----------------------------------------------------------------------------
# Pallas wrappers
# -----------------------------------------------------------------------------
def backbone(patches, w1, b1, w2, b2, w3, b3, p2, p3, *, H, W):
    """patches: (B, H*W, K1) bf16; returns (B, 16, CPAD) bf16 pooled features."""
    B, HW, K1 = patches.shape
    Wp2 = W + 2
    M2 = H * Wp2
    R2 = _round_up(M2 + 3 * Wp2 + 3, 8)
    H3, W3 = H // 2, W // 2
    Wp3 = W3 + 2
    M3 = H3 * Wp3
    R3 = _round_up(M3 + 3 * Wp3 + 3, 8)
    NPOS = (H3 // 2) * (W3 // 2)

    flops = 2 * B * (HW * K1 * CPAD
                     + (M2 + Wp2 + 1) * 9 * CPAD * CPAD
                     + (M3 + Wp3 + 1) * 9 * CPAD * CPAD
                     + H3 * W3 * M2 * CPAD + NPOS * M3 * CPAD)
    bytes_accessed = (patches.size * 2
                      + (w1.size + w2.size + w3.size + p2.size + p3.size) * 2
                      + (b1.size + b2.size + b3.size) * 4
                      + B * NPOS * CPAD * 2)

    def const(*shape):
        return pl.BlockSpec(shape, lambda b: (0,) * len(shape))

    return pl.pallas_call(
        functools.partial(_backbone_kernel, H=H, W=W),
        out_shape=jax.ShapeDtypeStruct((B, NPOS, CPAD), jnp.bfloat16),
        grid=(B,),
        in_specs=[
            pl.BlockSpec((1, HW, K1), lambda b: (b, 0, 0)),
            const(K1, CPAD), const(1, CPAD),
            const(9 * CPAD, CPAD), const(1, CPAD),
            const(9 * CPAD, CPAD), const(1, CPAD),
            const(H3 * W3, M2), const(NPOS, M3),
        ],
        out_specs=pl.BlockSpec((1, NPOS, CPAD), lambda b: (b, 0, 0)),
        scratch_shapes=[pltpu.VMEM((R2, CPAD), jnp.float32),
                        pltpu.VMEM((R3, CPAD), jnp.float32)],
        compiler_params=pltpu.CompilerParams(
            dimension_semantics=("parallel",)),   # v7x: 2 TCs split the batch
        cost_estimate=pl.CostEstimate(flops=flops, transcendentals=0,
                                      bytes_accessed=bytes_accessed),
    )(patches, w1, b1, w2, b2, w3, b3, p2, p3)


def classifier_head(feats, w1, b1, w2, b2, w3, b3, *, embed_size):
    """feats: (B, K) bf16 (K = 16*128 padded flatten); weights pre-padded bf16."""
    B, K = feats.shape
    Bp = _round_up(B, 8)
    x = jnp.pad(feats, ((0, Bp - B), (0, 0)))
    flops = 2 * Bp * (K * FC_PAD + FC_PAD * FC_PAD + FC_PAD * FC_PAD)
    bytes_accessed = (x.size * 2 + (w1.size + w2.size + w3.size) * 2
                      + (b1.size + b2.size + b3.size) * 4 + Bp * FC_PAD * 4)
    out = pl.pallas_call(
        _head_kernel,
        out_shape=jax.ShapeDtypeStruct((Bp, FC_PAD), jnp.float32),
        in_specs=[_full_spec((Bp, K)),
                  _full_spec((K, FC_PAD)), _full_spec((1, FC_PAD)),
                  _full_spec((FC_PAD, FC_PAD)), _full_spec((1, FC_PAD)),
                  _full_spec((FC_PAD, FC_PAD)), _full_spec((1, FC_PAD))],
        out_specs=_full_spec((Bp, FC_PAD)),
        cost_estimate=pl.CostEstimate(flops=flops, transcendentals=Bp,
                                      bytes_accessed=bytes_accessed),
    )(x, w1, b1, w2, b2, w3, b3)
    return out[:B, :embed_size]


# -----------------------------------------------------------------------------
# Host-side prep (tiny, only touches the 3-channel input / weights)
# -----------------------------------------------------------------------------
def _conv1_patches(image_nchw, k1):
    """(B, C, H, W) f32 -> (B, H*W, k1) bf16 3x3 'same' patches (tap-major, cin)."""
    x = jnp.transpose(image_nchw, (0, 2, 3, 1)).astype(jnp.bfloat16)
    B, H, W, C = x.shape
    xp = jnp.pad(x, ((0, 0), (1, 1), (1, 1), (0, 0)))
    pieces = [xp[:, di:di + H, dj:dj + W, :] for di in range(3) for dj in range(3)]
    pat = jnp.concatenate(pieces, axis=-1).reshape(B, H * W, 9 * C)
    return jnp.pad(pat, ((0, 0), (0, 0), (0, k1 - 9 * C)))


def _pool_select(h, w):
    """0/1 matrix ((h/2)*(w/2), h*(w+2)) selecting rows 2i*(w+2)+2j (compile-time)."""
    wp = w + 2
    m = np.zeros((h // 2 * (w // 2), h * wp), np.float32)
    for i in range(h // 2):
        for j in range(w // 2):
            m[i * (w // 2) + j, 2 * i * wp + 2 * j] = 1.0
    return jnp.asarray(m, jnp.bfloat16)


# -----------------------------------------------------------------------------
# ImgEncoder: parameters + forward
# -----------------------------------------------------------------------------
def init_params(key, in_ch=3, embed_size=EMBED_SIZE):
    """Deterministic synthetic weights in PyTorch layouts (scaled-down VGG)."""
    ks = jax.random.split(key, 12)
    s = 0.05
    c1, c2, c3 = CONV_CH
    flat_features = c3 * 4 * 4          # 16x16 input, two 2x2 pools -> 4x4
    p = {}
    p["c1_w"] = jax.random.normal(ks[0], (c1, in_ch, 3, 3), jnp.float32) * s
    p["c1_b"] = jax.random.normal(ks[1], (c1,), jnp.float32) * s
    p["c2_w"] = jax.random.normal(ks[2], (c2, c1, 3, 3), jnp.float32) * s
    p["c2_b"] = jax.random.normal(ks[3], (c2,), jnp.float32) * s
    p["c3_w"] = jax.random.normal(ks[4], (c3, c2, 3, 3), jnp.float32) * s
    p["c3_b"] = jax.random.normal(ks[5], (c3,), jnp.float32) * s
    # classifier (last fc removed): Linear(256->64) ReLU [Drop] Linear(64->64) ReLU [Drop]
    p["fc1_w"] = jax.random.normal(ks[6], (FC_HIDDEN, flat_features), jnp.float32) * s
    p["fc1_b"] = jax.random.normal(ks[7], (FC_HIDDEN,), jnp.float32) * s
    p["fc2_w"] = jax.random.normal(ks[8], (FC_HIDDEN, FC_HIDDEN), jnp.float32) * s
    p["fc2_b"] = jax.random.normal(ks[9], (FC_HIDDEN,), jnp.float32) * s
    # new fc: Linear(in_features=64 -> embed_size)
    p["fc_w"] = jax.random.normal(ks[10], (embed_size, FC_HIDDEN), jnp.float32) * s
    p["fc_b"] = jax.random.normal(ks[11], (embed_size,), jnp.float32) * s
    return p


def prepare_params(p, in_ch=3):
    """PyTorch-layout f32 params -> kernel-ready lane-padded bf16/f32 tensors."""
    c1, c2, c3 = CONV_CH
    k1 = _round_up(9 * in_ch, 8)

    def bias(b, pad):
        return jnp.pad(b, (0, pad - b.shape[0])).reshape(1, pad).astype(jnp.float32)

    kp = {}
    # conv1: (Cout, Cin, 3, 3) -> (9*Cin padded to k1, CPAD), tap-major rows
    w = jnp.transpose(p["c1_w"], (2, 3, 1, 0)).reshape(9 * in_ch, c1)
    kp["c1_w"] = jnp.pad(w, ((0, k1 - 9 * in_ch), (0, CPAD - c1))).astype(jnp.bfloat16)
    kp["c1_b"] = bias(p["c1_b"], CPAD)

    def conv_slab(wkey, bkey):
        w, b = p[wkey], p[bkey]                         # (Cout, Cin, 3, 3)
        cout, cin = w.shape[0], w.shape[1]
        wt = jnp.transpose(w, (2, 3, 1, 0))             # (3, 3, cin, cout)
        wt = jnp.pad(wt, ((0, 0), (0, 0), (0, CPAD - cin), (0, CPAD - cout)))
        return wt.reshape(9 * CPAD, CPAD).astype(jnp.bfloat16), bias(b, CPAD)

    kp["c2_w"], kp["c2_b"] = conv_slab("c2_w", "c2_b")
    kp["c3_w"], kp["c3_b"] = conv_slab("c3_w", "c3_b")

    # fc1 rows re-laid-out for the NHWC, 128-channel-padded flatten (p*128 + c)
    npos = p["fc1_w"].shape[1] // c3
    w = p["fc1_w"].reshape(FC_HIDDEN, npos, c3)
    w = jnp.transpose(w, (1, 2, 0))                     # (pos, c, out)
    w = jnp.pad(w, ((0, 0), (0, CPAD - c3), (0, FC_PAD - FC_HIDDEN)))
    kp["fc1_w"] = w.reshape(npos * CPAD, FC_PAD).astype(jnp.bfloat16)
    kp["fc1_b"] = bias(p["fc1_b"], FC_PAD)

    def fc(wkey, bkey):
        w, b = p[wkey], p[bkey]                         # (out, in)
        out_f, in_f = w.shape
        wt = jnp.pad(w.T, ((0, FC_PAD - in_f), (0, FC_PAD - out_f)))
        return wt.astype(jnp.bfloat16), bias(b, FC_PAD)

    kp["fc2_w"], kp["fc2_b"] = fc("fc2_w", "fc2_b")
    kp["fc_w"], kp["fc_b"] = fc("fc_w", "fc_b")
    return kp


def img_encoder_forward(kp, image):
    """image: (B, C, H, W) NCHW f32 -> (B, EMBED_SIZE) L2-normalized."""
    B, C, H, W = image.shape
    k1 = kp["c1_w"].shape[0]
    patches = _conv1_patches(image, k1)                 # only glue: 3-ch input prep
    p2 = _pool_select(H, W)
    p3 = _pool_select(H // 2, W // 2)
    feats = backbone(patches, kp["c1_w"], kp["c1_b"], kp["c2_w"], kp["c2_b"],
                     kp["c3_w"], kp["c3_b"], p2, p3, H=H, W=W)
    feats = feats.reshape(B, -1)                        # (B, 2048): free reshape
    return classifier_head(feats, kp["fc1_w"], kp["fc1_b"],
                           kp["fc2_w"], kp["fc2_b"],
                           kp["fc_w"], kp["fc_b"], embed_size=EMBED_SIZE)


# -----------------------------------------------------------------------------
# Pure-JAX reference (same bf16-input / f32-accumulate matmul discipline)
# -----------------------------------------------------------------------------
def maxpool2x2_nhwc(x):
    B, H, W, C = x.shape
    return jnp.max(x.reshape(B, H // 2, 2, W // 2, 2, C), axis=(2, 4))


def img_encoder_reference(p, image):
    bf = jnp.bfloat16

    def conv(x, w, b):
        y = jax.lax.conv_general_dilated(
            x.astype(bf), w.transpose(2, 3, 1, 0).astype(bf),
            window_strides=(1, 1), padding="SAME",
            dimension_numbers=("NHWC", "HWIO", "NHWC"),
            preferred_element_type=jnp.float32)
        return jnp.maximum(y + b, 0.0)

    def fc(x, w, b):
        return jnp.dot(x.astype(bf), w.T.astype(bf),
                       preferred_element_type=jnp.float32) + b

    x = image.transpose(0, 2, 3, 1)
    x = conv(x, p["c1_w"], p["c1_b"])
    x = conv(x, p["c2_w"], p["c2_b"])
    x = maxpool2x2_nhwc(x)
    x = conv(x, p["c3_w"], p["c3_b"])
    x = maxpool2x2_nhwc(x)
    x = x.reshape(x.shape[0], -1)
    x = jnp.maximum(fc(x, p["fc1_w"], p["fc1_b"]), 0.0)
    x = jnp.maximum(fc(x, p["fc2_w"], p["fc2_b"]), 0.0)
    y = fc(x, p["fc_w"], p["fc_b"])
    ssq = jnp.sum(y * y, axis=1, keepdims=True)
    return y * jax.lax.rsqrt(ssq + NORM_EPS)


if __name__ == "__main__":
    key = jax.random.PRNGKey(0)
    k_img, k_par = jax.random.split(key)

    B, C, H, W = 2, 3, 16, 16
    image = jax.random.normal(k_img, (B, C, H, W), jnp.float32)
    params = init_params(k_par, in_ch=C, embed_size=EMBED_SIZE)
    kparams = prepare_params(params, in_ch=C)

    out = jax.jit(img_encoder_forward)(kparams, image)
    out = jax.block_until_ready(out)

    ref = img_encoder_reference(params, image)
    assert out.shape == (B, EMBED_SIZE)
    assert jnp.allclose(out, ref, atol=2e-3, rtol=2e-3), "mismatch vs reference"
    # every row should be unit-norm
    assert jnp.allclose(jnp.linalg.norm(out, axis=1), 1.0, atol=1e-3)

    print("KERNEL_OK")
</pallas_src>

<mosaic_0001>
module attributes {stable_mosaic.version = 11 : i64} {
  func.func @_backbone_kernel(%arg0: i32, %arg1: memref<1x256x32xbf16, #tpu.memory_space<vmem>>, %arg2: memref<32x128xbf16, #tpu.memory_space<vmem>>, %arg3: memref<1x128xf32, #tpu.memory_space<vmem>>, %arg4: memref<1152x128xbf16, #tpu.memory_space<vmem>>, %arg5: memref<1x128xf32, #tpu.memory_space<vmem>>, %arg6: memref<1152x128xbf16, #tpu.memory_space<vmem>>, %arg7: memref<1x128xf32, #tpu.memory_space<vmem>>, %arg8: memref<64x288xbf16, #tpu.memory_space<vmem>>, %arg9: memref<16x80xbf16, #tpu.memory_space<vmem>>, %arg10: memref<1x16x128xbf16, #tpu.memory_space<vmem>>, %arg11: memref<352x128xf32, #tpu.memory_space<vmem>>, %arg12: memref<120x128xf32, #tpu.memory_space<vmem>>) attributes {dimension_semantics = [#tpu.dimension_semantics<parallel>], iteration_bounds = array<i64: 2>, scalar_prefetch = 0 : i64, scratch_operands = 2 : i64, tpu.core_type = #tpu.core_type<tc>, window_params = [{transform_indices = @transform_0, window_bounds = array<i64: 1, 256, 32>}, {pipeline_mode = #tpu.pipeline_mode<synchronous>, transform_indices = @transform_1, window_bounds = array<i64: 32, 128>}, {pipeline_mode = #tpu.pipeline_mode<synchronous>, transform_indices = @transform_2, window_bounds = array<i64: 1, 128>}, {pipeline_mode = #tpu.pipeline_mode<synchronous>, transform_indices = @transform_3, window_bounds = array<i64: 1152, 128>}, {pipeline_mode = #tpu.pipeline_mode<synchronous>, transform_indices = @transform_4, window_bounds = array<i64: 1, 128>}, {pipeline_mode = #tpu.pipeline_mode<synchronous>, transform_indices = @transform_5, window_bounds = array<i64: 1152, 128>}, {pipeline_mode = #tpu.pipeline_mode<synchronous>, transform_indices = @transform_6, window_bounds = array<i64: 1, 128>}, {pipeline_mode = #tpu.pipeline_mode<synchronous>, transform_indices = @transform_7, window_bounds = array<i64: 64, 288>}, {pipeline_mode = #tpu.pipeline_mode<synchronous>, transform_indices = @transform_8, window_bounds = array<i64: 16, 80>}, {transform_indices = @transform_9, window_bounds = array<i64: 1, 16, 128>}]} {
    %c0 = arith.constant 0 : index
    %c0_0 = arith.constant 0 : index
    %c0_1 = arith.constant 0 : index
    %0 = vector.load %arg1[%c0, %c0_0, %c0_1] : memref<1x256x32xbf16, #tpu.memory_space<vmem>>, vector<1x256x32xbf16>
    %1 = vector.shape_cast %0 : vector<1x256x32xbf16> to vector<256x32xbf16>
    %c0_2 = arith.constant 0 : index
    %c0_3 = arith.constant 0 : index
    %2 = vector.load %arg2[%c0_2, %c0_3] : memref<32x128xbf16, #tpu.memory_space<vmem>>, vector<32x128xbf16>
    %cst = arith.constant dense<0.000000e+00> : vector<256x128xf32>
    %3 = tpu.matmul %1, %2, %cst {dimension_numbers = #tpu.dot_dimension_numbers<[1], [0], [0], [1], [0, 0, 1, 1], [], []>} : vector<256x32xbf16>, vector<32x128xbf16>, vector<256x128xf32> -> vector<256x128xf32>
    %c0_4 = arith.constant 0 : index
    %c0_5 = arith.constant 0 : index
    %4 = vector.load %arg3[%c0_4, %c0_5] : memref<1x128xf32, #tpu.memory_space<vmem>>, vector<1x128xf32>
    %5 = vector.broadcast %4 : vector<1x128xf32> to vector<256x128xf32>
    %6 = arith.addf %3, %5 : vector<256x128xf32>
    %cst_6 = arith.constant 0.000000e+00 : f32
    %7 = vector.broadcast %cst_6 : f32 to vector<256x128xf32>
    %8 = arith.maximumf %6, %7 : vector<256x128xf32>
    %cst_7 = arith.constant 0.000000e+00 : f32
    %9 = vector.broadcast %cst_7 : f32 to vector<352x128xf32>
    %c0_8 = arith.constant 0 : index
    %c0_9 = arith.constant 0 : index
    %10 = vector.load %arg11[%c0_8, %c0_9] : memref<352x128xf32, #tpu.memory_space<vmem>>, vector<352x128xf32>
    tpu.vector_store %arg11[%c0_8, %c0_9], %9 {strides = array<i32>} : memref<352x128xf32, #tpu.memory_space<vmem>>, vector<352x128xf32>,
    %11 = vector.extract_strided_slice %8 {offsets = [0, 0], sizes = [16, 128], strides = [1, 1]} : vector<256x128xf32> to vector<16x128xf32>
    %c19 = arith.constant 19 : index
    %c0_10 = arith.constant 0 : index
    %12 = vector.load %arg11[%c19, %c0_10] : memref<352x128xf32, #tpu.memory_space<vmem>>, vector<16x128xf32>
    tpu.vector_store %arg11[%c19, %c0_10], %11 {strides = array<i32>} : memref<352x128xf32, #tpu.memory_space<vmem>>, vector<16x128xf32>,
    %13 = vector.extract_strided_slice %8 {offsets = [16, 0], sizes = [16, 128], strides = [1, 1]} : vector<256x128xf32> to vector<16x128xf32>
    %c37 = arith.constant 37 : index
    %c0_11 = arith.constant 0 : index
    %14 = vector.load %arg11[%c37, %c0_11] : memref<352x128xf32, #tpu.memory_space<vmem>>, vector<16x128xf32>
    tpu.vector_store %arg11[%c37, %c0_11], %13 {strides = array<i32>} : memref<352x128xf32, #tpu.memory_space<vmem>>, vector<16x128xf32>,
    %15 = vector.extract_strided_slice %8 {offsets = [32, 0], sizes = [16, 128], strides = [1, 1]} : vector<256x128xf32> to vector<16x128xf32>
    %c55 = arith.constant 55 : index
    %c0_12 = arith.constant 0 : index
    %16 = vector.load %arg11[%c55, %c0_12] : memref<352x128xf32, #tpu.memory_space<vmem>>, vector<16x128xf32>
    tpu.vector_store %arg11[%c55, %c0_12], %15 {strides = array<i32>} : memref<352x128xf32, #tpu.memory_space<vmem>>, vector<16x128xf32>,
    %17 = vector.extract_strided_slice %8 {offsets = [48, 0], sizes = [16, 128], strides = [1, 1]} : vector<256x128xf32> to vector<16x128xf32>
    %c73 = arith.constant 73 : index
    %c0_13 = arith.constant 0 : index
    %18 = vector.load %arg11[%c73, %c0_13] : memref<352x128xf32, #tpu.memory_space<vmem>>, vector<16x128xf32>
    tpu.vector_store %arg11[%c73, %c0_13], %17 {strides = array<i32>} : memref<352x128xf32, #tpu.memory_space<vmem>>, vector<16x128xf32>,
    %19 = vector.extract_strided_slice %8 {offsets = [64, 0], sizes = [16, 128], strides = [1, 1]} : vector<256x128xf32> to vector<16x128xf32>
    %c91 = arith.constant 91 : index
    %c0_14 = arith.constant 0 : index
    %20 = vector.load %arg11[%c91, %c0_14] : memref<352x128xf32, #tpu.memory_space<vmem>>, vector<16x128xf32>
    tpu.vector_store %arg11[%c91, %c0_14], %19 {strides = array<i32>} : memref<352x128xf32, #tpu.memory_space<vmem>>, vector<16x128xf32>,
    %21 = vector.extract_strided_slice %8 {offsets = [80, 0], sizes = [16, 128], strides = [1, 1]} : vector<256x128xf32> to vector<16x128xf32>
    %c109 = arith.constant 109 : index
    %c0_15 = arith.constant 0 : index
    %22 = vector.load %arg11[%c109, %c0_15] : memref<352x128xf32, #tpu.memory_space<vmem>>, vector<16x128xf32>
    tpu.vector_store %arg11[%c109, %c0_15], %21 {strides = array<i32>} : memref<352x128xf32, #tpu.memory_space<vmem>>, vector<16x128xf32>,
    %23 = vector.extract_strided_slice %8 {offsets = [96, 0], sizes = [16, 128], strides = [1, 1]} : vector<256x128xf32> to vector<16x128xf32>
    %c127 = arith.constant 127 : index
    %c0_16 = arith.constant 0 : index
    %24 = vector.load %arg11[%c127, %c0_16] : memref<352x128xf32, #tpu.memory_space<vmem>>, vector<16x128xf32>
    tpu.vector_store %arg11[%c127, %c0_16], %23 {strides = array<i32>} : memref<352x128xf32, #tpu.memory_space<vmem>>, vector<16x128xf32>,
    %25 = vector.extract_strided_slice %8 {offsets = [112, 0], sizes = [16, 128], strides = [1, 1]} : vector<256x128xf32> to vector<16x128xf32>
    %c145 = arith.constant 145 : index
    %c0_17 = arith.constant 0 : index
    %26 = vector.load %arg11[%c145, %c0_17] : memref<352x128xf32, #tpu.memory_space<vmem>>, vector<16x128xf32>
    tpu.vector_store %arg11[%c145, %c0_17], %25 {strides = array<i32>} : memref<352x128xf32, #tpu.memory_space<vmem>>, vector<16x128xf32>,
    %27 = vector.extract_strided_slice %8 {offsets = [128, 0], sizes = [16, 128], strides = [1, 1]} : vector<256x128xf32> to vector<16x128xf32>
    %c163 = arith.constant 163 : index
    %c0_18 = arith.constant 0 : index
    %28 = vector.load %arg11[%c163, %c0_18] : memref<352x128xf32, #tpu.memory_space<vmem>>, vector<16x128xf32>
    tpu.vector_store %arg11[%c163, %c0_18], %27 {strides = array<i32>} : memref<352x128xf32, #tpu.memory_space<vmem>>, vector<16x128xf32>,
    %29 = vector.extract_strided_slice %8 {offsets = [144, 0], sizes = [16, 128], strides = [1, 1]} : vector<256x128xf32> to vector<16x128xf32>
    %c181 = arith.constant 181 : index
    %c0_19 = arith.constant 0 : index
    %30 = vector.load %arg11[%c181, %c0_19] : memref<352x128xf32, #tpu.memory_space<vmem>>, vector<16x128xf32>
    tpu.vector_store %arg11[%c181, %c0_19], %29 {strides = array<i32>} : memref<352x128xf32, #tpu.memory_space<vmem>>, vector<16x128xf32>,
    %31 = vector.extract_strided_slice %8 {offsets = [160, 0], sizes = [16, 128], strides = [1, 1]} : vector<256x128xf32> to vector<16x128xf32>
    %c199 = arith.constant 199 : index
    %c0_20 = arith.constant 0 : index
    %32 = vector.load %arg11[%c199, %c0_20] : memref<352x128xf32, #tpu.memory_space<vmem>>, vector<16x128xf32>
    tpu.vector_store %arg11[%c199, %c0_20], %31 {strides = array<i32>} : memref<352x128xf32, #tpu.memory_space<vmem>>, vector<16x128xf32>,
    %33 = vector.extract_strided_slice %8 {offsets = [176, 0], sizes = [16, 128], strides = [1, 1]} : vector<256x128xf32> to vector<16x128xf32>
    %c217 = arith.constant 217 : index
    %c0_21 = arith.constant 0 : index
    %34 = vector.load %arg11[%c217, %c0_21] : memref<352x128xf32, #tpu.memory_space<vmem>>, vector<16x128xf32>
    tpu.vector_store %arg11[%c217, %c0_21], %33 {strides = array<i32>} : memref<352x128xf32, #tpu.memory_space<vmem>>, vector<16x128xf32>,
    %35 = vector.extract_strided_slice %8 {offsets = [192, 0], sizes = [16, 128], strides = [1, 1]} : vector<256x128xf32> to vector<16x128xf32>
    %c235 = arith.constant 235 : index
    %c0_22 = arith.constant 0 : index
    %36 = vector.load %arg11[%c235, %c0_22] : memref<352x128xf32, #tpu.memory_space<vmem>>, vector<16x128xf32>
    tpu.vector_store %arg11[%c235, %c0_22], %35 {strides = array<i32>} : memref<352x128xf32, #tpu.memory_space<vmem>>, vector<16x128xf32>,
    %37 = vector.extract_strided_slice %8 {offsets = [208, 0], sizes = [16, 128], strides = [1, 1]} : vector<256x128xf32> to vector<16x128xf32>
    %c253 = arith.constant 253 : index
    %c0_23 = arith.constant 0 : index
    %38 = vector.load %arg11[%c253, %c0_23] : memref<352x128xf32, #tpu.memory_space<vmem>>, vector<16x128xf32>
    tpu.vector_store %arg11[%c253, %c0_23], %37 {strides = array<i32>} : memref<352x128xf32, #tpu.memory_space<vmem>>, vector<16x128xf32>,
    %39 = vector.extract_strided_slice %8 {offsets = [224, 0], sizes = [16, 128], strides = [1, 1]} : vector<256x128xf32> to vector<16x128xf32>
    %c271 = arith.constant 271 : index
    %c0_24 = arith.constant 0 : index
    %40 = vector.load %arg11[%c271, %c0_24] : memref<352x128xf32, #tpu.memory_space<vmem>>, vector<16x128xf32>
    tpu.vector_store %arg11[%c271, %c0_24], %39 {strides = array<i32>} : memref<352x128xf32, #tpu.memory_space<vmem>>, vector<16x128xf32>,
    %41 = vector.extract_strided_slice %8 {offsets = [240, 0], sizes = [16, 128], strides = [1, 1]} : vector<256x128xf32> to vector<16x128xf32>
    %c289 = arith.constant 289 : index
    %c0_25 = arith.constant 0 : index
    %42 = vector.load %arg11[%c289, %c0_25] : memref<352x128xf32, #tpu.memory_space<vmem>>, vector<16x128xf32>
    tpu.vector_store %arg11[%c289, %c0_25], %41 {strides = array<i32>} : memref<352x128xf32, #tpu.memory_space<vmem>>, vector<16x128xf32>,
    %c0_26 = arith.constant 0 : index
    %c0_27 = arith.constant 0 : index
    %43 = vector.load %arg11[%c0_26, %c0_27] : memref<352x128xf32, #tpu.memory_space<vmem>>, vector<307x128xf32>
    %44 = arith.truncf %43 : vector<307x128xf32> to vector<307x128xbf16>
    %c1 = arith.constant 1 : index
    %c0_28 = arith.constant 0 : index
    %45 = vector.load %arg11[%c1, %c0_28] : memref<352x128xf32, #tpu.memory_space<vmem>>, vector<307x128xf32>
    %46 = arith.truncf %45 : vector<307x128xf32> to vector<307x128xbf16>
    %c2 = arith.constant 2 : index
    %c0_29 = arith.constant 0 : index
    %47 = vector.load %arg11[%c2, %c0_29] : memref<352x128xf32, #tpu.memory_space<vmem>>, vector<307x128xf32>
    %48 = arith.truncf %47 : vector<307x128xf32> to vector<307x128xbf16>
    %c18 = arith.constant 18 : index
    %c0_30 = arith.constant 0 : index
    %49 = vector.load %arg11[%c18, %c0_30] : memref<352x128xf32, #tpu.memory_space<vmem>>, vector<307x128xf32>
    %50 = arith.truncf %49 : vector<307x128xf32> to vector<307x128xbf16>
    %c19_31 = arith.constant 19 : index
    %c0_32 = arith.constant 0 : index
    %51 = vector.load %arg11[%c19_31, %c0_32] : memref<352x128xf32, #tpu.memory_space<vmem>>, vector<307x128xf32>
    %52 = arith.truncf %51 : vector<307x128xf32> to vector<307x128xbf16>
    %c20 = arith.constant 20 : index
    %c0_33 = arith.constant 0 : index
    %53 = vector.load %arg11[%c20, %c0_33] : memref<352x128xf32, #tpu.memory_space<vmem>>, vector<307x128xf32>
    %54 = arith.truncf %53 : vector<307x128xf32> to vector<307x128xbf16>
    %c36 = arith.constant 36 : index
    %c0_34 = arith.constant 0 : index
    %55 = vector.load %arg11[%c36, %c0_34] : memref<352x128xf32, #tpu.memory_space<vmem>>, vector<307x128xf32>
    %56 = arith.truncf %55 : vector<307x128xf32> to vector<307x128xbf16>
    %c37_35 = arith.constant 37 : index
    %c0_36 = arith.constant 0 : index
    %57 = vector.load %arg11[%c37_35, %c0_36] : memref<352x128xf32, #tpu.memory_space<vmem>>, vector<307x128xf32>
    %58 = arith.truncf %57 : vector<307x128xf32> to vector<307x128xbf16>
    %c38 = arith.constant 38 : index
    %c0_37 = arith.constant 0 : index
    %59 = vector.load %arg11[%c38, %c0_37] : memref<352x128xf32, #tpu.memory_space<vmem>>, vector<307x128xf32>
    %60 = arith.truncf %59 : vector<307x128xf32> to vector<307x128xbf16>
    %61 = tpu.concatenate %44, %46, %48, %50, %52, %54, %56, %58, %60 in 1 : vector<307x128xbf16>, vector<307x128xbf16>, vector<307x128xbf16>, vector<307x128xbf16>, vector<307x128xbf16>, vector<307x128xbf16>, vector<307x128xbf16>, vector<307x128xbf16>, vector<307x128xbf16> -> vector<307x1152xbf16>
    %c0_38 = arith.constant 0 : index
    %c0_39 = arith.constant 0 : index
    %62 = vector.load %arg4[%c0_38, %c0_39] : memref<1152x128xbf16, #tpu.memory_space<vmem>>, vector<1152x128xbf16>
    %cst_40 = arith.constant dense<0.000000e+00> : vector<307x128xf32>
    %63 = tpu.matmul %61, %62, %cst_40 {dimension_numbers = #tpu.dot_dimension_numbers<[1], [0], [0], [1], [0, 0, 1, 1], [], []>} : vector<307x1152xbf16>, vector<1152x128xbf16>, vector<307x128xf32> -> vector<307x128xf32>
    %c0_41 = arith.constant 0 : index
    %c0_42 = arith.constant 0 : index
    %64 = vector.load %arg5[%c0_41, %c0_42] : memref<1x128xf32, #tpu.memory_space<vmem>>, vector<1x128xf32>
    %65 = vector.broadcast %64 : vector<1x128xf32> to vector<307x128xf32>
    %66 = arith.addf %63, %65 : vector<307x128xf32>
    %cst_43 = arith.constant 0.000000e+00 : f32
    %67 = vector.broadcast %cst_43 : f32 to vector<307x128xf32>
    %68 = arith.maximumf %66, %67 : vector<307x128xf32>
    %69 = vector.extract_strided_slice %68 {offsets = [0, 0], sizes = [306, 128], strides = [1, 1]} : vector<307x128xf32> to vector<306x128xf32>
    %70 = vector.extract_strided_slice %68 {offsets = [1, 0], sizes = [306, 128], strides = [1, 1]} : vector<307x128xf32> to vector<306x128xf32>
    %71 = arith.maximumf %69, %70 : vector<306x128xf32>
    %72 = vector.extract_strided_slice %71 {offsets = [0, 0], sizes = [288, 128], strides = [1, 1]} : vector<306x128xf32> to vector<288x128xf32>
    %73 = vector.extract_strided_slice %71 {offsets = [18, 0], sizes = [288, 128], strides = [1, 1]} : vector<306x128xf32> to vector<288x128xf32>
    %74 = arith.maximumf %72, %73 : vector<288x128xf32>
    %c0_44 = arith.constant 0 : index
    %c0_45 = arith.constant 0 : index
    %75 = vector.load %arg8[%c0_44, %c0_45] : memref<64x288xbf16, #tpu.memory_space<vmem>>, vector<64x288xbf16>
    %76 = arith.truncf %74 : vector<288x128xf32> to vector<288x128xbf16>
    %cst_46 = arith.constant dense<0.000000e+00> : vector<64x128xf32>
    %77 = tpu.matmul %75, %76, %cst_46 {dimension_numbers = #tpu.dot_dimension_numbers<[1], [0], [0], [1], [0, 0, 1, 1], [], []>} : vector<64x288xbf16>, vector<288x128xbf16>, vector<64x128xf32> -> vector<64x128xf32>
    %cst_47 = arith.constant 0.000000e+00 : f32
    %78 = vector.broadcast %cst_47 : f32 to vector<120x128xf32>
    %c0_48 = arith.constant 0 : index
    %c0_49 = arith.constant 0 : index
    %79 = vector.load %arg12[%c0_48, %c0_49] : memref<120x128xf32, #tpu.memory_space<vmem>>, vector<120x128xf32>
    tpu.vector_store %arg12[%c0_48, %c0_49], %78 {strides = array<i32>} : memref<120x128xf32, #tpu.memory_space<vmem>>, vector<120x128xf32>,
    %80 = vector.extract_strided_slice %77 {offsets = [0, 0], sizes = [8, 128], strides = [1, 1]} : vector<64x128xf32> to vector<8x128xf32>
    %c11 = arith.constant 11 : index
    %c0_50 = arith.constant 0 : index
    %81 = vector.load %arg12[%c11, %c0_50] : memref<120x128xf32, #tpu.memory_space<vmem>>, vector<8x128xf32>
    tpu.vector_store %arg12[%c11, %c0_50], %80 {strides = array<i32>} : memref<120x128xf32, #tpu.memory_space<vmem>>, vector<8x128xf32>,
    %82 = vector.extract_strided_slice %77 {offsets = [8, 0], sizes = [8, 128], strides = [1, 1]} : vector<64x128xf32> to vector<8x128xf32>
    %c21 = arith.constant 21 : index
    %c0_51 = arith.constant 0 : index
    %83 = vector.load %arg12[%c21, %c0_51] : memref<120x128xf32, #tpu.memory_space<vmem>>, vector<8x128xf32>
    tpu.vector_store %arg12[%c21, %c0_51], %82 {strides = array<i32>} : memref<120x128xf32, #tpu.memory_space<vmem>>, vector<8x128xf32>,
    %84 = vector.extract_strided_slice %77 {offsets = [16, 0], sizes = [8, 128], strides = [1, 1]} : vector<64x128xf32> to vector<8x128xf32>
    %c31 = arith.constant 31 : index
    %c0_52 = arith.constant 0 : index
    %85 = vector.load %arg12[%c31, %c0_52] : memref<120x128xf32, #tpu.memory_space<vmem>>, vector<8x128xf32>
    tpu.vector_store %arg12[%c31, %c0_52], %84 {strides = array<i32>} : memref<120x128xf32, #tpu.memory_space<vmem>>, vector<8x128xf32>,
    %86 = vector.extract_strided_slice %77 {offsets = [24, 0], sizes = [8, 128], strides = [1, 1]} : vector<64x128xf32> to vector<8x128xf32>
    %c41 = arith.constant 41 : index
    %c0_53 = arith.constant 0 : index
    %87 = vector.load %arg12[%c41, %c0_53] : memref<120x128xf32, #tpu.memory_space<vmem>>, vector<8x128xf32>
    tpu.vector_store %arg12[%c41, %c0_53], %86 {strides = array<i32>} : memref<120x128xf32, #tpu.memory_space<vmem>>, vector<8x128xf32>,
    %88 = vector.extract_strided_slice %77 {offsets = [32, 0], sizes = [8, 128], strides = [1, 1]} : vector<64x128xf32> to vector<8x128xf32>
    %c51 = arith.constant 51 : index
    %c0_54 = arith.constant 0 : index
    %89 = vector.load %arg12[%c51, %c0_54] : memref<120x128xf32, #tpu.memory_space<vmem>>, vector<8x128xf32>
    tpu.vector_store %arg12[%c51, %c0_54], %88 {strides = array<i32>} : memref<120x128xf32, #tpu.memory_space<vmem>>, vector<8x128xf32>,
    %90 = vector.extract_strided_slice %77 {offsets = [40, 0], sizes = [8, 128], strides = [1, 1]} : vector<64x128xf32> to vector<8x128xf32>
    %c61 = arith.constant 61 : index
    %c0_55 = arith.constant 0 : index
    %91 = vector.load %arg12[%c61, %c0_55] : memref<120x128xf32, #tpu.memory_space<vmem>>, vector<8x128xf32>
    tpu.vector_store %arg12[%c61, %c0_55], %90 {strides = array<i32>} : memref<120x128xf32, #tpu.memory_space<vmem>>, vector<8x128xf32>,
    %92 = vector.extract_strided_slice %77 {offsets = [48, 0], sizes = [8, 128], strides = [1, 1]} : vector<64x128xf32> to vector<8x128xf32>
    %c71 = arith.constant 71 : index
    %c0_56 = arith.constant 0 : index
    %93 = vector.load %arg12[%c71, %c0_56] : memref<120x128xf32, #tpu.memory_space<vmem>>, vector<8x128xf32>
    tpu.vector_store %arg12[%c71, %c0_56], %92 {strides = array<i32>} : memref<120x128xf32, #tpu.memory_space<vmem>>, vector<8x128xf32>,
    %94 = vector.extract_strided_slice %77 {offsets = [56, 0], sizes = [8, 128], strides = [1, 1]} : vector<64x128xf32> to vector<8x128xf32>
    %c81 = arith.constant 81 : index
    %c0_57 = arith.constant 0 : index
    %95 = vector.load %arg12[%c81, %c0_57] : memref<120x128xf32, #tpu.memory_space<vmem>>, vector<8x128xf32>
    tpu.vector_store %arg12[%c81, %c0_57], %94 {strides = array<i32>} : memref<120x128xf32, #tpu.memory_space<vmem>>, vector<8x128xf32>,
    %c0_58 = arith.constant 0 : index
    %c0_59 = arith.constant 0 : index
    %96 = vector.load %arg12[%c0_58, %c0_59] : memref<120x128xf32, #tpu.memory_space<vmem>>, vector<91x128xf32>
    %97 = arith.truncf %96 : vector<91x128xf32> to vector<91x128xbf16>
    %c1_60 = arith.constant 1 : index
    %c0_61 = arith.constant 0 : index
    %98 = vector.load %arg12[%c1_60, %c0_61] : memref<120x128xf32, #tpu.memory_space<vmem>>, vector<91x128xf32>
    %99 = arith.truncf %98 : vector<91x128xf32> to vector<91x128xbf16>
    %c2_62 = arith.constant 2 : index
    %c0_63 = arith.constant 0 : index
    %100 = vector.load %arg12[%c2_62, %c0_63] : memref<120x128xf32, #tpu.memory_space<vmem>>, vector<91x128xf32>
    %101 = arith.truncf %100 : vector<91x128xf32> to vector<91x128xbf16>
    %c10 = arith.constant 10 : index
    %c0_64 = arith.constant 0 : index
    %102 = vector.load %arg12[%c10, %c0_64] : memref<120x128xf32, #tpu.memory_space<vmem>>, vector<91x128xf32>
    %103 = arith.truncf %102 : vector<91x128xf32> to vector<91x128xbf16>
    %c11_65 = arith.constant 11 : index
    %c0_66 = arith.constant 0 : index
    %104 = vector.load %arg12[%c11_65, %c0_66] : memref<120x128xf32, #tpu.memory_space<vmem>>, vector<91x128xf32>
    %105 = arith.truncf %104 : vector<91x128xf32> to vector<91x128xbf16>
    %c12 = arith.constant 12 : index
    %c0_67 = arith.constant 0 : index
    %106 = vector.load %arg12[%c12, %c0_67] : memref<120x128xf32, #tpu.memory_space<vmem>>, vector<91x128xf32>
    %107 = arith.truncf %106 : vector<91x128xf32> to vector<91x128xbf16>
    %c20_68 = arith.constant 20 : index
    %c0_69 = arith.constant 0 : index
    %108 = vector.load %arg12[%c20_68, %c0_69] : memref<120x128xf32, #tpu.memory_space<vmem>>, vector<91x128xf32>
    %109 = arith.truncf %108 : vector<91x128xf32> to vector<91x128xbf16>
    %c21_70 = arith.constant 21 : index
    %c0_71 = arith.constant 0 : index
    %110 = vector.load %arg12[%c21_70, %c0_71] : memref<120x128xf32, #tpu.memory_space<vmem>>, vector<91x128xf32>
    %111 = arith.truncf %110 : vector<91x128xf32> to vector<91x128xbf16>
    %c22 = arith.constant 22 : index
    %c0_72 = arith.constant 0 : index
    %112 = vector.load %arg12[%c22, %c0_72] : memref<120x128xf32, #tpu.memory_space<vmem>>, vector<91x128xf32>
    %113 = arith.truncf %112 : vector<91x128xf32> to vector<91x128xbf16>
    %114 = tpu.concatenate %97, %99, %101, %103, %105, %107, %109, %111, %113 in 1 : vector<91x128xbf16>, vector<91x128xbf16>, vector<91x128xbf16>, vector<91x128xbf16>, vector<91x128xbf16>, vector<91x128xbf16>, vector<91x128xbf16>, vector<91x128xbf16>, vector<91x128xbf16> -> vector<91x1152xbf16>
    %c0_73 = arith.constant 0 : index
    %c0_74 = arith.constant 0 : index
    %115 = vector.load %arg6[%c0_73, %c0_74] : memref<1152x128xbf16, #tpu.memory_space<vmem>>, vector<1152x128xbf16>
    %cst_75 = arith.constant dense<0.000000e+00> : vector<91x128xf32>
    %116 = tpu.matmul %114, %115, %cst_75 {dimension_numbers = #tpu.dot_dimension_numbers<[1], [0], [0], [1], [0, 0, 1, 1], [], []>} : vector<91x1152xbf16>, vector<1152x128xbf16>, vector<91x128xf32> -> vector<91x128xf32>
    %c0_76 = arith.constant 0 : index
    %c0_77 = arith.constant 0 : index
    %117 = vector.load %arg7[%c0_76, %c0_77] : memref<1x128xf32, #tpu.memory_space<vmem>>, vector<1x128xf32>
    %118 = vector.broadcast %117 : vector<1x128xf32> to vector<91x128xf32>
    %119 = arith.addf %116, %118 : vector<91x128xf32>
    %cst_78 = arith.constant 0.000000e+00 : f32
    %120 = vector.broadcast %cst_78 : f32 to vector<91x128xf32>
    %121 = arith.maximumf %119, %120 : vector<91x128xf32>
    %122 = vector.extract_strided_slice %121 {offsets = [0, 0], sizes = [90, 128], strides = [1, 1]} : vector<91x128xf32> to vector<90x128xf32>
    %123 = vector.extract_strided_slice %121 {offsets = [1, 0], sizes = [90, 128], strides = [1, 1]} : vector<91x128xf32> to vector<90x128xf32>
    %124 = arith.maximumf %122, %123 : vector<90x128xf32>
    %125 = vector.extract_strided_slice %124 {offsets = [0, 0], sizes = [80, 128], strides = [1, 1]} : vector<90x128xf32> to vector<80x128xf32>
    %126 = vector.extract_strided_slice %124 {offsets = [10, 0], sizes = [80, 128], strides = [1, 1]} : vector<90x128xf32> to vector<80x128xf32>
    %127 = arith.maximumf %125, %126 : vector<80x128xf32>
    %c0_79 = arith.constant 0 : index
    %c0_80 = arith.constant 0 : index
    %128 = vector.load %arg9[%c0_79, %c0_80] : memref<16x80xbf16, #tpu.memory_space<vmem>>, vector<16x80xbf16>
    %129 = arith.truncf %127 : vector<80x128xf32> to vector<80x128xbf16>
    %cst_81 = arith.constant dense<0.000000e+00> : vector<16x128xf32>
    %130 = tpu.matmul %128, %129, %cst_81 {dimension_numbers = #tpu.dot_dimension_numbers<[1], [0], [0], [1], [0, 0, 1, 1], [], []>} : vector<16x80xbf16>, vector<80x128xbf16>, vector<16x128xf32> -> vector<16x128xf32>
    %131 = arith.truncf %130 : vector<16x128xf32> to vector<16x128xbf16>
    %c0_82 = arith.constant 0 : index
    %c0_83 = arith.constant 0 : index
    %c0_84 = arith.constant 0 : index
    %132 = vector.load %arg10[%c0_82, %c0_83, %c0_84] : memref<1x16x128xbf16, #tpu.memory_space<vmem>>, vector<1x16x128xbf16>
    %133 = vector.shape_cast %132 : vector<1x16x128xbf16> to vector<16x128xbf16>
    %134 = vector.shape_cast %131 : vector<16x128xbf16> to vector<1x16x128xbf16>
    tpu.vector_store %arg10[%c0_82, %c0_83, %c0_84], %134 {strides = array<i32>} : memref<1x16x128xbf16, #tpu.memory_space<vmem>>, vector<1x16x128xbf16>,
    return
  }
  func.func @transform_0(%arg0: i32) -> (i32, i32, i32) {
    %c0_i32 = arith.constant 0 : i32
    %c0_i32_0 = arith.constant 0 : i32
    %c0_i32_1 = arith.constant 0 : i32
    return %arg0, %c0_i32, %c0_i32_0 : i32, i32, i32
  }
  func.func @transform_1(%arg0: i32) -> (i32, i32) {
    %c0_i32 = arith.constant 0 : i32
    %c0_i32_0 = arith.constant 0 : i32
    %c0_i32_1 = arith.constant 0 : i32
    return %c0_i32, %c0_i32_0 : i32, i32
  }
  func.func @transform_2(%arg0: i32) -> (i32, i32) {
    %c0_i32 = arith.constant 0 : i32
    %c0_i32_0 = arith.constant 0 : i32
    %c0_i32_1 = arith.constant 0 : i32
    return %c0_i32, %c0_i32_0 : i32, i32
  }
  func.func @transform_3(%arg0: i32) -> (i32, i32) {
    %c0_i32 = arith.constant 0 : i32
    %c0_i32_0 = arith.constant 0 : i32
    %c0_i32_1 = arith.constant 0 : i32
    return %c0_i32, %c0_i32_0 : i32, i32
  }
  func.func @transform_4(%arg0: i32) -> (i32, i32) {
    %c0_i32 = arith.constant 0 : i32
    %c0_i32_0 = arith.constant 0 : i32
    %c0_i32_1 = arith.constant 0 : i32
    return %c0_i32, %c0_i32_0 : i32, i32
  }
  func.func @transform_5(%arg0: i32) -> (i32, i32) {
    %c0_i32 = arith.constant 0 : i32
    %c0_i32_0 = arith.constant 0 : i32
    %c0_i32_1 = arith.constant 0 : i32
    return %c0_i32, %c0_i32_0 : i32, i32
  }
  func.func @transform_6(%arg0: i32) -> (i32, i32) {
    %c0_i32 = arith.constant 0 : i32
    %c0_i32_0 = arith.constant 0 : i32
    %c0_i32_1 = arith.constant 0 : i32
    return %c0_i32, %c0_i32_0 : i32, i32
  }
  func.func @transform_7(%arg0: i32) -> (i32, i32) {
    %c0_i32 = arith.constant 0 : i32
    %c0_i32_0 = arith.constant 0 : i32
    %c0_i32_1 = arith.constant 0 : i32
    return %c0_i32, %c0_i32_0 : i32, i32
  }
  func.func @transform_8(%arg0: i32) -> (i32, i32) {
    %c0_i32 = arith.constant 0 : i32
    %c0_i32_0 = arith.constant 0 : i32
    %c0_i32_1 = arith.constant 0 : i32
    return %c0_i32, %c0_i32_0 : i32, i32
  }
  func.func @transform_9(%arg0: i32) -> (i32, i32, i32) {
    %c0_i32 = arith.constant 0 : i32
    %c0_i32_0 = arith.constant 0 : i32
    %c0_i32_1 = arith.constant 0 : i32
    return %arg0, %c0_i32, %c0_i32_0 : i32, i32, i32
  }
}

module attributes {stable_mosaic.version = 11 : i64} {
  func.func @_head_kernel(%arg0: memref<8x2048xbf16, #tpu.memory_space<vmem>>, %arg1: memref<2048x128xbf16, #tpu.memory_space<vmem>>, %arg2: memref<1x128xf32, #tpu.memory_space<vmem>>, %arg3: memref<128x128xbf16, #tpu.memory_space<vmem>>, %arg4: memref<1x128xf32, #tpu.memory_space<vmem>>, %arg5: memref<128x128xbf16, #tpu.memory_space<vmem>>, %arg6: memref<1x128xf32, #tpu.memory_space<vmem>>, %arg7: memref<8x128xf32, #tpu.memory_space<vmem>>) attributes {dimension_semantics = [], scalar_prefetch = 0 : i64, scratch_operands = 0 : i64, tpu.core_type = #tpu.core_type<tc>} {
    %c0 = arith.constant 0 : index
    %c0_0 = arith.constant 0 : index
    %0 = vector.load %arg0[%c0, %c0_0] : memref<8x2048xbf16, #tpu.memory_space<vmem>>, vector<8x2048xbf16>
    %c0_1 = arith.constant 0 : index
    %c0_2 = arith.constant 0 : index
    %1 = vector.load %arg1[%c0_1, %c0_2] : memref<2048x128xbf16, #tpu.memory_space<vmem>>, vector<2048x128xbf16>
    %cst = arith.constant dense<0.000000e+00> : vector<8x128xf32>
    %2 = tpu.matmul %0, %1, %cst {dimension_numbers = #tpu.dot_dimension_numbers<[1], [0], [0], [1], [0, 0, 1, 1], [], []>} : vector<8x2048xbf16>, vector<2048x128xbf16>, vector<8x128xf32> -> vector<8x128xf32>
    %c0_3 = arith.constant 0 : index
    %c0_4 = arith.constant 0 : index
    %3 = vector.load %arg2[%c0_3, %c0_4] : memref<1x128xf32, #tpu.memory_space<vmem>>, vector<1x128xf32>
    %4 = vector.broadcast %3 : vector<1x128xf32> to vector<8x128xf32>
    %5 = arith.addf %2, %4 : vector<8x128xf32>
    %cst_5 = arith.constant 0.000000e+00 : f32
    %6 = vector.broadcast %cst_5 : f32 to vector<8x128xf32>
    %7 = arith.maximumf %5, %6 : vector<8x128xf32>
    %8 = arith.truncf %7 : vector<8x128xf32> to vector<8x128xbf16>
    %c0_6 = arith.constant 0 : index
    %c0_7 = arith.constant 0 : index
    %9 = vector.load %arg3[%c0_6, %c0_7] : memref<128x128xbf16, #tpu.memory_space<vmem>>, vector<128x128xbf16>
    %cst_8 = arith.constant dense<0.000000e+00> : vector<8x128xf32>
    %10 = tpu.matmul %8, %9, %cst_8 {dimension_numbers = #tpu.dot_dimension_numbers<[1], [0], [0], [1], [0, 0, 1, 1], [], []>} : vector<8x128xbf16>, vector<128x128xbf16>, vector<8x128xf32> -> vector<8x128xf32>
    %c0_9 = arith.constant 0 : index
    %c0_10 = arith.constant 0 : index
    %11 = vector.load %arg4[%c0_9, %c0_10] : memref<1x128xf32, #tpu.memory_space<vmem>>, vector<1x128xf32>
    %12 = vector.broadcast %11 : vector<1x128xf32> to vector<8x128xf32>
    %13 = arith.addf %10, %12 : vector<8x128xf32>
    %cst_11 = arith.constant 0.000000e+00 : f32
    %14 = vector.broadcast %cst_11 : f32 to vector<8x128xf32>
    %15 = arith.maximumf %13, %14 : vector<8x128xf32>
    %16 = arith.truncf %15 : vector<8x128xf32> to vector<8x128xbf16>
    %c0_12 = arith.constant 0 : index
    %c0_13 = arith.constant 0 : index
    %17 = vector.load %arg5[%c0_12, %c0_13] : memref<128x128xbf16, #tpu.memory_space<vmem>>, vector<128x128xbf16>
    %cst_14 = arith.constant dense<0.000000e+00> : vector<8x128xf32>
    %18 = tpu.matmul %16, %17, %cst_14 {dimension_numbers = #tpu.dot_dimension_numbers<[1], [0], [0], [1], [0, 0, 1, 1], [], []>} : vector<8x128xbf16>, vector<128x128xbf16>, vector<8x128xf32> -> vector<8x128xf32>
    %c0_15 = arith.constant 0 : index
    %c0_16 = arith.constant 0 : index
    %19 = vector.load %arg6[%c0_15, %c0_16] : memref<1x128xf32, #tpu.memory_space<vmem>>, vector<1x128xf32>
    %20 = vector.broadcast %19 : vector<1x128xf32> to vector<8x128xf32>
    %21 = arith.addf %18, %20 : vector<8x128xf32>
    %22 = arith.mulf %21, %21 : vector<8x128xf32>
    %cst_17 = arith.constant dense<0.000000e+00> : vector<8xf32>
    %23 = vector.multi_reduction <add>, %22, %cst_17 [1] : vector<8x128xf32> to vector<8xf32>
    %24 = vector.shape_cast %23 : vector<8xf32> to vector<8x1xf32>
    %cst_18 = arith.constant 9.99999996E-13 : f32
    %25 = vector.broadcast %cst_18 : f32 to vector<8x1xf32>
    %26 = arith.addf %24, %25 : vector<8x1xf32>
    %27 = math.rsqrt %26 : vector<8x1xf32>
    %28 = vector.broadcast %27 : vector<8x1xf32> to vector<8x128xf32>
    %29 = arith.mulf %21, %28 : vector<8x128xf32>
    %c0_19 = arith.constant 0 : index
    %c0_20 = arith.constant 0 : index
    %30 = vector.load %arg7[%c0_19, %c0_20] : memref<8x128xf32, #tpu.memory_space<vmem>>, vector<8x128xf32>
    tpu.vector_store %arg7[%c0_19, %c0_20], %29 {strides = array<i32>} : memref<8x128xf32, #tpu.memory_space<vmem>>, vector<8x128xf32>,
    return
  }
}

</mosaic_0001>

<llo_original>
// kernel: img_encoder_forward.3
$region0: #{img_encoder_forward.3}
  #allocation0 [shape = 'u32[]', space=smem, size = 0x4, offset = 0x4, fixed_abs, tag = 'smem constant byte address 0x4 - core index']
  #allocation1 [shape = 'u32[144,128]{1,0:T(1,128)}', space=vmem, size = 0x12000, scoped, tag = 'internal scratch']
  %s0 = inlined_call_operand.vmem [shape: bf16[8,2048], index: 0, kind: input, shape index: {}]
  %s1 = inlined_call_operand.vmem [shape: bf16[2048,128], index: 1, kind: input, shape index: {}]
  %s2 = inlined_call_operand.vmem [shape: f32[1,128], index: 2, kind: input, shape index: {}]
  %s3 = inlined_call_operand.vmem [shape: bf16[128,128], index: 3, kind: input, shape index: {}]
  %s4 = inlined_call_operand.vmem [shape: f32[1,128], index: 4, kind: input, shape index: {}]
  %s5 = inlined_call_operand.vmem [shape: bf16[128,128], index: 5, kind: input, shape index: {}]
  %s6 = inlined_call_operand.vmem [shape: f32[1,128], index: 6, kind: input, shape index: {}]
  %s7 = inlined_call_operand.vmem [shape: f32[8,128], index: 7, kind: output, shape index: {}]
  %s8 = sld [smem:[#allocation0]]
  $region38: #{img_encoder_forward.3} parent=0
    _
  %s10 = ssub.s32 1, %s8
  %s11 = scalar_select 0, %s10, %s8
  // Predicated region
  $region2: #{img_encoder_forward.3} parent=0 // pred_check
    _
  $region3: #{img_encoder_forward.3} parent=0 // pred_check_branch
    %13 = sbr.rel (0) target = $region5
  $region4: #{img_encoder_forward.3} parent=0 // pred_region
    _
  $region5: #{img_encoder_forward.3} parent=0 // pred_fallthru
    _
  // Predicated region
  $region6: #{img_encoder_forward.3} parent=0 // pred_check
    _
  $region7: #{img_encoder_forward.3} parent=0 // pred_check_branch
    %15 = sbr.rel (0) target = $region9
  $region8: #{img_encoder_forward.3} parent=0 // pred_region
    _
  $region9: #{img_encoder_forward.3} parent=0 // pred_fallthru
    _
  // Predicated region
  $region10: #{img_encoder_forward.3} parent=0 // pred_check
    _
  $region11: #{img_encoder_forward.3} parent=0 // pred_check_branch
    %17 = sbr.rel (0) target = $region13
  $region12: #{img_encoder_forward.3} parent=0 // pred_region
    _
  $region13: #{img_encoder_forward.3} parent=0 // pred_fallthru
    _
  // Predicated region
  $region14: #{img_encoder_forward.3} parent=0 // pred_check
    _
  $region15: #{img_encoder_forward.3} parent=0 // pred_check_branch
    %19 = sbr.rel (0) target = $region17
  $region16: #{img_encoder_forward.3} parent=0 // pred_region
    _
  $region17: #{img_encoder_forward.3} parent=0 // pred_fallthru
    _
  // Predicated region
  $region18: #{img_encoder_forward.3} parent=0 // pred_check
    _
  $region19: #{img_encoder_forward.3} parent=0 // pred_check_branch
    %21 = sbr.rel (0) target = $region21
  $region20: #{img_encoder_forward.3} parent=0 // pred_region
    _
  $region21: #{img_encoder_forward.3} parent=0 // pred_fallthru
    _
  // Predicated region
  $region22: #{img_encoder_forward.3} parent=0 // pred_check
    _
  $region23: #{img_encoder_forward.3} parent=0 // pred_check_branch
    %23 = sbr.rel (0) target = $region25
  $region24: #{img_encoder_forward.3} parent=0 // pred_region
    _
  $region25: #{img_encoder_forward.3} parent=0 // pred_fallthru
    _
  // Predicated region
  $region26: #{img_encoder_forward.3} parent=0 // pred_check
    _
  $region27: #{img_encoder_forward.3} parent=0 // pred_check_branch
    %25 = sbr.rel (0) target = $region29
  $region28: #{img_encoder_forward.3} parent=0 // pred_region
    _
  $region29: #{img_encoder_forward.3} parent=0 // pred_fallthru
    _
  %v27 = vld [vmem:[%s0] sm:$0xff]
  %v28 = vld [vmem:[%s0 + $0x8] sm:$0xff]
  %v29 = vld [vmem:[%s0 + $0x10] sm:$0xff]
  %v30 = vld [vmem:[%s0 + $0x18] sm:$0xff]
  %v31 = vld [vmem:[%s0 + $0x20] sm:$0xff]
  %v32 = vld [vmem:[%s0 + $0x28] sm:$0xff]
  %v33 = vld [vmem:[%s0 + $0x30] sm:$0xff]
  %v34 = vld [vmem:[%s0 + $0x38] sm:$0xff]
  %v35 = vld [vmem:[%s1] sm:$0xf]
  %v36 = vld [vmem:[%s1 + $0x4] sm:$0xf]
  %v37 = vld [vmem:[%s1 + $0x8] sm:$0xf]
  %v38 = vld [vmem:[%s1 + $0xc] sm:$0xf]
  %v39 = vld [vmem:[%s1 + $0x10] sm:$0xf]
  %v40 = vld [vmem:[%s1 + $0x14] sm:$0xf]
  %v41 = vld [vmem:[%s1 + $0x18] sm:$0xf]
  %v42 = vld [vmem:[%s1 + $0x1c] sm:$0xf]
  %v43 = vld [vmem:[%s1 + $0x20] sm:$0xf]
  %v44 = vld [vmem:[%s1 + $0x24] sm:$0xf]
  %v45 = vld [vmem:[%s1 + $0x28] sm:$0xf]
  %v46 = vld [vmem:[%s1 + $0x2c] sm:$0xf]
  %v47 = vld [vmem:[%s1 + $0x30] sm:$0xf]
  %v48 = vld [vmem:[%s1 + $0x34] sm:$0xf]
  %v49 = vld [vmem:[%s1 + $0x38] sm:$0xf]
  %v50 = vld [vmem:[%s1 + $0x3c] sm:$0xf]
  %v51 = vld [vmem:[%s1 + $0x40] sm:$0xf]
  %v52 = vld [vmem:[%s1 + $0x44] sm:$0xf]
  %v53 = vld [vmem:[%s1 + $0x48] sm:$0xf]
  %v54 = vld [vmem:[%s1 + $0x4c] sm:$0xf]
  %v55 = vld [vmem:[%s1 + $0x50] sm:$0xf]
  %v56 = vld [vmem:[%s1 + $0x54] sm:$0xf]
  %v57 = vld [vmem:[%s1 + $0x58] sm:$0xf]
  %v58 = vld [vmem:[%s1 + $0x5c] sm:$0xf]
  %v59 = vld [vmem:[%s1 + $0x60] sm:$0xf]
  %v60 = vld [vmem:[%s1 + $0x64] sm:$0xf]
  %v61 = vld [vmem:[%s1 + $0x68] sm:$0xf]
  %v62 = vld [vmem:[%s1 + $0x6c] sm:$0xf]
  %v63 = vld [vmem:[%s1 + $0x70] sm:$0xf]
  %v64 = vld [vmem:[%s1 + $0x74] sm:$0xf]
  %v65 = vld [vmem:[%s1 + $0x78] sm:$0xf]
  %v66 = vld [vmem:[%s1 + $0x7c] sm:$0xf]
  %v67 = vld [vmem:[%s1 + $0x80] sm:$0xf]
  %v68 = vld [vmem:[%s1 + $0x84] sm:$0xf]
  %v69 = vld [vmem:[%s1 + $0x88] sm:$0xf]
  %v70 = vld [vmem:[%s1 + $0x8c] sm:$0xf]
  %v71 = vld [vmem:[%s1 + $0x90] sm:$0xf]
  %v72 = vld [vmem:[%s1 + $0x94] sm:$0xf]
  %v73 = vld [vmem:[%s1 + $0x98] sm:$0xf]
  %v74 = vld [vmem:[%s1 + $0x9c] sm:$0xf]
  %v75 = vld [vmem:[%s1 + $0xa0] sm:$0xf]
  %v76 = vld [vmem:[%s1 + $0xa4] sm:$0xf]
  %v77 = vld [vmem:[%s1 + $0xa8] sm:$0xf]
  %v78 = vld [vmem:[%s1 + $0xac] sm:$0xf]
  %v79 = vld [vmem:[%s1 + $0xb0] sm:$0xf]
  %v80 = vld [vmem:[%s1 + $0xb4] sm:$0xf]
  %v81 = vld [vmem:[%s1 + $0xb8] sm:$0xf]
  %v82 = vld [vmem:[%s1 + $0xbc] sm:$0xf]
  %v83 = vld [vmem:[%s1 + $0xc0] sm:$0xf]
  %v84 = vld [vmem:[%s1 + $0xc4] sm:$0xf]
  %v85 = vld [vmem:[%s1 + $0xc8] sm:$0xf]
  %v86 = vld [vmem:[%s1 + $0xcc] sm:$0xf]
  %v87 = vld [vmem:[%s1 + $0xd0] sm:$0xf]
  %v88 = vld [vmem:[%s1 + $0xd4] sm:$0xf]
  %v89 = vld [vmem:[%s1 + $0xd8] sm:$0xf]
  %v90 = vld [vmem:[%s1 + $0xdc] sm:$0xf]
  %v91 = vld [vmem:[%s1 + $0xe0] sm:$0xf]
  %v92 = vld [vmem:[%s1 + $0xe4] sm:$0xf]
  %v93 = vld [vmem:[%s1 + $0xe8] sm:$0xf]
  %v94 = vld [vmem:[%s1 + $0xec] sm:$0xf]
  %v95 = vld [vmem:[%s1 + $0xf0] sm:$0xf]
  %v96 = vld [vmem:[%s1 + $0xf4] sm:$0xf]
  %v97 = vld [vmem:[%s1 + $0xf8] sm:$0xf]
  %v98 = vld [vmem:[%s1 + $0xfc] sm:$0xf]
  %v99 = vld [vmem:[%s1 + $0x100] sm:$0xf]
  %v100 = vld [vmem:[%s1 + $0x104] sm:$0xf]
  %v101 = vld [vmem:[%s1 + $0x108] sm:$0xf]
  %v102 = vld [vmem:[%s1 + $0x10c] sm:$0xf]
  %v103 = vld [vmem:[%s1 + $0x110] sm:$0xf]
  %v104 = vld [vmem:[%s1 + $0x114] sm:$0xf]
  %v105 = vld [vmem:[%s1 + $0x118] sm:$0xf]
  %v106 = vld [vmem:[%s1 + $0x11c] sm:$0xf]
  %v107 = vld [vmem:[%s1 + $0x120] sm:$0xf]
  %v108 = vld [vmem:[%s1 + $0x124] sm:$0xf]
  %v109 = vld [vmem:[%s1 + $0x128] sm:$0xf]
  %v110 = vld [vmem:[%s1 + $0x12c] sm:$0xf]
  %v111 = vld [vmem:[%s1 + $0x130] sm:$0xf]
  %v112 = vld [vmem:[%s1 + $0x134] sm:$0xf]
  %v113 = vld [vmem:[%s1 + $0x138] sm:$0xf]
  %v114 = vld [vmem:[%s1 + $0x13c] sm:$0xf]
  %v115 = vld [vmem:[%s1 + $0x140] sm:$0xf]
  %v116 = vld [vmem:[%s1 + $0x144] sm:$0xf]
  %v117 = vld [vmem:[%s1 + $0x148] sm:$0xf]
  %v118 = vld [vmem:[%s1 + $0x14c] sm:$0xf]
  %v119 = vld [vmem:[%s1 + $0x150] sm:$0xf]
  %v120 = vld [vmem:[%s1 + $0x154] sm:$0xf]
  %v121 = vld [vmem:[%s1 + $0x158] sm:$0xf]
  %v122 = vld [vmem:[%s1 + $0x15c] sm:$0xf]
  %v123 = vld [vmem:[%s1 + $0x160] sm:$0xf]
  %v124 = vld [vmem:[%s1 + $0x164] sm:$0xf]
  %v125 = vld [vmem:[%s1 + $0x168] sm:$0xf]
  %v126 = vld [vmem:[%s1 + $0x16c] sm:$0xf]
  %v127 = vld [vmem:[%s1 + $0x170] sm:$0xf]
  %v128 = vld [vmem:[%s1 + $0x174] sm:$0xf]
  %v129 = vld [vmem:[%s1 + $0x178] sm:$0xf]
  %v130 = vld [vmem:[%s1 + $0x17c] sm:$0xf]
  %v131 = vld [vmem:[%s1 + $0x180] sm:$0xf]
  %v132 = vld [vmem:[%s1 + $0x184] sm:$0xf]
  %v133 = vld [vmem:[%s1 + $0x188] sm:$0xf]
  %v134 = vld [vmem:[%s1 + $0x18c] sm:$0xf]
  %v135 = vld [vmem:[%s1 + $0x190] sm:$0xf]
  %v136 = vld [vmem:[%s1 + $0x194] sm:$0xf]
  %v137 = vld [vmem:[%s1 + $0x198] sm:$0xf]
  %v138 = vld [vmem:[%s1 + $0x19c] sm:$0xf]
  %v139 = vld [vmem:[%s1 + $0x1a0] sm:$0xf]
  %v140 = vld [vmem:[%s1 + $0x1a4] sm:$0xf]
  %v141 = vld [vmem:[%s1 + $0x1a8] sm:$0xf]
  %v142 = vld [vmem:[%s1 + $0x1ac] sm:$0xf]
  %v143 = vld [vmem:[%s1 + $0x1b0] sm:$0xf]
  %v144 = vld [vmem:[%s1 + $0x1b4] sm:$0xf]
  %v145 = vld [vmem:[%s1 + $0x1b8] sm:$0xf]
  %v146 = vld [vmem:[%s1 + $0x1bc] sm:$0xf]
  %v147 = vld [vmem:[%s1 + $0x1c0] sm:$0xf]
  %v148 = vld [vmem:[%s1 + $0x1c4] sm:$0xf]
  %v149 = vld [vmem:[%s1 + $0x1c8] sm:$0xf]
  %v150 = vld [vmem:[%s1 + $0x1cc] sm:$0xf]
  %v151 = vld [vmem:[%s1 + $0x1d0] sm:$0xf]
  %v152 = vld [vmem:[%s1 + $0x1d4] sm:$0xf]
  %v153 = vld [vmem:[%s1 + $0x1d8] sm:$0xf]
  %v154 = vld [vmem:[%s1 + $0x1dc] sm:$0xf]
  %v155 = vld [vmem:[%s1 + $0x1e0] sm:$0xf]
  %v156 = vld [vmem:[%s1 + $0x1e4] sm:$0xf]
  %v157 = vld [vmem:[%s1 + $0x1e8] sm:$0xf]
  %v158 = vld [vmem:[%s1 + $0x1ec] sm:$0xf]
  %v159 = vld [vmem:[%s1 + $0x1f0] sm:$0xf]
  %v160 = vld [vmem:[%s1 + $0x1f4] sm:$0xf]
  %v161 = vld [vmem:[%s1 + $0x1f8] sm:$0xf]
  %v162 = vld [vmem:[%s1 + $0x1fc] sm:$0xf]
  %v163 = vld [vmem:[%s1 + $0x200] sm:$0xf]
  %v164 = vld [vmem:[%s1 + $0x204] sm:$0xf]
  %v165 = vld [vmem:[%s1 + $0x208] sm:$0xf]
  %v166 = vld [vmem:[%s1 + $0x20c] sm:$0xf]
  %v167 = vld [vmem:[%s1 + $0x210] sm:$0xf]
  %v168 = vld [vmem:[%s1 + $0x214] sm:$0xf]
  %v169 = vld [vmem:[%s1 + $0x218] sm:$0xf]
  %v170 = vld [vmem:[%s1 + $0x21c] sm:$0xf]
  %v171 = vld [vmem:[%s1 + $0x220] sm:$0xf]
  %v172 = vld [vmem:[%s1 + $0x224] sm:$0xf]
  %v173 = vld [vmem:[%s1 + $0x228] sm:$0xf]
  %v174 = vld [vmem:[%s1 + $0x22c] sm:$0xf]
  %v175 = vld [vmem:[%s1 + $0x230] sm:$0xf]
  %v176 = vld [vmem:[%s1 + $0x234] sm:$0xf]
  %v177 = vld [vmem:[%s1 + $0x238] sm:$0xf]
  %v178 = vld [vmem:[%s1 + $0x23c] sm:$0xf]
  %v179 = vld [vmem:[%s1 + $0x240] sm:$0xf]
  %v180 = vld [vmem:[%s1 + $0x244] sm:$0xf]
  %v181 = vld [vmem:[%s1 + $0x248] sm:$0xf]
  %v182 = vld [vmem:[%s1 + $0x24c] sm:$0xf]
  %v183 = vld [vmem:[%s1 + $0x250] sm:$0xf]
  %v184 = vld [vmem:[%s1 + $0x254] sm:$0xf]
  %v185 = vld [vmem:[%s1 + $0x258] sm:$0xf]
  %v186 = vld [vmem:[%s1 + $0x25c] sm:$0xf]
  %v187 = vld [vmem:[%s1 + $0x260] sm:$0xf]
  %v188 = vld [vmem:[%s1 + $0x264] sm:$0xf]
  %v189 = vld [vmem:[%s1 + $0x268] sm:$0xf]
  %v190 = vld [vmem:[%s1 + $0x26c] sm:$0xf]
  %v191 = vld [vmem:[%s1 + $0x270] sm:$0xf]
  %v192 = vld [vmem:[%s1 + $0x274] sm:$0xf]
  %v193 = vld [vmem:[%s1 + $0x278] sm:$0xf]
  %v194 = vld [vmem:[%s1 + $0x27c] sm:$0xf]
  %v195 = vld [vmem:[%s1 + $0x280] sm:$0xf]
  %v196 = vld [vmem:[%s1 + $0x284] sm:$0xf]
  %v197 = vld [vmem:[%s1 + $0x288] sm:$0xf]
  %v198 = vld [vmem:[%s1 + $0x28c] sm:$0xf]
  %v199 = vld [vmem:[%s1 + $0x290] sm:$0xf]
  %v200 = vld [vmem:[%s1 + $0x294] sm:$0xf]
  %v201 = vld [vmem:[%s1 + $0x298] sm:$0xf]
  %v202 = vld [vmem:[%s1 + $0x29c] sm:$0xf]
  %v203 = vld [vmem:[%s1 + $0x2a0] sm:$0xf]
  %v204 = vld [vmem:[%s1 + $0x2a4] sm:$0xf]
  %v205 = vld [vmem:[%s1 + $0x2a8] sm:$0xf]
  %v206 = vld [vmem:[%s1 + $0x2ac] sm:$0xf]
  %v207 = vld [vmem:[%s1 + $0x2b0] sm:$0xf]
  %v208 = vld [vmem:[%s1 + $0x2b4] sm:$0xf]
  %v209 = vld [vmem:[%s1 + $0x2b8] sm:$0xf]
  %v210 = vld [vmem:[%s1 + $0x2bc] sm:$0xf]
  %v211 = vld [vmem:[%s1 + $0x2c0] sm:$0xf]
  %v212 = vld [vmem:[%s1 + $0x2c4] sm:$0xf]
  %v213 = vld [vmem:[%s1 + $0x2c8] sm:$0xf]
  %v214 = vld [vmem:[%s1 + $0x2cc] sm:$0xf]
  %v215 = vld [vmem:[%s1 + $0x2d0] sm:$0xf]
  %v216 = vld [vmem:[%s1 + $0x2d4] sm:$0xf]
  %v217 = vld [vmem:[%s1 + $0x2d8] sm:$0xf]
  %v218 = vld [vmem:[%s1 + $0x2dc] sm:$0xf]
  %v219 = vld [vmem:[%s1 + $0x2e0] sm:$0xf]
  %v220 = vld [vmem:[%s1 + $0x2e4] sm:$0xf]
  %v221 = vld [vmem:[%s1 + $0x2e8] sm:$0xf]
  %v222 = vld [vmem:[%s1 + $0x2ec] sm:$0xf]
  %v223 = vld [vmem:[%s1 + $0x2f0] sm:$0xf]
  %v224 = vld [vmem:[%s1 + $0x2f4] sm:$0xf]
  %v225 = vld [vmem:[%s1 + $0x2f8] sm:$0xf]
  %v226 = vld [vmem:[%s1 + $0x2fc] sm:$0xf]
  %v227 = vld [vmem:[%s1 + $0x300] sm:$0xf]
  %v228 = vld [vmem:[%s1 + $0x304] sm:$0xf]
  %v229 = vld [vmem:[%s1 + $0x308] sm:$0xf]
  %v230 = vld [vmem:[%s1 + $0x30c] sm:$0xf]
  %v231 = vld [vmem:[%s1 + $0x310] sm:$0xf]
  %v232 = vld [vmem:[%s1 + $0x314] sm:$0xf]
  %v233 = vld [vmem:[%s1 + $0x318] sm:$0xf]
  %v234 = vld [vmem:[%s1 + $0x31c] sm:$0xf]
  %v235 = vld [vmem:[%s1 + $0x320] sm:$0xf]
  %v236 = vld [vmem:[%s1 + $0x324] sm:$0xf]
  %v237 = vld [vmem:[%s1 + $0x328] sm:$0xf]
  %v238 = vld [vmem:[%s1 + $0x32c] sm:$0xf]
  %v239 = vld [vmem:[%s1 + $0x330] sm:$0xf]
  %v240 = vld [vmem:[%s1 + $0x334] sm:$0xf]
  %v241 = vld [vmem:[%s1 + $0x338] sm:$0xf]
  %v242 = vld [vmem:[%s1 + $0x33c] sm:$0xf]
  %v243 = vld [vmem:[%s1 + $0x340] sm:$0xf]
  %v244 = vld [vmem:[%s1 + $0x344] sm:$0xf]
  %v245 = vld [vmem:[%s1 + $0x348] sm:$0xf]
  %v246 = vld [vmem:[%s1 + $0x34c] sm:$0xf]
  %v247 = vld [vmem:[%s1 + $0x350] sm:$0xf]
  %v248 = vld [vmem:[%s1 + $0x354] sm:$0xf]
  %v249 = vld [vmem:[%s1 + $0x358] sm:$0xf]
  %v250 = vld [vmem:[%s1 + $0x35c] sm:$0xf]
  %v251 = vld [vmem:[%s1 + $0x360] sm:$0xf]
  %v252 = vld [vmem:[%s1 + $0x364] sm:$0xf]
  %v253 = vld [vmem:[%s1 + $0x368] sm:$0xf]
  %v254 = vld [vmem:[%s1 + $0x36c] sm:$0xf]
  %v255 = vld [vmem:[%s1 + $0x370] sm:$0xf]
  %v256 = vld [vmem:[%s1 + $0x374] sm:$0xf]
  %v257 = vld [vmem:[%s1 + $0x378] sm:$0xf]
  %v258 = vld [vmem:[%s1 + $0x37c] sm:$0xf]
  %v259 = vld [vmem:[%s1 + $0x380] sm:$0xf]
  %v260 = vld [vmem:[%s1 + $0x384] sm:$0xf]
  %v261 = vld [vmem:[%s1 + $0x388] sm:$0xf]
  %v262 = vld [vmem:[%s1 + $0x38c] sm:$0xf]
  %v263 = vld [vmem:[%s1 + $0x390] sm:$0xf]
  %v264 = vld [vmem:[%s1 + $0x394] sm:$0xf]
  %v265 = vld [vmem:[%s1 + $0x398] sm:$0xf]
  %v266 = vld [vmem:[%s1 + $0x39c] sm:$0xf]
  %v267 = vld [vmem:[%s1 + $0x3a0] sm:$0xf]
  %v268 = vld [vmem:[%s1 + $0x3a4] sm:$0xf]
  %v269 = vld [vmem:[%s1 + $0x3a8] sm:$0xf]
  %v270 = vld [vmem:[%s1 + $0x3ac] sm:$0xf]
  %v271 = vld [vmem:[%s1 + $0x3b0] sm:$0xf]
  %v272 = vld [vmem:[%s1 + $0x3b4] sm:$0xf]
  %v273 = vld [vmem:[%s1 + $0x3b8] sm:$0xf]
  %v274 = vld [vmem:[%s1 + $0x3bc] sm:$0xf]
  %v275 = vld [vmem:[%s1 + $0x3c0] sm:$0xf]
  %v276 = vld [vmem:[%s1 + $0x3c4] sm:$0xf]
  %v277 = vld [vmem:[%s1 + $0x3c8] sm:$0xf]
  %v278 = vld [vmem:[%s1 + $0x3cc] sm:$0xf]
  %v279 = vld [vmem:[%s1 + $0x3d0] sm:$0xf]
  %v280 = vld [vmem:[%s1 + $0x3d4] sm:$0xf]
  %v281 = vld [vmem:[%s1 + $0x3d8] sm:$0xf]
  %v282 = vld [vmem:[%s1 + $0x3dc] sm:$0xf]
  %v283 = vld [vmem:[%s1 + $0x3e0] sm:$0xf]
  %v284 = vld [vmem:[%s1 + $0x3e4] sm:$0xf]
  %v285 = vld [vmem:[%s1 + $0x3e8] sm:$0xf]
  %v286 = vld [vmem:[%s1 + $0x3ec] sm:$0xf]
  %v287 = vld [vmem:[%s1 + $0x3f0] sm:$0xf]
  %v288 = vld [vmem:[%s1 + $0x3f4] sm:$0xf]
  %v289 = vld [vmem:[%s1 + $0x3f8] sm:$0xf]
  %v290 = vld [vmem:[%s1 + $0x3fc] sm:$0xf]
  %v291 = vld [vmem:[%s2] sm:$0x1]
  %v293 = vlaneseq
  %v294 = vshrl.u32 %v293, 7
  %v295 = vsub.s32 0, %v294
  %v296 = vrot.slane %v291, %v295
  %v306 = vunpack.c.l.b16 %v27
  %v307 = vunpack.c.h.b16 %v27
  %v308 = vunpack.c.l.b16 %v28
  %v309 = vunpack.c.h.b16 %v28
  %v310 = vunpack.c.l.b16 %v29
  %v311 = vunpack.c.h.b16 %v29
  %v312 = vunpack.c.l.b16 %v30
  %v313 = vunpack.c.h.b16 %v30
  %v314 = vunpack.c.l.b16 %v31
  %v315 = vunpack.c.h.b16 %v31
  %v316 = vunpack.c.l.b16 %v32
  %v317 = vunpack.c.h.b16 %v32
  %v318 = vunpack.c.l.b16 %v33
  %v319 = vunpack.c.h.b16 %v33
  %v320 = vunpack.c.l.b16 %v34
  %v321 = vunpack.c.h.b16 %v34
  %v322 = vpack.c.b16 %v306, %v306
  %v323 = vpack.c.b16 %v307, %v307
  %v324 = vpack.c.b16 %v308, %v308
  %v325 = vpack.c.b16 %v309, %v309
  %v326 = vpack.c.b16 %v310, %v310
  %v327 = vpack.c.b16 %v311, %v311
  %v328 = vpack.c.b16 %v312, %v312
  %v329 = vpack.c.b16 %v313, %v313
  %v330 = vpack.c.b16 %v314, %v314
  %v331 = vpack.c.b16 %v315, %v315
  %v332 = vpack.c.b16 %v316, %v316
  %v333 = vpack.c.b16 %v317, %v317
  %v334 = vpack.c.b16 %v318, %v318
  %v335 = vpack.c.b16 %v319, %v319
  %v336 = vpack.c.b16 %v320, %v320
  %v337 = vpack.c.b16 %v321, %v321
  %v610 = vunpack.c.l.b16 %v35
  %v611 = vunpack.c.l.b16 %v36
  %v612 = vunpack.c.l.b16 %v37
  %v613 = vunpack.c.l.b16 %v38
  %v614 = vunpack.c.l.b16 %v39
  %v615 = vunpack.c.l.b16 %v40
  %v616 = vunpack.c.l.b16 %v41
  %v617 = vunpack.c.l.b16 %v42
  %v618 = vunpack.c.l.b16 %v43
  %v619 = vunpack.c.l.b16 %v44
  %v620 = vunpack.c.l.b16 %v45
  %v621 = vunpack.c.l.b16 %v46
  %v622 = vunpack.c.l.b16 %v47
  %v623 = vunpack.c.l.b16 %v48
  %v624 = vunpack.c.l.b16 %v49
  %v625 = vunpack.c.l.b16 %v50
  %v626 = vunpack.c.l.b16 %v51
  %v627 = vunpack.c.l.b16 %v52
  %v628 = vunpack.c.l.b16 %v53
  %v629 = vunpack.c.l.b16 %v54
  %v630 = vunpack.c.l.b16 %v55
  %v631 = vunpack.c.l.b16 %v56
  %v632 = vunpack.c.l.b16 %v57
  %v633 = vunpack.c.l.b16 %v58
  %v634 = vunpack.c.l.b16 %v59
  %v635 = vunpack.c.l.b16 %v60
  %v636 = vunpack.c.l.b16 %v61
  %v637 = vunpack.c.l.b16 %v62
  %v638 = vunpack.c.l.b16 %v63
  %v639 = vunpack.c.l.b16 %v64
  %v640 = vunpack.c.l.b16 %v65
  %v641 = vunpack.c.l.b16 %v66
  %v642 = vunpack.c.l.b16 %v67
  %v643 = vunpack.c.l.b16 %v68
  %v644 = vunpack.c.l.b16 %v69
  %v645 = vunpack.c.l.b16 %v70
  %v646 = vunpack.c.l.b16 %v71
  %v647 = vunpack.c.l.b16 %v72
  %v648 = vunpack.c.l.b16 %v73
  %v649 = vunpack.c.l.b16 %v74
  %v650 = vunpack.c.l.b16 %v75
  %v651 = vunpack.c.l.b16 %v76
  %v652 = vunpack.c.l.b16 %v77
  %v653 = vunpack.c.l.b16 %v78
  %v654 = vunpack.c.l.b16 %v79
  %v655 = vunpack.c.l.b16 %v80
  %v656 = vunpack.c.l.b16 %v81
  %v657 = vunpack.c.l.b16 %v82
  %v658 = vunpack.c.l.b16 %v83
  %v659 = vunpack.c.l.b16 %v84
  %v660 = vunpack.c.l.b16 %v85
  %v661 = vunpack.c.l.b16 %v86
  %v662 = vunpack.c.l.b16 %v87
  %v663 = vunpack.c.l.b16 %v88
  %v664 = vunpack.c.l.b16 %v89
  %v665 = vunpack.c.l.b16 %v90
  %v666 = vunpack.c.l.b16 %v91
  %v667 = vunpack.c.l.b16 %v92
  %v668 = vunpack.c.l.b16 %v93
  %v669 = vunpack.c.l.b16 %v94
  %v670 = vunpack.c.l.b16 %v95
  %v671 = vunpack.c.l.b16 %v96
  %v672 = vunpack.c.l.b16 %v97
  %v673 = vunpack.c.l.b16 %v98
  %v674 = vunpack.c.l.b16 %v99
  %v675 = vunpack.c.l.b16 %v100
  %v676 = vunpack.c.l.b16 %v101
  %v677 = vunpack.c.l.b16 %v102
  %v678 = vunpack.c.l.b16 %v103
  %v679 = vunpack.c.l.b16 %v104
  %v680 = vunpack.c.l.b16 %v105
  %v681 = vunpack.c.l.b16 %v106
  %v682 = vunpack.c.l.b16 %v107
  %v683 = vunpack.c.l.b16 %v108
  %v684 = vunpack.c.l.b16 %v109
  %v685 = vunpack.c.l.b16 %v110
  %v686 = vunpack.c.l.b16 %v111
  %v687 = vunpack.c.l.b16 %v112
  %v688 = vunpack.c.l.b16 %v113
  %v689 = vunpack.c.l.b16 %v114
  %v690 = vunpack.c.l.b16 %v115
  %v691 = vunpack.c.l.b16 %v116
  %v692 = vunpack.c.l.b16 %v117
  %v693 = vunpack.c.l.b16 %v118
  %v694 = vunpack.c.l.b16 %v119
  %v695 = vunpack.c.l.b16 %v120
  %v696 = vunpack.c.l.b16 %v121
  %v697 = vunpack.c.l.b16 %v122
  %v698 = vunpack.c.l.b16 %v123
  %v699 = vunpack.c.l.b16 %v124
  %v700 = vunpack.c.l.b16 %v125
  %v701 = vunpack.c.l.b16 %v126
  %v702 = vunpack.c.l.b16 %v127
  %v703 = vunpack.c.l.b16 %v128
  %v704 = vunpack.c.l.b16 %v129
  %v705 = vunpack.c.l.b16 %v130
  %v706 = vunpack.c.l.b16 %v131
  %v707 = vunpack.c.l.b16 %v132
  %v708 = vunpack.c.l.b16 %v133
  %v709 = vunpack.c.l.b16 %v134
  %v710 = vunpack.c.l.b16 %v135
  %v711 = vunpack.c.l.b16 %v136
  %v712 = vunpack.c.l.b16 %v137
  %v713 = vunpack.c.l.b16 %v138
  %v714 = vunpack.c.l.b16 %v139
  %v715 = vunpack.c.l.b16 %v140
  %v716 = vunpack.c.l.b16 %v141
  %v717 = vunpack.c.l.b16 %v142
  %v718 = vunpack.c.l.b16 %v143
  %v719 = vunpack.c.l.b16 %v144
  %v720 = vunpack.c.l.b16 %v145
  %v721 = vunpack.c.l.b16 %v146
  %v722 = vunpack.c.l.b16 %v147
  %v723 = vunpack.c.l.b16 %v148
  %v724 = vunpack.c.l.b16 %v149
  %v725 = vunpack.c.l.b16 %v150
  %v726 = vunpack.c.l.b16 %v151
  %v727 = vunpack.c.l.b16 %v152
  %v728 = vunpack.c.l.b16 %v153
  %v729 = vunpack.c.l.b16 %v154
  %v730 = vunpack.c.l.b16 %v155
  %v731 = vunpack.c.l.b16 %v156
  %v732 = vunpack.c.l.b16 %v157
  %v733 = vunpack.c.l.b16 %v158
  %v734 = vunpack.c.l.b16 %v159
  %v735 = vunpack.c.l.b16 %v160
  %v736 = vunpack.c.l.b16 %v161
  %v737 = vunpack.c.l.b16 %v162
  %v738 = vunpack.c.l.b16 %v163
  %v739 = vunpack.c.l.b16 %v164
  %v740 = vunpack.c.l.b16 %v165
  %v741 = vunpack.c.l.b16 %v166
  %v742 = vunpack.c.l.b16 %v167
  %v743 = vunpack.c.l.b16 %v168
  %v744 = vunpack.c.l.b16 %v169
  %v745 = vunpack.c.l.b16 %v170
  %v746 = vunpack.c.l.b16 %v171
  %v747 = vunpack.c.l.b16 %v172
  %v748 = vunpack.c.l.b16 %v173
  %v749 = vunpack.c.l.b16 %v174
  %v750 = vunpack.c.l.b16 %v175
  %v751 = vunpack.c.l.b16 %v176
  %v752 = vunpack.c.l.b16 %v177
  %v753 = vunpack.c.l.b16 %v178
  %v754 = vunpack.c.l.b16 %v179
  %v755 = vunpack.c.l.b16 %v180
  %v756 = vunpack.c.l.b16 %v181
  %v757 = vunpack.c.l.b16 %v182
  %v758 = vunpack.c.l.b16 %v183
  %v759 = vunpack.c.l.b16 %v184
  %v760 = vunpack.c.l.b16 %v185
  %v761 = vunpack.c.l.b16 %v186
  %v762 = vunpack.c.l.b16 %v187
  %v763 = vunpack.c.l.b16 %v188
  %v764 = vunpack.c.l.b16 %v189
  %v765 = vunpack.c.l.b16 %v190
  %v766 = vunpack.c.l.b16 %v191
  %v767 = vunpack.c.l.b16 %v192
  %v768 = vunpack.c.l.b16 %v193
  %v769 = vunpack.c.l.b16 %v194
  %v770 = vunpack.c.l.b16 %v195
  %v771 = vunpack.c.l.b16 %v196
  %v772 = vunpack.c.l.b16 %v197
  %v773 = vunpack.c.l.b16 %v198
  %v774 = vunpack.c.l.b16 %v199
  %v775 = vunpack.c.l.b16 %v200
  %v776 = vunpack.c.l.b16 %v201
  %v777 = vunpack.c.l.b16 %v202
  %v778 = vunpack.c.l.b16 %v203
  %v779 = vunpack.c.l.b16 %v204
  %v780 = vunpack.c.l.b16 %v205
  %v781 = vunpack.c.l.b16 %v206
  %v782 = vunpack.c.l.b16 %v207
  %v783 = vunpack.c.l.b16 %v208
  %v784 = vunpack.c.l.b16 %v209
  %v785 = vunpack.c.l.b16 %v210
  %v786 = vunpack.c.l.b16 %v211
  %v787 = vunpack.c.l.b16 %v212
  %v788 = vunpack.c.l.b16 %v213
  %v789 = vunpack.c.l.b16 %v214
  %v790 = vunpack.c.l.b16 %v215
  %v791 = vunpack.c.l.b16 %v216
  %v792 = vunpack.c.l.b16 %v217
  %v793 = vunpack.c.l.b16 %v218
  %v794 = vunpack.c.l.b16 %v219
  %v795 = vunpack.c.l.b16 %v220
  %v796 = vunpack.c.l.b16 %v221
  %v797 = vunpack.c.l.b16 %v222
  %v798 = vunpack.c.l.b16 %v223
  %v799 = vunpack.c.l.b16 %v224
  %v800 = vunpack.c.l.b16 %v225
  %v801 = vunpack.c.l.b16 %v226
  %v802 = vunpack.c.l.b16 %v227
  %v803 = vunpack.c.l.b16 %v228
  %v804 = vunpack.c.l.b16 %v229
  %v805 = vunpack.c.l.b16 %v230
  %v806 = vunpack.c.l.b16 %v231
  %v807 = vunpack.c.l.b16 %v232
  %v808 = vunpack.c.l.b16 %v233
  %v809 = vunpack.c.l.b16 %v234
  %v810 = vunpack.c.l.b16 %v235
  %v811 = vunpack.c.l.b16 %v236
  %v812 = vunpack.c.l.b16 %v237
  %v813 = vunpack.c.l.b16 %v238
  %v814 = vunpack.c.l.b16 %v239
  %v815 = vunpack.c.l.b16 %v240
  %v816 = vunpack.c.l.b16 %v241
  %v817 = vunpack.c.l.b16 %v242
  %v818 = vunpack.c.l.b16 %v243
  %v819 = vunpack.c.l.b16 %v244
  %v820 = vunpack.c.l.b16 %v245
  %v821 = vunpack.c.l.b16 %v246
  %v822 = vunpack.c.l.b16 %v247
  %v823 = vunpack.c.l.b16 %v248
  %v824 = vunpack.c.l.b16 %v249
  %v825 = vunpack.c.l.b16 %v250
  %v826 = vunpack.c.l.b16 %v251
  %v827 = vunpack.c.l.b16 %v252
  %v828 = vunpack.c.l.b16 %v253
  %v829 = vunpack.c.l.b16 %v254
  %v830 = vunpack.c.l.b16 %v255
  %v831 = vunpack.c.l.b16 %v256
  %v832 = vunpack.c.l.b16 %v257
  %v833 = vunpack.c.l.b16 %v258
  %v834 = vunpack.c.l.b16 %v259
  %v835 = vunpack.c.l.b16 %v260
  %v836 = vunpack.c.l.b16 %v261
  %v837 = vunpack.c.l.b16 %v262
  %v838 = vunpack.c.l.b16 %v263
  %v839 = vunpack.c.l.b16 %v264
  %v840 = vunpack.c.l.b16 %v265
  %v841 = vunpack.c.l.b16 %v266
  %v842 = vunpack.c.l.b16 %v267
  %v843 = vunpack.c.l.b16 %v268
  %v844 = vunpack.c.l.b16 %v269
  %v845 = vunpack.c.l.b16 %v270
  %v846 = vunpack.c.l.b16 %v271
  %v847 = vunpack.c.l.b16 %v272
  %v848 = vunpack.c.l.b16 %v273
  %v849 = vunpack.c.l.b16 %v274
  %v850 = vunpack.c.l.b16 %v275
  %v851 = vunpack.c.l.b16 %v276
  %v852 = vunpack.c.l.b16 %v277
  %v853 = vunpack.c.l.b16 %v278
  %v854 = vunpack.c.l.b16 %v279
  %v855 = vunpack.c.l.b16 %v280
  %v856 = vunpack.c.l.b16 %v281
  %v857 = vunpack.c.l.b16 %v282
  %v858 = vunpack.c.l.b16 %v283
  %v859 = vunpack.c.l.b16 %v284
  %v860 = vunpack.c.l.b16 %v285
  %v861 = vunpack.c.l.b16 %v286
  %v862 = vunpack.c.l.b16 %v287
  %v863 = vunpack.c.l.b16 %v288
  %v864 = vunpack.c.l.b16 %v289
  %v865 = vunpack.c.l.b16 %v290
  %v866 = vpack.c.b16 %v611, %v610
  %v867 = vpack.c.b16 %v613, %v612
  %v868 = vpack.c.b16 %v615, %v614
  %v869 = vpack.c.b16 %v617, %v616
  %v870 = vpack.c.b16 %v619, %v618
  %v871 = vpack.c.b16 %v621, %v620
  %v872 = vpack.c.b16 %v623, %v622
  %v873 = vpack.c.b16 %v625, %v624
  %v874 = vpack.c.b16 %v627, %v626
  %v875 = vpack.c.b16 %v629, %v628
  %v876 = vpack.c.b16 %v631, %v630
  %v877 = vpack.c.b16 %v633, %v632
  %v878 = vpack.c.b16 %v635, %v634
  %v879 = vpack.c.b16 %v637, %v636
  %v880 = vpack.c.b16 %v639, %v638
  %v881 = vpack.c.b16 %v641, %v640
  %v882 = vpack.c.b16 %v643, %v642
  %v883 = vpack.c.b16 %v645, %v644
  %v884 = vpack.c.b16 %v647, %v646
  %v885 = vpack.c.b16 %v649, %v648
  %v886 = vpack.c.b16 %v651, %v650
  %v887 = vpack.c.b16 %v653, %v652
  %v888 = vpack.c.b16 %v655, %v654
  %v889 = vpack.c.b16 %v657, %v656
  %v890 = vpack.c.b16 %v659, %v658
  %v891 = vpack.c.b16 %v661, %v660
  %v892 = vpack.c.b16 %v663, %v662
  %v893 = vpack.c.b16 %v665, %v664
  %v894 = vpack.c.b16 %v667, %v666
  %v895 = vpack.c.b16 %v669, %v668
  %v896 = vpack.c.b16 %v671, %v670
  %v897 = vpack.c.b16 %v673, %v672
  %v898 = vpack.c.b16 %v675, %v674
  %v899 = vpack.c.b16 %v677, %v676
  %v900 = vpack.c.b16 %v679, %v678
  %v901 = vpack.c.b16 %v681, %v680
  %v902 = vpack.c.b16 %v683, %v682
  %v903 = vpack.c.b16 %v685, %v684
  %v904 = vpack.c.b16 %v687, %v686
  %v905 = vpack.c.b16 %v689, %v688
  %v906 = vpack.c.b16 %v691, %v690
  %v907 = vpack.c.b16 %v693, %v692
  %v908 = vpack.c.b16 %v695, %v694
  %v909 = vpack.c.b16 %v697, %v696
  %v910 = vpack.c.b16 %v699, %v698
  %v911 = vpack.c.b16 %v701, %v700
  %v912 = vpack.c.b16 %v703, %v702
  %v913 = vpack.c.b16 %v705, %v704
  %v914 = vpack.c.b16 %v707, %v706
  %v915 = vpack.c.b16 %v709, %v708
  %v916 = vpack.c.b16 %v711, %v710
  %v917 = vpack.c.b16 %v713, %v712
  %v918 = vpack.c.b16 %v715, %v714
  %v919 = vpack.c.b16 %v717, %v716
  %v920 = vpack.c.b16 %v719, %v718
  %v921 = vpack.c.b16 %v721, %v720
  %v922 = vpack.c.b16 %v723, %v722
  %v923 = vpack.c.b16 %v725, %v724
  %v924 = vpack.c.b16 %v727, %v726
  %v925 = vpack.c.b16 %v729, %v728
  %v926 = vpack.c.b16 %v731, %v730
  %v927 = vpack.c.b16 %v733, %v732
  %v928 = vpack.c.b16 %v735, %v734
  %v929 = vpack.c.b16 %v737, %v736
  %v930 = vpack.c.b16 %v739, %v738
  %v931 = vpack.c.b16 %v741, %v740
  %v932 = vpack.c.b16 %v743, %v742
  %v933 = vpack.c.b16 %v745, %v744
  %v934 = vpack.c.b16 %v747, %v746
  %v935 = vpack.c.b16 %v749, %v748
  %v936 = vpack.c.b16 %v751, %v750
  %v937 = vpack.c.b16 %v753, %v752
  %v938 = vpack.c.b16 %v755, %v754
  %v939 = vpack.c.b16 %v757, %v756
  %v940 = vpack.c.b16 %v759, %v758
  %v941 = vpack.c.b16 %v761, %v760
  %v942 = vpack.c.b16 %v763, %v762
  %v943 = vpack.c.b16 %v765, %v764
  %v944 = vpack.c.b16 %v767, %v766
  %v945 = vpack.c.b16 %v769, %v768
  %v946 = vpack.c.b16 %v771, %v770
  %v947 = vpack.c.b16 %v773, %v772
  %v948 = vpack.c.b16 %v775, %v774
  %v949 = vpack.c.b16 %v777, %v776
  %v950 = vpack.c.b16 %v779, %v778
  %v951 = vpack.c.b16 %v781, %v780
  %v952 = vpack.c.b16 %v783, %v782
  %v953 = vpack.c.b16 %v785, %v784
  %v954 = vpack.c.b16 %v787, %v786
  %v955 = vpack.c.b16 %v789, %v788
  %v956 = vpack.c.b16 %v791, %v790
  %v957 = vpack.c.b16 %v793, %v792
  %v958 = vpack.c.b16 %v795, %v794
  %v959 = vpack.c.b16 %v797, %v796
  %v960 = vpack.c.b16 %v799, %v798
  %v961 = vpack.c.b16 %v801, %v800
  %v962 = vpack.c.b16 %v803, %v802
  %v963 = vpack.c.b16 %v805, %v804
  %v964 = vpack.c.b16 %v807, %v806
  %v965 = vpack.c.b16 %v809, %v808
  %v966 = vpack.c.b16 %v811, %v810
  %v967 = vpack.c.b16 %v813, %v812
  %v968 = vpack.c.b16 %v815, %v814
  %v969 = vpack.c.b16 %v817, %v816
  %v970 = vpack.c.b16 %v819, %v818
  %v971 = vpack.c.b16 %v821, %v820
  %v972 = vpack.c.b16 %v823, %v822
  %v973 = vpack.c.b16 %v825, %v824
  %v974 = vpack.c.b16 %v827, %v826
  %v975 = vpack.c.b16 %v829, %v828
  %v976 = vpack.c.b16 %v831, %v830
  %v977 = vpack.c.b16 %v833, %v832
  %v978 = vpack.c.b16 %v835, %v834
  %v979 = vpack.c.b16 %v837, %v836
  %v980 = vpack.c.b16 %v839, %v838
  %v981 = vpack.c.b16 %v841, %v840
  %v982 = vpack.c.b16 %v843, %v842
  %v983 = vpack.c.b16 %v845, %v844
  %v984 = vpack.c.b16 %v847, %v846
  %v985 = vpack.c.b16 %v849, %v848
  %v986 = vpack.c.b16 %v851, %v850
  %v987 = vpack.c.b16 %v853, %v852
  %v988 = vpack.c.b16 %v855, %v854
  %v989 = vpack.c.b16 %v857, %v856
  %v990 = vpack.c.b16 %v859, %v858
  %v991 = vpack.c.b16 %v861, %v860
  %v992 = vpack.c.b16 %v863, %v862
  %v993 = vpack.c.b16 %v865, %v864
  %1122 = vmatprep.subr.bf16.mxu0 0
  %1123 = vmatpush1.bf16.msra.mxu0 %v866
  %1124 = vmatprep.subr.bf16.mxu0 0
  %1125 = vmatpush1.bf16.msra.mxu0 %v867
  %1126 = vmatprep.subr.bf16.mxu0 0
  %1127 = vmatpush1.bf16.msra.mxu0 %v868
  %1128 = vmatprep.subr.bf16.mxu0 0
  %1129 = vmatpush1.bf16.msra.mxu0 %v869
  %1130 = vmatprep.subr.bf16.mxu0 0
  %1131 = vmatpush1.bf16.msra.mxu0 %v870
  %1132 = vmatprep.subr.bf16.mxu0 0
  %1133 = vmatpush1.bf16.msra.mxu0 %v871
  %1134 = vmatprep.subr.bf16.mxu0 0
  %1135 = vmatpush1.bf16.msra.mxu0 %v872
  %1136 = vmatprep.subr.bf16.mxu0 0
  %1137 = vmatpush1.bf16.msra.mxu0 %v873
  %1138 = vmatprep.subr.bf16.mxu0 0
  %1139 = vmatpush1.bf16.msra.mxu0 %v874
  %1140 = vmatprep.subr.bf16.mxu0 0
  %1141 = vmatpush1.bf16.msra.mxu0 %v875
  %1142 = vmatprep.subr.bf16.mxu0 0
  %1143 = vmatpush1.bf16.msra.mxu0 %v876
  %1144 = vmatprep.subr.bf16.mxu0 0
  %1145 = vmatpush1.bf16.msra.mxu0 %v877
  %1146 = vmatprep.subr.bf16.mxu0 0
  %1147 = vmatpush1.bf16.msra.mxu0 %v878
  %1148 = vmatprep.subr.bf16.mxu0 0
  %1149 = vmatpush1.bf16.msra.mxu0 %v879
  %1150 = vmatprep.subr.bf16.mxu0 0
  %1151 = vmatpush1.bf16.msra.mxu0 %v880
  %1152 = vmatprep.subr.bf16.mxu0 0
  %1153 = vmatpush1.bf16.msra.mxu0 %v881
  %1154 = vmatprep.mubr.bf16.mxu0 %v323
  %1155 = vmatmul.mubr.bf16.gmra.mrb[0].mxu0 %v322
  %v1156 = vpop.f32.mrb[0].mxu0
  %v1157 = vadd.f32 %v296, %v1156
  %v1158 = vpop.f32.mrb[0].mxu0
  %v1159 = vpop.f32.mrb[0].mxu0
  %v1160 = vpop.f32.mrb[0].mxu0
  %1161 = vdwg.mxu0
  %1162 = vmatprep.subr.bf16.mxu0 0
  %1163 = vmatpush1.bf16.msra.mxu0 %v882
  %1164 = vmatprep.subr.bf16.mxu0 0
  %1165 = vmatpush1.bf16.msra.mxu0 %v883
  %1166 = vmatprep.subr.bf16.mxu0 0
  %1167 = vmatpush1.bf16.msra.mxu0 %v884
  %1168 = vmatprep.subr.bf16.mxu0 0
  %1169 = vmatpush1.bf16.msra.mxu0 %v885
  %1170 = vmatprep.subr.bf16.mxu0 0
  %1171 = vmatpush1.bf16.msra.mxu0 %v886
  %1172 = vmatprep.subr.bf16.mxu0 0
  %1173 = vmatpush1.bf16.msra.mxu0 %v887
  %1174 = vmatprep.subr.bf16.mxu0 0
  %1175 = vmatpush1.bf16.msra.mxu0 %v888
  %1176 = vmatprep.subr.bf16.mxu0 0
  %1177 = vmatpush1.bf16.msra.mxu0 %v889
  %1178 = vmatprep.subr.bf16.mxu0 0
  %1179 = vmatpush1.bf16.msra.mxu0 %v890
  %1180 = vmatprep.subr.bf16.mxu0 0
  %1181 = vmatpush1.bf16.msra.mxu0 %v891
  %1182 = vmatprep.subr.bf16.mxu0 0
  %1183 = vmatpush1.bf16.msra.mxu0 %v892
  %1184 = vmatprep.subr.bf16.mxu0 0
  %1185 = vmatpush1.bf16.msra.mxu0 %v893
  %1186 = vmatprep.subr.bf16.mxu0 0
  %1187 = vmatpush1.bf16.msra.mxu0 %v894
  %1188 = vmatprep.subr.bf16.mxu0 0
  %1189 = vmatpush1.bf16.msra.mxu0 %v895
  %1190 = vmatprep.subr.bf16.mxu0 0
  %1191 = vmatpush1.bf16.msra.mxu0 %v896
  %1192 = vmatprep.subr.bf16.mxu0 0
  %1193 = vmatpush1.bf16.msra.mxu0 %v897
  %1194 = vmatprep.mubr.bf16.mxu0 %v325
  %1195 = vmatmul.mubr.bf16.gmra.mrb[0].mxu0 %v324
  %v1196 = vpop.f32.mrb[0].mxu0
  %v1197 = vadd.f32 %v1157, %v1196
  %v1198 = vpop.f32.mrb[0].mxu0
  %v1199 = vpop.f32.mrb[0].mxu0
  %v1200 = vpop.f32.mrb[0].mxu0
  %1201 = vdwg.mxu0
  %1202 = vmatprep.subr.bf16.mxu0 0
  %1203 = vmatpush1.bf16.msra.mxu0 %v898
  %1204 = vmatprep.subr.bf16.mxu0 0
  %1205 = vmatpush1.bf16.msra.mxu0 %v899
  %1206 = vmatprep.subr.bf16.mxu0 0
  %1207 = vmatpush1.bf16.msra.mxu0 %v900
  %1208 = vmatprep.subr.bf16.mxu0 0
  %1209 = vmatpush1.bf16.msra.mxu0 %v901
  %1210 = vmatprep.subr.bf16.mxu0 0
  %1211 = vmatpush1.bf16.msra.mxu0 %v902
  %1212 = vmatprep.subr.bf16.mxu0 0
  %1213 = vmatpush1.bf16.msra.mxu0 %v903
  %1214 = vmatprep.subr.bf16.mxu0 0
  %1215 = vmatpush1.bf16.msra.mxu0 %v904
  %1216 = vmatprep.subr.bf16.mxu0 0
  %1217 = vmatpush1.bf16.msra.mxu0 %v905
  %1218 = vmatprep.subr.bf16.mxu0 0
  %1219 = vmatpush1.bf16.msra.mxu0 %v906
  %1220 = vmatprep.subr.bf16.mxu0 0
  %1221 = vmatpush1.bf16.msra.mxu0 %v907
  %1222 = vmatprep.subr.bf16.mxu0 0
  %1223 = vmatpush1.bf16.msra.mxu0 %v908
  %1224 = vmatprep.subr.bf16.mxu0 0
  %1225 = vmatpush1.bf16.msra.mxu0 %v909
  %1226 = vmatprep.subr.bf16.mxu0 0
  %1227 = vmatpush1.bf16.msra.mxu0 %v910
  %1228 = vmatprep.subr.bf16.mxu0 0
  %1229 = vmatpush1.bf16.msra.mxu0 %v911
  %1230 = vmatprep.subr.bf16.mxu0 0
  %1231 = vmatpush1.bf16.msra.mxu0 %v912
  %1232 = vmatprep.subr.bf16.mxu0 0
  %1233 = vmatpush1.bf16.msra.mxu0 %v913
  %1234 = vmatprep.mubr.bf16.mxu0 %v327
  %1235 = vmatmul.mubr.bf16.gmra.mrb[0].mxu0 %v326
  %v1236 = vpop.f32.mrb[0].mxu0
  %v1237 = vadd.f32 %v1197, %v1236
  %v1238 = vpop.f32.mrb[0].mxu0
  %v1239 = vpop.f32.mrb[0].mxu0
  %v1240 = vpop.f32.mrb[0].mxu0
  %1241 = vdwg.mxu0
  %1242 = vmatprep.subr.bf16.mxu0 0
  %1243 = vmatpush1.bf16.msra.mxu0 %v914
  %1244 = vmatprep.subr.bf16.mxu0 0
  %1245 = vmatpush1.bf16.msra.mxu0 %v915
  %1246 = vmatprep.subr.bf16.mxu0 0
  %1247 = vmatpush1.bf16.msra.mxu0 %v916
  %1248 = vmatprep.subr.bf16.mxu0 0
  %1249 = vmatpush1.bf16.msra.mxu0 %v917
  %1250 = vmatprep.subr.bf16.mxu0 0
  %1251 = vmatpush1.bf16.msra.mxu0 %v918
  %1252 = vmatprep.subr.bf16.mxu0 0
  %1253 = vmatpush1.bf16.msra.mxu0 %v919
  %1254 = vmatprep.subr.bf16.mxu0 0
  %1255 = vmatpush1.bf16.msra.mxu0 %v920
  %1256 = vmatprep.subr.bf16.mxu0 0
  %1257 = vmatpush1.bf16.msra.mxu0 %v921
  %1258 = vmatprep.subr.bf16.mxu0 0
  %1259 = vmatpush1.bf16.msra.mxu0 %v922
  %1260 = vmatprep.subr.bf16.mxu0 0
  %1261 = vmatpush1.bf16.msra.mxu0 %v923
  %1262 = vmatprep.subr.bf16.mxu0 0
  %1263 = vmatpush1.bf16.msra.mxu0 %v924
  %1264 = vmatprep.subr.bf16.mxu0 0
  %1265 = vmatpush1.bf16.msra.mxu0 %v925
  %1266 = vmatprep.subr.bf16.mxu0 0
  %1267 = vmatpush1.bf16.msra.mxu0 %v926
  %1268 = vmatprep.subr.bf16.mxu0 0
  %1269 = vmatpush1.bf16.msra.mxu0 %v927
  %1270 = vmatprep.subr.bf16.mxu0 0
  %1271 = vmatpush1.bf16.msra.mxu0 %v928
  %1272 = vmatprep.subr.bf16.mxu0 0
  %1273 = vmatpush1.bf16.msra.mxu0 %v929
  %1274 = vmatprep.mubr.bf16.mxu0 %v329
  %1275 = vmatmul.mubr.bf16.gmra.mrb[0].mxu0 %v328
  %v1276 = vpop.f32.mrb[0].mxu0
  %v1277 = vadd.f32 %v1237, %v1276
  %v1278 = vpop.f32.mrb[0].mxu0
  %v1279 = vpop.f32.mrb[0].mxu0
  %v1280 = vpop.f32.mrb[0].mxu0
  %1281 = vdwg.mxu0
  %1282 = vmatprep.subr.bf16.mxu0 0
  %1283 = vmatpush1.bf16.msra.mxu0 %v930
  %1284 = vmatprep.subr.bf16.mxu0 0
  %1285 = vmatpush1.bf16.msra.mxu0 %v931
  %1286 = vmatprep.subr.bf16.mxu0 0
  %1287 = vmatpush1.bf16.msra.mxu0 %v932
  %1288 = vmatprep.subr.bf16.mxu0 0
  %1289 = vmatpush1.bf16.msra.mxu0 %v933
  %1290 = vmatprep.subr.bf16.mxu0 0
  %1291 = vmatpush1.bf16.msra.mxu0 %v934
  %1292 = vmatprep.subr.bf16.mxu0 0
  %1293 = vmatpush1.bf16.msra.mxu0 %v935
  %1294 = vmatprep.subr.bf16.mxu0 0
  %1295 = vmatpush1.bf16.msra.mxu0 %v936
  %1296 = vmatprep.subr.bf16.mxu0 0
  %1297 = vmatpush1.bf16.msra.mxu0 %v937
  %1298 = vmatprep.subr.bf16.mxu0 0
  %1299 = vmatpush1.bf16.msra.mxu0 %v938
  %1300 = vmatprep.subr.bf16.mxu0 0
  %1301 = vmatpush1.bf16.msra.mxu0 %v939
  %1302 = vmatprep.subr.bf16.mxu0 0
  %1303 = vmatpush1.bf16.msra.mxu0 %v940
  %1304 = vmatprep.subr.bf16.mxu0 0
  %1305 = vmatpush1.bf16.msra.mxu0 %v941
  %1306 = vmatprep.subr.bf16.mxu0 0
  %1307 = vmatpush1.bf16.msra.mxu0 %v942
  %1308 = vmatprep.subr.bf16.mxu0 0
  %1309 = vmatpush1.bf16.msra.mxu0 %v943
  %1310 = vmatprep.subr.bf16.mxu0 0
  %1311 = vmatpush1.bf16.msra.mxu0 %v944
  %1312 = vmatprep.subr.bf16.mxu0 0
  %1313 = vmatpush1.bf16.msra.mxu0 %v945
  %1314 = vmatprep.mubr.bf16.mxu0 %v331
  %1315 = vmatmul.mubr.bf16.gmra.mrb[0].mxu0 %v330
  %v1316 = vpop.f32.mrb[0].mxu0
  %v1317 = vadd.f32 %v1277, %v1316
  %v1318 = vpop.f32.mrb[0].mxu0
  %v1319 = vpop.f32.mrb[0].mxu0
  %v1320 = vpop.f32.mrb[0].mxu0
  %1321 = vdwg.mxu0
  %1322 = vmatprep.subr.bf16.mxu0 0
  %1323 = vmatpush1.bf16.msra.mxu0 %v946
  %1324 = vmatprep.subr.bf16.mxu0 0
  %1325 = vmatpush1.bf16.msra.mxu0 %v947
  %1326 = vmatprep.subr.bf16.mxu0 0
  %1327 = vmatpush1.bf16.msra.mxu0 %v948
  %1328 = vmatprep.subr.bf16.mxu0 0
  %1329 = vmatpush1.bf16.msra.mxu0 %v949
  %1330 = vmatprep.subr.bf16.mxu0 0
  %1331 = vmatpush1.bf16.msra.mxu0 %v950
  %1332 = vmatprep.subr.bf16.mxu0 0
  %1333 = vmatpush1.bf16.msra.mxu0 %v951
  %1334 = vmatprep.subr.bf16.mxu0 0
  %1335 = vmatpush1.bf16.msra.mxu0 %v952
  %1336 = vmatprep.subr.bf16.mxu0 0
  %1337 = vmatpush1.bf16.msra.mxu0 %v953
  %1338 = vmatprep.subr.bf16.mxu0 0
  %1339 = vmatpush1.bf16.msra.mxu0 %v954
  %1340 = vmatprep.subr.bf16.mxu0 0
  %1341 = vmatpush1.bf16.msra.mxu0 %v955
  %1342 = vmatprep.subr.bf16.mxu0 0
  %1343 = vmatpush1.bf16.msra.mxu0 %v956
  %1344 = vmatprep.subr.bf16.mxu0 0
  %1345 = vmatpush1.bf16.msra.mxu0 %v957
  %1346 = vmatprep.subr.bf16.mxu0 0
  %1347 = vmatpush1.bf16.msra.mxu0 %v958
  %1348 = vmatprep.subr.bf16.mxu0 0
  %1349 = vmatpush1.bf16.msra.mxu0 %v959
  %1350 = vmatprep.subr.bf16.mxu0 0
  %1351 = vmatpush1.bf16.msra.mxu0 %v960
  %1352 = vmatprep.subr.bf16.mxu0 0
  %1353 = vmatpush1.bf16.msra.mxu0 %v961
  %1354 = vmatprep.mubr.bf16.mxu0 %v333
  %1355 = vmatmul.mubr.bf16.gmra.mrb[0].mxu0 %v332
  %v1356 = vpop.f32.mrb[0].mxu0
  %v1357 = vadd.f32 %v1317, %v1356
  %v1358 = vpop.f32.mrb[0].mxu0
  %v1359 = vpop.f32.mrb[0].mxu0
  %v1360 = vpop.f32.mrb[0].mxu0
  %1361 = vdwg.mxu0
  %1362 = vmatprep.subr.bf16.mxu0 0
  %1363 = vmatpush1.bf16.msra.mxu0 %v962
  %1364 = vmatprep.subr.bf16.mxu0 0
  %1365 = vmatpush1.bf16.msra.mxu0 %v963
  %1366 = vmatprep.subr.bf16.mxu0 0
  %1367 = vmatpush1.bf16.msra.mxu0 %v964
  %1368 = vmatprep.subr.bf16.mxu0 0
  %1369 = vmatpush1.bf16.msra.mxu0 %v965
  %1370 = vmatprep.subr.bf16.mxu0 0
  %1371 = vmatpush1.bf16.msra.mxu0 %v966
  %1372 = vmatprep.subr.bf16.mxu0 0
  %1373 = vmatpush1.bf16.msra.mxu0 %v967
  %1374 = vmatprep.subr.bf16.mxu0 0
  %1375 = vmatpush1.bf16.msra.mxu0 %v968
  %1376 = vmatprep.subr.bf16.mxu0 0
  %1377 = vmatpush1.bf16.msra.mxu0 %v969
  %1378 = vmatprep.subr.bf16.mxu0 0
  %1379 = vmatpush1.bf16.msra.mxu0 %v970
  %1380 = vmatprep.subr.bf16.mxu0 0
  %1381 = vmatpush1.bf16.msra.mxu0 %v971
  %1382 = vmatprep.subr.bf16.mxu0 0
  %1383 = vmatpush1.bf16.msra.mxu0 %v972
  %1384 = vmatprep.subr.bf16.mxu0 0
  %1385 = vmatpush1.bf16.msra.mxu0 %v973
  %1386 = vmatprep.subr.bf16.mxu0 0
  %1387 = vmatpush1.bf16.msra.mxu0 %v974
  %1388 = vmatprep.subr.bf16.mxu0 0
  %1389 = vmatpush1.bf16.msra.mxu0 %v975
  %1390 = vmatprep.subr.bf16.mxu0 0
  %1391 = vmatpush1.bf16.msra.mxu0 %v976
  %1392 = vmatprep.subr.bf16.mxu0 0
  %1393 = vmatpush1.bf16.msra.mxu0 %v977
  %1394 = vmatprep.mubr.bf16.mxu0 %v335
  %1395 = vmatmul.mubr.bf16.gmra.mrb[0].mxu0 %v334
  %v1396 = vpop.f32.mrb[0].mxu0
  %v1397 = vadd.f32 %v1357, %v1396
  %v1398 = vpop.f32.mrb[0].mxu0
  %v1399 = vpop.f32.mrb[0].mxu0
  %v1400 = vpop.f32.mrb[0].mxu0
  %1401 = vdwg.mxu0
  %1402 = vmatprep.subr.bf16.mxu0 0
  %1403 = vmatpush1.bf16.msra.mxu0 %v978
  %1404 = vmatprep.subr.bf16.mxu0 0
  %1405 = vmatpush1.bf16.msra.mxu0 %v979
  %1406 = vmatprep.subr.bf16.mxu0 0
  %1407 = vmatpush1.bf16.msra.mxu0 %v980
  %1408 = vmatprep.subr.bf16.mxu0 0
  %1409 = vmatpush1.bf16.msra.mxu0 %v981
  %1410 = vmatprep.subr.bf16.mxu0 0
  %1411 = vmatpush1.bf16.msra.mxu0 %v982
  %1412 = vmatprep.subr.bf16.mxu0 0
  %1413 = vmatpush1.bf16.msra.mxu0 %v983
  %1414 = vmatprep.subr.bf16.mxu0 0
  %1415 = vmatpush1.bf16.msra.mxu0 %v984
  %1416 = vmatprep.subr.bf16.mxu0 0
  %1417 = vmatpush1.bf16.msra.mxu0 %v985
  %1418 = vmatprep.subr.bf16.mxu0 0
  %1419 = vmatpush1.bf16.msra.mxu0 %v986
  %1420 = vmatprep.subr.bf16.mxu0 0
  %1421 = vmatpush1.bf16.msra.mxu0 %v987
  %1422 = vmatprep.subr.bf16.mxu0 0
  %1423 = vmatpush1.bf16.msra.mxu0 %v988
  %1424 = vmatprep.subr.bf16.mxu0 0
  %1425 = vmatpush1.bf16.msra.mxu0 %v989
  %1426 = vmatprep.subr.bf16.mxu0 0
  %1427 = vmatpush1.bf16.msra.mxu0 %v990
  %1428 = vmatprep.subr.bf16.mxu0 0
  %1429 = vmatpush1.bf16.msra.mxu0 %v991
  %1430 = vmatprep.subr.bf16.mxu0 0
  %1431 = vmatpush1.bf16.msra.mxu0 %v992
  %1432 = vmatprep.subr.bf16.mxu0 0
  %1433 = vmatpush1.bf16.msra.mxu0 %v993
  %1434 = vmatprep.mubr.bf16.mxu0 %v337
  %1435 = vmatmul.mubr.bf16.gmra.mrb[0].mxu0 %v336
  %v1436 = vpop.f32.mrb[0].mxu0
  %v1437 = vadd.f32 %v1397, %v1436
  %v1438 = vpop.f32.mrb[0].mxu0
  %v1439 = vpop.f32.mrb[0].mxu0
  %v1440 = vpop.f32.mrb[0].mxu0
  %1441 = vdwg.mxu0
  %v1442 = vmax.f32 %v1437, 0.0
  %v1443 = vpack.c.bf16 %v1442, %v1442
  %v1444 = vld [vmem:[%s3] sm:$0xf]
  %v1445 = vld [vmem:[%s3 + $0x4] sm:$0xf]
  %v1446 = vld [vmem:[%s3 + $0x8] sm:$0xf]
  %v1447 = vld [vmem:[%s3 + $0xc] sm:$0xf]
  %v1448 = vld [vmem:[%s3 + $0x10] sm:$0xf]
  %v1449 = vld [vmem:[%s3 + $0x14] sm:$0xf]
  %v1450 = vld [vmem:[%s3 + $0x18] sm:$0xf]
  %v1451 = vld [vmem:[%s3 + $0x1c] sm:$0xf]
  %v1452 = vld [vmem:[%s3 + $0x20] sm:$0xf]
  %v1453 = vld [vmem:[%s3 + $0x24] sm:$0xf]
  %v1454 = vld [vmem:[%s3 + $0x28] sm:$0xf]
  %v1455 = vld [vmem:[%s3 + $0x2c] sm:$0xf]
  %v1456 = vld [vmem:[%s3 + $0x30] sm:$0xf]
  %v1457 = vld [vmem:[%s3 + $0x34] sm:$0xf]
  %v1458 = vld [vmem:[%s3 + $0x38] sm:$0xf]
  %v1459 = vld [vmem:[%s3 + $0x3c] sm:$0xf]
  %v1460 = vld [vmem:[%s4] sm:$0x1]
  %v1462 = vlaneseq
  %v1463 = vshrl.u32 %v1462, 7
  %v1464 = vsub.s32 0, %v1463
  %v1465 = vrot.slane %v1460, %v1464
  %v1483 = vunpack.c.l.b16 %v1444
  %v1484 = vunpack.c.l.b16 %v1445
  %v1485 = vunpack.c.l.b16 %v1446
  %v1486 = vunpack.c.l.b16 %v1447
  %v1487 = vunpack.c.l.b16 %v1448
  %v1488 = vunpack.c.l.b16 %v1449
  %v1489 = vunpack.c.l.b16 %v1450
  %v1490 = vunpack.c.l.b16 %v1451
  %v1491 = vunpack.c.l.b16 %v1452
  %v1492 = vunpack.c.l.b16 %v1453
  %v1493 = vunpack.c.l.b16 %v1454
  %v1494 = vunpack.c.l.b16 %v1455
  %v1495 = vunpack.c.l.b16 %v1456
  %v1496 = vunpack.c.l.b16 %v1457
  %v1497 = vunpack.c.l.b16 %v1458
  %v1498 = vunpack.c.l.b16 %v1459
  %v1499 = vpack.c.b16 %v1484, %v1483
  %v1500 = vpack.c.b16 %v1486, %v1485
  %v1501 = vpack.c.b16 %v1488, %v1487
  %v1502 = vpack.c.b16 %v1490, %v1489
  %v1503 = vpack.c.b16 %v1492, %v1491
  %v1504 = vpack.c.b16 %v1494, %v1493
  %v1505 = vpack.c.b16 %v1496, %v1495
  %v1506 = vpack.c.b16 %v1498, %v1497
  %1515 = vmatprep.subr.bf16.mxu0 0
  %1516 = vmatpush1.bf16.msra.mxu0 %v1499
  %1517 = vmatprep.subr.bf16.mxu0 0
  %1518 = vmatpush1.bf16.msra.mxu0 %v1500
  %1519 = vmatprep.subr.bf16.mxu0 0
  %1520 = vmatpush1.bf16.msra.mxu0 %v1501
  %1521 = vmatprep.subr.bf16.mxu0 0
  %1522 = vmatpush1.bf16.msra.mxu0 %v1502
  %1523 = vmatprep.subr.bf16.mxu0 0
  %1524 = vmatpush1.bf16.msra.mxu0 %v1503
  %1525 = vmatprep.subr.bf16.mxu0 0
  %1526 = vmatpush1.bf16.msra.mxu0 %v1504
  %1527 = vmatprep.subr.bf16.mxu0 0
  %1528 = vmatpush1.bf16.msra.mxu0 %v1505
  %1529 = vmatprep.subr.bf16.mxu0 0
  %1530 = vmatpush1.bf16.msra.mxu0 %v1506
  %1531 = vmatprep.subr.bf16.mxu0 0
  %1532 = vmatpush1.bf16.msra.mxu0 0
  %1533 = vmatprep.subr.bf16.mxu0 0
  %1534 = vmatpush1.bf16.msra.mxu0 0
  %1535 = vmatprep.subr.bf16.mxu0 0
  %1536 = vmatpush1.bf16.msra.mxu0 0
  %1537 = vmatprep.subr.bf16.mxu0 0
  %1538 = vmatpush1.bf16.msra.mxu0 0
  %1539 = vmatprep.subr.bf16.mxu0 0
  %1540 = vmatpush1.bf16.msra.mxu0 0
  %1541 = vmatprep.subr.bf16.mxu0 0
  %1542 = vmatpush1.bf16.msra.mxu0 0
  %1543 = vmatprep.subr.bf16.mxu0 0
  %1544 = vmatpush1.bf16.msra.mxu0 0
  %1545 = vmatprep.subr.bf16.mxu0 0
  %1546 = vmatpush1.bf16.msra.mxu0 0
  %1547 = vmatprep.mubr.bf16.mxu0 0
  %1548 = vmatmul.mubr.bf16.gmra.mrb[0].mxu0 %v1443
  %v1549 = vpop.f32.mrb[0].mxu0
  %v1550 = vadd.f32 %v1465, %v1549
  %v1551 = vpop.f32.mrb[0].mxu0
  %v1552 = vpop.f32.mrb[0].mxu0
  %v1553 = vpop.f32.mrb[0].mxu0
  %1554 = vdwg.mxu0
  %v1555 = vmax.f32 %v1550, 0.0
  %v1556 = vpack.c.bf16 %v1555, %v1555
  %v1557 = vld [vmem:[%s5] sm:$0xf]
  %v1558 = vld [vmem:[%s5 + $0x4] sm:$0xf]
  %v1559 = vld [vmem:[%s5 + $0x8] sm:$0xf]
  %v1560 = vld [vmem:[%s5 + $0xc] sm:$0xf]
  %v1561 = vld [vmem:[%s5 + $0x10] sm:$0xf]
  %v1562 = vld [vmem:[%s5 + $0x14] sm:$0xf]
  %v1563 = vld [vmem:[%s5 + $0x18] sm:$0xf]
  %v1564 = vld [vmem:[%s5 + $0x1c] sm:$0xf]
  %v1565 = vld [vmem:[%s5 + $0x20] sm:$0xf]
  %v1566 = vld [vmem:[%s5 + $0x24] sm:$0xf]
  %v1567 = vld [vmem:[%s5 + $0x28] sm:$0xf]
  %v1568 = vld [vmem:[%s5 + $0x2c] sm:$0xf]
  %v1569 = vld [vmem:[%s5 + $0x30] sm:$0xf]
  %v1570 = vld [vmem:[%s5 + $0x34] sm:$0xf]
  %v1571 = vld [vmem:[%s5 + $0x38] sm:$0xf]
  %v1572 = vld [vmem:[%s5 + $0x3c] sm:$0xf]
  %v1573 = vld [vmem:[%s6] sm:$0x1]
  %v1575 = vlaneseq
  %v1576 = vshrl.u32 %v1575, 7
  %v1577 = vsub.s32 0, %v1576
  %v1578 = vrot.slane %v1573, %v1577
  %v1596 = vunpack.c.l.b16 %v1557
  %v1597 = vunpack.c.l.b16 %v1558
  %v1598 = vunpack.c.l.b16 %v1559
  %v1599 = vunpack.c.l.b16 %v1560
  %v1600 = vunpack.c.l.b16 %v1561
  %v1601 = vunpack.c.l.b16 %v1562
  %v1602 = vunpack.c.l.b16 %v1563
  %v1603 = vunpack.c.l.b16 %v1564
  %v1604 = vunpack.c.l.b16 %v1565
  %v1605 = vunpack.c.l.b16 %v1566
  %v1606 = vunpack.c.l.b16 %v1567
  %v1607 = vunpack.c.l.b16 %v1568
  %v1608 = vunpack.c.l.b16 %v1569
  %v1609 = vunpack.c.l.b16 %v1570
  %v1610 = vunpack.c.l.b16 %v1571
  %v1611 = vunpack.c.l.b16 %v1572
  %v1612 = vpack.c.b16 %v1597, %v1596
  %v1613 = vpack.c.b16 %v1599, %v1598
  %v1614 = vpack.c.b16 %v1601, %v1600
  %v1615 = vpack.c.b16 %v1603, %v1602
  %v1616 = vpack.c.b16 %v1605, %v1604
  %v1617 = vpack.c.b16 %v1607, %v1606
  %v1618 = vpack.c.b16 %v1609, %v1608
  %v1619 = vpack.c.b16 %v1611, %v1610
  %1628 = vmatprep.subr.bf16.mxu0 0
  %1629 = vmatpush1.bf16.msra.mxu0 %v1612
  %1630 = vmatprep.subr.bf16.mxu0 0
  %1631 = vmatpush1.bf16.msra.mxu0 %v1613
  %1632 = vmatprep.subr.bf16.mxu0 0
  %1633 = vmatpush1.bf16.msra.mxu0 %v1614
  %1634 = vmatprep.subr.bf16.mxu0 0
  %1635 = vmatpush1.bf16.msra.mxu0 %v1615
  %1636 = vmatprep.subr.bf16.mxu0 0
  %1637 = vmatpush1.bf16.msra.mxu0 %v1616
  %1638 = vmatprep.subr.bf16.mxu0 0
  %1639 = vmatpush1.bf16.msra.mxu0 %v1617
  %1640 = vmatprep.subr.bf16.mxu0 0
  %1641 = vmatpush1.bf16.msra.mxu0 %v1618
  %1642 = vmatprep.subr.bf16.mxu0 0
  %1643 = vmatpush1.bf16.msra.mxu0 %v1619
  %1644 = vmatprep.subr.bf16.mxu0 0
  %1645 = vmatpush1.bf16.msra.mxu0 0
  %1646 = vmatprep.subr.bf16.mxu0 0
  %1647 = vmatpush1.bf16.msra.mxu0 0
  %1648 = vmatprep.subr.bf16.mxu0 0
  %1649 = vmatpush1.bf16.msra.mxu0 0
  %1650 = vmatprep.subr.bf16.mxu0 0
  %1651 = vmatpush1.bf16.msra.mxu0 0
  %1652 = vmatprep.subr.bf16.mxu0 0
  %1653 = vmatpush1.bf16.msra.mxu0 0
  %1654 = vmatprep.subr.bf16.mxu0 0
  %1655 = vmatpush1.bf16.msra.mxu0 0
  %1656 = vmatprep.subr.bf16.mxu0 0
  %1657 = vmatpush1.bf16.msra.mxu0 0
  %1658 = vmatprep.subr.bf16.mxu0 0
  %1659 = vmatpush1.bf16.msra.mxu0 0
  %1660 = vmatprep.mubr.bf16.mxu0 0
  %1661 = vmatmul.mubr.bf16.gmra.mrb[0].mxu0 %v1556
  %v1662 = vpop.f32.mrb[0].mxu0
  %v1663 = vadd.f32 %v1578, %v1662
  %v1664 = vpop.f32.mrb[0].mxu0
  %v1665 = vpop.f32.mrb[0].mxu0
  %v1666 = vpop.f32.mrb[0].mxu0
  %1667 = vdwg.mxu0
  %v1668 = vmul.f32 %v1663, %v1663
  %1669 = vadd.xlane.f32.xlu0 %v1668
  %v1670 = vpop.xlane.xlu0 %1669
  %v1671 = vadd.f32 %v1670, 1e-12
  %v1672 = vrsqrt.pop %v1671
  %v1673 = vmul.f32 %v1663, %v1672
  %1674 = vst [vmem:[%s7] sm:$0xff] %v1673
  // Predicated region
  $region30: #{img_encoder_forward.3} parent=0 // pred_check
    _
  $region31: #{img_encoder_forward.3} parent=0 // pred_check_branch
    %1676 = sbr.rel (0) target = $region33
  $region32: #{img_encoder_forward.3} parent=0 // pred_region
    _
  $region33: #{img_encoder_forward.3} parent=0 // pred_fallthru
    _
  // Predicated region
  $region34: #{img_encoder_forward.3} parent=0 // pred_check
    _
  $region35: #{img_encoder_forward.3} parent=0 // pred_check_branch
    %1678 = sbr.rel (0) target = $region37
  $region36: #{img_encoder_forward.3} parent=0 // pred_region
    _
  $region37: #{img_encoder_forward.3} parent=0 // pred_fallthru
    _

// kernel: img_encoder_forward.2
$region0: #{img_encoder_forward.2}
  #allocation0 [shape = 'u32[]', space=smem, size = 0x4, offset = 0x4, fixed_abs, tag = 'smem constant byte address 0x4 - core index']
  #allocation1 [shape = 'u32[144,128]{1,0:T(1,128)}', space=vmem, size = 0x12000, scoped, tag = 'internal scratch']
  #allocation2 [shape = 'f32[352,128]{1,0:T(8,128)}', space=vmem, size = 0x2c000, scoped, tag = 'scratch operand']
  #allocation3 [shape = 'f32[120,128]{1,0:T(8,128)}', space=vmem, size = 0xf000, scoped, tag = 'scratch operand']
  %s0 = inlined_call_operand.vmem [shape: bf16[2,256,32], index: 0, kind: input, shape index: {}]
  %s1 = inlined_call_operand.vmem [shape: bf16[32,128], index: 1, kind: input, shape index: {}]
  %s2 = inlined_call_operand.vmem [shape: f32[1,128], index: 2, kind: input, shape index: {}]
  %s3 = inlined_call_operand.vmem [shape: bf16[1152,128], index: 3, kind: input, shape index: {}]
  %s4 = inlined_call_operand.vmem [shape: f32[1,128], index: 4, kind: input, shape index: {}]
  %s5 = inlined_call_operand.vmem [shape: bf16[1152,128], index: 5, kind: input, shape index: {}]
  %s6 = inlined_call_operand.vmem [shape: f32[1,128], index: 6, kind: input, shape index: {}]
  %s7 = inlined_call_operand.vmem [shape: bf16[64,288], index: 7, kind: input, shape index: {}]
  %s8 = inlined_call_operand.vmem [shape: bf16[16,80], index: 8, kind: input, shape index: {}]
  %s9 = inlined_call_operand.vmem [shape: bf16[2,16,128], index: 9, kind: output, shape index: {}]
  %s10 = sld [smem:[#allocation0]]
  $region69: #{img_encoder_forward.2} parent=0
    _
  %s12 = ssub.s32 1, %s10
  %s13 = scalar_select 0, %s12, %s10
  loop: start=0, step=1, limit=4
  $region2: #{img_encoder_forward.2} parent=0 // loop_pre_header
    _
  $region3: #{img_encoder_forward.2} parent=0 // loop_header
    %s15 = sphi 0, %s19
    %p16 = scmp.ge.s32.totalorder %s15, 4
    %s25 = sphi 0, %s27
    %s28 = sphi 0, %s25
    %s29 = sphi 0, %s28
    %s45 = sphi 0, %s29
    %s49 = sphi 0, %s49
    %s51 = sphi 0, %s49
    %s52 = sphi 0, %s51
    %s66 = sphi 0, %s52
    %s70 = sphi 0, %s70
    %s72 = sphi 0, %s70
    %s73 = sphi 0, %s72
    %s87 = sphi 0, %s73
    %s91 = sphi 0, %s91
    %s93 = sphi 0, %s91
    %s94 = sphi 0, %s93
    %s108 = sphi 0, %s94
    %s112 = sphi 0, %s112
    %s114 = sphi 0, %s112
    %s115 = sphi 0, %s114
    %s129 = sphi 0, %s115
    %s133 = sphi 0, %s133
    %s135 = sphi 0, %s133
    %s136 = sphi 0, %s135
    %s150 = sphi 0, %s136
    %s154 = sphi 0, %s154
    %s156 = sphi 0, %s154
    %s157 = sphi 0, %s156
    %s171 = sphi 0, %s157
    %s175 = sphi 0, %s175
    %s177 = sphi 0, %s175
    %s178 = sphi 0, %s177
    %s192 = sphi 0, %s178
    %s196 = sphi 0, %s196
    %s198 = sphi 0, %s196
    %s199 = sphi 0, %s198
    %s213 = sphi 0, %s199
    %s219 = sphi 0, %s221
    %s222 = sphi 0, %s219
    %s223 = sphi 0, %s222
    %s239 = sphi 0, %s223
  $region4: #{img_encoder_forward.2} parent=0 // loop_header_branch
    %18 = sbr.rel (%p16) target = $region8
  $region5: #{img_encoder_forward.2} parent=0 // loop_body
    %s20 = ssub.s32 %s15, 1
    %s21 = ssub.s32 %s15, 2
    %s22 = sadd.s32 %s15, 1
    %s23 = ssub.s32 %s15, %s22
    %p24 = scmp.eq.s32.totalorder %s23, 0
    %s26 = sadd.s32 %s25, 1
    %s27 = scalar_select %p24, %s25, %s26
    %p30 = pneg %p24
    %p31 = scmp.eq.s32.totalorder %s15, 1
    %p32 = por %p30, %p31
    %p33 = scmp.ne.s32.totalorder %s25, %s28
    %p34 = scmp.eq.s32.totalorder %s15, 0
    %p35 = por %p33, %p34
    %p36 = scmp.ne.s32.totalorder %s25, %s28
    %p37 = scmp.eq.s32.totalorder %s20, 1
    %p38 = por %p36, %p37
    %p39 = scmp.ne.s32.totalorder %s28, %s29
    %p40 = scmp.eq.s32.totalorder %s20, 0
    %p41 = por %p39, %p40
    %p42 = scmp.ne.s32.totalorder %s28, %s29
    %p43 = scmp.eq.s32.totalorder %s21, 1
    %p44 = por %p42, %p43
    %p46 = scmp.ne.s32.totalorder %s29, %s45
    %p47 = scmp.eq.s32.totalorder %s21, 0
    %p48 = por %p46, %p47
    %s50 = sadd.s32 %s49, 1
    %p53 = scmp.eq.s32.totalorder %s15, 1
    %p54 = scmp.ne.s32.totalorder %s49, %s51
    %p55 = scmp.eq.s32.totalorder %s15, 0
    %p56 = por %p54, %p55
    %p57 = scmp.ne.s32.totalorder %s49, %s51
    %p58 = scmp.eq.s32.totalorder %s20, 1
    %p59 = por %p57, %p58
    %p60 = scmp.ne.s32.totalorder %s51, %s52
    %p61 = scmp.eq.s32.totalorder %s20, 0
    %p62 = por %p60, %p61
    %p63 = scmp.ne.s32.totalorder %s51, %s52
    %p64 = scmp.eq.s32.totalorder %s21, 1
    %p65 = por %p63, %p64
    %p67 = scmp.ne.s32.totalorder %s52, %s66
    %p68 = scmp.eq.s32.totalorder %s21, 0
    %p69 = por %p67, %p68
    %s71 = sadd.s32 %s70, 1
    %p74 = scmp.eq.s32.totalorder %s15, 1
    %p75 = scmp.ne.s32.totalorder %s70, %s72
    %p76 = scmp.eq.s32.totalorder %s15, 0
    %p77 = por %p75, %p76
    %p78 = scmp.ne.s32.totalorder %s70, %s72
    %p79 = scmp.eq.s32.totalorder %s20, 1
    %p80 = por %p78, %p79
    %p81 = scmp.ne.s32.totalorder %s72, %s73
    %p82 = scmp.eq.s32.totalorder %s20, 0
    %p83 = por %p81, %p82
    %p84 = scmp.ne.s32.totalorder %s72, %s73
    %p85 = scmp.eq.s32.totalorder %s21, 1
    %p86 = por %p84, %p85
    %p88 = scmp.ne.s32.totalorder %s73, %s87
    %p89 = scmp.eq.s32.totalorder %s21, 0
    %p90 = por %p88, %p89
    %s92 = sadd.s32 %s91, 1
    %p95 = scmp.eq.s32.totalorder %s15, 1
    %p96 = scmp.ne.s32.totalorder %s91, %s93
    %p97 = scmp.eq.s32.totalorder %s15, 0
    %p98 = por %p96, %p97
    %p99 = scmp.ne.s32.totalorder %s91, %s93
    %p100 = scmp.eq.s32.totalorder %s20, 1
    %p101 = por %p99, %p100
    %p102 = scmp.ne.s32.totalorder %s93, %s94
    %p103 = scmp.eq.s32.totalorder %s20, 0
    %p104 = por %p102, %p103
    %p105 = scmp.ne.s32.totalorder %s93, %s94
    %p106 = scmp.eq.s32.totalorder %s21, 1
    %p107 = por %p105, %p106
    %p109 = scmp.ne.s32.totalorder %s94, %s108
    %p110 = scmp.eq.s32.totalorder %s21, 0
    %p111 = por %p109, %p110
    %s113 = sadd.s32 %s112, 1
    %p116 = scmp.eq.s32.totalorder %s15, 1
    %p117 = scmp.ne.s32.totalorder %s112, %s114
    %p118 = scmp.eq.s32.totalorder %s15, 0
    %p119 = por %p117, %p118
    %p120 = scmp.ne.s32.totalorder %s112, %s114
    %p121 = scmp.eq.s32.totalorder %s20, 1
    %p122 = por %p120, %p121
    %p123 = scmp.ne.s32.totalorder %s114, %s115
    %p124 = scmp.eq.s32.totalorder %s20, 0
    %p125 = por %p123, %p124
    %p126 = scmp.ne.s32.totalorder %s114, %s115
    %p127 = scmp.eq.s32.totalorder %s21, 1
    %p128 = por %p126, %p127
    %p130 = scmp.ne.s32.totalorder %s115, %s129
    %p131 = scmp.eq.s32.totalorder %s21, 0
    %p132 = por %p130, %p131
    %s134 = sadd.s32 %s133, 1
    %p137 = scmp.eq.s32.totalorder %s15, 1
    %p138 = scmp.ne.s32.totalorder %s133, %s135
    %p139 = scmp.eq.s32.totalorder %s15, 0
    %p140 = por %p138, %p139
    %p141 = scmp.ne.s32.totalorder %s133, %s135
    %p142 = scmp.eq.s32.totalorder %s20, 1
    %p143 = por %p141, %p142
    %p144 = scmp.ne.s32.totalorder %s135, %s136
    %p145 = scmp.eq.s32.totalorder %s20, 0
    %p146 = por %p144, %p145
    %p147 = scmp.ne.s32.totalorder %s135, %s136
    %p148 = scmp.eq.s32.totalorder %s21, 1
    %p149 = por %p147, %p148
    %p151 = scmp.ne.s32.totalorder %s136, %s150
    %p152 = scmp.eq.s32.totalorder %s21, 0
    %p153 = por %p151, %p152
    %s155 = sadd.s32 %s154, 1
    %p158 = scmp.eq.s32.totalorder %s15, 1
    %p159 = scmp.ne.s32.totalorder %s154, %s156
    %p160 = scmp.eq.s32.totalorder %s15, 0
    %p161 = por %p159, %p160
    %p162 = scmp.ne.s32.totalorder %s154, %s156
    %p163 = scmp.eq.s32.totalorder %s20, 1
    %p164 = por %p162, %p163
    %p165 = scmp.ne.s32.totalorder %s156, %s157
    %p166 = scmp.eq.s32.totalorder %s20, 0
    %p167 = por %p165, %p166
    %p168 = scmp.ne.s32.totalorder %s156, %s157
    %p169 = scmp.eq.s32.totalorder %s21, 1
    %p170 = por %p168, %p169
    %p172 = scmp.ne.s32.totalorder %s157, %s171
    %p173 = scmp.eq.s32.totalorder %s21, 0
    %p174 = por %p172, %p173
    %s176 = sadd.s32 %s175, 1
    %p179 = scmp.eq.s32.totalorder %s15, 1
    %p180 = scmp.ne.s32.totalorder %s175, %s177
    %p181 = scmp.eq.s32.totalorder %s15, 0
    %p182 = por %p180, %p181
    %p183 = scmp.ne.s32.totalorder %s175, %s177
    %p184 = scmp.eq.s32.totalorder %s20, 1
    %p185 = por %p183, %p184
    %p186 = scmp.ne.s32.totalorder %s177, %s178
    %p187 = scmp.eq.s32.totalorder %s20, 0
    %p188 = por %p186, %p187
    %p189 = scmp.ne.s32.totalorder %s177, %s178
    %p190 = scmp.eq.s32.totalorder %s21, 1
    %p191 = por %p189, %p190
    %p193 = scmp.ne.s32.totalorder %s178, %s192
    %p194 = scmp.eq.s32.totalorder %s21, 0
    %p195 = por %p193, %p194
    %s197 = sadd.s32 %s196, 1
    %p200 = scmp.eq.s32.totalorder %s15, 1
    %p201 = scmp.ne.s32.totalorder %s196, %s198
    %p202 = scmp.eq.s32.totalorder %s15, 0
    %p203 = por %p201, %p202
    %p204 = scmp.ne.s32.totalorder %s196, %s198
    %p205 = scmp.eq.s32.totalorder %s20, 1
    %p206 = por %p204, %p205
    %p207 = scmp.ne.s32.totalorder %s198, %s199
    %p208 = scmp.eq.s32.totalorder %s20, 0
    %p209 = por %p207, %p208
    %p210 = scmp.ne.s32.totalorder %s198, %s199
    %p211 = scmp.eq.s32.totalorder %s21, 1
    %p212 = por %p210, %p211
    %p214 = scmp.ne.s32.totalorder %s199, %s213
    %p215 = scmp.eq.s32.totalorder %s21, 0
    %p216 = por %p214, %p215
    %s217 = ssub.s32 %s15, %s22
    %p218 = scmp.eq.s32.totalorder %s217, 0
    %s220 = sadd.s32 %s219, 1
    %s221 = scalar_select %p218, %s219, %s220
    %p224 = pneg %p218
    %p225 = scmp.eq.s32.totalorder %s15, 1
    %p226 = por %p224, %p225
    %p227 = scmp.ne.s32.totalorder %s219, %s222
    %p228 = scmp.eq.s32.totalorder %s15, 0
    %p229 = por %p227, %p228
    %p230 = scmp.ne.s32.totalorder %s219, %s222
    %p231 = scmp.eq.s32.totalorder %s20, 1
    %p232 = por %p230, %p231
    %p233 = scmp.ne.s32.totalorder %s222, %s223
    %p234 = scmp.eq.s32.totalorder %s20, 0
    %p235 = por %p233, %p234
    %p236 = scmp.ne.s32.totalorder %s222, %s223
    %p237 = scmp.eq.s32.totalorder %s21, 1
    %p238 = por %p236, %p237
    %p240 = scmp.ne.s32.totalorder %s223, %s239
    %p241 = scmp.eq.s32.totalorder %s21, 0
    %p242 = por %p240, %p241
    %p243 = scmp.le.s32.totalorder 1, %s15
    %p244 = scmp.lt.s32.totalorder %s15, 3
    %p245 = pnand %p243, %p244
    %p246 = pneg %p245
    // Predicated region
    $region9: #{img_encoder_forward.2} parent=5 // pred_check
      _
    $region10: #{img_encoder_forward.2} parent=5 // pred_check_branch
      %248 = sbr.rel (%p245) target = $region12
    $region11: #{img_encoder_forward.2} parent=5 // pred_region
      %s249 = ssub.s32 %s15, 1
      // Predicated region
      $region13: #{img_encoder_forward.2} parent=11 // pred_check
        %p250 = pneg %p62
      $region14: #{img_encoder_forward.2} parent=11 // pred_check_branch
        %252 = sbr.rel (%p250) target = $region16
      $region15: #{img_encoder_forward.2} parent=11 // pred_region
        _
      $region16: #{img_encoder_forward.2} parent=11 // pred_fallthru
        _
      // Predicated region
      $region17: #{img_encoder_forward.2} parent=11 // pred_check
        %p253 = pneg %p83
      $region18: #{img_encoder_forward.2} parent=11 // pred_check_branch
        %255 = sbr.rel (%p253) target = $region20
      $region19: #{img_encoder_forward.2} parent=11 // pred_region
        _
      $region20: #{img_encoder_forward.2} parent=11 // pred_fallthru
        _
      // Predicated region
      $region21: #{img_encoder_forward.2} parent=11 // pred_check
        %p256 = pneg %p104
      $region22: #{img_encoder_forward.2} parent=11 // pred_check_branch
        %258 = sbr.rel (%p256) target = $region24
      $region23: #{img_encoder_forward.2} parent=11 // pred_region
        _
      $region24: #{img_encoder_forward.2} parent=11 // pred_fallthru
        _
      // Predicated region
      $region25: #{img_encoder_forward.2} parent=11 // pred_check
        %p259 = pneg %p125
      $region26: #{img_encoder_forward.2} parent=11 // pred_check_branch
        %261 = sbr.rel (%p259) target = $region28
      $region27: #{img_encoder_forward.2} parent=11 // pred_region
        _
      $region28: #{img_encoder_forward.2} parent=11 // pred_fallthru
        _
      // Predicated region
      $region29: #{img_encoder_forward.2} parent=11 // pred_check
        %p262 = pneg %p146
      $region30: #{img_encoder_forward.2} parent=11 // pred_check_branch
        %264 = sbr.rel (%p262) target = $region32
      $region31: #{img_encoder_forward.2} parent=11 // pred_region
        _
      $region32: #{img_encoder_forward.2} parent=11 // pred_fallthru
        _
      // Predicated region
      $region33: #{img_encoder_forward.2} parent=11 // pred_check
        %p265 = pneg %p167
      $region34: #{img_encoder_forward.2} parent=11 // pred_check_branch
        %267 = sbr.rel (%p265) target = $region36
      $region35: #{img_encoder_forward.2} parent=11 // pred_region
        _
      $region36: #{img_encoder_forward.2} parent=11 // pred_fallthru
        _
      // Predicated region
      $region37: #{img_encoder_forward.2} parent=11 // pred_check
        %p268 = pneg %p188
      $region38: #{img_encoder_forward.2} parent=11 // pred_check_branch
        %270 = sbr.rel (%p268) target = $region40
      $region39: #{img_encoder_forward.2} parent=11 // pred_region
        _
      $region40: #{img_encoder_forward.2} parent=11 // pred_fallthru
        _
      // Predicated region
      $region41: #{img_encoder_forward.2} parent=11 // pred_check
        %p271 = pneg %p209
      $region42: #{img_encoder_forward.2} parent=11 // pred_check_branch
        %273 = sbr.rel (%p271) target = $region44
      $region43: #{img_encoder_forward.2} parent=11 // pred_region
        _
      $region44: #{img_encoder_forward.2} parent=11 // pred_fallthru
        _
    $region12: #{img_encoder_forward.2} parent=5 // pred_fallthru
      _
    %p274 = scmp.lt.s32.totalorder %s15, 2
    // Predicated region
    $region45: #{img_encoder_forward.2} parent=5 // pred_check
      %p275 = pneg %p274
    $region46: #{img_encoder_forward.2} parent=5 // pred_check_branch
      %277 = sbr.rel (%p275) target = $region48
    $region47: #{img_encoder_forward.2} parent=5 // pred_region
      // Predicated region
      $region49: #{img_encoder_forward.2} parent=47 // pred_check
        %p278 = pneg %p35
      $region50: #{img_encoder_forward.2} parent=47 // pred_check_branch
        %280 = sbr.rel (%p278) target = $region52
      $region51: #{img_encoder_forward.2} parent=47 // pred_region
        %p281 = scmp.lt.s32.totalorder %s15, 1
        %s282 = scalar_select %p281, %s15, 1
        %s283 = smul.addr %s282, 32
        %s284 = smul.addr %s283, 4
        %s285 = scalar_lea.vmem %s0, %s284
      $region52: #{img_encoder_forward.2} parent=47 // pred_fallthru
        _
    $region48: #{img_encoder_forward.2} parent=5 // pred_fallthru
      _
    %p286 = scmp.le.s32.totalorder 1, %s15
    %p287 = scmp.lt.s32.totalorder %s15, 3
    %p288 = pnand %p286, %p287
    %p289 = pneg %p288
    // Predicated region
    $region53: #{img_encoder_forward.2} parent=5 // pred_check
      _
    $region54: #{img_encoder_forward.2} parent=5 // pred_check_branch
      %291 = sbr.rel (%p288) target = $region56
    $region55: #{img_encoder_forward.2} parent=5 // pred_region
      %s292 = ssub.s32 %s15, 1
      %p293 = scmp.lt.s32.totalorder %s20, 1
      %s294 = scalar_select %p293, %s20, 1
      %s295 = smul.addr %s294, 32
      %s296 = smul.addr %s295, 4
      %s297 = scalar_lea.vmem %s0, %s296
      %p298 = pneg %p41
      %p299 = pneg %p38
      %p300 = pneg %p62
      %p301 = pneg %p59
      %p302 = pneg %p83
      %p303 = pneg %p80
      %p304 = pneg %p104
      %p305 = pneg %p101
      %p306 = pneg %p125
      %p307 = pneg %p122
      %p308 = pneg %p146
      %p309 = pneg %p143
      %p310 = pneg %p167
      %p311 = pneg %p164
      %p312 = pneg %p188
      %p313 = pneg %p185
      %p314 = pneg %p209
      %p315 = pneg %p206
      %p316 = pneg %p235
      %p317 = pneg %p232
      %p318 = scmp.lt.s32.totalorder %s20, 1
      %s319 = scalar_select %p318, %s20, 1
      %s320 = smul.addr %s319, 2
      %s321 = smul.addr %s320, 4
      %s322 = scalar_lea.vmem %s9, %s321
      %p323 = scmp.lt.s32.totalorder %s20, 1
      %s324 = scalar_select %p323, %s20, 1
      %s325 = smul.addr %s324, 32
      %s326 = smul.addr %s325, 4
      %s327 = scalar_lea.vmem %s0, %s326
      %p328 = scmp.lt.s32.totalorder %s20, 1
      %s329 = scalar_select %p328, %s20, 1
      %s330 = smul.addr %s329, 2
      %s331 = smul.addr %s330, 4
      %s332 = scalar_lea.vmem %s9, %s331
      %v334 = vld [vmem:[%s327] sm:$0xf]
      %v335 = vld [vmem:[%s327 + $0x4] sm:$0xf]
      %v336 = vld [vmem:[%s327 + $0x8] sm:$0xf]
      %v337 = vld [vmem:[%s327 + $0xc] sm:$0xf]
      %v338 = vld [vmem:[%s327 + $0x10] sm:$0xf]
      %v339 = vld [vmem:[%s327 + $0x14] sm:$0xf]
      %v340 = vld [vmem:[%s327 + $0x18] sm:$0xf]
      %v341 = vld [vmem:[%s327 + $0x1c] sm:$0xf]
      %v342 = vld [vmem:[%s327 + $0x20] sm:$0xf]
      %v343 = vld [vmem:[%s327 + $0x24] sm:$0xf]
      %v344 = vld [vmem:[%s327 + $0x28] sm:$0xf]
      %v345 = vld [vmem:[%s327 + $0x2c] sm:$0xf]
      %v346 = vld [vmem:[%s327 + $0x30] sm:$0xf]
      %v347 = vld [vmem:[%s327 + $0x34] sm:$0xf]
      %v348 = vld [vmem:[%s327 + $0x38] sm:$0xf]
      %v349 = vld [vmem:[%s327 + $0x3c] sm:$0xf]
      %v350 = vld [vmem:[%s327 + $0x40] sm:$0xf]
      %v351 = vld [vmem:[%s327 + $0x44] sm:$0xf]
      %v352 = vld [vmem:[%s327 + $0x48] sm:$0xf]
      %v353 = vld [vmem:[%s327 + $0x4c] sm:$0xf]
      %v354 = vld [vmem:[%s327 + $0x50] sm:$0xf]
      %v355 = vld [vmem:[%s327 + $0x54] sm:$0xf]
      %v356 = vld [vmem:[%s327 + $0x58] sm:$0xf]
      %v357 = vld [vmem:[%s327 + $0x5c] sm:$0xf]
      %v358 = vld [vmem:[%s327 + $0x60] sm:$0xf]
      %v359 = vld [vmem:[%s327 + $0x64] sm:$0xf]
      %v360 = vld [vmem:[%s327 + $0x68] sm:$0xf]
      %v361 = vld [vmem:[%s327 + $0x6c] sm:$0xf]
      %v362 = vld [vmem:[%s327 + $0x70] sm:$0xf]
      %v363 = vld [vmem:[%s327 + $0x74] sm:$0xf]
      %v364 = vld [vmem:[%s327 + $0x78] sm:$0xf]
      %v365 = vld [vmem:[%s327 + $0x7c] sm:$0xf]
      %v366 = vld [vmem:[%s1] sm:$0xf]
      %v367 = vld [vmem:[%s1 + $0x4] sm:$0xf]
      %v368 = vld [vmem:[%s1 + $0x8] sm:$0xf]
      %v369 = vld [vmem:[%s1 + $0xc] sm:$0xf]
      %v370 = vld [vmem:[%s2] sm:$0x1]
      %v372 = vlaneseq
      %v373 = vshrl.u32 %v372, 7
      %v374 = vsub.s32 0, %v373
      %v375 = vrot.slane %v370, %v374
      %v409 = vunpack.c.l.b16 %v334
      %v410 = vunpack.c.l.b16 %v335
      %v411 = vunpack.c.l.b16 %v336
      %v412 = vunpack.c.l.b16 %v337
      %v413 = vunpack.c.l.b16 %v338
      %v414 = vunpack.c.l.b16 %v339
      %v415 = vunpack.c.l.b16 %v340
      %v416 = vunpack.c.l.b16 %v341
      %v417 = vunpack.c.l.b16 %v342
      %v418 = vunpack.c.l.b16 %v343
      %v419 = vunpack.c.l.b16 %v344
      %v420 = vunpack.c.l.b16 %v345
      %v421 = vunpack.c.l.b16 %v346
      %v422 = vunpack.c.l.b16 %v347
      %v423 = vunpack.c.l.b16 %v348
      %v424 = vunpack.c.l.b16 %v349
      %v425 = vunpack.c.l.b16 %v350
      %v426 = vunpack.c.l.b16 %v351
      %v427 = vunpack.c.l.b16 %v352
      %v428 = vunpack.c.l.b16 %v353
      %v429 = vunpack.c.l.b16 %v354
      %v430 = vunpack.c.l.b16 %v355
      %v431 = vunpack.c.l.b16 %v356
      %v432 = vunpack.c.l.b16 %v357
      %v433 = vunpack.c.l.b16 %v358
      %v434 = vunpack.c.l.b16 %v359
      %v435 = vunpack.c.l.b16 %v360
      %v436 = vunpack.c.l.b16 %v361
      %v437 = vunpack.c.l.b16 %v362
      %v438 = vunpack.c.l.b16 %v363
      %v439 = vunpack.c.l.b16 %v364
      %v440 = vunpack.c.l.b16 %v365
      %v441 = vpack.c.b16 %v410, %v409
      %v442 = vpack.c.b16 %v412, %v411
      %v443 = vpack.c.b16 %v414, %v413
      %v444 = vpack.c.b16 %v416, %v415
      %v445 = vpack.c.b16 %v418, %v417
      %v446 = vpack.c.b16 %v420, %v419
      %v447 = vpack.c.b16 %v422, %v421
      %v448 = vpack.c.b16 %v424, %v423
      %v449 = vpack.c.b16 %v426, %v425
      %v450 = vpack.c.b16 %v428, %v427
      %v451 = vpack.c.b16 %v430, %v429
      %v452 = vpack.c.b16 %v432, %v431
      %v453 = vpack.c.b16 %v434, %v433
      %v454 = vpack.c.b16 %v436, %v435
      %v455 = vpack.c.b16 %v438, %v437
      %v456 = vpack.c.b16 %v440, %v439
      %v461 = vunpack.c.l.b16 %v366
      %v462 = vunpack.c.l.b16 %v367
      %v463 = vunpack.c.l.b16 %v368
      %v464 = vunpack.c.l.b16 %v369
      %v465 = vpack.c.b16 %v462, %v461
      %v466 = vpack.c.b16 %v464, %v463
      %vm469 = vcmask 261120
      %v471 = vsel %vm469, %v441, 0
      %v474 = vsel %vm469, %v442, 0
      %v477 = vsel %vm469, %v443, 0
      %v480 = vsel %vm469, %v444, 0
      %v483 = vsel %vm469, %v445, 0
      %v486 = vsel %vm469, %v446, 0
      %v489 = vsel %vm469, %v447, 0
      %v492 = vsel %vm469, %v448, 0
      %v495 = vsel %vm469, %v449, 0
      %v498 = vsel %vm469, %v450, 0
      %v501 = vsel %vm469, %v451, 0
      %v504 = vsel %vm469, %v452, 0
      %v507 = vsel %vm469, %v453, 0
      %v510 = vsel %vm469, %v454, 0
      %v513 = vsel %vm469, %v455, 0
      %v516 = vsel %vm469, %v456, 0
      %518 = vmatprep.subr.bf16.mxu0 0
      %519 = vmatpush1.bf16.msra.mxu0 %v465
      %520 = vmatprep.subr.bf16.mxu0 0
      %521 = vmatpush1.bf16.msra.mxu0 %v466
      %522 = vmatprep.subr.bf16.mxu0 0
      %523 = vmatpush1.bf16.msra.mxu0 0
      %524 = vmatprep.subr.bf16.mxu0 0
      %525 = vmatpush1.bf16.msra.mxu0 0
      %526 = vmatprep.subr.bf16.mxu0 0
      %527 = vmatpush1.bf16.msra.mxu0 0
      %528 = vmatprep.subr.bf16.mxu0 0
      %529 = vmatpush1.bf16.msra.mxu0 0
      %530 = vmatprep.subr.bf16.mxu0 0
      %531 = vmatpush1.bf16.msra.mxu0 0
      %532 = vmatprep.subr.bf16.mxu0 0
      %533 = vmatpush1.bf16.msra.mxu0 0
      %534 = vmatprep.subr.bf16.mxu0 0
      %535 = vmatpush1.bf16.msra.mxu0 0
      %536 = vmatprep.subr.bf16.mxu0 0
      %537 = vmatpush1.bf16.msra.mxu0 0
      %538 = vmatprep.subr.bf16.mxu0 0
      %539 = vmatpush1.bf16.msra.mxu0 0
      %540 = vmatprep.subr.bf16.mxu0 0
      %541 = vmatpush1.bf16.msra.mxu0 0
      %542 = vmatprep.subr.bf16.mxu0 0
      %543 = vmatpush1.bf16.msra.mxu0 0
      %544 = vmatprep.subr.bf16.mxu0 0
      %545 = vmatpush1.bf16.msra.mxu0 0
      %546 = vmatprep.subr.bf16.mxu0 0
      %547 = vmatpush1.bf16.msra.mxu0 0
      %548 = vmatprep.subr.bf16.mxu0 0
      %549 = vmatpush1.bf16.msra.mxu0 0
      %550 = vmatprep.mubr.bf16.mxu0 0
      %551 = vmatmul.mubr.bf16.gmra.mrb[0].mxu0 %v471
      %v552 = vpop.f32.mrb[0].mxu0
      %v553 = vadd.f32 %v375, %v552
      %v554 = vpop.f32.mrb[0].mxu0
      %v555 = vpop.f32.mrb[0].mxu0
      %v556 = vadd.f32 %v375, %v555
      %v557 = vpop.f32.mrb[0].mxu0
      %558 = vmatprep.mubr.bf16.mxu0 0
      %559 = vmatmul.mubr.bf16.gmra.mrb[0].mxu0 %v474
      %v560 = vpop.f32.mrb[0].mxu0
      %v561 = vadd.f32 %v375, %v560
      %v562 = vpop.f32.mrb[0].mxu0
      %v563 = vpop.f32.mrb[0].mxu0
      %v564 = vadd.f32 %v375, %v563
      %v565 = vpop.f32.mrb[0].mxu0
      %566 = vmatprep.mubr.bf16.mxu0 0
      %567 = vmatmul.mubr.bf16.gmra.mrb[0].mxu0 %v477
      %v568 = vpop.f32.mrb[0].mxu0
      %v569 = vadd.f32 %v375, %v568
      %v570 = vpop.f32.mrb[0].mxu0
      %v571 = vpop.f32.mrb[0].mxu0
      %v572 = vadd.f32 %v375, %v571
      %v573 = vpop.f32.mrb[0].mxu0
      %574 = vmatprep.mubr.bf16.mxu0 0
      %575 = vmatmul.mubr.bf16.gmra.mrb[0].mxu0 %v480
      %v576 = vpop.f32.mrb[0].mxu0
      %v577 = vadd.f32 %v375, %v576
      %v578 = vpop.f32.mrb[0].mxu0
      %v579 = vpop.f32.mrb[0].mxu0
      %v580 = vadd.f32 %v375, %v579
      %v581 = vpop.f32.mrb[0].mxu0
      %582 = vmatprep.mubr.bf16.mxu0 0
      %583 = vmatmul.mubr.bf16.gmra.mrb[0].mxu0 %v483
      %v584 = vpop.f32.mrb[0].mxu0
      %v585 = vadd.f32 %v375, %v584
      %v586 = vpop.f32.mrb[0].mxu0
      %v587 = vpop.f32.mrb[0].mxu0
      %v588 = vadd.f32 %v375, %v587
      %v589 = vpop.f32.mrb[0].mxu0
      %590 = vmatprep.mubr.bf16.mxu0 0
      %591 = vmatmul.mubr.bf16.gmra.mrb[0].mxu0 %v486
      %v592 = vpop.f32.mrb[0].mxu0
      %v593 = vadd.f32 %v375, %v592
      %v594 = vpop.f32.mrb[0].mxu0
      %v595 = vpop.f32.mrb[0].mxu0
      %v596 = vadd.f32 %v375, %v595
      %v597 = vpop.f32.mrb[0].mxu0
      %598 = vmatprep.mubr.bf16.mxu0 0
      %599 = vmatmul.mubr.bf16.gmra.mrb[0].mxu0 %v489
      %v600 = vpop.f32.mrb[0].mxu0
      %v601 = vadd.f32 %v375, %v600
      %v602 = vpop.f32.mrb[0].mxu0
      %v603 = vpop.f32.mrb[0].mxu0
      %v604 = vadd.f32 %v375, %v603
      %v605 = vpop.f32.mrb[0].mxu0
      %606 = vmatprep.mubr.bf16.mxu0 0
      %607 = vmatmul.mubr.bf16.gmra.mrb[0].mxu0 %v492
      %v608 = vpop.f32.mrb[0].mxu0
      %v609 = vadd.f32 %v375, %v608
      %v610 = vpop.f32.mrb[0].mxu0
      %v611 = vpop.f32.mrb[0].mxu0
      %v612 = vadd.f32 %v375, %v611
      %v613 = vpop.f32.mrb[0].mxu0
      %614 = vmatprep.mubr.bf16.mxu0 0
      %615 = vmatmul.mubr.bf16.gmra.mrb[0].mxu0 %v495
      %v616 = vpop.f32.mrb[0].mxu0
      %v617 = vadd.f32 %v375, %v616
      %v618 = vpop.f32.mrb[0].mxu0
      %v619 = vpop.f32.mrb[0].mxu0
      %v620 = vadd.f32 %v375, %v619
      %v621 = vpop.f32.mrb[0].mxu0
      %622 = vmatprep.mubr.bf16.mxu0 0
      %623 = vmatmul.mubr.bf16.gmra.mrb[0].mxu0 %v498
      %v624 = vpop.f32.mrb[0].mxu0
      %v625 = vadd.f32 %v375, %v624
      %v626 = vpop.f32.mrb[0].mxu0
      %v627 = vpop.f32.mrb[0].mxu0
      %v628 = vadd.f32 %v375, %v627
      %v629 = vpop.f32.mrb[0].mxu0
      %630 = vmatprep.mubr.bf16.mxu0 0
      %631 = vmatmul.mubr.bf16.gmra.mrb[0].mxu0 %v501
      %v632 = vpop.f32.mrb[0].mxu0
      %v633 = vadd.f32 %v375, %v632
      %v634 = vpop.f32.mrb[0].mxu0
      %v635 = vpop.f32.mrb[0].mxu0
      %v636 = vadd.f32 %v375, %v635
      %v637 = vpop.f32.mrb[0].mxu0
      %638 = vmatprep.mubr.bf16.mxu0 0
      %639 = vmatmul.mubr.bf16.gmra.mrb[0].mxu0 %v504
      %v640 = vpop.f32.mrb[0].mxu0
      %v641 = vadd.f32 %v375, %v640
      %v642 = vpop.f32.mrb[0].mxu0
      %v643 = vpop.f32.mrb[0].mxu0
      %v644 = vadd.f32 %v375, %v643
      %v645 = vpop.f32.mrb[0].mxu0
      %646 = vmatprep.mubr.bf16.mxu0 0
      %647 = vmatmul.mubr.bf16.gmra.mrb[0].mxu0 %v507
      %v648 = vpop.f32.mrb[0].mxu0
      %v649 = vadd.f32 %v375, %v648
      %v650 = vpop.f32.mrb[0].mxu0
      %v651 = vpop.f32.mrb[0].mxu0
      %v652 = vadd.f32 %v375, %v651
      %v653 = vpop.f32.mrb[0].mxu0
      %654 = vmatprep.mubr.bf16.mxu0 0
      %655 = vmatmul.mubr.bf16.gmra.mrb[0].mxu0 %v510
      %v656 = vpop.f32.mrb[0].mxu0
      %v657 = vadd.f32 %v375, %v656
      %v658 = vpop.f32.mrb[0].mxu0
      %v659 = vpop.f32.mrb[0].mxu0
      %v660 = vadd.f32 %v375, %v659
      %v661 = vpop.f32.mrb[0].mxu0
      %662 = vmatprep.mubr.bf16.mxu0 0
      %663 = vmatmul.mubr.bf16.gmra.mrb[0].mxu0 %v513
      %v664 = vpop.f32.mrb[0].mxu0
      %v665 = vadd.f32 %v375, %v664
      %v666 = vpop.f32.mrb[0].mxu0
      %v667 = vpop.f32.mrb[0].mxu0
      %v668 = vadd.f32 %v375, %v667
      %v669 = vpop.f32.mrb[0].mxu0
      %670 = vmatprep.mubr.bf16.mxu0 0
      %671 = vmatmul.mubr.bf16.gmra.mrb[0].mxu0 %v516
      %v672 = vpop.f32.mrb[0].mxu0
      %v673 = vadd.f32 %v375, %v672
      %v674 = vpop.f32.mrb[0].mxu0
      %v675 = vpop.f32.mrb[0].mxu0
      %v676 = vadd.f32 %v375, %v675
      %v677 = vpop.f32.mrb[0].mxu0
      %678 = vdwg.mxu0
      %v679 = vmax.f32 %v553, 0.0
      %v680 = vmax.f32 %v556, 0.0
      %v681 = vmax.f32 %v561, 0.0
      %v682 = vmax.f32 %v564, 0.0
      %v683 = vmax.f32 %v569, 0.0
      %v684 = vmax.f32 %v572, 0.0
      %v685 = vmax.f32 %v577, 0.0
      %v686 = vmax.f32 %v580, 0.0
      %v687 = vmax.f32 %v585, 0.0
      %v688 = vmax.f32 %v588, 0.0
      %v689 = vmax.f32 %v593, 0.0
      %v690 = vmax.f32 %v596, 0.0
      %v691 = vmax.f32 %v601, 0.0
      %v692 = vmax.f32 %v604, 0.0
      %v693 = vmax.f32 %v609, 0.0
      %v694 = vmax.f32 %v612, 0.0
      %v695 = vmax.f32 %v617, 0.0
      %v696 = vmax.f32 %v620, 0.0
      %v697 = vmax.f32 %v625, 0.0
      %v698 = vmax.f32 %v628, 0.0
      %v699 = vmax.f32 %v633, 0.0
      %v700 = vmax.f32 %v636, 0.0
      %v701 = vmax.f32 %v641, 0.0
      %v702 = vmax.f32 %v644, 0.0
      %v703 = vmax.f32 %v649, 0.0
      %v704 = vmax.f32 %v652, 0.0
      %v705 = vmax.f32 %v657, 0.0
      %v706 = vmax.f32 %v660, 0.0
      %v707 = vmax.f32 %v665, 0.0
      %v708 = vmax.f32 %v668, 0.0
      %v709 = vmax.f32 %v673, 0.0
      %v710 = vmax.f32 %v676, 0.0
      %711 = vst [vmem:[#allocation2] sm:$0xff] 0.0
      %712 = vst [vmem:[#allocation2 + $0x8] sm:$0xff] 0.0
      %713 = vst [vmem:[#allocation2 + $0x10] sm:$0xff] 0.0
      %714 = vst [vmem:[#allocation2 + $0x18] sm:$0xff] 0.0
      %715 = vst [vmem:[#allocation2 + $0x20] sm:$0xff] 0.0
      %716 = vst [vmem:[#allocation2 + $0x28] sm:$0xff] 0.0
      %717 = vst [vmem:[#allocation2 + $0x30] sm:$0xff] 0.0
      %718 = vst [vmem:[#allocation2 + $0x38] sm:$0xff] 0.0
      %719 = vst [vmem:[#allocation2 + $0x40] sm:$0xff] 0.0
      %720 = vst [vmem:[#allocation2 + $0x48] sm:$0xff] 0.0
      %721 = vst [vmem:[#allocation2 + $0x50] sm:$0xff] 0.0
      %722 = vst [vmem:[#allocation2 + $0x58] sm:$0xff] 0.0
      %723 = vst [vmem:[#allocation2 + $0x60] sm:$0xff] 0.0
      %724 = vst [vmem:[#allocation2 + $0x68] sm:$0xff] 0.0
      %725 = vst [vmem:[#allocation2 + $0x70] sm:$0xff] 0.0
      %726 = vst [vmem:[#allocation2 + $0x78] sm:$0xff] 0.0
      %727 = vst [vmem:[#allocation2 + $0x80] sm:$0xff] 0.0
      %728 = vst [vmem:[#allocation2 + $0x88] sm:$0xff] 0.0
      %729 = vst [vmem:[#allocation2 + $0x90] sm:$0xff] 0.0
      %730 = vst [vmem:[#allocation2 + $0x98] sm:$0xff] 0.0
      %731 = vst [vmem:[#allocation2 + $0xa0] sm:$0xff] 0.0
      %732 = vst [vmem:[#allocation2 + $0xa8] sm:$0xff] 0.0
      %733 = vst [vmem:[#allocation2 + $0xb0] sm:$0xff] 0.0
      %734 = vst [vmem:[#allocation2 + $0xb8] sm:$0xff] 0.0
      %735 = vst [vmem:[#allocation2 + $0xc0] sm:$0xff] 0.0
      %736 = vst [vmem:[#allocation2 + $0xc8] sm:$0xff] 0.0
      %737 = vst [vmem:[#allocation2 + $0xd0] sm:$0xff] 0.0
      %738 = vst [vmem:[#allocation2 + $0xd8] sm:$0xff] 0.0
      %739 = vst [vmem:[#allocation2 + $0xe0] sm:$0xff] 0.0
      %740 = vst [vmem:[#allocation2 + $0xe8] sm:$0xff] 0.0
      %741 = vst [vmem:[#allocation2 + $0xf0] sm:$0xff] 0.0
      %742 = vst [vmem:[#allocation2 + $0xf8] sm:$0xff] 0.0
      %743 = vst [vmem:[#allocation2 + $0x100] sm:$0xff] 0.0
      %744 = vst [vmem:[#allocation2 + $0x108] sm:$0xff] 0.0
      %745 = vst [vmem:[#allocation2 + $0x110] sm:$0xff] 0.0
      %746 = vst [vmem:[#allocation2 + $0x118] sm:$0xff] 0.0
      %747 = vst [vmem:[#allocation2 + $0x120] sm:$0xff] 0.0
      %748 = vst [vmem:[#allocation2 + $0x128] sm:$0xff] 0.0
      %749 = vst [vmem:[#allocation2 + $0x130] sm:$0xff] 0.0
      %750 = vst [vmem:[#allocation2 + $0x138] sm:$0xff] 0.0
      %751 = vst [vmem:[#allocation2 + $0x140] sm:$0xff] 0.0
      %752 = vst [vmem:[#allocation2 + $0x148] sm:$0xff] 0.0
      %753 = vst [vmem:[#allocation2 + $0x150] sm:$0xff] 0.0
      %754 = vst [vmem:[#allocation2 + $0x158] sm:$0xff] 0.0
      %755 = vst [vmem:[#allocation2 + $0x13] sm:$0xff] %v679
      %756 = vst [vmem:[#allocation2 + $0x1b] sm:$0xff] %v680
      %757 = vst [vmem:[#allocation2 + $0x25] sm:$0xff] %v681
      %758 = vst [vmem:[#allocation2 + $0x2d] sm:$0xff] %v682
      %759 = vst [vmem:[#allocation2 + $0x37] sm:$0xff] %v683
      %760 = vst [vmem:[#allocation2 + $0x3f] sm:$0xff] %v684
      %761 = vst [vmem:[#allocation2 + $0x49] sm:$0xff] %v685
      %762 = vst [vmem:[#allocation2 + $0x51] sm:$0xff] %v686
      %763 = vst [vmem:[#allocation2 + $0x5b] sm:$0xff] %v687
      %764 = vst [vmem:[#allocation2 + $0x63] sm:$0xff] %v688
      %765 = vst [vmem:[#allocation2 + $0x6d] sm:$0xff] %v689
      %766 = vst [vmem:[#allocation2 + $0x75] sm:$0xff] %v690
      %767 = vst [vmem:[#allocation2 + $0x7f] sm:$0xff] %v691
      %768 = vst [vmem:[#allocation2 + $0x87] sm:$0xff] %v692
      %769 = vst [vmem:[#allocation2 + $0x91] sm:$0xff] %v693
      %770 = vst [vmem:[#allocation2 + $0x99] sm:$0xff] %v694
      %771 = vst [vmem:[#allocation2 + $0xa3] sm:$0xff] %v695
      %772 = vst [vmem:[#allocation2 + $0xab] sm:$0xff] %v696
      %773 = vst [vmem:[#allocation2 + $0xb5] sm:$0xff] %v697
      %774 = vst [vmem:[#allocation2 + $0xbd] sm:$0xff] %v698
      %775 = vst [vmem:[#allocation2 + $0xc7] sm:$0xff] %v699
      %776 = vst [vmem:[#allocation2 + $0xcf] sm:$0xff] %v700
      %777 = vst [vmem:[#allocation2 + $0xd9] sm:$0xff] %v701
      %778 = vst [vmem:[#allocation2 + $0xe1] sm:$0xff] %v702
      %779 = vst [vmem:[#allocation2 + $0xeb] sm:$0xff] %v703
      %780 = vst [vmem:[#allocation2 + $0xf3] sm:$0xff] %v704
      %781 = vst [vmem:[#allocation2 + $0xfd] sm:$0xff] %v705
      %782 = vst [vmem:[#allocation2 + $0x105] sm:$0xff] %v706
      %783 = vst [vmem:[#allocation2 + $0x10f] sm:$0xff] %v707
      %784 = vst [vmem:[#allocation2 + $0x117] sm:$0xff] %v708
      %785 = vst [vmem:[#allocation2 + $0x121] sm:$0xff] %v709
      %786 = vst [vmem:[#allocation2 + $0x129] sm:$0xff] %v710
      %v787 = vld [vmem:[#allocation2] sm:$0xff]
      %v788 = vld [vmem:[#allocation2 + $0x8] sm:$0xff]
      %v789 = vld [vmem:[#allocation2 + $0x10] sm:$0xff]
      %v790 = vld [vmem:[#allocation2 + $0x18] sm:$0xff]
      %v791 = vld [vmem:[#allocation2 + $0x20] sm:$0xff]
      %v792 = vld [vmem:[#allocation2 + $0x28] sm:$0xff]
      %v793 = vld [vmem:[#allocation2 + $0x30] sm:$0xff]
      %v794 = vld [vmem:[#allocation2 + $0x38] sm:$0xff]
      %v795 = vld [vmem:[#allocation2 + $0x40] sm:$0xff]
      %v796 = vld [vmem:[#allocation2 + $0x48] sm:$0xff]
      %v797 = vld [vmem:[#allocation2 + $0x50] sm:$0xff]
      %v798 = vld [vmem:[#allocation2 + $0x58] sm:$0xff]
      %v799 = vld [vmem:[#allocation2 + $0x60] sm:$0xff]
      %v800 = vld [vmem:[#allocation2 + $0x68] sm:$0xff]
      %v801 = vld [vmem:[#allocation2 + $0x70] sm:$0xff]
      %v802 = vld [vmem:[#allocation2 + $0x78] sm:$0xff]
      %v803 = vld [vmem:[#allocation2 + $0x80] sm:$0xff]
      %v804 = vld [vmem:[#allocation2 + $0x88] sm:$0xff]
      %v805 = vld [vmem:[#allocation2 + $0x90] sm:$0xff]
      %v806 = vld [vmem:[#allocation2 + $0x98] sm:$0xff]
      %v807 = vld [vmem:[#allocation2 + $0xa0] sm:$0xff]
      %v808 = vld [vmem:[#allocation2 + $0xa8] sm:$0xff]
      %v809 = vld [vmem:[#allocation2 + $0xb0] sm:$0xff]
      %v810 = vld [vmem:[#allocation2 + $0xb8] sm:$0xff]
      %v811 = vld [vmem:[#allocation2 + $0xc0] sm:$0xff]
      %v812 = vld [vmem:[#allocation2 + $0xc8] sm:$0xff]
      %v813 = vld [vmem:[#allocation2 + $0xd0] sm:$0xff]
      %v814 = vld [vmem:[#allocation2 + $0xd8] sm:$0xff]
      %v815 = vld [vmem:[#allocation2 + $0xe0] sm:$0xff]
      %v816 = vld [vmem:[#allocation2 + $0xe8] sm:$0xff]
      %v817 = vld [vmem:[#allocation2 + $0xf0] sm:$0xff]
      %v818 = vld [vmem:[#allocation2 + $0xf8] sm:$0xff]
      %v819 = vld [vmem:[#allocation2 + $0x100] sm:$0xff]
      %v820 = vld [vmem:[#allocation2 + $0x108] sm:$0xff]
      %v821 = vld [vmem:[#allocation2 + $0x110] sm:$0xff]
      %v822 = vld [vmem:[#allocation2 + $0x118] sm:$0xff]
      %v823 = vld [vmem:[#allocation2 + $0x120] sm:$0xff]
      %v824 = vld [vmem:[#allocation2 + $0x128] sm:$0xff]
      %v825 = vld [vmem:[#allocation2 + $0x130] sm:$0x7]
      %v826 = vpack.c.bf16 %v788, %v787
      %v827 = vpack.c.bf16 %v790, %v789
      %v828 = vpack.c.bf16 %v792, %v791
      %v829 = vpack.c.bf16 %v794, %v793
      %v830 = vpack.c.bf16 %v796, %v795
      %v831 = vpack.c.bf16 %v798, %v797
      %v832 = vpack.c.bf16 %v800, %v799
      %v833 = vpack.c.bf16 %v802, %v801
      %v834 = vpack.c.bf16 %v804, %v803
      %v835 = vpack.c.bf16 %v806, %v805
      %v836 = vpack.c.bf16 %v808, %v807
      %v837 = vpack.c.bf16 %v810, %v809
      %v838 = vpack.c.bf16 %v812, %v811
      %v839 = vpack.c.bf16 %v814, %v813
      %v840 = vpack.c.bf16 %v816, %v815
      %v841 = vpack.c.bf16 %v818, %v817
      %v842 = vpack.c.bf16 %v820, %v819
      %v843 = vpack.c.bf16 %v822, %v821
      %v844 = vpack.c.bf16 %v824, %v823
      %v845 = vpack.c.bf16 %v825, %v825
      %v846 = vld [vmem:[#allocation2 + $0x1] sm:$0xff]
      %v847 = vld [vmem:[#allocation2 + $0x9] sm:$0xff]
      %v848 = vld [vmem:[#allocation2 + $0x11] sm:$0xff]
      %v849 = vld [vmem:[#allocation2 + $0x19] sm:$0xff]
      %v850 = vld [vmem:[#allocation2 + $0x21] sm:$0xff]
      %v851 = vld [vmem:[#allocation2 + $0x29] sm:$0xff]
      %v852 = vld [vmem:[#allocation2 + $0x31] sm:$0xff]
      %v853 = vld [vmem:[#allocation2 + $0x39] sm:$0xff]
      %v854 = vld [vmem:[#allocation2 + $0x41] sm:$0xff]
      %v855 = vld [vmem:[#allocation2 + $0x49] sm:$0xff]
      %v856 = vld [vmem:[#allocation2 + $0x51] sm:$0xff]
      %v857 = vld [vmem:[#allocation2 + $0x59] sm:$0xff]
      %v858 = vld [vmem:[#allocation2 + $0x61] sm:$0xff]
      %v859 = vld [vmem:[#allocation2 + $0x69] sm:$0xff]
      %v860 = vld [vmem:[#allocation2 + $0x71] sm:$0xff]
      %v861 = vld [vmem:[#allocation2 + $0x79] sm:$0xff]
      %v862 = vld [vmem:[#allocation2 + $0x81] sm:$0xff]
      %v863 = vld [vmem:[#allocation2 + $0x89] sm:$0xff]
      %v864 = vld [vmem:[#allocation2 + $0x91] sm:$0xff]
      %v865 = vld [vmem:[#allocation2 + $0x99] sm:$0xff]
      %v866 = vld [vmem:[#allocation2 + $0xa1] sm:$0xff]
      %v867 = vld [vmem:[#allocation2 + $0xa9] sm:$0xff]
      %v868 = vld [vmem:[#allocation2 + $0xb1] sm:$0xff]
      %v869 = vld [vmem:[#allocation2 + $0xb9] sm:$0xff]
      %v870 = vld [vmem:[#allocation2 + $0xc1] sm:$0xff]
      %v871 = vld [vmem:[#allocation2 + $0xc9] sm:$0xff]
      %v872 = vld [vmem:[#allocation2 + $0xd1] sm:$0xff]
      %v873 = vld [vmem:[#allocation2 + $0xd9] sm:$0xff]
      %v874 = vld [vmem:[#allocation2 + $0xe1] sm:$0xff]
      %v875 = vld [vmem:[#allocation2 + $0xe9] sm:$0xff]
      %v876 = vld [vmem:[#allocation2 + $0xf1] sm:$0xff]
      %v877 = vld [vmem:[#allocation2 + $0xf9] sm:$0xff]
      %v878 = vld [vmem:[#allocation2 + $0x101] sm:$0xff]
      %v879 = vld [vmem:[#allocation2 + $0x109] sm:$0xff]
      %v880 = vld [vmem:[#allocation2 + $0x111] sm:$0xff]
      %v881 = vld [vmem:[#allocation2 + $0x119] sm:$0xff]
      %v882 = vld [vmem:[#allocation2 + $0x121] sm:$0xff]
      %v883 = vld [vmem:[#allocation2 + $0x129] sm:$0xff]
      %v884 = vld [vmem:[#allocation2 + $0x131] sm:$0x7]
      %v885 = vpack.c.bf16 %v847, %v846
      %v886 = vpack.c.bf16 %v849, %v848
      %v887 = vpack.c.bf16 %v851, %v850
      %v888 = vpack.c.bf16 %v853, %v852
      %v889 = vpack.c.bf16 %v855, %v854
      %v890 = vpack.c.bf16 %v857, %v856
      %v891 = vpack.c.bf16 %v859, %v858
      %v892 = vpack.c.bf16 %v861, %v860
      %v893 = vpack.c.bf16 %v863, %v862
      %v894 = vpack.c.bf16 %v865, %v864
      %v895 = vpack.c.bf16 %v867, %v866
      %v896 = vpack.c.bf16 %v869, %v868
      %v897 = vpack.c.bf16 %v871, %v870
      %v898 = vpack.c.bf16 %v873, %v872
      %v899 = vpack.c.bf16 %v875, %v874
      %v900 = vpack.c.bf16 %v877, %v876
      %v901 = vpack.c.bf16 %v879, %v878
      %v902 = vpack.c.bf16 %v881, %v880
      %v903 = vpack.c.bf16 %v883, %v882
      %v904 = vpack.c.bf16 %v884, %v884
      %v905 = vld [vmem:[#allocation2 + $0x2] sm:$0xff]
      %v906 = vld [vmem:[#allocation2 + $0xa] sm:$0xff]
      %v907 = vld [vmem:[#allocation2 + $0x12] sm:$0xff]
      %v908 = vld [vmem:[#allocation2 + $0x1a] sm:$0xff]
      %v909 = vld [vmem:[#allocation2 + $0x22] sm:$0xff]
      %v910 = vld [vmem:[#allocation2 + $0x2a] sm:$0xff]
      %v911 = vld [vmem:[#allocation2 + $0x32] sm:$0xff]
      %v912 = vld [vmem:[#allocation2 + $0x3a] sm:$0xff]
      %v913 = vld [vmem:[#allocation2 + $0x42] sm:$0xff]
      %v914 = vld [vmem:[#allocation2 + $0x4a] sm:$0xff]
      %v915 = vld [vmem:[#allocation2 + $0x52] sm:$0xff]
      %v916 = vld [vmem:[#allocation2 + $0x5a] sm:$0xff]
      %v917 = vld [vmem:[#allocation2 + $0x62] sm:$0xff]
      %v918 = vld [vmem:[#allocation2 + $0x6a] sm:$0xff]
      %v919 = vld [vmem:[#allocation2 + $0x72] sm:$0xff]
      %v920 = vld [vmem:[#allocation2 + $0x7a] sm:$0xff]
      %v921 = vld [vmem:[#allocation2 + $0x82] sm:$0xff]
      %v922 = vld [vmem:[#allocation2 + $0x8a] sm:$0xff]
      %v923 = vld [vmem:[#allocation2 + $0x92] sm:$0xff]
      %v924 = vld [vmem:[#allocation2 + $0x9a] sm:$0xff]
      %v925 = vld [vmem:[#allocation2 + $0xa2] sm:$0xff]
      %v926 = vld [vmem:[#allocation2 + $0xaa] sm:$0xff]
      %v927 = vld [vmem:[#allocation2 + $0xb2] sm:$0xff]
      %v928 = vld [vmem:[#allocation2 + $0xba] sm:$0xff]
      %v929 = vld [vmem:[#allocation2 + $0xc2] sm:$0xff]
      %v930 = vld [vmem:[#allocation2 + $0xca] sm:$0xff]
      %v931 = vld [vmem:[#allocation2 + $0xd2] sm:$0xff]
      %v932 = vld [vmem:[#allocation2 + $0xda] sm:$0xff]
      %v933 = vld [vmem:[#allocation2 + $0xe2] sm:$0xff]
      %v934 = vld [vmem:[#allocation2 + $0xea] sm:$0xff]
      %v935 = vld [vmem:[#allocation2 + $0xf2] sm:$0xff]
      %v936 = vld [vmem:[#allocation2 + $0xfa] sm:$0xff]
      %v937 = vld [vmem:[#allocation2 + $0x102] sm:$0xff]
      %v938 = vld [vmem:[#allocation2 + $0x10a] sm:$0xff]
      %v939 = vld [vmem:[#allocation2 + $0x112] sm:$0xff]
      %v940 = vld [vmem:[#allocation2 + $0x11a] sm:$0xff]
      %v941 = vld [vmem:[#allocation2 + $0x122] sm:$0xff]
      %v942 = vld [vmem:[#allocation2 + $0x12a] sm:$0xff]
      %v943 = vld [vmem:[#allocation2 + $0x132] sm:$0x7]
      %v944 = vpack.c.bf16 %v906, %v905
      %v945 = vpack.c.bf16 %v908, %v907
      %v946 = vpack.c.bf16 %v910, %v909
      %v947 = vpack.c.bf16 %v912, %v911
      %v948 = vpack.c.bf16 %v914, %v913
      %v949 = vpack.c.bf16 %v916, %v915
      %v950 = vpack.c.bf16 %v918, %v917
      %v951 = vpack.c.bf16 %v920, %v919
      %v952 = vpack.c.bf16 %v922, %v921
      %v953 = vpack.c.bf16 %v924, %v923
      %v954 = vpack.c.bf16 %v926, %v925
      %v955 = vpack.c.bf16 %v928, %v927
      %v956 = vpack.c.bf16 %v930, %v929
      %v957 = vpack.c.bf16 %v932, %v931
      %v958 = vpack.c.bf16 %v934, %v933
      %v959 = vpack.c.bf16 %v936, %v935
      %v960 = vpack.c.bf16 %v938, %v937
      %v961 = vpack.c.bf16 %v940, %v939
      %v962 = vpack.c.bf16 %v942, %v941
      %v963 = vpack.c.bf16 %v943, %v943
      %v964 = vld [vmem:[#allocation2 + $0x132] sm:$0xff]
      %v965 = vld [vmem:[#allocation2 + $0x13a] sm:$0xff]
      %v966 = vld [vmem:[#allocation2 + $0x142] sm:$0x7]
      %v967 = vpack.c.bf16 %v965, %v964
      %v968 = vpack.c.bf16 %v966, %v966
      %v969 = vld [vmem:[#allocation2 + $0x13] sm:$0xff]
      %v970 = vld [vmem:[#allocation2 + $0x1b] sm:$0xff]
      %v971 = vld [vmem:[#allocation2 + $0x23] sm:$0xff]
      %v972 = vld [vmem:[#allocation2 + $0x2b] sm:$0xff]
      %v973 = vld [vmem:[#allocation2 + $0x33] sm:$0xff]
      %v974 = vld [vmem:[#allocation2 + $0x3b] sm:$0xff]
      %v975 = vld [vmem:[#allocation2 + $0x43] sm:$0xff]
      %v976 = vld [vmem:[#allocation2 + $0x4b] sm:$0xff]
      %v977 = vld [vmem:[#allocation2 + $0x53] sm:$0xff]
      %v978 = vld [vmem:[#allocation2 + $0x5b] sm:$0xff]
      %v979 = vld [vmem:[#allocation2 + $0x63] sm:$0xff]
      %v980 = vld [vmem:[#allocation2 + $0x6b] sm:$0xff]
      %v981 = vld [vmem:[#allocation2 + $0x73] sm:$0xff]
      %v982 = vld [vmem:[#allocation2 + $0x7b] sm:$0xff]
      %v983 = vld [vmem:[#allocation2 + $0x83] sm:$0xff]
      %v984 = vld [vmem:[#allocation2 + $0x8b] sm:$0xff]
      %v985 = vld [vmem:[#allocation2 + $0x93] sm:$0xff]
      %v986 = vld [vmem:[#allocation2 + $0x9b] sm:$0xff]
      %v987 = vld [vmem:[#allocation2 + $0xa3] sm:$0xff]
      %v988 = vld [vmem:[#allocation2 + $0xab] sm:$0xff]
      %v989 = vld [vmem:[#allocation2 + $0xb3] sm:$0xff]
      %v990 = vld [vmem:[#allocation2 + $0xbb] sm:$0xff]
      %v991 = vld [vmem:[#allocation2 + $0xc3] sm:$0xff]
      %v992 = vld [vmem:[#allocation2 + $0xcb] sm:$0xff]
      %v993 = vld [vmem:[#allocation2 + $0xd3] sm:$0xff]
      %v994 = vld [vmem:[#allocation2 + $0xdb] sm:$0xff]
      %v995 = vld [vmem:[#allocation2 + $0xe3] sm:$0xff]
      %v996 = vld [vmem:[#allocation2 + $0xeb] sm:$0xff]
      %v997 = vld [vmem:[#allocation2 + $0xf3] sm:$0xff]
      %v998 = vld [vmem:[#allocation2 + $0xfb] sm:$0xff]
      %v999 = vld [vmem:[#allocation2 + $0x103] sm:$0xff]
      %v1000 = vld [vmem:[#allocation2 + $0x10b] sm:$0xff]
      %v1001 = vld [vmem:[#allocation2 + $0x113] sm:$0xff]
      %v1002 = vld [vmem:[#allocation2 + $0x11b] sm:$0xff]
      %v1003 = vld [vmem:[#allocation2 + $0x123] sm:$0xff]
      %v1004 = vld [vmem:[#allocation2 + $0x12b] sm:$0xff]
      %v1005 = vld [vmem:[#allocation2 + $0x133] sm:$0xff]
      %v1006 = vld [vmem:[#allocation2 + $0x13b] sm:$0xff]
      %v1007 = vld [vmem:[#allocation2 + $0x143] sm:$0x7]
      %v1008 = vpack.c.bf16 %v970, %v969
      %v1009 = vpack.c.bf16 %v972, %v971
      %v1010 = vpack.c.bf16 %v974, %v973
      %v1011 = vpack.c.bf16 %v976, %v975
      %v1012 = vpack.c.bf16 %v978, %v977
      %v1013 = vpack.c.bf16 %v980, %v979
      %v1014 = vpack.c.bf16 %v982, %v981
      %v1015 = vpack.c.bf16 %v984, %v983
      %v1016 = vpack.c.bf16 %v986, %v985
      %v1017 = vpack.c.bf16 %v988, %v987
      %v1018 = vpack.c.bf16 %v990, %v989
      %v1019 = vpack.c.bf16 %v992, %v991
      %v1020 = vpack.c.bf16 %v994, %v993
      %v1021 = vpack.c.bf16 %v996, %v995
      %v1022 = vpack.c.bf16 %v998, %v997
      %v1023 = vpack.c.bf16 %v1000, %v999
      %v1024 = vpack.c.bf16 %v1002, %v1001
      %v1025 = vpack.c.bf16 %v1004, %v1003
      %v1026 = vpack.c.bf16 %v1006, %v1005
      %v1027 = vpack.c.bf16 %v1007, %v1007
      %v1028 = vld [vmem:[#allocation2 + $0x14] sm:$0xff]
      %v1029 = vld [vmem:[#allocation2 + $0x1c] sm:$0xff]
      %v1030 = vld [vmem:[#allocation2 + $0x24] sm:$0xff]
      %v1031 = vld [vmem:[#allocation2 + $0x2c] sm:$0xff]
      %v1032 = vld [vmem:[#allocation2 + $0x34] sm:$0xff]
      %v1033 = vld [vmem:[#allocation2 + $0x3c] sm:$0xff]
      %v1034 = vld [vmem:[#allocation2 + $0x44] sm:$0xff]
      %v1035 = vld [vmem:[#allocation2 + $0x4c] sm:$0xff]
      %v1036 = vld [vmem:[#allocation2 + $0x54] sm:$0xff]
      %v1037 = vld [vmem:[#allocation2 + $0x5c] sm:$0xff]
      %v1038 = vld [vmem:[#allocation2 + $0x64] sm:$0xff]
      %v1039 = vld [vmem:[#allocation2 + $0x6c] sm:$0xff]
      %v1040 = vld [vmem:[#allocation2 + $0x74] sm:$0xff]
      %v1041 = vld [vmem:[#allocation2 + $0x7c] sm:$0xff]
      %v1042 = vld [vmem:[#allocation2 + $0x84] sm:$0xff]
      %v1043 = vld [vmem:[#allocation2 + $0x8c] sm:$0xff]
      %v1044 = vld [vmem:[#allocation2 + $0x94] sm:$0xff]
      %v1045 = vld [vmem:[#allocation2 + $0x9c] sm:$0xff]
      %v1046 = vld [vmem:[#allocation2 + $0xa4] sm:$0xff]
      %v1047 = vld [vmem:[#allocation2 + $0xac] sm:$0xff]
      %v1048 = vld [vmem:[#allocation2 + $0xb4] sm:$0xff]
      %v1049 = vld [vmem:[#allocation2 + $0xbc] sm:$0xff]
      %v1050 = vld [vmem:[#allocation2 + $0xc4] sm:$0xff]
      %v1051 = vld [vmem:[#allocation2 + $0xcc] sm:$0xff]
      %v1052 = vld [vmem:[#allocation2 + $0xd4] sm:$0xff]
      %v1053 = vld [vmem:[#allocation2 + $0xdc] sm:$0xff]
      %v1054 = vld [vmem:[#allocation2 + $0xe4] sm:$0xff]
      %v1055 = vld [vmem:[#allocation2 + $0xec] sm:$0xff]
      %v1056 = vld [vmem:[#allocation2 + $0xf4] sm:$0xff]
      %v1057 = vld [vmem:[#allocation2 + $0xfc] sm:$0xff]
      %v1058 = vld [vmem:[#allocation2 + $0x104] sm:$0xff]
      %v1059 = vld [vmem:[#allocation2 + $0x10c] sm:$0xff]
      %v1060 = vld [vmem:[#allocation2 + $0x114] sm:$0xff]
      %v1061 = vld [vmem:[#allocation2 + $0x11c] sm:$0xff]
      %v1062 = vld [vmem:[#allocation2 + $0x124] sm:$0xff]
      %v1063 = vld [vmem:[#allocation2 + $0x12c] sm:$0xff]
      %v1064 = vld [vmem:[#allocation2 + $0x134] sm:$0xff]
      %v1065 = vld [vmem:[#allocation2 + $0x13c] sm:$0xff]
      %v1066 = vld [vmem:[#allocation2 + $0x144] sm:$0x7]
      %v1067 = vpack.c.bf16 %v1029, %v1028
      %v1068 = vpack.c.bf16 %v1031, %v1030
      %v1069 = vpack.c.bf16 %v1033, %v1032
      %v1070 = vpack.c.bf16 %v1035, %v1034
      %v1071 = vpack.c.bf16 %v1037, %v1036
      %v1072 = vpack.c.bf16 %v1039, %v1038
      %v1073 = vpack.c.bf16 %v1041, %v1040
      %v1074 = vpack.c.bf16 %v1043, %v1042
      %v1075 = vpack.c.bf16 %v1045, %v1044
      %v1076 = vpack.c.bf16 %v1047, %v1046
      %v1077 = vpack.c.bf16 %v1049, %v1048
      %v1078 = vpack.c.bf16 %v1051, %v1050
      %v1079 = vpack.c.bf16 %v1053, %v1052
      %v1080 = vpack.c.bf16 %v1055, %v1054
      %v1081 = vpack.c.bf16 %v1057, %v1056
      %v1082 = vpack.c.bf16 %v1059, %v1058
      %v1083 = vpack.c.bf16 %v1061, %v1060
      %v1084 = vpack.c.bf16 %v1063, %v1062
      %v1085 = vpack.c.bf16 %v1065, %v1064
      %v1086 = vpack.c.bf16 %v1066, %v1066
      %v1087 = vld [vmem:[#allocation2 + $0x144] sm:$0xff]
      %v1088 = vld [vmem:[#allocation2 + $0x14c] sm:$0xff]
      %v1089 = vld [vmem:[#allocation2 + $0x154] sm:$0x7]
      %v1090 = vpack.c.bf16 %v1088, %v1087
      %v1091 = vpack.c.bf16 %v1089, %v1089
      %v1092 = vld [vmem:[#allocation2 + $0x25] sm:$0xff]
      %v1093 = vld [vmem:[#allocation2 + $0x2d] sm:$0xff]
      %v1094 = vld [vmem:[#allocation2 + $0x35] sm:$0xff]
      %v1095 = vld [vmem:[#allocation2 + $0x3d] sm:$0xff]
      %v1096 = vld [vmem:[#allocation2 + $0x45] sm:$0xff]
      %v1097 = vld [vmem:[#allocation2 + $0x4d] sm:$0xff]
      %v1098 = vld [vmem:[#allocation2 + $0x55] sm:$0xff]
      %v1099 = vld [vmem:[#allocation2 + $0x5d] sm:$0xff]
      %v1100 = vld [vmem:[#allocation2 + $0x65] sm:$0xff]
      %v1101 = vld [vmem:[#allocation2 + $0x6d] sm:$0xff]
      %v1102 = vld [vmem:[#allocation2 + $0x75] sm:$0xff]
      %v1103 = vld [vmem:[#allocation2 + $0x7d] sm:$0xff]
      %v1104 = vld [vmem:[#allocation2 + $0x85] sm:$0xff]
      %v1105 = vld [vmem:[#allocation2 + $0x8d] sm:$0xff]
      %v1106 = vld [vmem:[#allocation2 + $0x95] sm:$0xff]
      %v1107 = vld [vmem:[#allocation2 + $0x9d] sm:$0xff]
      %v1108 = vld [vmem:[#allocation2 + $0xa5] sm:$0xff]
      %v1109 = vld [vmem:[#allocation2 + $0xad] sm:$0xff]
      %v1110 = vld [vmem:[#allocation2 + $0xb5] sm:$0xff]
      %v1111 = vld [vmem:[#allocation2 + $0xbd] sm:$0xff]
      %v1112 = vld [vmem:[#allocation2 + $0xc5] sm:$0xff]
      %v1113 = vld [vmem:[#allocation2 + $0xcd] sm:$0xff]
      %v1114 = vld [vmem:[#allocation2 + $0xd5] sm:$0xff]
      %v1115 = vld [vmem:[#allocation2 + $0xdd] sm:$0xff]
      %v1116 = vld [vmem:[#allocation2 + $0xe5] sm:$0xff]
      %v1117 = vld [vmem:[#allocation2 + $0xed] sm:$0xff]
      %v1118 = vld [vmem:[#allocation2 + $0xf5] sm:$0xff]
      %v1119 = vld [vmem:[#allocation2 + $0xfd] sm:$0xff]
      %v1120 = vld [vmem:[#allocation2 + $0x105] sm:$0xff]
      %v1121 = vld [vmem:[#allocation2 + $0x10d] sm:$0xff]
      %v1122 = vld [vmem:[#allocation2 + $0x115] sm:$0xff]
      %v1123 = vld [vmem:[#allocation2 + $0x11d] sm:$0xff]
      %v1124 = vld [vmem:[#allocation2 + $0x125] sm:$0xff]
      %v1125 = vld [vmem:[#allocation2 + $0x12d] sm:$0xff]
      %v1126 = vld [vmem:[#allocation2 + $0x135] sm:$0xff]
      %v1127 = vld [vmem:[#allocation2 + $0x13d] sm:$0xff]
      %v1128 = vld [vmem:[#allocation2 + $0x145] sm:$0xff]
      %v1129 = vld [vmem:[#allocation2 + $0x14d] sm:$0xff]
      %v1130 = vld [vmem:[#allocation2 + $0x155] sm:$0x7]
      %v1131 = vpack.c.bf16 %v1093, %v1092
      %v1132 = vpack.c.bf16 %v1095, %v1094
      %v1133 = vpack.c.bf16 %v1097, %v1096
      %v1134 = vpack.c.bf16 %v1099, %v1098
      %v1135 = vpack.c.bf16 %v1101, %v1100
      %v1136 = vpack.c.bf16 %v1103, %v1102
      %v1137 = vpack.c.bf16 %v1105, %v1104
      %v1138 = vpack.c.bf16 %v1107, %v1106
      %v1139 = vpack.c.bf16 %v1109, %v1108
      %v1140 = vpack.c.bf16 %v1111, %v1110
      %v1141 = vpack.c.bf16 %v1113, %v1112
      %v1142 = vpack.c.bf16 %v1115, %v1114
      %v1143 = vpack.c.bf16 %v1117, %v1116
      %v1144 = vpack.c.bf16 %v1119, %v1118
      %v1145 = vpack.c.bf16 %v1121, %v1120
      %v1146 = vpack.c.bf16 %v1123, %v1122
      %v1147 = vpack.c.bf16 %v1125, %v1124
      %v1148 = vpack.c.bf16 %v1127, %v1126
      %v1149 = vpack.c.bf16 %v1129, %v1128
      %v1150 = vpack.c.bf16 %v1130, %v1130
      %v1151 = vld [vmem:[#allocation2 + $0x26] sm:$0xff]
      %v1152 = vld [vmem:[#allocation2 + $0x2e] sm:$0xff]
      %v1153 = vld [vmem:[#allocation2 + $0x36] sm:$0xff]
      %v1154 = vld [vmem:[#allocation2 + $0x3e] sm:$0xff]
      %v1155 = vld [vmem:[#allocation2 + $0x46] sm:$0xff]
      %v1156 = vld [vmem:[#allocation2 + $0x4e] sm:$0xff]
      %v1157 = vld [vmem:[#allocation2 + $0x56] sm:$0xff]
      %v1158 = vld [vmem:[#allocation2 + $0x5e] sm:$0xff]
      %v1159 = vld [vmem:[#allocation2 + $0x66] sm:$0xff]
      %v1160 = vld [vmem:[#allocation2 + $0x6e] sm:$0xff]
      %v1161 = vld [vmem:[#allocation2 + $0x76] sm:$0xff]
      %v1162 = vld [vmem:[#allocation2 + $0x7e] sm:$0xff]
      %v1163 = vld [vmem:[#allocation2 + $0x86] sm:$0xff]
      %v1164 = vld [vmem:[#allocation2 + $0x8e] sm:$0xff]
      %v1165 = vld [vmem:[#allocation2 + $0x96] sm:$0xff]
      %v1166 = vld [vmem:[#allocation2 + $0x9e] sm:$0xff]
      %v1167 = vld [vmem:[#allocation2 + $0xa6] sm:$0xff]
      %v1168 = vld [vmem:[#allocation2 + $0xae] sm:$0xff]
      %v1169 = vld [vmem:[#allocation2 + $0xb6] sm:$0xff]
      %v1170 = vld [vmem:[#allocation2 + $0xbe] sm:$0xff]
      %v1171 = vld [vmem:[#allocation2 + $0xc6] sm:$0xff]
      %v1172 = vld [vmem:[#allocation2 + $0xce] sm:$0xff]
      %v1173 = vld [vmem:[#allocation2 + $0xd6] sm:$0xff]
      %v1174 = vld [vmem:[#allocation2 + $0xde] sm:$0xff]
      %v1175 = vld [vmem:[#allocation2 + $0xe6] sm:$0xff]
      %v1176 = vld [vmem:[#allocation2 + $0xee] sm:$0xff]
      %v1177 = vld [vmem:[#allocation2 + $0xf6] sm:$0xff]
      %v1178 = vld [vmem:[#allocation2 + $0xfe] sm:$0xff]
      %v1179 = vld [vmem:[#allocation2 + $0x106] sm:$0xff]
      %v1180 = vld [vmem:[#allocation2 + $0x10e] sm:$0xff]
      %v1181 = vld [vmem:[#allocation2 + $0x116] sm:$0xff]
      %v1182 = vld [vmem:[#allocation2 + $0x11e] sm:$0xff]
      %v1183 = vld [vmem:[#allocation2 + $0x126] sm:$0xff]
      %v1184 = vld [vmem:[#allocation2 + $0x12e] sm:$0xff]
      %v1185 = vld [vmem:[#allocation2 + $0x136] sm:$0xff]
      %v1186 = vld [vmem:[#allocation2 + $0x13e] sm:$0xff]
      %v1187 = vld [vmem:[#allocation2 + $0x146] sm:$0xff]
      %v1188 = vld [vmem:[#allocation2 + $0x14e] sm:$0xff]
      %v1189 = vld [vmem:[#allocation2 + $0x156] sm:$0x7]
      %v1190 = vpack.c.bf16 %v1152, %v1151
      %v1191 = vpack.c.bf16 %v1154, %v1153
      %v1192 = vpack.c.bf16 %v1156, %v1155
      %v1193 = vpack.c.bf16 %v1158, %v1157
      %v1194 = vpack.c.bf16 %v1160, %v1159
      %v1195 = vpack.c.bf16 %v1162, %v1161
      %v1196 = vpack.c.bf16 %v1164, %v1163
      %v1197 = vpack.c.bf16 %v1166, %v1165
      %v1198 = vpack.c.bf16 %v1168, %v1167
      %v1199 = vpack.c.bf16 %v1170, %v1169
      %v1200 = vpack.c.bf16 %v1172, %v1171
      %v1201 = vpack.c.bf16 %v1174, %v1173
      %v1202 = vpack.c.bf16 %v1176, %v1175
      %v1203 = vpack.c.bf16 %v1178, %v1177
      %v1204 = vpack.c.bf16 %v1180, %v1179
      %v1205 = vpack.c.bf16 %v1182, %v1181
      %v1206 = vpack.c.bf16 %v1184, %v1183
      %v1207 = vpack.c.bf16 %v1186, %v1185
      %v1208 = vpack.c.bf16 %v1188, %v1187
      %v1209 = vpack.c.bf16 %v1189, %v1189
      %v1210 = vld [vmem:[%s3] sm:$0xf]
      %v1211 = vld [vmem:[%s3 + $0x4] sm:$0xf]
      %v1212 = vld [vmem:[%s3 + $0x8] sm:$0xf]
      %v1213 = vld [vmem:[%s3 + $0xc] sm:$0xf]
      %v1214 = vld [vmem:[%s3 + $0x10] sm:$0xf]
      %v1215 = vld [vmem:[%s3 + $0x14] sm:$0xf]
      %v1216 = vld [vmem:[%s3 + $0x18] sm:$0xf]
      %v1217 = vld [vmem:[%s3 + $0x1c] sm:$0xf]
      %v1218 = vld [vmem:[%s3 + $0x20] sm:$0xf]
      %v1219 = vld [vmem:[%s3 + $0x24] sm:$0xf]
      %v1220 = vld [vmem:[%s3 + $0x28] sm:$0xf]
      %v1221 = vld [vmem:[%s3 + $0x2c] sm:$0xf]
      %v1222 = vld [vmem:[%s3 + $0x30] sm:$0xf]
      %v1223 = vld [vmem:[%s3 + $0x34] sm:$0xf]
      %v1224 = vld [vmem:[%s3 + $0x38] sm:$0xf]
      %v1225 = vld [vmem:[%s3 + $0x3c] sm:$0xf]
      %v1226 = vld [vmem:[%s3 + $0x40] sm:$0xf]
      %v1227 = vld [vmem:[%s3 + $0x44] sm:$0xf]
      %v1228 = vld [vmem:[%s3 + $0x48] sm:$0xf]
      %v1229 = vld [vmem:[%s3 + $0x4c] sm:$0xf]
      %v1230 = vld [vmem:[%s3 + $0x50] sm:$0xf]
      %v1231 = vld [vmem:[%s3 + $0x54] sm:$0xf]
      %v1232 = vld [vmem:[%s3 + $0x58] sm:$0xf]
      %v1233 = vld [vmem:[%s3 + $0x5c] sm:$0xf]
      %v1234 = vld [vmem:[%s3 + $0x60] sm:$0xf]
      %v1235 = vld [vmem:[%s3 + $0x64] sm:$0xf]
      %v1236 = vld [vmem:[%s3 + $0x68] sm:$0xf]
      %v1237 = vld [vmem:[%s3 + $0x6c] sm:$0xf]
      %v1238 = vld [vmem:[%s3 + $0x70] sm:$0xf]
      %v1239 = vld [vmem:[%s3 + $0x74] sm:$0xf]
      %v1240 = vld [vmem:[%s3 + $0x78] sm:$0xf]
      %v1241 = vld [vmem:[%s3 + $0x7c] sm:$0xf]
      %v1242 = vld [vmem:[%s3 + $0x80] sm:$0xf]
      %v1243 = vld [vmem:[%s3 + $0x84] sm:$0xf]
      %v1244 = vld [vmem:[%s3 + $0x88] sm:$0xf]
      %v1245 = vld [vmem:[%s3 + $0x8c] sm:$0xf]
      %v1246 = vld [vmem:[%s3 + $0x90] sm:$0xf]
      %v1247 = vld [vmem:[%s3 + $0x94] sm:$0xf]
      %v1248 = vld [vmem:[%s3 + $0x98] sm:$0xf]
      %v1249 = vld [vmem:[%s3 + $0x9c] sm:$0xf]
      %v1250 = vld [vmem:[%s3 + $0xa0] sm:$0xf]
      %v1251 = vld [vmem:[%s3 + $0xa4] sm:$0xf]
      %v1252 = vld [vmem:[%s3 + $0xa8] sm:$0xf]
      %v1253 = vld [vmem:[%s3 + $0xac] sm:$0xf]
      %v1254 = vld [vmem:[%s3 + $0xb0] sm:$0xf]
      %v1255 = vld [vmem:[%s3 + $0xb4] sm:$0xf]
      %v1256 = vld [vmem:[%s3 + $0xb8] sm:$0xf]
      %v1257 = vld [vmem:[%s3 + $0xbc] sm:$0xf]
      %v1258 = vld [vmem:[%s3 + $0xc0] sm:$0xf]
      %v1259 = vld [vmem:[%s3 + $0xc4] sm:$0xf]
      %v1260 = vld [vmem:[%s3 + $0xc8] sm:$0xf]
      %v1261 = vld [vmem:[%s3 + $0xcc] sm:$0xf]
      %v1262 = vld [vmem:[%s3 + $0xd0] sm:$0xf]
      %v1263 = vld [vmem:[%s3 + $0xd4] sm:$0xf]
      %v1264 = vld [vmem:[%s3 + $0xd8] sm:$0xf]
      %v1265 = vld [vmem:[%s3 + $0xdc] sm:$0xf]
      %v1266 = vld [vmem:[%s3 + $0xe0] sm:$0xf]
      %v1267 = vld [vmem:[%s3 + $0xe4] sm:$0xf]
      %v1268 = vld [vmem:[%s3 + $0xe8] sm:$0xf]
      %v1269 = vld [vmem:[%s3 + $0xec] sm:$0xf]
      %v1270 = vld [vmem:[%s3 + $0xf0] sm:$0xf]
      %v1271 = vld [vmem:[%s3 + $0xf4] sm:$0xf]
      %v1272 = vld [vmem:[%s3 + $0xf8] sm:$0xf]
      %v1273 = vld [vmem:[%s3 + $0xfc] sm:$0xf]
      %v1274 = vld [vmem:[%s3 + $0x100] sm:$0xf]
      %v1275 = vld [vmem:[%s3 + $0x104] sm:$0xf]
      %v1276 = vld [vmem:[%s3 + $0x108] sm:$0xf]
      %v1277 = vld [vmem:[%s3 + $0x10c] sm:$0xf]
      %v1278 = vld [vmem:[%s3 + $0x110] sm:$0xf]
      %v1279 = vld [vmem:[%s3 + $0x114] sm:$0xf]
      %v1280 = vld [vmem:[%s3 + $0x118] sm:$0xf]
      %v1281 = vld [vmem:[%s3 + $0x11c] sm:$0xf]
      %v1282 = vld [vmem:[%s3 + $0x120] sm:$0xf]
      %v1283 = vld [vmem:[%s3 + $0x124] sm:$0xf]
      %v1284 = vld [vmem:[%s3 + $0x128] sm:$0xf]
      %v1285 = vld [vmem:[%s3 + $0x12c] sm:$0xf]
      %v1286 = vld [vmem:[%s3 + $0x130] sm:$0xf]
      %v1287 = vld [vmem:[%s3 + $0x134] sm:$0xf]
      %v1288 = vld [vmem:[%s3 + $0x138] sm:$0xf]
      %v1289 = vld [vmem:[%s3 + $0x13c] sm:$0xf]
      %v1290 = vld [vmem:[%s3 + $0x140] sm:$0xf]
      %v1291 = vld [vmem:[%s3 + $0x144] sm:$0xf]
      %v1292 = vld [vmem:[%s3 + $0x148] sm:$0xf]
      %v1293 = vld [vmem:[%s3 + $0x14c] sm:$0xf]
      %v1294 = vld [vmem:[%s3 + $0x150] sm:$0xf]
      %v1295 = vld [vmem:[%s3 + $0x154] sm:$0xf]
      %v1296 = vld [vmem:[%s3 + $0x158] sm:$0xf]
      %v1297 = vld [vmem:[%s3 + $0x15c] sm:$0xf]
      %v1298 = vld [vmem:[%s3 + $0x160] sm:$0xf]
      %v1299 = vld [vmem:[%s3 + $0x164] sm:$0xf]
      %v1300 = vld [vmem:[%s3 + $0x168] sm:$0xf]
      %v1301 = vld [vmem:[%s3 + $0x16c] sm:$0xf]
      %v1302 = vld [vmem:[%s3 + $0x170] sm:$0xf]
      %v1303 = vld [vmem:[%s3 + $0x174] sm:$0xf]
      %v1304 = vld [vmem:[%s3 + $0x178] sm:$0xf]
      %v1305 = vld [vmem:[%s3 + $0x17c] sm:$0xf]
      %v1306 = vld [vmem:[%s3 + $0x180] sm:$0xf]
      %v1307 = vld [vmem:[%s3 + $0x184] sm:$0xf]
      %v1308 = vld [vmem:[%s3 + $0x188] sm:$0xf]
      %v1309 = vld [vmem:[%s3 + $0x18c] sm:$0xf]
      %v1310 = vld [vmem:[%s3 + $0x190] sm:$0xf]
      %v1311 = vld [vmem:[%s3 + $0x194] sm:$0xf]
      %v1312 = vld [vmem:[%s3 + $0x198] sm:$0xf]
      %v1313 = vld [vmem:[%s3 + $0x19c] sm:$0xf]
      %v1314 = vld [vmem:[%s3 + $0x1a0] sm:$0xf]
      %v1315 = vld [vmem:[%s3 + $0x1a4] sm:$0xf]
      %v1316 = vld [vmem:[%s3 + $0x1a8] sm:$0xf]
      %v1317 = vld [vmem:[%s3 + $0x1ac] sm:$0xf]
      %v1318 = vld [vmem:[%s3 + $0x1b0] sm:$0xf]
      %v1319 = vld [vmem:[%s3 + $0x1b4] sm:$0xf]
      %v1320 = vld [vmem:[%s3 + $0x1b8] sm:$0xf]
      %v1321 = vld [vmem:[%s3 + $0x1bc] sm:$0xf]
      %v1322 = vld [vmem:[%s3 + $0x1c0] sm:$0xf]
      %v1323 = vld [vmem:[%s3 + $0x1c4] sm:$0xf]
      %v1324 = vld [vmem:[%s3 + $0x1c8] sm:$0xf]
      %v1325 = vld [vmem:[%s3 + $0x1cc] sm:$0xf]
      %v1326 = vld [vmem:[%s3 + $0x1d0] sm:$0xf]
      %v1327 = vld [vmem:[%s3 + $0x1d4] sm:$0xf]
      %v1328 = vld [vmem:[%s3 + $0x1d8] sm:$0xf]
      %v1329 = vld [vmem:[%s3 + $0x1dc] sm:$0xf]
      %v1330 = vld [vmem:[%s3 + $0x1e0] sm:$0xf]
      %v1331 = vld [vmem:[%s3 + $0x1e4] sm:$0xf]
      %v1332 = vld [vmem:[%s3 + $0x1e8] sm:$0xf]
      %v1333 = vld [vmem:[%s3 + $0x1ec] sm:$0xf]
      %v1334 = vld [vmem:[%s3 + $0x1f0] sm:$0xf]
      %v1335 = vld [vmem:[%s3 + $0x1f4] sm:$0xf]
      %v1336 = vld [vmem:[%s3 + $0x1f8] sm:$0xf]
      %v1337 = vld [vmem:[%s3 + $0x1fc] sm:$0xf]
      %v1338 = vld [vmem:[%s3 + $0x200] sm:$0xf]
      %v1339 = vld [vmem:[%s3 + $0x204] sm:$0xf]
      %v1340 = vld [vmem:[%s3 + $0x208] sm:$0xf]
      %v1341 = vld [vmem:[%s3 + $0x20c] sm:$0xf]
      %v1342 = vld [vmem:[%s3 + $0x210] sm:$0xf]
      %v1343 = vld [vmem:[%s3 + $0x214] sm:$0xf]
      %v1344 = vld [vmem:[%s3 + $0x218] sm:$0xf]
      %v1345 = vld [vmem:[%s3 + $0x21c] sm:$0xf]
      %v1346 = vld [vmem:[%s3 + $0x220] sm:$0xf]
      %v1347 = vld [vmem:[%s3 + $0x224] sm:$0xf]
      %v1348 = vld [vmem:[%s3 + $0x228] sm:$0xf]
      %v1349 = vld [vmem:[%s3 + $0x22c] sm:$0xf]
      %v1350 = vld [vmem:[%s3 + $0x230] sm:$0xf]
      %v1351 = vld [vmem:[%s3 + $0x234] sm:$0xf]
      %v1352 = vld [vmem:[%s3 + $0x238] sm:$0xf]
      %v1353 = vld [vmem:[%s3 + $0x23c] sm:$0xf]
      %v1354 = vld [vmem:[%s4] sm:$0x1]
      %v1356 = vlaneseq
      %v1357 = vshrl.u32 %v1356, 7
      %v1358 = vsub.s32 0, %v1357
      %v1359 = vrot.slane %v1354, %v1358
      %v1505 = vunpack.c.l.b16 %v1210
      %v1506 = vunpack.c.l.b16 %v1211
      %v1507 = vunpack.c.l.b16 %v1212
      %v1508 = vunpack.c.l.b16 %v1213
      %v1509 = vunpack.c.l.b16 %v1214
      %v1510 = vunpack.c.l.b16 %v1215
      %v1511 = vunpack.c.l.b16 %v1216
      %v1512 = vunpack.c.l.b16 %v1217
      %v1513 = vunpack.c.l.b16 %v1218
      %v1514 = vunpack.c.l.b16 %v1219
      %v1515 = vunpack.c.l.b16 %v1220
      %v1516 = vunpack.c.l.b16 %v1221
      %v1517 = vunpack.c.l.b16 %v1222
      %v1518 = vunpack.c.l.b16 %v1223
      %v1519 = vunpack.c.l.b16 %v1224
      %v1520 = vunpack.c.l.b16 %v1225
      %v1521 = vunpack.c.l.b16 %v1226
      %v1522 = vunpack.c.l.b16 %v1227
      %v1523 = vunpack.c.l.b16 %v1228
      %v1524 = vunpack.c.l.b16 %v1229
      %v1525 = vunpack.c.l.b16 %v1230
      %v1526 = vunpack.c.l.b16 %v1231
      %v1527 = vunpack.c.l.b16 %v1232
      %v1528 = vunpack.c.l.b16 %v1233
      %v1529 = vunpack.c.l.b16 %v1234
      %v1530 = vunpack.c.l.b16 %v1235
      %v1531 = vunpack.c.l.b16 %v1236
      %v1532 = vunpack.c.l.b16 %v1237
      %v1533 = vunpack.c.l.b16 %v1238
      %v1534 = vunpack.c.l.b16 %v1239
      %v1535 = vunpack.c.l.b16 %v1240
      %v1536 = vunpack.c.l.b16 %v1241
      %v1537 = vunpack.c.l.b16 %v1242
      %v1538 = vunpack.c.l.b16 %v1243
      %v1539 = vunpack.c.l.b16 %v1244
      %v1540 = vunpack.c.l.b16 %v1245
      %v1541 = vunpack.c.l.b16 %v1246
      %v1542 = vunpack.c.l.b16 %v1247
      %v1543 = vunpack.c.l.b16 %v1248
      %v1544 = vunpack.c.l.b16 %v1249
      %v1545 = vunpack.c.l.b16 %v1250
      %v1546 = vunpack.c.l.b16 %v1251
      %v1547 = vunpack.c.l.b16 %v1252
      %v1548 = vunpack.c.l.b16 %v1253
      %v1549 = vunpack.c.l.b16 %v1254
      %v1550 = vunpack.c.l.b16 %v1255
      %v1551 = vunpack.c.l.b16 %v1256
      %v1552 = vunpack.c.l.b16 %v1257
      %v1553 = vunpack.c.l.b16 %v1258
      %v1554 = vunpack.c.l.b16 %v1259
      %v1555 = vunpack.c.l.b16 %v1260
      %v1556 = vunpack.c.l.b16 %v1261
      %v1557 = vunpack.c.l.b16 %v1262
      %v1558 = vunpack.c.l.b16 %v1263
      %v1559 = vunpack.c.l.b16 %v1264
      %v1560 = vunpack.c.l.b16 %v1265
      %v1561 = vunpack.c.l.b16 %v1266
      %v1562 = vunpack.c.l.b16 %v1267
      %v1563 = vunpack.c.l.b16 %v1268
      %v1564 = vunpack.c.l.b16 %v1269
      %v1565 = vunpack.c.l.b16 %v1270
      %v1566 = vunpack.c.l.b16 %v1271
      %v1567 = vunpack.c.l.b16 %v1272
      %v1568 = vunpack.c.l.b16 %v1273
      %v1569 = vunpack.c.l.b16 %v1274
      %v1570 = vunpack.c.l.b16 %v1275
      %v1571 = vunpack.c.l.b16 %v1276
      %v1572 = vunpack.c.l.b16 %v1277
      %v1573 = vunpack.c.l.b16 %v1278
      %v1574 = vunpack.c.l.b16 %v1279
      %v1575 = vunpack.c.l.b16 %v1280
      %v1576 = vunpack.c.l.b16 %v1281
      %v1577 = vunpack.c.l.b16 %v1282
      %v1578 = vunpack.c.l.b16 %v1283
      %v1579 = vunpack.c.l.b16 %v1284
      %v1580 = vunpack.c.l.b16 %v1285
      %v1581 = vunpack.c.l.b16 %v1286
      %v1582 = vunpack.c.l.b16 %v1287
      %v1583 = vunpack.c.l.b16 %v1288
      %v1584 = vunpack.c.l.b16 %v1289
      %v1585 = vunpack.c.l.b16 %v1290
      %v1586 = vunpack.c.l.b16 %v1291
      %v1587 = vunpack.c.l.b16 %v1292
      %v1588 = vunpack.c.l.b16 %v1293
      %v1589 = vunpack.c.l.b16 %v1294
      %v1590 = vunpack.c.l.b16 %v1295
      %v1591 = vunpack.c.l.b16 %v1296
      %v1592 = vunpack.c.l.b16 %v1297
      %v1593 = vunpack.c.l.b16 %v1298
      %v1594 = vunpack.c.l.b16 %v1299
      %v1595 = vunpack.c.l.b16 %v1300
      %v1596 = vunpack.c.l.b16 %v1301
      %v1597 = vunpack.c.l.b16 %v1302
      %v1598 = vunpack.c.l.b16 %v1303
      %v1599 = vunpack.c.l.b16 %v1304
      %v1600 = vunpack.c.l.b16 %v1305
      %v1601 = vunpack.c.l.b16 %v1306
      %v1602 = vunpack.c.l.b16 %v1307
      %v1603 = vunpack.c.l.b16 %v1308
      %v1604 = vunpack.c.l.b16 %v1309
      %v1605 = vunpack.c.l.b16 %v1310
      %v1606 = vunpack.c.l.b16 %v1311
      %v1607 = vunpack.c.l.b16 %v1312
      %v1608 = vunpack.c.l.b16 %v1313
      %v1609 = vunpack.c.l.b16 %v1314
      %v1610 = vunpack.c.l.b16 %v1315
      %v1611 = vunpack.c.l.b16 %v1316
      %v1612 = vunpack.c.l.b16 %v1317
      %v1613 = vunpack.c.l.b16 %v1318
      %v1614 = vunpack.c.l.b16 %v1319
      %v1615 = vunpack.c.l.b16 %v1320
      %v1616 = vunpack.c.l.b16 %v1321
      %v1617 = vunpack.c.l.b16 %v1322
      %v1618 = vunpack.c.l.b16 %v1323
      %v1619 = vunpack.c.l.b16 %v1324
      %v1620 = vunpack.c.l.b16 %v1325
      %v1621 = vunpack.c.l.b16 %v1326
      %v1622 = vunpack.c.l.b16 %v1327
      %v1623 = vunpack.c.l.b16 %v1328
      %v1624 = vunpack.c.l.b16 %v1329
      %v1625 = vunpack.c.l.b16 %v1330
      %v1626 = vunpack.c.l.b16 %v1331
      %v1627 = vunpack.c.l.b16 %v1332
      %v1628 = vunpack.c.l.b16 %v1333
      %v1629 = vunpack.c.l.b16 %v1334
      %v1630 = vunpack.c.l.b16 %v1335
      %v1631 = vunpack.c.l.b16 %v1336
      %v1632 = vunpack.c.l.b16 %v1337
      %v1633 = vunpack.c.l.b16 %v1338
      %v1634 = vunpack.c.l.b16 %v1339
      %v1635 = vunpack.c.l.b16 %v1340
      %v1636 = vunpack.c.l.b16 %v1341
      %v1637 = vunpack.c.l.b16 %v1342
      %v1638 = vunpack.c.l.b16 %v1343
      %v1639 = vunpack.c.l.b16 %v1344
      %v1640 = vunpack.c.l.b16 %v1345
      %v1641 = vunpack.c.l.b16 %v1346
      %v1642 = vunpack.c.l.b16 %v1347
      %v1643 = vunpack.c.l.b16 %v1348
      %v1644 = vunpack.c.l.b16 %v1349
      %v1645 = vunpack.c.l.b16 %v1350
      %v1646 = vunpack.c.l.b16 %v1351
      %v1647 = vunpack.c.l.b16 %v1352
      %v1648 = vunpack.c.l.b16 %v1353
      %v1649 = vpack.c.b16 %v1506, %v1505
      %v1650 = vpack.c.b16 %v1508, %v1507
      %v1651 = vpack.c.b16 %v1510, %v1509
      %v1652 = vpack.c.b16 %v1512, %v1511
      %v1653 = vpack.c.b16 %v1514, %v1513
      %v1654 = vpack.c.b16 %v1516, %v1515
      %v1655 = vpack.c.b16 %v1518, %v1517
      %v1656 = vpack.c.b16 %v1520, %v1519
      %v1657 = vpack.c.b16 %v1522, %v1521
      %v1658 = vpack.c.b16 %v1524, %v1523
      %v1659 = vpack.c.b16 %v1526, %v1525
      %v1660 = vpack.c.b16 %v1528, %v1527
      %v1661 = vpack.c.b16 %v1530, %v1529
      %v1662 = vpack.c.b16 %v1532, %v1531
      %v1663 = vpack.c.b16 %v1534, %v1533
      %v1664 = vpack.c.b16 %v1536, %v1535
      %v1665 = vpack.c.b16 %v1538, %v1537
      %v1666 = vpack.c.b16 %v1540, %v1539
      %v1667 = vpack.c.b16 %v1542, %v1541
      %v1668 = vpack.c.b16 %v1544, %v1543
      %v1669 = vpack.c.b16 %v1546, %v1545
      %v1670 = vpack.c.b16 %v1548, %v1547
      %v1671 = vpack.c.b16 %v1550, %v1549
      %v1672 = vpack.c.b16 %v1552, %v1551
      %v1673 = vpack.c.b16 %v1554, %v1553
      %v1674 = vpack.c.b16 %v1556, %v1555
      %v1675 = vpack.c.b16 %v1558, %v1557
      %v1676 = vpack.c.b16 %v1560, %v1559
      %v1677 = vpack.c.b16 %v1562, %v1561
      %v1678 = vpack.c.b16 %v1564, %v1563
      %v1679 = vpack.c.b16 %v1566, %v1565
      %v1680 = vpack.c.b16 %v1568, %v1567
      %v1681 = vpack.c.b16 %v1570, %v1569
      %v1682 = vpack.c.b16 %v1572, %v1571
      %v1683 = vpack.c.b16 %v1574, %v1573
      %v1684 = vpack.c.b16 %v1576, %v1575
      %v1685 = vpack.c.b16 %v1578, %v1577
      %v1686 = vpack.c.b16 %v1580, %v1579
      %v1687 = vpack.c.b16 %v1582, %v1581
      %v1688 = vpack.c.b16 %v1584, %v1583
      %v1689 = vpack.c.b16 %v1586, %v1585
      %v1690 = vpack.c.b16 %v1588, %v1587
      %v1691 = vpack.c.b16 %v1590, %v1589
      %v1692 = vpack.c.b16 %v1592, %v1591
      %v1693 = vpack.c.b16 %v1594, %v1593
      %v1694 = vpack.c.b16 %v1596, %v1595
      %v1695 = vpack.c.b16 %v1598, %v1597
      %v1696 = vpack.c.b16 %v1600, %v1599
      %v1697 = vpack.c.b16 %v1602, %v1601
      %v1698 = vpack.c.b16 %v1604, %v1603
      %v1699 = vpack.c.b16 %v1606, %v1605
      %v1700 = vpack.c.b16 %v1608, %v1607
      %v1701 = vpack.c.b16 %v1610, %v1609
      %v1702 = vpack.c.b16 %v1612, %v1611
      %v1703 = vpack.c.b16 %v1614, %v1613
      %v1704 = vpack.c.b16 %v1616, %v1615
      %v1705 = vpack.c.b16 %v1618, %v1617
      %v1706 = vpack.c.b16 %v1620, %v1619
      %v1707 = vpack.c.b16 %v1622, %v1621
      %v1708 = vpack.c.b16 %v1624, %v1623
      %v1709 = vpack.c.b16 %v1626, %v1625
      %v1710 = vpack.c.b16 %v1628, %v1627
      %v1711 = vpack.c.b16 %v1630, %v1629
      %v1712 = vpack.c.b16 %v1632, %v1631
      %v1713 = vpack.c.b16 %v1634, %v1633
      %v1714 = vpack.c.b16 %v1636, %v1635
      %v1715 = vpack.c.b16 %v1638, %v1637
      %v1716 = vpack.c.b16 %v1640, %v1639
      %v1717 = vpack.c.b16 %v1642, %v1641
      %v1718 = vpack.c.b16 %v1644, %v1643
      %v1719 = vpack.c.b16 %v1646, %v1645
      %v1720 = vpack.c.b16 %v1648, %v1647
      %1793 = vmatprep.subr.bf16.mxu0 0
      %1794 = vmatpush1.bf16.msra.mxu0 %v1649
      %1795 = vmatprep.subr.bf16.mxu0 0
      %1796 = vmatpush1.bf16.msra.mxu0 %v1650
      %1797 = vmatprep.subr.bf16.mxu0 0
      %1798 = vmatpush1.bf16.msra.mxu0 %v1651
      %1799 = vmatprep.subr.bf16.mxu0 0
      %1800 = vmatpush1.bf16.msra.mxu0 %v1652
      %1801 = vmatprep.subr.bf16.mxu0 0
      %1802 = vmatpush1.bf16.msra.mxu0 %v1653
      %1803 = vmatprep.subr.bf16.mxu0 0
      %1804 = vmatpush1.bf16.msra.mxu0 %v1654
      %1805 = vmatprep.subr.bf16.mxu0 0
      %1806 = vmatpush1.bf16.msra.mxu0 %v1655
      %1807 = vmatprep.subr.bf16.mxu0 0
      %1808 = vmatpush1.bf16.msra.mxu0 %v1656
      %1809 = vmatprep.subr.bf16.mxu0 0
      %1810 = vmatpush1.bf16.msra.mxu0 %v1657
      %1811 = vmatprep.subr.bf16.mxu0 0
      %1812 = vmatpush1.bf16.msra.mxu0 %v1658
      %1813 = vmatprep.subr.bf16.mxu0 0
      %1814 = vmatpush1.bf16.msra.mxu0 %v1659
      %1815 = vmatprep.subr.bf16.mxu0 0
      %1816 = vmatpush1.bf16.msra.mxu0 %v1660
      %1817 = vmatprep.subr.bf16.mxu0 0
      %1818 = vmatpush1.bf16.msra.mxu0 %v1661
      %1819 = vmatprep.subr.bf16.mxu0 0
      %1820 = vmatpush1.bf16.msra.mxu0 %v1662
      %1821 = vmatprep.subr.bf16.mxu0 0
      %1822 = vmatpush1.bf16.msra.mxu0 %v1663
      %1823 = vmatprep.subr.bf16.mxu0 0
      %1824 = vmatpush1.bf16.msra.mxu0 %v1664
      %1825 = vmatprep.mubr.bf16.mxu0 %v885
      %1826 = vmatmul.mubr.bf16.gmra.mrb[0].mxu0 %v826
      %v1827 = vpop.f32.mrb[0].mxu0
      %v1828 = vadd.f32 %v1359, %v1827
      %v1829 = vpop.f32.mrb[0].mxu0
      %v1830 = vpop.f32.mrb[0].mxu0
      %v1831 = vadd.f32 %v1359, %v1830
      %v1832 = vpop.f32.mrb[0].mxu0
      %1833 = vmatprep.mubr.bf16.mxu0 %v886
      %1834 = vmatmul.mubr.bf16.gmra.mrb[0].mxu0 %v827
      %v1835 = vpop.f32.mrb[0].mxu0
      %v1836 = vadd.f32 %v1359, %v1835
      %v1837 = vpop.f32.mrb[0].mxu0
      %v1838 = vpop.f32.mrb[0].mxu0
      %v1839 = vadd.f32 %v1359, %v1838
      %v1840 = vpop.f32.mrb[0].mxu0
      %1841 = vmatprep.mubr.bf16.mxu0 %v887
      %1842 = vmatmul.mubr.bf16.gmra.mrb[0].mxu0 %v828
      %v1843 = vpop.f32.mrb[0].mxu0
      %v1844 = vadd.f32 %v1359, %v1843
      %v1845 = vpop.f32.mrb[0].mxu0
      %v1846 = vpop.f32.mrb[0].mxu0
      %v1847 = vadd.f32 %v1359, %v1846
      %v1848 = vpop.f32.mrb[0].mxu0
      %1849 = vmatprep.mubr.bf16.mxu0 %v888
      %1850 = vmatmul.mubr.bf16.gmra.mrb[0].mxu0 %v829
      %v1851 = vpop.f32.mrb[0].mxu0
      %v1852 = vadd.f32 %v1359, %v1851
      %v1853 = vpop.f32.mrb[0].mxu0
      %v1854 = vpop.f32.mrb[0].mxu0
      %v1855 = vadd.f32 %v1359, %v1854
      %v1856 = vpop.f32.mrb[0].mxu0
      %1857 = vmatprep.mubr.bf16.mxu0 %v889
      %1858 = vmatmul.mubr.bf16.gmra.mrb[0].mxu0 %v830
      %v1859 = vpop.f32.mrb[0].mxu0
      %v1860 = vadd.f32 %v1359, %v1859
      %v1861 = vpop.f32.mrb[0].mxu0
      %v1862 = vpop.f32.mrb[0].mxu0
      %v1863 = vadd.f32 %v1359, %v1862
      %v1864 = vpop.f32.mrb[0].mxu0
      %1865 = vmatprep.mubr.bf16.mxu0 %v890
      %1866 = vmatmul.mubr.bf16.gmra.mrb[0].mxu0 %v831
      %v1867 = vpop.f32.mrb[0].mxu0
      %v1868 = vadd.f32 %v1359, %v1867
      %v1869 = vpop.f32.mrb[0].mxu0
      %v1870 = vpop.f32.mrb[0].mxu0
      %v1871 = vadd.f32 %v1359, %v1870
      %v1872 = vpop.f32.mrb[0].mxu0
      %1873 = vmatprep.mubr.bf16.mxu0 %v891
      %1874 = vmatmul.mubr.bf16.gmra.mrb[0].mxu0 %v832
      %v1875 = vpop.f32.mrb[0].mxu0
      %v1876 = vadd.f32 %v1359, %v1875
      %v1877 = vpop.f32.mrb[0].mxu0
      %v1878 = vpop.f32.mrb[0].mxu0
      %v1879 = vadd.f32 %v1359, %v1878
      %v1880 = vpop.f32.mrb[0].mxu0
      %1881 = vmatprep.mubr.bf16.mxu0 %v892
      %1882 = vmatmul.mubr.bf16.gmra.mrb[0].mxu0 %v833
      %v1883 = vpop.f32.mrb[0].mxu0
      %v1884 = vadd.f32 %v1359, %v1883
      %v1885 = vpop.f32.mrb[0].mxu0
      %v1886 = vpop.f32.mrb[0].mxu0
      %v1887 = vadd.f32 %v1359, %v1886
      %v1888 = vpop.f32.mrb[0].mxu0
      %1889 = vmatprep.mubr.bf16.mxu0 %v893
      %1890 = vmatmul.mubr.bf16.gmra.mrb[0].mxu0 %v834
      %v1891 = vpop.f32.mrb[0].mxu0
      %v1892 = vadd.f32 %v1359, %v1891
      %v1893 = vpop.f32.mrb[0].mxu0
      %v1894 = vpop.f32.mrb[0].mxu0
      %v1895 = vadd.f32 %v1359, %v1894
      %v1896 = vpop.f32.mrb[0].mxu0
      %1897 = vmatprep.mubr.bf16.mxu0 %v894
      %1898 = vmatmul.mubr.bf16.gmra.mrb[0].mxu0 %v835
      %v1899 = vpop.f32.mrb[0].mxu0
      %v1900 = vadd.f32 %v1359, %v1899
      %v1901 = vpop.f32.mrb[0].mxu0
      %v1902 = vpop.f32.mrb[0].mxu0
      %v1903 = vadd.f32 %v1359, %v1902
      %v1904 = vpop.f32.mrb[0].mxu0
      %1905 = vmatprep.mubr.bf16.mxu0 %v895
      %1906 = vmatmul.mubr.bf16.gmra.mrb[0].mxu0 %v836
      %v1907 = vpop.f32.mrb[0].mxu0
      %v1908 = vadd.f32 %v1359, %v1907
      %v1909 = vpop.f32.mrb[0].mxu0
      %v1910 = vpop.f32.mrb[0].mxu0
      %v1911 = vadd.f32 %v1359, %v1910
      %v1912 = vpop.f32.mrb[0].mxu0
      %1913 = vmatprep.mubr.bf16.mxu0 %v896
      %1914 = vmatmul.mubr.bf16.gmra.mrb[0].mxu0 %v837
      %v1915 = vpop.f32.mrb[0].mxu0
      %v1916 = vadd.f32 %v1359, %v1915
      %v1917 = vpop.f32.mrb[0].mxu0
      %v1918 = vpop.f32.mrb[0].mxu0
      %v1919 = vadd.f32 %v1359, %v1918
      %v1920 = vpop.f32.mrb[0].mxu0
      %1921 = vmatprep.mubr.bf16.mxu0 %v897
      %1922 = vmatmul.mubr.bf16.gmra.mrb[0].mxu0 %v838
      %v1923 = vpop.f32.mrb[0].mxu0
      %v1924 = vadd.f32 %v1359, %v1923
      %v1925 = vpop.f32.mrb[0].mxu0
      %v1926 = vpop.f32.mrb[0].mxu0
      %v1927 = vadd.f32 %v1359, %v1926
      %v1928 = vpop.f32.mrb[0].mxu0
      %1929 = vmatprep.mubr.bf16.mxu0 %v898
      %1930 = vmatmul.mubr.bf16.gmra.mrb[0].mxu0 %v839
      %v1931 = vpop.f32.mrb[0].mxu0
      %v1932 = vadd.f32 %v1359, %v1931
      %v1933 = vpop.f32.mrb[0].mxu0
      %v1934 = vpop.f32.mrb[0].mxu0
      %v1935 = vadd.f32 %v1359, %v1934
      %v1936 = vpop.f32.mrb[0].mxu0
      %1937 = vmatprep.mubr.bf16.mxu0 %v899
      %1938 = vmatmul.mubr.bf16.gmra.mrb[0].mxu0 %v840
      %v1939 = vpop.f32.mrb[0].mxu0
      %v1940 = vadd.f32 %v1359, %v1939
      %v1941 = vpop.f32.mrb[0].mxu0
      %v1942 = vpop.f32.mrb[0].mxu0
      %v1943 = vadd.f32 %v1359, %v1942
      %v1944 = vpop.f32.mrb[0].mxu0
      %1945 = vmatprep.mubr.bf16.mxu0 %v900
      %1946 = vmatmul.mubr.bf16.gmra.mrb[0].mxu0 %v841
      %v1947 = vpop.f32.mrb[0].mxu0
      %v1948 = vadd.f32 %v1359, %v1947
      %v1949 = vpop.f32.mrb[0].mxu0
      %v1950 = vpop.f32.mrb[0].mxu0
      %v1951 = vadd.f32 %v1359, %v1950
      %v1952 = vpop.f32.mrb[0].mxu0
      %1953 = vmatprep.mubr.bf16.mxu0 %v901
      %1954 = vmatmul.mubr.bf16.gmra.mrb[0].mxu0 %v842
      %v1955 = vpop.f32.mrb[0].mxu0
      %v1956 = vadd.f32 %v1359, %v1955
      %v1957 = vpop.f32.mrb[0].mxu0
      %v1958 = vpop.f32.mrb[0].mxu0
      %v1959 = vadd.f32 %v1359, %v1958
      %v1960 = vpop.f32.mrb[0].mxu0
      %1961 = vmatprep.mubr.bf16.mxu0 %v902
      %1962 = vmatmul.mubr.bf16.gmra.mrb[0].mxu0 %v843
      %v1963 = vpop.f32.mrb[0].mxu0
      %v1964 = vadd.f32 %v1359, %v1963
      %v1965 = vpop.f32.mrb[0].mxu0
      %v1966 = vpop.f32.mrb[0].mxu0
      %v1967 = vadd.f32 %v1359, %v1966
      %v1968 = vpop.f32.mrb[0].mxu0
      %1969 = vmatprep.mubr.bf16.mxu0 %v903
      %1970 = vmatmul.mubr.bf16.gmra.mrb[0].mxu0 %v844
      %v1971 = vpop.f32.mrb[0].mxu0
      %v1972 = vadd.f32 %v1359, %v1971
      %v1973 = vpop.f32.mrb[0].mxu0
      %v1974 = vpop.f32.mrb[0].mxu0
      %v1975 = vadd.f32 %v1359, %v1974
      %v1976 = vpop.f32.mrb[0].mxu0
      %1977 = vmatprep.mubr.bf16.mxu0 %v904
      %1978 = vmatmul.mubr.bf16.gmra.mrb[0].mxu0 %v845
      %v1979 = vpop.f32.mrb[0].mxu0
      %v1980 = vadd.f32 %v1359, %v1979
      %v1981 = vpop.f32.mrb[0].mxu0
      %v1982 = vpop.f32.mrb[0].mxu0
      %v1983 = vpop.f32.mrb[0].mxu0
      %1984 = vdwg.mxu0
      %1985 = vmatprep.subr.bf16.mxu0 0
      %1986 = vmatpush1.bf16.msra.mxu0 %v1665
      %1987 = vmatprep.subr.bf16.mxu0 0
      %1988 = vmatpush1.bf16.msra.mxu0 %v1666
      %1989 = vmatprep.subr.bf16.mxu0 0
      %1990 = vmatpush1.bf16.msra.mxu0 %v1667
      %1991 = vmatprep.subr.bf16.mxu0 0
      %1992 = vmatpush1.bf16.msra.mxu0 %v1668
      %1993 = vmatprep.subr.bf16.mxu0 0
      %1994 = vmatpush1.bf16.msra.mxu0 %v1669
      %1995 = vmatprep.subr.bf16.mxu0 0
      %1996 = vmatpush1.bf16.msra.mxu0 %v1670
      %1997 = vmatprep.subr.bf16.mxu0 0
      %1998 = vmatpush1.bf16.msra.mxu0 %v1671
      %1999 = vmatprep.subr.bf16.mxu0 0
      %2000 = vmatpush1.bf16.msra.mxu0 %v1672
      %2001 = vmatprep.subr.bf16.mxu0 0
      %2002 = vmatpush1.bf16.msra.mxu0 %v1673
      %2003 = vmatprep.subr.bf16.mxu0 0
      %2004 = vmatpush1.bf16.msra.mxu0 %v1674
      %2005 = vmatprep.subr.bf16.mxu0 0
      %2006 = vmatpush1.bf16.msra.mxu0 %v1675
      %2007 = vmatprep.subr.bf16.mxu0 0
      %2008 = vmatpush1.bf16.msra.mxu0 %v1676
      %2009 = vmatprep.subr.bf16.mxu0 0
      %2010 = vmatpush1.bf16.msra.mxu0 %v1677
      %2011 = vmatprep.subr.bf16.mxu0 0
      %2012 = vmatpush1.bf16.msra.mxu0 %v1678
      %2013 = vmatprep.subr.bf16.mxu0 0
      %2014 = vmatpush1.bf16.msra.mxu0 %v1679
      %2015 = vmatprep.subr.bf16.mxu0 0
      %2016 = vmatpush1.bf16.msra.mxu0 %v1680
      %2017 = vmatprep.mubr.bf16.mxu0 %v945
      %2018 = vmatmul.mubr.bf16.gmra.mrb[0].mxu0 %v944
      %v2019 = vpop.f32.mrb[0].mxu0
      %v2020 = vadd.f32 %v1828, %v2019
      %v2021 = vpop.f32.mrb[0].mxu0
      %v2022 = vpop.f32.mrb[0].mxu0
      %v2023 = vadd.f32 %v1831, %v2022
      %v2024 = vpop.f32.mrb[0].mxu0
      %2025 = vmatprep.mubr.bf16.mxu0 %v946
      %2026 = vmatmul.mubr.bf16.gmra.mrb[0].mxu0 %v945
      %v2027 = vpop.f32.mrb[0].mxu0
      %v2028 = vadd.f32 %v1836, %v2027
      %v2029 = vpop.f32.mrb[0].mxu0
      %v2030 = vpop.f32.mrb[0].mxu0
      %v2031 = vadd.f32 %v1839, %v2030
      %v2032 = vpop.f32.mrb[0].mxu0
      %2033 = vmatprep.mubr.bf16.mxu0 %v947
      %2034 = vmatmul.mubr.bf16.gmra.mrb[0].mxu0 %v946
      %v2035 = vpop.f32.mrb[0].mxu0
      %v2036 = vadd.f32 %v1844, %v2035
      %v2037 = vpop.f32.mrb[0].mxu0
      %v2038 = vpop.f32.mrb[0].mxu0
      %v2039 = vadd.f32 %v1847, %v2038
      %v2040 = vpop.f32.mrb[0].mxu0
      %2041 = vmatprep.mubr.bf16.mxu0 %v948
      %2042 = vmatmul.mubr.bf16.gmra.mrb[0].mxu0 %v947
      %v2043 = vpop.f32.mrb[0].mxu0
      %v2044 = vadd.f32 %v1852, %v2043
      %v2045 = vpop.f32.mrb[0].mxu0
      %v2046 = vpop.f32.mrb[0].mxu0
      %v2047 = vadd.f32 %v1855, %v2046
      %v2048 = vpop.f32.mrb[0].mxu0
      %2049 = vmatprep.mubr.bf16.mxu0 %v949
      %2050 = vmatmul.mubr.bf16.gmra.mrb[0].mxu0 %v948
      %v2051 = vpop.f32.mrb[0].mxu0
      %v2052 = vadd.f32 %v1860, %v2051
      %v2053 = vpop.f32.mrb[0].mxu0
      %v2054 = vpop.f32.mrb[0].mxu0
      %v2055 = vadd.f32 %v1863, %v2054
      %v2056 = vpop.f32.mrb[0].mxu0
      %2057 = vmatprep.mubr.bf16.mxu0 %v950
      %2058 = vmatmul.mubr.bf16.gmra.mrb[0].mxu0 %v949
      %v2059 = vpop.f32.mrb[0].mxu0
      %v2060 = vadd.f32 %v1868, %v2059
      %v2061 = vpop.f32.mrb[0].mxu0
      %v2062 = vpop.f32.mrb[0].mxu0
      %v2063 = vadd.f32 %v1871, %v2062
      %v2064 = vpop.f32.mrb[0].mxu0
      %2065 = vmatprep.mubr.bf16.mxu0 %v951
      %2066 = vmatmul.mubr.bf16.gmra.mrb[0].mxu0 %v950
      %v2067 = vpop.f32.mrb[0].mxu0
      %v2068 = vadd.f32 %v1876, %v2067
      %v2069 = vpop.f32.mrb[0].mxu0
      %v2070 = vpop.f32.mrb[0].mxu0
      %v2071 = vadd.f32 %v1879, %v2070
      %v2072 = vpop.f32.mrb[0].mxu0
      %2073 = vmatprep.mubr.bf16.mxu0 %v952
      %2074 = vmatmul.mubr.bf16.gmra.mrb[0].mxu0 %v951
      %v2075 = vpop.f32.mrb[0].mxu0
      %v2076 = vadd.f32 %v1884, %v2075
      %v2077 = vpop.f32.mrb[0].mxu0
      %v2078 = vpop.f32.mrb[0].mxu0
      %v2079 = vadd.f32 %v1887, %v2078
      %v2080 = vpop.f32.mrb[0].mxu0
      %2081 = vmatprep.mubr.bf16.mxu0 %v953
      %2082 = vmatmul.mubr.bf16.gmra.mrb[0].mxu0 %v952
      %v2083 = vpop.f32.mrb[0].mxu0
      %v2084 = vadd.f32 %v1892, %v2083
      %v2085 = vpop.f32.mrb[0].mxu0
      %v2086 = vpop.f32.mrb[0].mxu0
      %v2087 = vadd.f32 %v1895, %v2086
      %v2088 = vpop.f32.mrb[0].mxu0
      %2089 = vmatprep.mubr.bf16.mxu0 %v954
      %2090 = vmatmul.mubr.bf16.gmra.mrb[0].mxu0 %v953
      %v2091 = vpop.f32.mrb[0].mxu0
      %v2092 = vadd.f32 %v1900, %v2091
      %v2093 = vpop.f32.mrb[0].mxu0
      %v2094 = vpop.f32.mrb[0].mxu0
      %v2095 = vadd.f32 %v1903, %v2094
      %v2096 = vpop.f32.mrb[0].mxu0
      %2097 = vmatprep.mubr.bf16.mxu0 %v955
      %2098 = vmatmul.mubr.bf16.gmra.mrb[0].mxu0 %v954
      %v2099 = vpop.f32.mrb[0].mxu0
      %v2100 = vadd.f32 %v1908, %v2099
      %v2101 = vpop.f32.mrb[0].mxu0
      %v2102 = vpop.f32.mrb[0].mxu0
      %v2103 = vadd.f32 %v1911, %v2102
      %v2104 = vpop.f32.mrb[0].mxu0
      %2105 = vmatprep.mubr.bf16.mxu0 %v956
      %2106 = vmatmul.mubr.bf16.gmra.mrb[0].mxu0 %v955
      %v2107 = vpop.f32.mrb[0].mxu0
      %v2108 = vadd.f32 %v1916, %v2107
      %v2109 = vpop.f32.mrb[0].mxu0
      %v2110 = vpop.f32.mrb[0].mxu0
      %v2111 = vadd.f32 %v1919, %v2110
      %v2112 = vpop.f32.mrb[0].mxu0
      %2113 = vmatprep.mubr.bf16.mxu0 %v957
      %2114 = vmatmul.mubr.bf16.gmra.mrb[0].mxu0 %v956
      %v2115 = vpop.f32.mrb[0].mxu0
      %v2116 = vadd.f32 %v1924, %v2115
      %v2117 = vpop.f32.mrb[0].mxu0
      %v2118 = vpop.f32.mrb[0].mxu0
      %v2119 = vadd.f32 %v1927, %v2118
      %v2120 = vpop.f32.mrb[0].mxu0
      %2121 = vmatprep.mubr.bf16.mxu0 %v958
      %2122 = vmatmul.mubr.bf16.gmra.mrb[0].mxu0 %v957
      %v2123 = vpop.f32.mrb[0].mxu0
      %v2124 = vadd.f32 %v1932, %v2123
      %v2125 = vpop.f32.mrb[0].mxu0
      %v2126 = vpop.f32.mrb[0].mxu0
      %v2127 = vadd.f32 %v1935, %v2126
      %v2128 = vpop.f32.mrb[0].mxu0
      %2129 = vmatprep.mubr.bf16.mxu0 %v959
      %2130 = vmatmul.mubr.bf16.gmra.mrb[0].mxu0 %v958
      %v2131 = vpop.f32.mrb[0].mxu0
      %v2132 = vadd.f32 %v1940, %v2131
      %v2133 = vpop.f32.mrb[0].mxu0
      %v2134 = vpop.f32.mrb[0].mxu0
      %v2135 = vadd.f32 %v1943, %v2134
      %v2136 = vpop.f32.mrb[0].mxu0
      %2137 = vmatprep.mubr.bf16.mxu0 %v960
      %2138 = vmatmul.mubr.bf16.gmra.mrb[0].mxu0 %v959
      %v2139 = vpop.f32.mrb[0].mxu0
      %v2140 = vadd.f32 %v1948, %v2139
      %v2141 = vpop.f32.mrb[0].mxu0
      %v2142 = vpop.f32.mrb[0].mxu0
      %v2143 = vadd.f32 %v1951, %v2142
      %v2144 = vpop.f32.mrb[0].mxu0
      %2145 = vmatprep.mubr.bf16.mxu0 %v961
      %2146 = vmatmul.mubr.bf16.gmra.mrb[0].mxu0 %v960
      %v2147 = vpop.f32.mrb[0].mxu0
      %v2148 = vadd.f32 %v1956, %v2147
      %v2149 = vpop.f32.mrb[0].mxu0
      %v2150 = vpop.f32.mrb[0].mxu0
      %v2151 = vadd.f32 %v1959, %v2150
      %v2152 = vpop.f32.mrb[0].mxu0
      %2153 = vmatprep.mubr.bf16.mxu0 %v962
      %2154 = vmatmul.mubr.bf16.gmra.mrb[0].mxu0 %v961
      %v2155 = vpop.f32.mrb[0].mxu0
      %v2156 = vadd.f32 %v1964, %v2155
      %v2157 = vpop.f32.mrb[0].mxu0
      %v2158 = vpop.f32.mrb[0].mxu0
      %v2159 = vadd.f32 %v1967, %v2158
      %v2160 = vpop.f32.mrb[0].mxu0
      %2161 = vmatprep.mubr.bf16.mxu0 %v967
      %2162 = vmatmul.mubr.bf16.gmra.mrb[0].mxu0 %v962
      %v2163 = vpop.f32.mrb[0].mxu0
      %v2164 = vadd.f32 %v1972, %v2163
      %v2165 = vpop.f32.mrb[0].mxu0
      %v2166 = vpop.f32.mrb[0].mxu0
      %v2167 = vadd.f32 %v1975, %v2166
      %v2168 = vpop.f32.mrb[0].mxu0
      %2169 = vmatprep.mubr.bf16.mxu0 %v968
      %2170 = vmatmul.mubr.bf16.gmra.mrb[0].mxu0 %v963
      %v2171 = vpop.f32.mrb[0].mxu0
      %v2172 = vadd.f32 %v1980, %v2171
      %v2173 = vpop.f32.mrb[0].mxu0
      %v2174 = vpop.f32.mrb[0].mxu0
      %v2175 = vpop.f32.mrb[0].mxu0
      %2176 = vdwg.mxu0
      %2177 = vmatprep.subr.bf16.mxu0 0
      %2178 = vmatpush1.bf16.msra.mxu0 %v1681
      %2179 = vmatprep.subr.bf16.mxu0 0
      %2180 = vmatpush1.bf16.msra.mxu0 %v1682
      %2181 = vmatprep.subr.bf16.mxu0 0
      %2182 = vmatpush1.bf16.msra.mxu0 %v1683
      %2183 = vmatprep.subr.bf16.mxu0 0
      %2184 = vmatpush1.bf16.msra.mxu0 %v1684
      %2185 = vmatprep.subr.bf16.mxu0 0
      %2186 = vmatpush1.bf16.msra.mxu0 %v1685
      %2187 = vmatprep.subr.bf16.mxu0 0
      %2188 = vmatpush1.bf16.msra.mxu0 %v1686
      %2189 = vmatprep.subr.bf16.mxu0 0
      %2190 = vmatpush1.bf16.msra.mxu0 %v1687
      %2191 = vmatprep.subr.bf16.mxu0 0
      %2192 = vmatpush1.bf16.msra.mxu0 %v1688
      %2193 = vmatprep.subr.bf16.mxu0 0
      %2194 = vmatpush1.bf16.msra.mxu0 %v1689
      %2195 = vmatprep.subr.bf16.mxu0 0
      %2196 = vmatpush1.bf16.msra.mxu0 %v1690
      %2197 = vmatprep.subr.bf16.mxu0 0
      %2198 = vmatpush1.bf16.msra.mxu0 %v1691
      %2199 = vmatprep.subr.bf16.mxu0 0
      %2200 = vmatpush1.bf16.msra.mxu0 %v1692
      %2201 = vmatprep.subr.bf16.mxu0 0
      %2202 = vmatpush1.bf16.msra.mxu0 %v1693
      %2203 = vmatprep.subr.bf16.mxu0 0
      %2204 = vmatpush1.bf16.msra.mxu0 %v1694
      %2205 = vmatprep.subr.bf16.mxu0 0
      %2206 = vmatpush1.bf16.msra.mxu0 %v1695
      %2207 = vmatprep.subr.bf16.mxu0 0
      %2208 = vmatpush1.bf16.msra.mxu0 %v1696
      %2209 = vmatprep.mubr.bf16.mxu0 %v1067
      %2210 = vmatmul.mubr.bf16.gmra.mrb[0].mxu0 %v1008
      %v2211 = vpop.f32.mrb[0].mxu0
      %v2212 = vadd.f32 %v2020, %v2211
      %v2213 = vpop.f32.mrb[0].mxu0
      %v2214 = vpop.f32.mrb[0].mxu0
      %v2215 = vadd.f32 %v2023, %v2214
      %v2216 = vpop.f32.mrb[0].mxu0
      %2217 = vmatprep.mubr.bf16.mxu0 %v1068
      %2218 = vmatmul.mubr.bf16.gmra.mrb[0].mxu0 %v1009
      %v2219 = vpop.f32.mrb[0].mxu0
      %v2220 = vadd.f32 %v2028, %v2219
      %v2221 = vpop.f32.mrb[0].mxu0
      %v2222 = vpop.f32.mrb[0].mxu0
      %v2223 = vadd.f32 %v2031, %v2222
      %v2224 = vpop.f32.mrb[0].mxu0
      %2225 = vmatprep.mubr.bf16.mxu0 %v1069
      %2226 = vmatmul.mubr.bf16.gmra.mrb[0].mxu0 %v1010
      %v2227 = vpop.f32.mrb[0].mxu0
      %v2228 = vadd.f32 %v2036, %v2227
      %v2229 = vpop.f32.mrb[0].mxu0
      %v2230 = vpop.f32.mrb[0].mxu0
      %v2231 = vadd.f32 %v2039, %v2230
      %v2232 = vpop.f32.mrb[0].mxu0
      %2233 = vmatprep.mubr.bf16.mxu0 %v1070
      %2234 = vmatmul.mubr.bf16.gmra.mrb[0].mxu0 %v1011
      %v2235 = vpop.f32.mrb[0].mxu0
      %v2236 = vadd.f32 %v2044, %v2235
      %v2237 = vpop.f32.mrb[0].mxu0
      %v2238 = vpop.f32.mrb[0].mxu0
      %v2239 = vadd.f32 %v2047, %v2238
      %v2240 = vpop.f32.mrb[0].mxu0
      %2241 = vmatprep.mubr.bf16.mxu0 %v1071
      %2242 = vmatmul.mubr.bf16.gmra.mrb[0].mxu0 %v1012
      %v2243 = vpop.f32.mrb[0].mxu0
      %v2244 = vadd.f32 %v2052, %v2243
      %v2245 = vpop.f32.mrb[0].mxu0
      %v2246 = vpop.f32.mrb[0].mxu0
      %v2247 = vadd.f32 %v2055, %v2246
      %v2248 = vpop.f32.mrb[0].mxu0
      %2249 = vmatprep.mubr.bf16.mxu0 %v1072
      %2250 = vmatmul.mubr.bf16.gmra.mrb[0].mxu0 %v1013
      %v2251 = vpop.f32.mrb[0].mxu0
      %v2252 = vadd.f32 %v2060, %v2251
      %v2253 = vpop.f32.mrb[0].mxu0
      %v2254 = vpop.f32.mrb[0].mxu0
      %v2255 = vadd.f32 %v2063, %v2254
      %v2256 = vpop.f32.mrb[0].mxu0
      %2257 = vmatprep.mubr.bf16.mxu0 %v1073
      %2258 = vmatmul.mubr.bf16.gmra.mrb[0].mxu0 %v1014
      %v2259 = vpop.f32.mrb[0].mxu0
      %v2260 = vadd.f32 %v2068, %v2259
      %v2261 = vpop.f32.mrb[0].mxu0
      %v2262 = vpop.f32.mrb[0].mxu0
      %v2263 = vadd.f32 %v2071, %v2262
      %v2264 = vpop.f32.mrb[0].mxu0
      %2265 = vmatprep.mubr.bf16.mxu0 %v1074
      %2266 = vmatmul.mubr.bf16.gmra.mrb[0].mxu0 %v1015
      %v2267 = vpop.f32.mrb[0].mxu0
      %v2268 = vadd.f32 %v2076, %v2267
      %v2269 = vpop.f32.mrb[0].mxu0
      %v2270 = vpop.f32.mrb[0].mxu0
      %v2271 = vadd.f32 %v2079, %v2270
      %v2272 = vpop.f32.mrb[0].mxu0
      %2273 = vmatprep.mubr.bf16.mxu0 %v1075
      %2274 = vmatmul.mubr.bf16.gmra.mrb[0].mxu0 %v1016
      %v2275 = vpop.f32.mrb[0].mxu0
      %v2276 = vadd.f32 %v2084, %v2275
      %v2277 = vpop.f32.mrb[0].mxu0
      %v2278 = vpop.f32.mrb[0].mxu0
      %v2279 = vadd.f32 %v2087, %v2278
      %v2280 = vpop.f32.mrb[0].mxu0
      %2281 = vmatprep.mubr.bf16.mxu0 %v1076
      %2282 = vmatmul.mubr.bf16.gmra.mrb[0].mxu0 %v1017
      %v2283 = vpop.f32.mrb[0].mxu0
      %v2284 = vadd.f32 %v2092, %v2283
      %v2285 = vpop.f32.mrb[0].mxu0
      %v2286 = vpop.f32.mrb[0].mxu0
      %v2287 = vadd.f32 %v2095, %v2286
      %v2288 = vpop.f32.mrb[0].mxu0
      %2289 = vmatprep.mubr.bf16.mxu0 %v1077
      %2290 = vmatmul.mubr.bf16.gmra.mrb[0].mxu0 %v1018
      %v2291 = vpop.f32.mrb[0].mxu0
      %v2292 = vadd.f32 %v2100, %v2291
      %v2293 = vpop.f32.mrb[0].mxu0
      %v2294 = vpop.f32.mrb[0].mxu0
      %v2295 = vadd.f32 %v2103, %v2294
      %v2296 = vpop.f32.mrb[0].mxu0
      %2297 = vmatprep.mubr.bf16.mxu0 %v1078
      %2298 = vmatmul.mubr.bf16.gmra.mrb[0].mxu0 %v1019
      %v2299 = vpop.f32.mrb[0].mxu0
      %v2300 = vadd.f32 %v2108, %v2299
      %v2301 = vpop.f32.mrb[0].mxu0
      %v2302 = vpop.f32.mrb[0].mxu0
      %v2303 = vadd.f32 %v2111, %v2302
      %v2304 = vpop.f32.mrb[0].mxu0
      %2305 = vmatprep.mubr.bf16.mxu0 %v1079
      %2306 = vmatmul.mubr.bf16.gmra.mrb[0].mxu0 %v1020
      %v2307 = vpop.f32.mrb[0].mxu0
      %v2308 = vadd.f32 %v2116, %v2307
      %v2309 = vpop.f32.mrb[0].mxu0
      %v2310 = vpop.f32.mrb[0].mxu0
      %v2311 = vadd.f32 %v2119, %v2310
      %v2312 = vpop.f32.mrb[0].mxu0
      %2313 = vmatprep.mubr.bf16.mxu0 %v1080
      %2314 = vmatmul.mubr.bf16.gmra.mrb[0].mxu0 %v1021
      %v2315 = vpop.f32.mrb[0].mxu0
      %v2316 = vadd.f32 %v2124, %v2315
      %v2317 = vpop.f32.mrb[0].mxu0
      %v2318 = vpop.f32.mrb[0].mxu0
      %v2319 = vadd.f32 %v2127, %v2318
      %v2320 = vpop.f32.mrb[0].mxu0
      %2321 = vmatprep.mubr.bf16.mxu0 %v1081
      %2322 = vmatmul.mubr.bf16.gmra.mrb[0].mxu0 %v1022
      %v2323 = vpop.f32.mrb[0].mxu0
      %v2324 = vadd.f32 %v2132, %v2323
      %v2325 = vpop.f32.mrb[0].mxu0
      %v2326 = vpop.f32.mrb[0].mxu0
      %v2327 = vadd.f32 %v2135, %v2326
      %v2328 = vpop.f32.mrb[0].mxu0
      %2329 = vmatprep.mubr.bf16.mxu0 %v1082
      %2330 = vmatmul.mubr.bf16.gmra.mrb[0].mxu0 %v1023
      %v2331 = vpop.f32.mrb[0].mxu0
      %v2332 = vadd.f32 %v2140, %v2331
      %v2333 = vpop.f32.mrb[0].mxu0
      %v2334 = vpop.f32.mrb[0].mxu0
      %v2335 = vadd.f32 %v2143, %v2334
      %v2336 = vpop.f32.mrb[0].mxu0
      %2337 = vmatprep.mubr.bf16.mxu0 %v1083
      %2338 = vmatmul.mubr.bf16.gmra.mrb[0].mxu0 %v1024
      %v2339 = vpop.f32.mrb[0].mxu0
      %v2340 = vadd.f32 %v2148, %v2339
      %v2341 = vpop.f32.mrb[0].mxu0
      %v2342 = vpop.f32.mrb[0].mxu0
      %v2343 = vadd.f32 %v2151, %v2342
      %v2344 = vpop.f32.mrb[0].mxu0
      %2345 = vmatprep.mubr.bf16.mxu0 %v1084
      %2346 = vmatmul.mubr.bf16.gmra.mrb[0].mxu0 %v1025
      %v2347 = vpop.f32.mrb[0].mxu0
      %v2348 = vadd.f32 %v2156, %v2347
      %v2349 = vpop.f32.mrb[0].mxu0
      %v2350 = vpop.f32.mrb[0].mxu0
      %v2351 = vadd.f32 %v2159, %v2350
      %v2352 = vpop.f32.mrb[0].mxu0
      %2353 = vmatprep.mubr.bf16.mxu0 %v1085
      %2354 = vmatmul.mubr.bf16.gmra.mrb[0].mxu0 %v1026
      %v2355 = vpop.f32.mrb[0].mxu0
      %v2356 = vadd.f32 %v2164, %v2355
      %v2357 = vpop.f32.mrb[0].mxu0
      %v2358 = vpop.f32.mrb[0].mxu0
      %v2359 = vadd.f32 %v2167, %v2358
      %v2360 = vpop.f32.mrb[0].mxu0
      %2361 = vmatprep.mubr.bf16.mxu0 %v1086
      %2362 = vmatmul.mubr.bf16.gmra.mrb[0].mxu0 %v1027
      %v2363 = vpop.f32.mrb[0].mxu0
      %v2364 = vadd.f32 %v2172, %v2363
      %v2365 = vpop.f32.mrb[0].mxu0
      %v2366 = vpop.f32.mrb[0].mxu0
      %v2367 = vpop.f32.mrb[0].mxu0
      %2368 = vdwg.mxu0
      %2369 = vmatprep.subr.bf16.mxu0 0
      %2370 = vmatpush1.bf16.msra.mxu0 %v1697
      %2371 = vmatprep.subr.bf16.mxu0 0
      %2372 = vmatpush1.bf16.msra.mxu0 %v1698
      %2373 = vmatprep.subr.bf16.mxu0 0
      %2374 = vmatpush1.bf16.msra.mxu0 %v1699
      %2375 = vmatprep.subr.bf16.mxu0 0
      %2376 = vmatpush1.bf16.msra.mxu0 %v1700
      %2377 = vmatprep.subr.bf16.mxu0 0
      %2378 = vmatpush1.bf16.msra.mxu0 %v1701
      %2379 = vmatprep.subr.bf16.mxu0 0
      %2380 = vmatpush1.bf16.msra.mxu0 %v1702
      %2381 = vmatprep.subr.bf16.mxu0 0
      %2382 = vmatpush1.bf16.msra.mxu0 %v1703
      %2383 = vmatprep.subr.bf16.mxu0 0
      %2384 = vmatpush1.bf16.msra.mxu0 %v1704
      %2385 = vmatprep.subr.bf16.mxu0 0
      %2386 = vmatpush1.bf16.msra.mxu0 %v1705
      %2387 = vmatprep.subr.bf16.mxu0 0
      %2388 = vmatpush1.bf16.msra.mxu0 %v1706
      %2389 = vmatprep.subr.bf16.mxu0 0
      %2390 = vmatpush1.bf16.msra.mxu0 %v1707
      %2391 = vmatprep.subr.bf16.mxu0 0
      %2392 = vmatpush1.bf16.msra.mxu0 %v1708
      %2393 = vmatprep.subr.bf16.mxu0 0
      %2394 = vmatpush1.bf16.msra.mxu0 %v1709
      %2395 = vmatprep.subr.bf16.mxu0 0
      %2396 = vmatpush1.bf16.msra.mxu0 %v1710
      %2397 = vmatprep.subr.bf16.mxu0 0
      %2398 = vmatpush1.bf16.msra.mxu0 %v1711
      %2399 = vmatprep.subr.bf16.mxu0 0
      %2400 = vmatpush1.bf16.msra.mxu0 %v1712
      %2401 = vmatprep.mubr.bf16.mxu0 %v1131
      %2402 = vmatmul.mubr.bf16.gmra.mrb[0].mxu0 %v1068
      %v2403 = vpop.f32.mrb[0].mxu0
      %v2404 = vadd.f32 %v2212, %v2403
      %v2405 = vpop.f32.mrb[0].mxu0
      %v2406 = vpop.f32.mrb[0].mxu0
      %v2407 = vadd.f32 %v2215, %v2406
      %v2408 = vpop.f32.mrb[0].mxu0
      %2409 = vmatprep.mubr.bf16.mxu0 %v1132
      %2410 = vmatmul.mubr.bf16.gmra.mrb[0].mxu0 %v1069
      %v2411 = vpop.f32.mrb[0].mxu0
      %v2412 = vadd.f32 %v2220, %v2411
      %v2413 = vpop.f32.mrb[0].mxu0
      %v2414 = vpop.f32.mrb[0].mxu0
      %v2415 = vadd.f32 %v2223, %v2414
      %v2416 = vpop.f32.mrb[0].mxu0
      %2417 = vmatprep.mubr.bf16.mxu0 %v1133
      %2418 = vmatmul.mubr.bf16.gmra.mrb[0].mxu0 %v1070
      %v2419 = vpop.f32.mrb[0].mxu0
      %v2420 = vadd.f32 %v2228, %v2419
      %v2421 = vpop.f32.mrb[0].mxu0
      %v2422 = vpop.f32.mrb[0].mxu0
      %v2423 = vadd.f32 %v2231, %v2422
      %v2424 = vpop.f32.mrb[0].mxu0
      %2425 = vmatprep.mubr.bf16.mxu0 %v1134
      %2426 = vmatmul.mubr.bf16.gmra.mrb[0].mxu0 %v1071
      %v2427 = vpop.f32.mrb[0].mxu0
      %v2428 = vadd.f32 %v2236, %v2427
      %v2429 = vpop.f32.mrb[0].mxu0
      %v2430 = vpop.f32.mrb[0].mxu0
      %v2431 = vadd.f32 %v2239, %v2430
      %v2432 = vpop.f32.mrb[0].mxu0
      %2433 = vmatprep.mubr.bf16.mxu0 %v1135
      %2434 = vmatmul.mubr.bf16.gmra.mrb[0].mxu0 %v1072
      %v2435 = vpop.f32.mrb[0].mxu0
      %v2436 = vadd.f32 %v2244, %v2435
      %v2437 = vpop.f32.mrb[0].mxu0
      %v2438 = vpop.f32.mrb[0].mxu0
      %v2439 = vadd.f32 %v2247, %v2438
      %v2440 = vpop.f32.mrb[0].mxu0
      %2441 = vmatprep.mubr.bf16.mxu0 %v1136
      %2442 = vmatmul.mubr.bf16.gmra.mrb[0].mxu0 %v1073
      %v2443 = vpop.f32.mrb[0].mxu0
      %v2444 = vadd.f32 %v2252, %v2443
      %v2445 = vpop.f32.mrb[0].mxu0
      %v2446 = vpop.f32.mrb[0].mxu0
      %v2447 = vadd.f32 %v2255, %v2446
      %v2448 = vpop.f32.mrb[0].mxu0
      %2449 = vmatprep.mubr.bf16.mxu0 %v1137
      %2450 = vmatmul.mubr.bf16.gmra.mrb[0].mxu0 %v1074
      %v2451 = vpop.f32.mrb[0].mxu0
      %v2452 = vadd.f32 %v2260, %v2451
      %v2453 = vpop.f32.mrb[0].mxu0
      %v2454 = vpop.f32.mrb[0].mxu0
      %v2455 = vadd.f32 %v2263, %v2454
      %v2456 = vpop.f32.mrb[0].mxu0
      %2457 = vmatprep.mubr.bf16.mxu0 %v1138
      %2458 = vmatmul.mubr.bf16.gmra.mrb[0].mxu0 %v1075
      %v2459 = vpop.f32.mrb[0].mxu0
      %v2460 = vadd.f32 %v2268, %v2459
      %v2461 = vpop.f32.mrb[0].mxu0
      %v2462 = vpop.f32.mrb[0].mxu0
      %v2463 = vadd.f32 %v2271, %v2462
      %v2464 = vpop.f32.mrb[0].mxu0
      %2465 = vmatprep.mubr.bf16.mxu0 %v1139
      %2466 = vmatmul.mubr.bf16.gmra.mrb[0].mxu0 %v1076
      %v2467 = vpop.f32.mrb[0].mxu0
      %v2468 = vadd.f32 %v2276, %v2467
      %v2469 = vpop.f32.mrb[0].mxu0
      %v2470 = vpop.f32.mrb[0].mxu0
      %v2471 = vadd.f32 %v2279, %v2470
      %v2472 = vpop.f32.mrb[0].mxu0
      %2473 = vmatprep.mubr.bf16.mxu0 %v1140
      %2474 = vmatmul.mubr.bf16.gmra.mrb[0].mxu0 %v1077
      %v2475 = vpop.f32.mrb[0].mxu0
      %v2476 = vadd.f32 %v2284, %v2475
      %v2477 = vpop.f32.mrb[0].mxu0
      %v2478 = vpop.f32.mrb[0].mxu0
      %v2479 = vadd.f32 %v2287, %v2478
      %v2480 = vpop.f32.mrb[0].mxu0
      %2481 = vmatprep.mubr.bf16.mxu0 %v1141
      %2482 = vmatmul.mubr.bf16.gmra.mrb[0].mxu0 %v1078
      %v2483 = vpop.f32.mrb[0].mxu0
      %v2484 = vadd.f32 %v2292, %v2483
      %v2485 = vpop.f32.mrb[0].mxu0
      %v2486 = vpop.f32.mrb[0].mxu0
      %v2487 = vadd.f32 %v2295, %v2486
      %v2488 = vpop.f32.mrb[0].mxu0
      %2489 = vmatprep.mubr.bf16.mxu0 %v1142
      %2490 = vmatmul.mubr.bf16.gmra.mrb[0].mxu0 %v1079
      %v2491 = vpop.f32.mrb[0].mxu0
      %v2492 = vadd.f32 %v2300, %v2491
      %v2493 = vpop.f32.mrb[0].mxu0
      %v2494 = vpop.f32.mrb[0].mxu0
      %v2495 = vadd.f32 %v2303, %v2494
      %v2496 = vpop.f32.mrb[0].mxu0
      %2497 = vmatprep.mubr.bf16.mxu0 %v1143
      %2498 = vmatmul.mubr.bf16.gmra.mrb[0].mxu0 %v1080
      %v2499 = vpop.f32.mrb[0].mxu0
      %v2500 = vadd.f32 %v2308, %v2499
      %v2501 = vpop.f32.mrb[0].mxu0
      %v2502 = vpop.f32.mrb[0].mxu0
      %v2503 = vadd.f32 %v2311, %v2502
      %v2504 = vpop.f32.mrb[0].mxu0
      %2505 = vmatprep.mubr.bf16.mxu0 %v1144
      %2506 = vmatmul.mubr.bf16.gmra.mrb[0].mxu0 %v1081
      %v2507 = vpop.f32.mrb[0].mxu0
      %v2508 = vadd.f32 %v2316, %v2507
      %v2509 = vpop.f32.mrb[0].mxu0
      %v2510 = vpop.f32.mrb[0].mxu0
      %v2511 = vadd.f32 %v2319, %v2510
      %v2512 = vpop.f32.mrb[0].mxu0
      %2513 = vmatprep.mubr.bf16.mxu0 %v1145
      %2514 = vmatmul.mubr.bf16.gmra.mrb[0].mxu0 %v1082
      %v2515 = vpop.f32.mrb[0].mxu0
      %v2516 = vadd.f32 %v2324, %v2515
      %v2517 = vpop.f32.mrb[0].mxu0
      %v2518 = vpop.f32.mrb[0].mxu0
      %v2519 = vadd.f32 %v2327, %v2518
      %v2520 = vpop.f32.mrb[0].mxu0
      %2521 = vmatprep.mubr.bf16.mxu0 %v1146
      %2522 = vmatmul.mubr.bf16.gmra.mrb[0].mxu0 %v1083
      %v2523 = vpop.f32.mrb[0].mxu0
      %v2524 = vadd.f32 %v2332, %v2523
      %v2525 = vpop.f32.mrb[0].mxu0
      %v2526 = vpop.f32.mrb[0].mxu0
      %v2527 = vadd.f32 %v2335, %v2526
      %v2528 = vpop.f32.mrb[0].mxu0
      %2529 = vmatprep.mubr.bf16.mxu0 %v1147
      %2530 = vmatmul.mubr.bf16.gmra.mrb[0].mxu0 %v1084
      %v2531 = vpop.f32.mrb[0].mxu0
      %v2532 = vadd.f32 %v2340, %v2531
      %v2533 = vpop.f32.mrb[0].mxu0
      %v2534 = vpop.f32.mrb[0].mxu0
      %v2535 = vadd.f32 %v2343, %v2534
      %v2536 = vpop.f32.mrb[0].mxu0
      %2537 = vmatprep.mubr.bf16.mxu0 %v1148
      %2538 = vmatmul.mubr.bf16.gmra.mrb[0].mxu0 %v1085
      %v2539 = vpop.f32.mrb[0].mxu0
      %v2540 = vadd.f32 %v2348, %v2539
      %v2541 = vpop.f32.mrb[0].mxu0
      %v2542 = vpop.f32.mrb[0].mxu0
      %v2543 = vadd.f32 %v2351, %v2542
      %v2544 = vpop.f32.mrb[0].mxu0
      %2545 = vmatprep.mubr.bf16.mxu0 %v1149
      %2546 = vmatmul.mubr.bf16.gmra.mrb[0].mxu0 %v1090
      %v2547 = vpop.f32.mrb[0].mxu0
      %v2548 = vadd.f32 %v2356, %v2547
      %v2549 = vpop.f32.mrb[0].mxu0
      %v2550 = vpop.f32.mrb[0].mxu0
      %v2551 = vadd.f32 %v2359, %v2550
      %v2552 = vpop.f32.mrb[0].mxu0
      %2553 = vmatprep.mubr.bf16.mxu0 %v1150
      %2554 = vmatmul.mubr.bf16.gmra.mrb[0].mxu0 %v1091
      %v2555 = vpop.f32.mrb[0].mxu0
      %v2556 = vadd.f32 %v2364, %v2555
      %v2557 = vpop.f32.mrb[0].mxu0
      %v2558 = vpop.f32.mrb[0].mxu0
      %v2559 = vpop.f32.mrb[0].mxu0
      %2560 = vdwg.mxu0
      %2561 = vmatprep.subr.bf16.mxu0 0
      %2562 = vmatpush1.bf16.msra.mxu0 %v1713
      %2563 = vmatprep.subr.bf16.mxu0 0
      %2564 = vmatpush1.bf16.msra.mxu0 %v1714
      %2565 = vmatprep.subr.bf16.mxu0 0
      %2566 = vmatpush1.bf16.msra.mxu0 %v1715
      %2567 = vmatprep.subr.bf16.mxu0 0
      %2568 = vmatpush1.bf16.msra.mxu0 %v1716
      %2569 = vmatprep.subr.bf16.mxu0 0
      %2570 = vmatpush1.bf16.msra.mxu0 %v1717
      %2571 = vmatprep.subr.bf16.mxu0 0
      %2572 = vmatpush1.bf16.msra.mxu0 %v1718
      %2573 = vmatprep.subr.bf16.mxu0 0
      %2574 = vmatpush1.bf16.msra.mxu0 %v1719
      %2575 = vmatprep.subr.bf16.mxu0 0
      %2576 = vmatpush1.bf16.msra.mxu0 %v1720
      %2577 = vmatprep.subr.bf16.mxu0 0
      %2578 = vmatpush1.bf16.msra.mxu0 0
      %2579 = vmatprep.subr.bf16.mxu0 0
      %2580 = vmatpush1.bf16.msra.mxu0 0
      %2581 = vmatprep.subr.bf16.mxu0 0
      %2582 = vmatpush1.bf16.msra.mxu0 0
      %2583 = vmatprep.subr.bf16.mxu0 0
      %2584 = vmatpush1.bf16.msra.mxu0 0
      %2585 = vmatprep.subr.bf16.mxu0 0
      %2586 = vmatpush1.bf16.msra.mxu0 0
      %2587 = vmatprep.subr.bf16.mxu0 0
      %2588 = vmatpush1.bf16.msra.mxu0 0
      %2589 = vmatprep.subr.bf16.mxu0 0
      %2590 = vmatpush1.bf16.msra.mxu0 0
      %2591 = vmatprep.subr.bf16.mxu0 0
      %2592 = vmatpush1.bf16.msra.mxu0 0
      %2593 = vmatprep.mubr.bf16.mxu0 0
      %2594 = vmatmul.mubr.bf16.gmra.mrb[0].mxu0 %v1190
      %v2595 = vpop.f32.mrb[0].mxu0
      %v2596 = vadd.f32 %v2404, %v2595
      %v2597 = vpop.f32.mrb[0].mxu0
      %v2598 = vpop.f32.mrb[0].mxu0
      %v2599 = vadd.f32 %v2407, %v2598
      %v2600 = vpop.f32.mrb[0].mxu0
      %2601 = vmatprep.mubr.bf16.mxu0 0
      %2602 = vmatmul.mubr.bf16.gmra.mrb[0].mxu0 %v1191
      %v2603 = vpop.f32.mrb[0].mxu0
      %v2604 = vadd.f32 %v2412, %v2603
      %v2605 = vpop.f32.mrb[0].mxu0
      %v2606 = vpop.f32.mrb[0].mxu0
      %v2607 = vadd.f32 %v2415, %v2606
      %v2608 = vpop.f32.mrb[0].mxu0
      %2609 = vmatprep.mubr.bf16.mxu0 0
      %2610 = vmatmul.mubr.bf16.gmra.mrb[0].mxu0 %v1192
      %v2611 = vpop.f32.mrb[0].mxu0
      %v2612 = vadd.f32 %v2420, %v2611
      %v2613 = vpop.f32.mrb[0].mxu0
      %v2614 = vpop.f32.mrb[0].mxu0
      %v2615 = vadd.f32 %v2423, %v2614
      %v2616 = vpop.f32.mrb[0].mxu0
      %2617 = vmatprep.mubr.bf16.mxu0 0
      %2618 = vmatmul.mubr.bf16.gmra.mrb[0].mxu0 %v1193
      %v2619 = vpop.f32.mrb[0].mxu0
      %v2620 = vadd.f32 %v2428, %v2619
      %v2621 = vpop.f32.mrb[0].mxu0
      %v2622 = vpop.f32.mrb[0].mxu0
      %v2623 = vadd.f32 %v2431, %v2622
      %v2624 = vpop.f32.mrb[0].mxu0
      %2625 = vmatprep.mubr.bf16.mxu0 0
      %2626 = vmatmul.mubr.bf16.gmra.mrb[0].mxu0 %v1194
      %v2627 = vpop.f32.mrb[0].mxu0
      %v2628 = vadd.f32 %v2436, %v2627
      %v2629 = vpop.f32.mrb[0].mxu0
      %v2630 = vpop.f32.mrb[0].mxu0
      %v2631 = vadd.f32 %v2439, %v2630
      %v2632 = vpop.f32.mrb[0].mxu0
      %2633 = vmatprep.mubr.bf16.mxu0 0
      %2634 = vmatmul.mubr.bf16.gmra.mrb[0].mxu0 %v1195
      %v2635 = vpop.f32.mrb[0].mxu0
      %v2636 = vadd.f32 %v2444, %v2635
      %v2637 = vpop.f32.mrb[0].mxu0
      %v2638 = vpop.f32.mrb[0].mxu0
      %v2639 = vadd.f32 %v2447, %v2638
      %v2640 = vpop.f32.mrb[0].mxu0
      %2641 = vmatprep.mubr.bf16.mxu0 0
      %2642 = vmatmul.mubr.bf16.gmra.mrb[0].mxu0 %v1196
      %v2643 = vpop.f32.mrb[0].mxu0
      %v2644 = vadd.f32 %v2452, %v2643
      %v2645 = vpop.f32.mrb[0].mxu0
      %v2646 = vpop.f32.mrb[0].mxu0
      %v2647 = vadd.f32 %v2455, %v2646
      %v2648 = vpop.f32.mrb[0].mxu0
      %2649 = vmatprep.mubr.bf16.mxu0 0
      %2650 = vmatmul.mubr.bf16.gmra.mrb[0].mxu0 %v1197
      %v2651 = vpop.f32.mrb[0].mxu0
      %v2652 = vadd.f32 %v2460, %v2651
      %v2653 = vpop.f32.mrb[0].mxu0
      %v2654 = vpop.f32.mrb[0].mxu0
      %v2655 = vadd.f32 %v2463, %v2654
      %v2656 = vpop.f32.mrb[0].mxu0
      %2657 = vmatprep.mubr.bf16.mxu0 0
      %2658 = vmatmul.mubr.bf16.gmra.mrb[0].mxu0 %v1198
      %v2659 = vpop.f32.mrb[0].mxu0
      %v2660 = vadd.f32 %v2468, %v2659
      %v2661 = vpop.f32.mrb[0].mxu0
      %v2662 = vpop.f32.mrb[0].mxu0
      %v2663 = vadd.f32 %v2471, %v2662
      %v2664 = vpop.f32.mrb[0].mxu0
      %2665 = vmatprep.mubr.bf16.mxu0 0
      %2666 = vmatmul.mubr.bf16.gmra.mrb[0].mxu0 %v1199
      %v2667 = vpop.f32.mrb[0].mxu0
      %v2668 = vadd.f32 %v2476, %v2667
      %v2669 = vpop.f32.mrb[0].mxu0
      %v2670 = vpop.f32.mrb[0].mxu0
      %v2671 = vadd.f32 %v2479, %v2670
      %v2672 = vpop.f32.mrb[0].mxu0
      %2673 = vmatprep.mubr.bf16.mxu0 0
      %2674 = vmatmul.mubr.bf16.gmra.mrb[0].mxu0 %v1200
      %v2675 = vpop.f32.mrb[0].mxu0
      %v2676 = vadd.f32 %v2484, %v2675
      %v2677 = vpop.f32.mrb[0].mxu0
      %v2678 = vpop.f32.mrb[0].mxu0
      %v2679 = vadd.f32 %v2487, %v2678
      %v2680 = vpop.f32.mrb[0].mxu0
      %2681 = vmatprep.mubr.bf16.mxu0 0
      %2682 = vmatmul.mubr.bf16.gmra.mrb[0].mxu0 %v1201
      %v2683 = vpop.f32.mrb[0].mxu0
      %v2684 = vadd.f32 %v2492, %v2683
      %v2685 = vpop.f32.mrb[0].mxu0
      %v2686 = vpop.f32.mrb[0].mxu0
      %v2687 = vadd.f32 %v2495, %v2686
      %v2688 = vpop.f32.mrb[0].mxu0
      %2689 = vmatprep.mubr.bf16.mxu0 0
      %2690 = vmatmul.mubr.bf16.gmra.mrb[0].mxu0 %v1202
      %v2691 = vpop.f32.mrb[0].mxu0
      %v2692 = vadd.f32 %v2500, %v2691
      %v2693 = vpop.f32.mrb[0].mxu0
      %v2694 = vpop.f32.mrb[0].mxu0
      %v2695 = vadd.f32 %v2503, %v2694
      %v2696 = vpop.f32.mrb[0].mxu0
      %2697 = vmatprep.mubr.bf16.mxu0 0
      %2698 = vmatmul.mubr.bf16.gmra.mrb[0].mxu0 %v1203
      %v2699 = vpop.f32.mrb[0].mxu0
      %v2700 = vadd.f32 %v2508, %v2699
      %v2701 = vpop.f32.mrb[0].mxu0
      %v2702 = vpop.f32.mrb[0].mxu0
      %v2703 = vadd.f32 %v2511, %v2702
      %v2704 = vpop.f32.mrb[0].mxu0
      %2705 = vmatprep.mubr.bf16.mxu0 0
      %2706 = vmatmul.mubr.bf16.gmra.mrb[0].mxu0 %v1204
      %v2707 = vpop.f32.mrb[0].mxu0
      %v2708 = vadd.f32 %v2516, %v2707
      %v2709 = vpop.f32.mrb[0].mxu0
      %v2710 = vpop.f32.mrb[0].mxu0
      %v2711 = vadd.f32 %v2519, %v2710
      %v2712 = vpop.f32.mrb[0].mxu0
      %2713 = vmatprep.mubr.bf16.mxu0 0
      %2714 = vmatmul.mubr.bf16.gmra.mrb[0].mxu0 %v1205
      %v2715 = vpop.f32.mrb[0].mxu0
      %v2716 = vadd.f32 %v2524, %v2715
      %v2717 = vpop.f32.mrb[0].mxu0
      %v2718 = vpop.f32.mrb[0].mxu0
      %v2719 = vadd.f32 %v2527, %v2718
      %v2720 = vpop.f32.mrb[0].mxu0
      %2721 = vmatprep.mubr.bf16.mxu0 0
      %2722 = vmatmul.mubr.bf16.gmra.mrb[0].mxu0 %v1206
      %v2723 = vpop.f32.mrb[0].mxu0
      %v2724 = vadd.f32 %v2532, %v2723
      %v2725 = vpop.f32.mrb[0].mxu0
      %v2726 = vpop.f32.mrb[0].mxu0
      %v2727 = vadd.f32 %v2535, %v2726
      %v2728 = vpop.f32.mrb[0].mxu0
      %2729 = vmatprep.mubr.bf16.mxu0 0
      %2730 = vmatmul.mubr.bf16.gmra.mrb[0].mxu0 %v1207
      %v2731 = vpop.f32.mrb[0].mxu0
      %v2732 = vadd.f32 %v2540, %v2731
      %v2733 = vpop.f32.mrb[0].mxu0
      %v2734 = vpop.f32.mrb[0].mxu0
      %v2735 = vadd.f32 %v2543, %v2734
      %v2736 = vpop.f32.mrb[0].mxu0
      %2737 = vmatprep.mubr.bf16.mxu0 0
      %2738 = vmatmul.mubr.bf16.gmra.mrb[0].mxu0 %v1208
      %v2739 = vpop.f32.mrb[0].mxu0
      %v2740 = vadd.f32 %v2548, %v2739
      %v2741 = vpop.f32.mrb[0].mxu0
      %v2742 = vpop.f32.mrb[0].mxu0
      %v2743 = vadd.f32 %v2551, %v2742
      %v2744 = vpop.f32.mrb[0].mxu0
      %2745 = vmatprep.mubr.bf16.mxu0 0
      %2746 = vmatmul.mubr.bf16.gmra.mrb[0].mxu0 %v1209
      %v2747 = vpop.f32.mrb[0].mxu0
      %v2748 = vadd.f32 %v2556, %v2747
      %v2749 = vpop.f32.mrb[0].mxu0
      %v2750 = vpop.f32.mrb[0].mxu0
      %v2751 = vpop.f32.mrb[0].mxu0
      %2752 = vdwg.mxu0
      %v2753 = vmax.f32 %v2596, 0.0
      %v2754 = vmax.f32 %v2599, 0.0
      %v2755 = vmax.f32 %v2604, 0.0
      %v2756 = vmax.f32 %v2607, 0.0
      %v2757 = vmax.f32 %v2612, 0.0
      %v2758 = vmax.f32 %v2615, 0.0
      %v2759 = vmax.f32 %v2620, 0.0
      %v2760 = vmax.f32 %v2623, 0.0
      %v2761 = vmax.f32 %v2628, 0.0
      %v2762 = vmax.f32 %v2631, 0.0
      %v2763 = vmax.f32 %v2636, 0.0
      %v2764 = vmax.f32 %v2639, 0.0
      %v2765 = vmax.f32 %v2644, 0.0
      %v2766 = vmax.f32 %v2647, 0.0
      %v2767 = vmax.f32 %v2652, 0.0
      %v2768 = vmax.f32 %v2655, 0.0
      %v2769 = vmax.f32 %v2660, 0.0
      %v2770 = vmax.f32 %v2663, 0.0
      %v2771 = vmax.f32 %v2668, 0.0
      %v2772 = vmax.f32 %v2671, 0.0
      %v2773 = vmax.f32 %v2676, 0.0
      %v2774 = vmax.f32 %v2679, 0.0
      %v2775 = vmax.f32 %v2684, 0.0
      %v2776 = vmax.f32 %v2687, 0.0
      %v2777 = vmax.f32 %v2692, 0.0
      %v2778 = vmax.f32 %v2695, 0.0
      %v2779 = vmax.f32 %v2700, 0.0
      %v2780 = vmax.f32 %v2703, 0.0
      %v2781 = vmax.f32 %v2708, 0.0
      %v2782 = vmax.f32 %v2711, 0.0
      %v2783 = vmax.f32 %v2716, 0.0
      %v2784 = vmax.f32 %v2719, 0.0
      %v2785 = vmax.f32 %v2724, 0.0
      %v2786 = vmax.f32 %v2727, 0.0
      %v2787 = vmax.f32 %v2732, 0.0
      %v2788 = vmax.f32 %v2735, 0.0
      %v2789 = vmax.f32 %v2740, 0.0
      %v2790 = vmax.f32 %v2743, 0.0
      %v2791 = vmax.f32 %v2748, 0.0
      %vm2831 = vcmask 1046528
      %v2832 = vrot.slane %v2753, 1
      %v2833 = vrot.slane %v2754, 1
      %v2834 = vsel %vm2831, %v2832, %v2833
      %v2835 = vrot.slane %v2755, 1
      %v2836 = vsel %vm2831, %v2833, %v2835
      %v2837 = vrot.slane %v2756, 1
      %v2838 = vsel %vm2831, %v2835, %v2837
      %v2839 = vrot.slane %v2757, 1
      %v2840 = vsel %vm2831, %v2837, %v2839
      %v2841 = vrot.slane %v2758, 1
      %v2842 = vsel %vm2831, %v2839, %v2841
      %v2843 = vrot.slane %v2759, 1
      %v2844 = vsel %vm2831, %v2841, %v2843
      %v2845 = vrot.slane %v2760, 1
      %v2846 = vsel %vm2831, %v2843, %v2845
      %v2847 = vrot.slane %v2761, 1
      %v2848 = vsel %vm2831, %v2845, %v2847
      %v2849 = vrot.slane %v2762, 1
      %v2850 = vsel %vm2831, %v2847, %v2849
      %v2851 = vrot.slane %v2763, 1
      %v2852 = vsel %vm2831, %v2849, %v2851
      %v2853 = vrot.slane %v2764, 1
      %v2854 = vsel %vm2831, %v2851, %v2853
      %v2855 = vrot.slane %v2765, 1
      %v2856 = vsel %vm2831, %v2853, %v2855
      %v2857 = vrot.slane %v2766, 1
      %v2858 = vsel %vm2831, %v2855, %v2857
      %v2859 = vrot.slane %v2767, 1
      %v2860 = vsel %vm2831, %v2857, %v2859
      %v2861 = vrot.slane %v2768, 1
      %v2862 = vsel %vm2831, %v2859, %v2861
      %v2863 = vrot.slane %v2769, 1
      %v2864 = vsel %vm2831, %v2861, %v2863
      %v2865 = vrot.slane %v2770, 1
      %v2866 = vsel %vm2831, %v2863, %v2865
      %v2867 = vrot.slane %v2771, 1
      %v2868 = vsel %vm2831, %v2865, %v2867
      %v2869 = vrot.slane %v2772, 1
      %v2870 = vsel %vm2831, %v2867, %v2869
      %v2871 = vrot.slane %v2773, 1
      %v2872 = vsel %vm2831, %v2869, %v2871
      %v2873 = vrot.slane %v2774, 1
      %v2874 = vsel %vm2831, %v2871, %v2873
      %v2875 = vrot.slane %v2775, 1
      %v2876 = vsel %vm2831, %v2873, %v2875
      %v2877 = vrot.slane %v2776, 1
      %v2878 = vsel %vm2831, %v2875, %v2877
      %v2879 = vrot.slane %v2777, 1
      %v2880 = vsel %vm2831, %v2877, %v2879
      %v2881 = vrot.slane %v2778, 1
      %v2882 = vsel %vm2831, %v2879, %v2881
      %v2883 = vrot.slane %v2779, 1
      %v2884 = vsel %vm2831, %v2881, %v2883
      %v2885 = vrot.slane %v2780, 1
      %v2886 = vsel %vm2831, %v2883, %v2885
      %v2887 = vrot.slane %v2781, 1
      %v2888 = vsel %vm2831, %v2885, %v2887
      %v2889 = vrot.slane %v2782, 1
      %v2890 = vsel %vm2831, %v2887, %v2889
      %v2891 = vrot.slane %v2783, 1
      %v2892 = vsel %vm2831, %v2889, %v2891
      %v2893 = vrot.slane %v2784, 1
      %v2894 = vsel %vm2831, %v2891, %v2893
      %v2895 = vrot.slane %v2785, 1
      %v2896 = vsel %vm2831, %v2893, %v2895
      %v2897 = vrot.slane %v2786, 1
      %v2898 = vsel %vm2831, %v2895, %v2897
      %v2899 = vrot.slane %v2787, 1
      %v2900 = vsel %vm2831, %v2897, %v2899
      %v2901 = vrot.slane %v2788, 1
      %v2902 = vsel %vm2831, %v2899, %v2901
      %v2903 = vrot.slane %v2789, 1
      %v2904 = vsel %vm2831, %v2901, %v2903
      %v2905 = vrot.slane %v2790, 1
      %v2906 = vsel %vm2831, %v2903, %v2905
      %v2907 = vrot.slane %v2791, 1
      %v2908 = vsel %vm2831, %v2905, %v2907
      %v2948 = vmax.f32 %v2753, %v2834
      %v2949 = vmax.f32 %v2754, %v2836
      %v2950 = vmax.f32 %v2755, %v2838
      %v2951 = vmax.f32 %v2756, %v2840
      %v2952 = vmax.f32 %v2757, %v2842
      %v2953 = vmax.f32 %v2758, %v2844
      %v2954 = vmax.f32 %v2759, %v2846
      %v2955 = vmax.f32 %v2760, %v2848
      %v2956 = vmax.f32 %v2761, %v2850
      %v2957 = vmax.f32 %v2762, %v2852
      %v2958 = vmax.f32 %v2763, %v2854
      %v2959 = vmax.f32 %v2764, %v2856
      %v2960 = vmax.f32 %v2765, %v2858
      %v2961 = vmax.f32 %v2766, %v2860
      %v2962 = vmax.f32 %v2767, %v2862
      %v2963 = vmax.f32 %v2768, %v2864
      %v2964 = vmax.f32 %v2769, %v2866
      %v2965 = vmax.f32 %v2770, %v2868
      %v2966 = vmax.f32 %v2771, %v2870
      %v2967 = vmax.f32 %v2772, %v2872
      %v2968 = vmax.f32 %v2773, %v2874
      %v2969 = vmax.f32 %v2774, %v2876
      %v2970 = vmax.f32 %v2775, %v2878
      %v2971 = vmax.f32 %v2776, %v2880
      %v2972 = vmax.f32 %v2777, %v2882
      %v2973 = vmax.f32 %v2778, %v2884
      %v2974 = vmax.f32 %v2779, %v2886
      %v2975 = vmax.f32 %v2780, %v2888
      %v2976 = vmax.f32 %v2781, %v2890
      %v2977 = vmax.f32 %v2782, %v2892
      %v2978 = vmax.f32 %v2783, %v2894
      %v2979 = vmax.f32 %v2784, %v2896
      %v2980 = vmax.f32 %v2785, %v2898
      %v2981 = vmax.f32 %v2786, %v2900
      %v2982 = vmax.f32 %v2787, %v2902
      %v2983 = vmax.f32 %v2788, %v2904
      %v2984 = vmax.f32 %v2789, %v2906
      %v2985 = vmax.f32 %v2790, %v2908
      %v2986 = vmax.f32 %v2791, %v2907
      %vm3024 = vcmask 1045504
      %v3025 = vrot.slane %v2950, 2
      %v3026 = vrot.slane %v2951, 2
      %v3027 = vsel %vm3024, %v3025, %v3026
      %v3028 = vrot.slane %v2952, 2
      %v3029 = vsel %vm3024, %v3026, %v3028
      %v3030 = vrot.slane %v2953, 2
      %v3031 = vsel %vm3024, %v3028, %v3030
      %v3032 = vrot.slane %v2954, 2
      %v3033 = vsel %vm3024, %v3030, %v3032
      %v3034 = vrot.slane %v2955, 2
      %v3035 = vsel %vm3024, %v3032, %v3034
      %v3036 = vrot.slane %v2956, 2
      %v3037 = vsel %vm3024, %v3034, %v3036
      %v3038 = vrot.slane %v2957, 2
      %v3039 = vsel %vm3024, %v3036, %v3038
      %v3040 = vrot.slane %v2958, 2
      %v3041 = vsel %vm3024, %v3038, %v3040
      %v3042 = vrot.slane %v2959, 2
      %v3043 = vsel %vm3024, %v3040, %v3042
      %v3044 = vrot.slane %v2960, 2
      %v3045 = vsel %vm3024, %v3042, %v3044
      %v3046 = vrot.slane %v2961, 2
      %v3047 = vsel %vm3024, %v3044, %v3046
      %v3048 = vrot.slane %v2962, 2
      %v3049 = vsel %vm3024, %v3046, %v3048
      %v3050 = vrot.slane %v2963, 2
      %v3051 = vsel %vm3024, %v3048, %v3050
      %v3052 = vrot.slane %v2964, 2
      %v3053 = vsel %vm3024, %v3050, %v3052
      %v3054 = vrot.slane %v2965, 2
      %v3055 = vsel %vm3024, %v3052, %v3054
      %v3056 = vrot.slane %v2966, 2
      %v3057 = vsel %vm3024, %v3054, %v3056
      %v3058 = vrot.slane %v2967, 2
      %v3059 = vsel %vm3024, %v3056, %v3058
      %v3060 = vrot.slane %v2968, 2
      %v3061 = vsel %vm3024, %v3058, %v3060
      %v3062 = vrot.slane %v2969, 2
      %v3063 = vsel %vm3024, %v3060, %v3062
      %v3064 = vrot.slane %v2970, 2
      %v3065 = vsel %vm3024, %v3062, %v3064
      %v3066 = vrot.slane %v2971, 2
      %v3067 = vsel %vm3024, %v3064, %v3066
      %v3068 = vrot.slane %v2972, 2
      %v3069 = vsel %vm3024, %v3066, %v3068
      %v3070 = vrot.slane %v2973, 2
      %v3071 = vsel %vm3024, %v3068, %v3070
      %v3072 = vrot.slane %v2974, 2
      %v3073 = vsel %vm3024, %v3070, %v3072
      %v3074 = vrot.slane %v2975, 2
      %v3075 = vsel %vm3024, %v3072, %v3074
      %v3076 = vrot.slane %v2976, 2
      %v3077 = vsel %vm3024, %v3074, %v3076
      %v3078 = vrot.slane %v2977, 2
      %v3079 = vsel %vm3024, %v3076, %v3078
      %v3080 = vrot.slane %v2978, 2
      %v3081 = vsel %vm3024, %v3078, %v3080
      %v3082 = vrot.slane %v2979, 2
      %v3083 = vsel %vm3024, %v3080, %v3082
      %v3084 = vrot.slane %v2980, 2
      %v3085 = vsel %vm3024, %v3082, %v3084
      %v3086 = vrot.slane %v2981, 2
      %v3087 = vsel %vm3024, %v3084, %v3086
      %v3088 = vrot.slane %v2982, 2
      %v3089 = vsel %vm3024, %v3086, %v3088
      %v3090 = vrot.slane %v2983, 2
      %v3091 = vsel %vm3024, %v3088, %v3090
      %v3092 = vrot.slane %v2984, 2
      %v3093 = vsel %vm3024, %v3090, %v3092
      %v3094 = vrot.slane %v2985, 2
      %v3095 = vsel %vm3024, %v3092, %v3094
      %v3096 = vrot.slane %v2986, 2
      %v3097 = vsel %vm3024, %v3094, %v3096
      %v3134 = vmax.f32 %v2948, %v3027
      %v3135 = vmax.f32 %v2949, %v3029
      %v3136 = vmax.f32 %v2950, %v3031
      %v3137 = vmax.f32 %v2951, %v3033
      %v3138 = vmax.f32 %v2952, %v3035
      %v3139 = vmax.f32 %v2953, %v3037
      %v3140 = vmax.f32 %v2954, %v3039
      %v3141 = vmax.f32 %v2955, %v3041
      %v3142 = vmax.f32 %v2956, %v3043
      %v3143 = vmax.f32 %v2957, %v3045
      %v3144 = vmax.f32 %v2958, %v3047
      %v3145 = vmax.f32 %v2959, %v3049
      %v3146 = vmax.f32 %v2960, %v3051
      %v3147 = vmax.f32 %v2961, %v3053
      %v3148 = vmax.f32 %v2962, %v3055
      %v3149 = vmax.f32 %v2963, %v3057
      %v3150 = vmax.f32 %v2964, %v3059
      %v3151 = vmax.f32 %v2965, %v3061
      %v3152 = vmax.f32 %v2966, %v3063
      %v3153 = vmax.f32 %v2967, %v3065
      %v3154 = vmax.f32 %v2968, %v3067
      %v3155 = vmax.f32 %v2969, %v3069
      %v3156 = vmax.f32 %v2970, %v3071
      %v3157 = vmax.f32 %v2971, %v3073
      %v3158 = vmax.f32 %v2972, %v3075
      %v3159 = vmax.f32 %v2973, %v3077
      %v3160 = vmax.f32 %v2974, %v3079
      %v3161 = vmax.f32 %v2975, %v3081
      %v3162 = vmax.f32 %v2976, %v3083
      %v3163 = vmax.f32 %v2977, %v3085
      %v3164 = vmax.f32 %v2978, %v3087
      %v3165 = vmax.f32 %v2979, %v3089
      %v3166 = vmax.f32 %v2980, %v3091
      %v3167 = vmax.f32 %v2981, %v3093
      %v3168 = vmax.f32 %v2982, %v3095
      %v3169 = vmax.f32 %v2983, %v3097
      %v3170 = vld [vmem:[%s7] sm:$0xff]
      %v3171 = vld [vmem:[%s7 + $0x8] sm:$0xf]
      %v3172 = vld [vmem:[%s7 + $0xc] sm:$0xff]
      %v3173 = vld [vmem:[%s7 + $0x14] sm:$0xf]
      %v3174 = vld [vmem:[%s7 + $0x18] sm:$0xff]
      %v3175 = vld [vmem:[%s7 + $0x20] sm:$0xf]
      %v3176 = vld [vmem:[%s7 + $0x24] sm:$0xff]
      %v3177 = vld [vmem:[%s7 + $0x2c] sm:$0xf]
      %v3178 = vld [vmem:[%s7 + $0x30] sm:$0xff]
      %v3179 = vld [vmem:[%s7 + $0x38] sm:$0xf]
      %v3180 = vld [vmem:[%s7 + $0x3c] sm:$0xff]
      %v3181 = vld [vmem:[%s7 + $0x44] sm:$0xf]
      %v3182 = vld [vmem:[%s7 + $0x48] sm:$0xff]
      %v3183 = vld [vmem:[%s7 + $0x50] sm:$0xf]
      %v3184 = vld [vmem:[%s7 + $0x54] sm:$0xff]
      %v3185 = vld [vmem:[%s7 + $0x5c] sm:$0xf]
      %v3186 = vpack.c.bf16 %v3135, %v3134
      %v3187 = vpack.c.bf16 %v3137, %v3136
      %v3188 = vpack.c.bf16 %v3139, %v3138
      %v3189 = vpack.c.bf16 %v3141, %v3140
      %v3190 = vpack.c.bf16 %v3143, %v3142
      %v3191 = vpack.c.bf16 %v3145, %v3144
      %v3192 = vpack.c.bf16 %v3147, %v3146
      %v3193 = vpack.c.bf16 %v3149, %v3148
      %v3194 = vpack.c.bf16 %v3151, %v3150
      %v3195 = vpack.c.bf16 %v3153, %v3152
      %v3196 = vpack.c.bf16 %v3155, %v3154
      %v3197 = vpack.c.bf16 %v3157, %v3156
      %v3198 = vpack.c.bf16 %v3159, %v3158
      %v3199 = vpack.c.bf16 %v3161, %v3160
      %v3200 = vpack.c.bf16 %v3163, %v3162
      %v3201 = vpack.c.bf16 %v3165, %v3164
      %v3202 = vpack.c.bf16 %v3167, %v3166
      %v3203 = vpack.c.bf16 %v3169, %v3168
      %v3220 = vunpack.c.l.b16 %v3170
      %v3221 = vunpack.c.h.b16 %v3170
      %v3222 = vunpack.c.l.b16 %v3171
      %v3223 = vunpack.c.l.b16 %v3172
      %v3224 = vunpack.c.h.b16 %v3172
      %v3225 = vunpack.c.l.b16 %v3173
      %v3226 = vunpack.c.l.b16 %v3174
      %v3227 = vunpack.c.h.b16 %v3174
      %v3228 = vunpack.c.l.b16 %v3175
      %v3229 = vunpack.c.l.b16 %v3176
      %v3230 = vunpack.c.h.b16 %v3176
      %v3231 = vunpack.c.l.b16 %v3177
      %v3232 = vunpack.c.l.b16 %v3178
      %v3233 = vunpack.c.h.b16 %v3178
      %v3234 = vunpack.c.l.b16 %v3179
      %v3235 = vunpack.c.l.b16 %v3180
      %v3236 = vunpack.c.h.b16 %v3180
      %v3237 = vunpack.c.l.b16 %v3181
      %v3238 = vunpack.c.l.b16 %v3182
      %v3239 = vunpack.c.h.b16 %v3182
      %v3240 = vunpack.c.l.b16 %v3183
      %v3241 = vunpack.c.l.b16 %v3184
      %v3242 = vunpack.c.h.b16 %v3184
      %v3243 = vunpack.c.l.b16 %v3185
      %v3244 = vpack.c.b16 %v3223, %v3220
      %v3245 = vpack.c.b16 %v3224, %v3221
      %v3246 = vpack.c.b16 %v3225, %v3222
      %v3247 = vpack.c.b16 %v3229, %v3226
      %v3248 = vpack.c.b16 %v3230, %v3227
      %v3249 = vpack.c.b16 %v3231, %v3228
      %v3250 = vpack.c.b16 %v3235, %v3232
      %v3251 = vpack.c.b16 %v3236, %v3233
      %v3252 = vpack.c.b16 %v3237, %v3234
      %v3253 = vpack.c.b16 %v3241, %v3238
      %v3254 = vpack.c.b16 %v3242, %v3239
      %v3255 = vpack.c.b16 %v3243, %v3240
      %v3265 = vsel %vm469, %v3246, 0
      %v3268 = vsel %vm469, %v3249, 0
      %v3271 = vsel %vm469, %v3252, 0
      %v3274 = vsel %vm469, %v3255, 0
      %3276 = vmatprep.subr.bf16.mxu0 0
      %3277 = vmatpush1.bf16.msra.mxu0 %v3186
      %3278 = vmatprep.subr.bf16.mxu0 0
      %3279 = vmatpush1.bf16.msra.mxu0 %v3187
      %3280 = vmatprep.subr.bf16.mxu0 0
      %3281 = vmatpush1.bf16.msra.mxu0 %v3188
      %3282 = vmatprep.subr.bf16.mxu0 0
      %3283 = vmatpush1.bf16.msra.mxu0 %v3189
      %3284 = vmatprep.subr.bf16.mxu0 0
      %3285 = vmatpush1.bf16.msra.mxu0 %v3190
      %3286 = vmatprep.subr.bf16.mxu0 0
      %3287 = vmatpush1.bf16.msra.mxu0 %v3191
      %3288 = vmatprep.subr.bf16.mxu0 0
      %3289 = vmatpush1.bf16.msra.mxu0 %v3192
      %3290 = vmatprep.subr.bf16.mxu0 0
      %3291 = vmatpush1.bf16.msra.mxu0 %v3193
      %3292 = vmatprep.subr.bf16.mxu0 0
      %3293 = vmatpush1.bf16.msra.mxu0 %v3194
      %3294 = vmatprep.subr.bf16.mxu0 0
      %3295 = vmatpush1.bf16.msra.mxu0 %v3195
      %3296 = vmatprep.subr.bf16.mxu0 0
      %3297 = vmatpush1.bf16.msra.mxu0 %v3196
      %3298 = vmatprep.subr.bf16.mxu0 0
      %3299 = vmatpush1.bf16.msra.mxu0 %v3197
      %3300 = vmatprep.subr.bf16.mxu0 0
      %3301 = vmatpush1.bf16.msra.mxu0 %v3198
      %3302 = vmatprep.subr.bf16.mxu0 0
      %3303 = vmatpush1.bf16.msra.mxu0 %v3199
      %3304 = vmatprep.subr.bf16.mxu0 0
      %3305 = vmatpush1.bf16.msra.mxu0 %v3200
      %3306 = vmatprep.subr.bf16.mxu0 0
      %3307 = vmatpush1.bf16.msra.mxu0 %v3201
      %3308 = vmatprep.mubr.bf16.mxu0 %v3245
      %3309 = vmatmul.mubr.bf16.gmra.mrb[0].mxu0 %v3244
      %v3310 = vpop.f32.mrb[0].mxu0
      %v3311 = vadd.f32 0.0, %v3310
      %v3312 = vpop.f32.mrb[0].mxu0
      %v3313 = vpop.f32.mrb[0].mxu0
      %v3314 = vadd.f32 0.0, %v3313
      %v3315 = vpop.f32.mrb[0].mxu0
      %3316 = vmatprep.mubr.bf16.mxu0 %v3248
      %3317 = vmatmul.mubr.bf16.gmra.mrb[0].mxu0 %v3247
      %v3318 = vpop.f32.mrb[0].mxu0
      %v3319 = vadd.f32 0.0, %v3318
      %v3320 = vpop.f32.mrb[0].mxu0
      %v3321 = vpop.f32.mrb[0].mxu0
      %v3322 = vadd.f32 0.0, %v3321
      %v3323 = vpop.f32.mrb[0].mxu0
      %3324 = vmatprep.mubr.bf16.mxu0 %v3251
      %3325 = vmatmul.mubr.bf16.gmra.mrb[0].mxu0 %v3250
      %v3326 = vpop.f32.mrb[0].mxu0
      %v3327 = vadd.f32 0.0, %v3326
      %v3328 = vpop.f32.mrb[0].mxu0
      %v3329 = vpop.f32.mrb[0].mxu0
      %v3330 = vadd.f32 0.0, %v3329
      %v3331 = vpop.f32.mrb[0].mxu0
      %3332 = vmatprep.mubr.bf16.mxu0 %v3254
      %3333 = vmatmul.mubr.bf16.gmra.mrb[0].mxu0 %v3253
      %v3334 = vpop.f32.mrb[0].mxu0
      %v3335 = vadd.f32 0.0, %v3334
      %v3336 = vpop.f32.mrb[0].mxu0
      %v3337 = vpop.f32.mrb[0].mxu0
      %v3338 = vadd.f32 0.0, %v3337
      %v3339 = vpop.f32.mrb[0].mxu0
      %3340 = vdwg.mxu0
      %3341 = vmatprep.subr.bf16.mxu0 0
      %3342 = vmatpush1.bf16.msra.mxu0 %v3202
      %3343 = vmatprep.subr.bf16.mxu0 0
      %3344 = vmatpush1.bf16.msra.mxu0 %v3203
      %3345 = vmatprep.subr.bf16.mxu0 0
      %3346 = vmatpush1.bf16.msra.mxu0 0
      %3347 = vmatprep.subr.bf16.mxu0 0
      %3348 = vmatpush1.bf16.msra.mxu0 0
      %3349 = vmatprep.subr.bf16.mxu0 0
      %3350 = vmatpush1.bf16.msra.mxu0 0
      %3351 = vmatprep.subr.bf16.mxu0 0
      %3352 = vmatpush1.bf16.msra.mxu0 0
      %3353 = vmatprep.subr.bf16.mxu0 0
      %3354 = vmatpush1.bf16.msra.mxu0 0
      %3355 = vmatprep.subr.bf16.mxu0 0
      %3356 = vmatpush1.bf16.msra.mxu0 0
      %3357 = vmatprep.subr.bf16.mxu0 0
      %3358 = vmatpush1.bf16.msra.mxu0 0
      %3359 = vmatprep.subr.bf16.mxu0 0
      %3360 = vmatpush1.bf16.msra.mxu0 0
      %3361 = vmatprep.subr.bf16.mxu0 0
      %3362 = vmatpush1.bf16.msra.mxu0 0
      %3363 = vmatprep.subr.bf16.mxu0 0
      %3364 = vmatpush1.bf16.msra.mxu0 0
      %3365 = vmatprep.subr.bf16.mxu0 0
      %3366 = vmatpush1.bf16.msra.mxu0 0
      %3367 = vmatprep.subr.bf16.mxu0 0
      %3368 = vmatpush1.bf16.msra.mxu0 0
      %3369 = vmatprep.subr.bf16.mxu0 0
      %3370 = vmatpush1.bf16.msra.mxu0 0
      %3371 = vmatprep.subr.bf16.mxu0 0
      %3372 = vmatpush1.bf16.msra.mxu0 0
      %3373 = vmatprep.mubr.bf16.mxu0 0
      %3374 = vmatmul.mubr.bf16.gmra.mrb[0].mxu0 %v3265
      %v3375 = vpop.f32.mrb[0].mxu0
      %v3376 = vadd.f32 %v3311, %v3375
      %v3377 = vpop.f32.mrb[0].mxu0
      %v3378 = vpop.f32.mrb[0].mxu0
      %v3379 = vadd.f32 %v3314, %v3378
      %v3380 = vpop.f32.mrb[0].mxu0
      %3381 = vmatprep.mubr.bf16.mxu0 0
      %3382 = vmatmul.mubr.bf16.gmra.mrb[0].mxu0 %v3268
      %v3383 = vpop.f32.mrb[0].mxu0
      %v3384 = vadd.f32 %v3319, %v3383
      %v3385 = vpop.f32.mrb[0].mxu0
      %v3386 = vpop.f32.mrb[0].mxu0
      %v3387 = vadd.f32 %v3322, %v3386
      %v3388 = vpop.f32.mrb[0].mxu0
      %3389 = vmatprep.mubr.bf16.mxu0 0
      %3390 = vmatmul.mubr.bf16.gmra.mrb[0].mxu0 %v3271
      %v3391 = vpop.f32.mrb[0].mxu0
      %v3392 = vadd.f32 %v3327, %v3391
      %v3393 = vpop.f32.mrb[0].mxu0
      %v3394 = vpop.f32.mrb[0].mxu0
      %v3395 = vadd.f32 %v3330, %v3394
      %v3396 = vpop.f32.mrb[0].mxu0
      %3397 = vmatprep.mubr.bf16.mxu0 0
      %3398 = vmatmul.mubr.bf16.gmra.mrb[0].mxu0 %v3274
      %v3399 = vpop.f32.mrb[0].mxu0
      %v3400 = vadd.f32 %v3335, %v3399
      %v3401 = vpop.f32.mrb[0].mxu0
      %v3402 = vpop.f32.mrb[0].mxu0
      %v3403 = vadd.f32 %v3338, %v3402
      %v3404 = vpop.f32.mrb[0].mxu0
      %3405 = vdwg.mxu0
      %3406 = vst [vmem:[#allocation3] sm:$0xff] 0.0
      %3407 = vst [vmem:[#allocation3 + $0x8] sm:$0xff] 0.0
      %3408 = vst [vmem:[#allocation3 + $0x10] sm:$0xff] 0.0
      %3409 = vst [vmem:[#allocation3 + $0x18] sm:$0xff] 0.0
      %3410 = vst [vmem:[#allocation3 + $0x20] sm:$0xff] 0.0
      %3411 = vst [vmem:[#allocation3 + $0x28] sm:$0xff] 0.0
      %3412 = vst [vmem:[#allocation3 + $0x30] sm:$0xff] 0.0
      %3413 = vst [vmem:[#allocation3 + $0x38] sm:$0xff] 0.0
      %3414 = vst [vmem:[#allocation3 + $0x40] sm:$0xff] 0.0
      %3415 = vst [vmem:[#allocation3 + $0x48] sm:$0xff] 0.0
      %3416 = vst [vmem:[#allocation3 + $0x50] sm:$0xff] 0.0
      %3417 = vst [vmem:[#allocation3 + $0x58] sm:$0xff] 0.0
      %3418 = vst [vmem:[#allocation3 + $0x60] sm:$0xff] 0.0
      %3419 = vst [vmem:[#allocation3 + $0x68] sm:$0xff] 0.0
      %3420 = vst [vmem:[#allocation3 + $0x70] sm:$0xff] 0.0
      %3421 = vst [vmem:[#allocation3 + $0xb] sm:$0xff] %v3376
      %3422 = vst [vmem:[#allocation3 + $0x15] sm:$0xff] %v3379
      %3423 = vst [vmem:[#allocation3 + $0x1f] sm:$0xff] %v3384
      %3424 = vst [vmem:[#allocation3 + $0x29] sm:$0xff] %v3387
      %3425 = vst [vmem:[#allocation3 + $0x33] sm:$0xff] %v3392
      %3426 = vst [vmem:[#allocation3 + $0x3d] sm:$0xff] %v3395
      %3427 = vst [vmem:[#allocation3 + $0x47] sm:$0xff] %v3400
      %3428 = vst [vmem:[#allocation3 + $0x51] sm:$0xff] %v3403
      %v3429 = vld [vmem:[#allocation3] sm:$0xff]
      %v3430 = vld [vmem:[#allocation3 + $0x8] sm:$0xff]
      %v3431 = vld [vmem:[#allocation3 + $0x10] sm:$0xff]
      %v3432 = vld [vmem:[#allocation3 + $0x18] sm:$0xff]
      %v3433 = vld [vmem:[#allocation3 + $0x20] sm:$0xff]
      %v3434 = vld [vmem:[#allocation3 + $0x28] sm:$0xff]
      %v3435 = vld [vmem:[#allocation3 + $0x30] sm:$0xff]
      %v3436 = vld [vmem:[#allocation3 + $0x38] sm:$0xff]
      %v3437 = vld [vmem:[#allocation3 + $0x40] sm:$0xff]
      %v3438 = vld [vmem:[#allocation3 + $0x48] sm:$0xff]
      %v3439 = vld [vmem:[#allocation3 + $0x50] sm:$0xff]
      %v3440 = vld [vmem:[#allocation3 + $0x58] sm:$0x7]
      %v3441 = vpack.c.bf16 %v3430, %v3429
      %v3442 = vpack.c.bf16 %v3432, %v3431
      %v3443 = vpack.c.bf16 %v3434, %v3433
      %v3444 = vpack.c.bf16 %v3436, %v3435
      %v3445 = vpack.c.bf16 %v3438, %v3437
      %v3446 = vpack.c.bf16 %v3440, %v3439
      %v3447 = vld [vmem:[#allocation3 + $0x1] sm:$0xff]
      %v3448 = vld [vmem:[#allocation3 + $0x9] sm:$0xff]
      %v3449 = vld [vmem:[#allocation3 + $0x11] sm:$0xff]
      %v3450 = vld [vmem:[#allocation3 + $0x19] sm:$0xff]
      %v3451 = vld [vmem:[#allocation3 + $0x21] sm:$0xff]
      %v3452 = vld [vmem:[#allocation3 + $0x29] sm:$0xff]
      %v3453 = vld [vmem:[#allocation3 + $0x31] sm:$0xff]
      %v3454 = vld [vmem:[#allocation3 + $0x39] sm:$0xff]
      %v3455 = vld [vmem:[#allocation3 + $0x41] sm:$0xff]
      %v3456 = vld [vmem:[#allocation3 + $0x49] sm:$0xff]
      %v3457 = vld [vmem:[#allocation3 + $0x51] sm:$0xff]
      %v3458 = vld [vmem:[#allocation3 + $0x59] sm:$0x7]
      %v3459 = vpack.c.bf16 %v3448, %v3447
      %v3460 = vpack.c.bf16 %v3450, %v3449
      %v3461 = vpack.c.bf16 %v3452, %v3451
      %v3462 = vpack.c.bf16 %v3454, %v3453
      %v3463 = vpack.c.bf16 %v3456, %v3455
      %v3464 = vpack.c.bf16 %v3458, %v3457
      %v3465 = vld [vmem:[#allocation3 + $0x2] sm:$0xff]
      %v3466 = vld [vmem:[#allocation3 + $0xa] sm:$0xff]
      %v3467 = vld [vmem:[#allocation3 + $0x12] sm:$0xff]
      %v3468 = vld [vmem:[#allocation3 + $0x1a] sm:$0xff]
      %v3469 = vld [vmem:[#allocation3 + $0x22] sm:$0xff]
      %v3470 = vld [vmem:[#allocation3 + $0x2a] sm:$0xff]
      %v3471 = vld [vmem:[#allocation3 + $0x32] sm:$0xff]
      %v3472 = vld [vmem:[#allocation3 + $0x3a] sm:$0xff]
      %v3473 = vld [vmem:[#allocation3 + $0x42] sm:$0xff]
      %v3474 = vld [vmem:[#allocation3 + $0x4a] sm:$0xff]
      %v3475 = vld [vmem:[#allocation3 + $0x52] sm:$0xff]
      %v3476 = vld [vmem:[#allocation3 + $0x5a] sm:$0x7]
      %v3477 = vpack.c.bf16 %v3466, %v3465
      %v3478 = vpack.c.bf16 %v3468, %v3467
      %v3479 = vpack.c.bf16 %v3470, %v3469
      %v3480 = vpack.c.bf16 %v3472, %v3471
      %v3481 = vpack.c.bf16 %v3474, %v3473
      %v3482 = vpack.c.bf16 %v3476, %v3475
      %v3483 = vld [vmem:[#allocation3 + $0x5a] sm:$0xff]
      %v3484 = vld [vmem:[#allocation3 + $0x62] sm:$0x7]
      %v3485 = vpack.c.bf16 %v3467, %v3466
      %v3486 = vpack.c.bf16 %v3469, %v3468
      %v3487 = vpack.c.bf16 %v3471, %v3470
      %v3488 = vpack.c.bf16 %v3473, %v3472
      %v3489 = vpack.c.bf16 %v3475, %v3474
      %v3490 = vpack.c.bf16 %v3484, %v3483
      %v3491 = vld [vmem:[#allocation3 + $0xb] sm:$0xff]
      %v3492 = vld [vmem:[#allocation3 + $0x13] sm:$0xff]
      %v3493 = vld [vmem:[#allocation3 + $0x1b] sm:$0xff]
      %v3494 = vld [vmem:[#allocation3 + $0x23] sm:$0xff]
      %v3495 = vld [vmem:[#allocation3 + $0x2b] sm:$0xff]
      %v3496 = vld [vmem:[#allocation3 + $0x33] sm:$0xff]
      %v3497 = vld [vmem:[#allocation3 + $0x3b] sm:$0xff]
      %v3498 = vld [vmem:[#allocation3 + $0x43] sm:$0xff]
      %v3499 = vld [vmem:[#allocation3 + $0x4b] sm:$0xff]
      %v3500 = vld [vmem:[#allocation3 + $0x53] sm:$0xff]
      %v3501 = vld [vmem:[#allocation3 + $0x5b] sm:$0xff]
      %v3502 = vld [vmem:[#allocation3 + $0x63] sm:$0x7]
      %v3503 = vpack.c.bf16 %v3492, %v3491
      %v3504 = vpack.c.bf16 %v3494, %v3493
      %v3505 = vpack.c.bf16 %v3496, %v3495
      %v3506 = vpack.c.bf16 %v3498, %v3497
      %v3507 = vpack.c.bf16 %v3500, %v3499
      %v3508 = vpack.c.bf16 %v3502, %v3501
      %v3509 = vld [vmem:[#allocation3 + $0xc] sm:$0xff]
      %v3510 = vld [vmem:[#allocation3 + $0x14] sm:$0xff]
      %v3511 = vld [vmem:[#allocation3 + $0x1c] sm:$0xff]
      %v3512 = vld [vmem:[#allocation3 + $0x24] sm:$0xff]
      %v3513 = vld [vmem:[#allocation3 + $0x2c] sm:$0xff]
      %v3514 = vld [vmem:[#allocation3 + $0x34] sm:$0xff]
      %v3515 = vld [vmem:[#allocation3 + $0x3c] sm:$0xff]
      %v3516 = vld [vmem:[#allocation3 + $0x44] sm:$0xff]
      %v3517 = vld [vmem:[#allocation3 + $0x4c] sm:$0xff]
      %v3518 = vld [vmem:[#allocation3 + $0x54] sm:$0xff]
      %v3519 = vld [vmem:[#allocation3 + $0x5c] sm:$0xff]
      %v3520 = vld [vmem:[#allocation3 + $0x64] sm:$0x7]
      %v3521 = vpack.c.bf16 %v3510, %v3509
      %v3522 = vpack.c.bf16 %v3512, %v3511
      %v3523 = vpack.c.bf16 %v3514, %v3513
      %v3524 = vpack.c.bf16 %v3516, %v3515
      %v3525 = vpack.c.bf16 %v3518, %v3517
      %v3526 = vpack.c.bf16 %v3520, %v3519
      %v3527 = vld [vmem:[#allocation3 + $0x64] sm:$0xff]
      %v3528 = vld [vmem:[#allocation3 + $0x6c] sm:$0x7]
      %v3529 = vpack.c.bf16 %v3511, %v3510
      %v3530 = vpack.c.bf16 %v3513, %v3512
      %v3531 = vpack.c.bf16 %v3515, %v3514
      %v3532 = vpack.c.bf16 %v3517, %v3516
      %v3533 = vpack.c.bf16 %v3519, %v3518
      %v3534 = vpack.c.bf16 %v3528, %v3527
      %v3535 = vld [vmem:[#allocation3 + $0x15] sm:$0xff]
      %v3536 = vld [vmem:[#allocation3 + $0x1d] sm:$0xff]
      %v3537 = vld [vmem:[#allocation3 + $0x25] sm:$0xff]
      %v3538 = vld [vmem:[#allocation3 + $0x2d] sm:$0xff]
      %v3539 = vld [vmem:[#allocation3 + $0x35] sm:$0xff]
      %v3540 = vld [vmem:[#allocation3 + $0x3d] sm:$0xff]
      %v3541 = vld [vmem:[#allocation3 + $0x45] sm:$0xff]
      %v3542 = vld [vmem:[#allocation3 + $0x4d] sm:$0xff]
      %v3543 = vld [vmem:[#allocation3 + $0x55] sm:$0xff]
      %v3544 = vld [vmem:[#allocation3 + $0x5d] sm:$0xff]
      %v3545 = vld [vmem:[#allocation3 + $0x65] sm:$0xff]
      %v3546 = vld [vmem:[#allocation3 + $0x6d] sm:$0x7]
      %v3547 = vpack.c.bf16 %v3536, %v3535
      %v3548 = vpack.c.bf16 %v3538, %v3537
      %v3549 = vpack.c.bf16 %v3540, %v3539
      %v3550 = vpack.c.bf16 %v3542, %v3541
      %v3551 = vpack.c.bf16 %v3544, %v3543
      %v3552 = vpack.c.bf16 %v3546, %v3545
      %v3553 = vld [vmem:[#allocation3 + $0x16] sm:$0xff]
      %v3554 = vld [vmem:[#allocation3 + $0x1e] sm:$0xff]
      %v3555 = vld [vmem:[#allocation3 + $0x26] sm:$0xff]
      %v3556 = vld [vmem:[#allocation3 + $0x2e] sm:$0xff]
      %v3557 = vld [vmem:[#allocation3 + $0x36] sm:$0xff]
      %v3558 = vld [vmem:[#allocation3 + $0x3e] sm:$0xff]
      %v3559 = vld [vmem:[#allocation3 + $0x46] sm:$0xff]
      %v3560 = vld [vmem:[#allocation3 + $0x4e] sm:$0xff]
      %v3561 = vld [vmem:[#allocation3 + $0x56] sm:$0xff]
      %v3562 = vld [vmem:[#allocation3 + $0x5e] sm:$0xff]
      %v3563 = vld [vmem:[#allocation3 + $0x66] sm:$0xff]
      %v3564 = vld [vmem:[#allocation3 + $0x6e] sm:$0x7]
      %v3565 = vpack.c.bf16 %v3554, %v3553
      %v3566 = vpack.c.bf16 %v3556, %v3555
      %v3567 = vpack.c.bf16 %v3558, %v3557
      %v3568 = vpack.c.bf16 %v3560, %v3559
      %v3569 = vpack.c.bf16 %v3562, %v3561
      %v3570 = vpack.c.bf16 %v3564, %v3563
      %v3571 = vld [vmem:[%s5] sm:$0xf]
      %v3572 = vld [vmem:[%s5 + $0x4] sm:$0xf]
      %v3573 = vld [vmem:[%s5 + $0x8] sm:$0xf]
      %v3574 = vld [vmem:[%s5 + $0xc] sm:$0xf]
      %v3575 = vld [vmem:[%s5 + $0x10] sm:$0xf]
      %v3576 = vld [vmem:[%s5 + $0x14] sm:$0xf]
      %v3577 = vld [vmem:[%s5 + $0x18] sm:$0xf]
      %v3578 = vld [vmem:[%s5 + $0x1c] sm:$0xf]
      %v3579 = vld [vmem:[%s5 + $0x20] sm:$0xf]
      %v3580 = vld [vmem:[%s5 + $0x24] sm:$0xf]
      %v3581 = vld [vmem:[%s5 + $0x28] sm:$0xf]
      %v3582 = vld [vmem:[%s5 + $0x2c] sm:$0xf]
      %v3583 = vld [vmem:[%s5 + $0x30] sm:$0xf]
      %v3584 = vld [vmem:[%s5 + $0x34] sm:$0xf]
      %v3585 = vld [vmem:[%s5 + $0x38] sm:$0xf]
      %v3586 = vld [vmem:[%s5 + $0x3c] sm:$0xf]
      %v3587 = vld [vmem:[%s5 + $0x40] sm:$0xf]
      %v3588 = vld [vmem:[%s5 + $0x44] sm:$0xf]
      %v3589 = vld [vmem:[%s5 + $0x48] sm:$0xf]
      %v3590 = vld [vmem:[%s5 + $0x4c] sm:$0xf]
      %v3591 = vld [vmem:[%s5 + $0x50] sm:$0xf]
      %v3592 = vld [vmem:[%s5 + $0x54] sm:$0xf]
      %v3593 = vld [vmem:[%s5 + $0x58] sm:$0xf]
      %v3594 = vld [vmem:[%s5 + $0x5c] sm:$0xf]
      %v3595 = vld [vmem:[%s5 + $0x60] sm:$0xf]
      %v3596 = vld [vmem:[%s5 + $0x64] sm:$0xf]
      %v3597 = vld [vmem:[%s5 + $0x68] sm:$0xf]
      %v3598 = vld [vmem:[%s5 + $0x6c] sm:$0xf]
      %v3599 = vld [vmem:[%s5 + $0x70] sm:$0xf]
      %v3600 = vld [vmem:[%s5 + $0x74] sm:$0xf]
      %v3601 = vld [vmem:[%s5 + $0x78] sm:$0xf]
      %v3602 = vld [vmem:[%s5 + $0x7c] sm:$0xf]
      %v3603 = vld [vmem:[%s5 + $0x80] sm:$0xf]
      %v3604 = vld [vmem:[%s5 + $0x84] sm:$0xf]
      %v3605 = vld [vmem:[%s5 + $0x88] sm:$0xf]
      %v3606 = vld [vmem:[%s5 + $0x8c] sm:$0xf]
      %v3607 = vld [vmem:[%s5 + $0x90] sm:$0xf]
      %v3608 = vld [vmem:[%s5 + $0x94] sm:$0xf]
      %v3609 = vld [vmem:[%s5 + $0x98] sm:$0xf]
      %v3610 = vld [vmem:[%s5 + $0x9c] sm:$0xf]
      %v3611 = vld [vmem:[%s5 + $0xa0] sm:$0xf]
      %v3612 = vld [vmem:[%s5 + $0xa4] sm:$0xf]
      %v3613 = vld [vmem:[%s5 + $0xa8] sm:$0xf]
      %v3614 = vld [vmem:[%s5 + $0xac] sm:$0xf]
      %v3615 = vld [vmem:[%s5 + $0xb0] sm:$0xf]
      %v3616 = vld [vmem:[%s5 + $0xb4] sm:$0xf]
      %v3617 = vld [vmem:[%s5 + $0xb8] sm:$0xf]
      %v3618 = vld [vmem:[%s5 + $0xbc] sm:$0xf]
      %v3619 = vld [vmem:[%s5 + $0xc0] sm:$0xf]
      %v3620 = vld [vmem:[%s5 + $0xc4] sm:$0xf]
      %v3621 = vld [vmem:[%s5 + $0xc8] sm:$0xf]
      %v3622 = vld [vmem:[%s5 + $0xcc] sm:$0xf]
      %v3623 = vld [vmem:[%s5 + $0xd0] sm:$0xf]
      %v3624 = vld [vmem:[%s5 + $0xd4] sm:$0xf]
      %v3625 = vld [vmem:[%s5 + $0xd8] sm:$0xf]
      %v3626 = vld [vmem:[%s5 + $0xdc] sm:$0xf]
      %v3627 = vld [vmem:[%s5 + $0xe0] sm:$0xf]
      %v3628 = vld [vmem:[%s5 + $0xe4] sm:$0xf]
      %v3629 = vld [vmem:[%s5 + $0xe8] sm:$0xf]
      %v3630 = vld [vmem:[%s5 + $0xec] sm:$0xf]
      %v3631 = vld [vmem:[%s5 + $0xf0] sm:$0xf]
      %v3632 = vld [vmem:[%s5 + $0xf4] sm:$0xf]
      %v3633 = vld [vmem:[%s5 + $0xf8] sm:$0xf]
      %v3634 = vld [vmem:[%s5 + $0xfc] sm:$0xf]
      %v3635 = vld [vmem:[%s5 + $0x100] sm:$0xf]
      %v3636 = vld [vmem:[%s5 + $0x104] sm:$0xf]
      %v3637 = vld [vmem:[%s5 + $0x108] sm:$0xf]
      %v3638 = vld [vmem:[%s5 + $0x10c] sm:$0xf]
      %v3639 = vld [vmem:[%s5 + $0x110] sm:$0xf]
      %v3640 = vld [vmem:[%s5 + $0x114] sm:$0xf]
      %v3641 = vld [vmem:[%s5 + $0x118] sm:$0xf]
      %v3642 = vld [vmem:[%s5 + $0x11c] sm:$0xf]
      %v3643 = vld [vmem:[%s5 + $0x120] sm:$0xf]
      %v3644 = vld [vmem:[%s5 + $0x124] sm:$0xf]
      %v3645 = vld [vmem:[%s5 + $0x128] sm:$0xf]
      %v3646 = vld [vmem:[%s5 + $0x12c] sm:$0xf]
      %v3647 = vld [vmem:[%s5 + $0x130] sm:$0xf]
      %v3648 = vld [vmem:[%s5 + $0x134] sm:$0xf]
      %v3649 = vld [vmem:[%s5 + $0x138] sm:$0xf]
      %v3650 = vld [vmem:[%s5 + $0x13c] sm:$0xf]
      %v3651 = vld [vmem:[%s5 + $0x140] sm:$0xf]
      %v3652 = vld [vmem:[%s5 + $0x144] sm:$0xf]
      %v3653 = vld [vmem:[%s5 + $0x148] sm:$0xf]
      %v3654 = vld [vmem:[%s5 + $0x14c] sm:$0xf]
      %v3655 = vld [vmem:[%s5 + $0x150] sm:$0xf]
      %v3656 = vld [vmem:[%s5 + $0x154] sm:$0xf]
      %v3657 = vld [vmem:[%s5 + $0x158] sm:$0xf]
      %v3658 = vld [vmem:[%s5 + $0x15c] sm:$0xf]
      %v3659 = vld [vmem:[%s5 + $0x160] sm:$0xf]
      %v3660 = vld [vmem:[%s5 + $0x164] sm:$0xf]
      %v3661 = vld [vmem:[%s5 + $0x168] sm:$0xf]
      %v3662 = vld [vmem:[%s5 + $0x16c] sm:$0xf]
      %v3663 = vld [vmem:[%s5 + $0x170] sm:$0xf]
      %v3664 = vld [vmem:[%s5 + $0x174] sm:$0xf]
      %v3665 = vld [vmem:[%s5 + $0x178] sm:$0xf]
      %v3666 = vld [vmem:[%s5 + $0x17c] sm:$0xf]
      %v3667 = vld [vmem:[%s5 + $0x180] sm:$0xf]
      %v3668 = vld [vmem:[%s5 + $0x184] sm:$0xf]
      %v3669 = vld [vmem:[%s5 + $0x188] sm:$0xf]
      %v3670 = vld [vmem:[%s5 + $0x18c] sm:$0xf]
      %v3671 = vld [vmem:[%s5 + $0x190] sm:$0xf]
      %v3672 = vld [vmem:[%s5 + $0x194] sm:$0xf]
      %v3673 = vld [vmem:[%s5 + $0x198] sm:$0xf]
      %v3674 = vld [vmem:[%s5 + $0x19c] sm:$0xf]
      %v3675 = vld [vmem:[%s5 + $0x1a0] sm:$0xf]
      %v3676 = vld [vmem:[%s5 + $0x1a4] sm:$0xf]
      %v3677 = vld [vmem:[%s5 + $0x1a8] sm:$0xf]
      %v3678 = vld [vmem:[%s5 + $0x1ac] sm:$0xf]
      %v3679 = vld [vmem:[%s5 + $0x1b0] sm:$0xf]
      %v3680 = vld [vmem:[%s5 + $0x1b4] sm:$0xf]
      %v3681 = vld [vmem:[%s5 + $0x1b8] sm:$0xf]
      %v3682 = vld [vmem:[%s5 + $0x1bc] sm:$0xf]
      %v3683 = vld [vmem:[%s5 + $0x1c0] sm:$0xf]
      %v3684 = vld [vmem:[%s5 + $0x1c4] sm:$0xf]
      %v3685 = vld [vmem:[%s5 + $0x1c8] sm:$0xf]
      %v3686 = vld [vmem:[%s5 + $0x1cc] sm:$0xf]
      %v3687 = vld [vmem:[%s5 + $0x1d0] sm:$0xf]
      %v3688 = vld [vmem:[%s5 + $0x1d4] sm:$0xf]
      %v3689 = vld [vmem:[%s5 + $0x1d8] sm:$0xf]
      %v3690 = vld [vmem:[%s5 + $0x1dc] sm:$0xf]
      %v3691 = vld [vmem:[%s5 + $0x1e0] sm:$0xf]
      %v3692 = vld [vmem:[%s5 + $0x1e4] sm:$0xf]
      %v3693 = vld [vmem:[%s5 + $0x1e8] sm:$0xf]
      %v3694 = vld [vmem:[%s5 + $0x1ec] sm:$0xf]
      %v3695 = vld [vmem:[%s5 + $0x1f0] sm:$0xf]
      %v3696 = vld [vmem:[%s5 + $0x1f4] sm:$0xf]
      %v3697 = vld [vmem:[%s5 + $0x1f8] sm:$0xf]
      %v3698 = vld [vmem:[%s5 + $0x1fc] sm:$0xf]
      %v3699 = vld [vmem:[%s5 + $0x200] sm:$0xf]
      %v3700 = vld [vmem:[%s5 + $0x204] sm:$0xf]
      %v3701 = vld [vmem:[%s5 + $0x208] sm:$0xf]
      %v3702 = vld [vmem:[%s5 + $0x20c] sm:$0xf]
      %v3703 = vld [vmem:[%s5 + $0x210] sm:$0xf]
      %v3704 = vld [vmem:[%s5 + $0x214] sm:$0xf]
      %v3705 = vld [vmem:[%s5 + $0x218] sm:$0xf]
      %v3706 = vld [vmem:[%s5 + $0x21c] sm:$0xf]
      %v3707 = vld [vmem:[%s5 + $0x220] sm:$0xf]
      %v3708 = vld [vmem:[%s5 + $0x224] sm:$0xf]
      %v3709 = vld [vmem:[%s5 + $0x228] sm:$0xf]
      %v3710 = vld [vmem:[%s5 + $0x22c] sm:$0xf]
      %v3711 = vld [vmem:[%s5 + $0x230] sm:$0xf]
      %v3712 = vld [vmem:[%s5 + $0x234] sm:$0xf]
      %v3713 = vld [vmem:[%s5 + $0x238] sm:$0xf]
      %v3714 = vld [vmem:[%s5 + $0x23c] sm:$0xf]
      %v3715 = vld [vmem:[%s6] sm:$0x1]
      %v3717 = vlaneseq
      %v3718 = vshrl.u32 %v3717, 7
      %v3719 = vsub.s32 0, %v3718
      %v3720 = vrot.slane %v3715, %v3719
      %v3866 = vunpack.c.l.b16 %v3571
      %v3867 = vunpack.c.l.b16 %v3572
      %v3868 = vunpack.c.l.b16 %v3573
      %v3869 = vunpack.c.l.b16 %v3574
      %v3870 = vunpack.c.l.b16 %v3575
      %v3871 = vunpack.c.l.b16 %v3576
      %v3872 = vunpack.c.l.b16 %v3577
      %v3873 = vunpack.c.l.b16 %v3578
      %v3874 = vunpack.c.l.b16 %v3579
      %v3875 = vunpack.c.l.b16 %v3580
      %v3876 = vunpack.c.l.b16 %v3581
      %v3877 = vunpack.c.l.b16 %v3582
      %v3878 = vunpack.c.l.b16 %v3583
      %v3879 = vunpack.c.l.b16 %v3584
      %v3880 = vunpack.c.l.b16 %v3585
      %v3881 = vunpack.c.l.b16 %v3586
      %v3882 = vunpack.c.l.b16 %v3587
      %v3883 = vunpack.c.l.b16 %v3588
      %v3884 = vunpack.c.l.b16 %v3589
      %v3885 = vunpack.c.l.b16 %v3590
      %v3886 = vunpack.c.l.b16 %v3591
      %v3887 = vunpack.c.l.b16 %v3592
      %v3888 = vunpack.c.l.b16 %v3593
      %v3889 = vunpack.c.l.b16 %v3594
      %v3890 = vunpack.c.l.b16 %v3595
      %v3891 = vunpack.c.l.b16 %v3596
      %v3892 = vunpack.c.l.b16 %v3597
      %v3893 = vunpack.c.l.b16 %v3598
      %v3894 = vunpack.c.l.b16 %v3599
      %v3895 = vunpack.c.l.b16 %v3600
      %v3896 = vunpack.c.l.b16 %v3601
      %v3897 = vunpack.c.l.b16 %v3602
      %v3898 = vunpack.c.l.b16 %v3603
      %v3899 = vunpack.c.l.b16 %v3604
      %v3900 = vunpack.c.l.b16 %v3605
      %v3901 = vunpack.c.l.b16 %v3606
      %v3902 = vunpack.c.l.b16 %v3607
      %v3903 = vunpack.c.l.b16 %v3608
      %v3904 = vunpack.c.l.b16 %v3609
      %v3905 = vunpack.c.l.b16 %v3610
      %v3906 = vunpack.c.l.b16 %v3611
      %v3907 = vunpack.c.l.b16 %v3612
      %v3908 = vunpack.c.l.b16 %v3613
      %v3909 = vunpack.c.l.b16 %v3614
      %v3910 = vunpack.c.l.b16 %v3615
      %v3911 = vunpack.c.l.b16 %v3616
      %v3912 = vunpack.c.l.b16 %v3617
      %v3913 = vunpack.c.l.b16 %v3618
      %v3914 = vunpack.c.l.b16 %v3619
      %v3915 = vunpack.c.l.b16 %v3620
      %v3916 = vunpack.c.l.b16 %v3621
      %v3917 = vunpack.c.l.b16 %v3622
      %v3918 = vunpack.c.l.b16 %v3623
      %v3919 = vunpack.c.l.b16 %v3624
      %v3920 = vunpack.c.l.b16 %v3625
      %v3921 = vunpack.c.l.b16 %v3626
      %v3922 = vunpack.c.l.b16 %v3627
      %v3923 = vunpack.c.l.b16 %v3628
      %v3924 = vunpack.c.l.b16 %v3629
      %v3925 = vunpack.c.l.b16 %v3630
      %v3926 = vunpack.c.l.b16 %v3631
      %v3927 = vunpack.c.l.b16 %v3632
      %v3928 = vunpack.c.l.b16 %v3633
      %v3929 = vunpack.c.l.b16 %v3634
      %v3930 = vunpack.c.l.b16 %v3635
      %v3931 = vunpack.c.l.b16 %v3636
      %v3932 = vunpack.c.l.b16 %v3637
      %v3933 = vunpack.c.l.b16 %v3638
      %v3934 = vunpack.c.l.b16 %v3639
      %v3935 = vunpack.c.l.b16 %v3640
      %v3936 = vunpack.c.l.b16 %v3641
      %v3937 = vunpack.c.l.b16 %v3642
      %v3938 = vunpack.c.l.b16 %v3643
      %v3939 = vunpack.c.l.b16 %v3644
      %v3940 = vunpack.c.l.b16 %v3645
      %v3941 = vunpack.c.l.b16 %v3646
      %v3942 = vunpack.c.l.b16 %v3647
      %v3943 = vunpack.c.l.b16 %v3648
      %v3944 = vunpack.c.l.b16 %v3649
      %v3945 = vunpack.c.l.b16 %v3650
      %v3946 = vunpack.c.l.b16 %v3651
      %v3947 = vunpack.c.l.b16 %v3652
      %v3948 = vunpack.c.l.b16 %v3653
      %v3949 = vunpack.c.l.b16 %v3654
      %v3950 = vunpack.c.l.b16 %v3655
      %v3951 = vunpack.c.l.b16 %v3656
      %v3952 = vunpack.c.l.b16 %v3657
      %v3953 = vunpack.c.l.b16 %v3658
      %v3954 = vunpack.c.l.b16 %v3659
      %v3955 = vunpack.c.l.b16 %v3660
      %v3956 = vunpack.c.l.b16 %v3661
      %v3957 = vunpack.c.l.b16 %v3662
      %v3958 = vunpack.c.l.b16 %v3663
      %v3959 = vunpack.c.l.b16 %v3664
      %v3960 = vunpack.c.l.b16 %v3665
      %v3961 = vunpack.c.l.b16 %v3666
      %v3962 = vunpack.c.l.b16 %v3667
      %v3963 = vunpack.c.l.b16 %v3668
      %v3964 = vunpack.c.l.b16 %v3669
      %v3965 = vunpack.c.l.b16 %v3670
      %v3966 = vunpack.c.l.b16 %v3671
      %v3967 = vunpack.c.l.b16 %v3672
      %v3968 = vunpack.c.l.b16 %v3673
      %v3969 = vunpack.c.l.b16 %v3674
      %v3970 = vunpack.c.l.b16 %v3675
      %v3971 = vunpack.c.l.b16 %v3676
      %v3972 = vunpack.c.l.b16 %v3677
      %v3973 = vunpack.c.l.b16 %v3678
      %v3974 = vunpack.c.l.b16 %v3679
      %v3975 = vunpack.c.l.b16 %v3680
      %v3976 = vunpack.c.l.b16 %v3681
      %v3977 = vunpack.c.l.b16 %v3682
      %v3978 = vunpack.c.l.b16 %v3683
      %v3979 = vunpack.c.l.b16 %v3684
      %v3980 = vunpack.c.l.b16 %v3685
      %v3981 = vunpack.c.l.b16 %v3686
      %v3982 = vunpack.c.l.b16 %v3687
      %v3983 = vunpack.c.l.b16 %v3688
      %v3984 = vunpack.c.l.b16 %v3689
      %v3985 = vunpack.c.l.b16 %v3690
      %v3986 = vunpack.c.l.b16 %v3691
      %v3987 = vunpack.c.l.b16 %v3692
      %v3988 = vunpack.c.l.b16 %v3693
      %v3989 = vunpack.c.l.b16 %v3694
      %v3990 = vunpack.c.l.b16 %v3695
      %v3991 = vunpack.c.l.b16 %v3696
      %v3992 = vunpack.c.l.b16 %v3697
      %v3993 = vunpack.c.l.b16 %v3698
      %v3994 = vunpack.c.l.b16 %v3699
      %v3995 = vunpack.c.l.b16 %v3700
      %v3996 = vunpack.c.l.b16 %v3701
      %v3997 = vunpack.c.l.b16 %v3702
      %v3998 = vunpack.c.l.b16 %v3703
      %v3999 = vunpack.c.l.b16 %v3704
      %v4000 = vunpack.c.l.b16 %v3705
      %v4001 = vunpack.c.l.b16 %v3706
      %v4002 = vunpack.c.l.b16 %v3707
      %v4003 = vunpack.c.l.b16 %v3708
      %v4004 = vunpack.c.l.b16 %v3709
      %v4005 = vunpack.c.l.b16 %v3710
      %v4006 = vunpack.c.l.b16 %v3711
      %v4007 = vunpack.c.l.b16 %v3712
      %v4008 = vunpack.c.l.b16 %v3713
      %v4009 = vunpack.c.l.b16 %v3714
      %v4010 = vpack.c.b16 %v3867, %v3866
      %v4011 = vpack.c.b16 %v3869, %v3868
      %v4012 = vpack.c.b16 %v3871, %v3870
      %v4013 = vpack.c.b16 %v3873, %v3872
      %v4014 = vpack.c.b16 %v3875, %v3874
      %v4015 = vpack.c.b16 %v3877, %v3876
      %v4016 = vpack.c.b16 %v3879, %v3878
      %v4017 = vpack.c.b16 %v3881, %v3880
      %v4018 = vpack.c.b16 %v3883, %v3882
      %v4019 = vpack.c.b16 %v3885, %v3884
      %v4020 = vpack.c.b16 %v3887, %v3886
      %v4021 = vpack.c.b16 %v3889, %v3888
      %v4022 = vpack.c.b16 %v3891, %v3890
      %v4023 = vpack.c.b16 %v3893, %v3892
      %v4024 = vpack.c.b16 %v3895, %v3894
      %v4025 = vpack.c.b16 %v3897, %v3896
      %v4026 = vpack.c.b16 %v3899, %v3898
      %v4027 = vpack.c.b16 %v3901, %v3900
      %v4028 = vpack.c.b16 %v3903, %v3902
      %v4029 = vpack.c.b16 %v3905, %v3904
      %v4030 = vpack.c.b16 %v3907, %v3906
      %v4031 = vpack.c.b16 %v3909, %v3908
      %v4032 = vpack.c.b16 %v3911, %v3910
      %v4033 = vpack.c.b16 %v3913, %v3912
      %v4034 = vpack.c.b16 %v3915, %v3914
      %v4035 = vpack.c.b16 %v3917, %v3916
      %v4036 = vpack.c.b16 %v3919, %v3918
      %v4037 = vpack.c.b16 %v3921, %v3920
      %v4038 = vpack.c.b16 %v3923, %v3922
      %v4039 = vpack.c.b16 %v3925, %v3924
      %v4040 = vpack.c.b16 %v3927, %v3926
      %v4041 = vpack.c.b16 %v3929, %v3928
      %v4042 = vpack.c.b16 %v3931, %v3930
      %v4043 = vpack.c.b16 %v3933, %v3932
      %v4044 = vpack.c.b16 %v3935, %v3934
      %v4045 = vpack.c.b16 %v3937, %v3936
      %v4046 = vpack.c.b16 %v3939, %v3938
      %v4047 = vpack.c.b16 %v3941, %v3940
      %v4048 = vpack.c.b16 %v3943, %v3942
      %v4049 = vpack.c.b16 %v3945, %v3944
      %v4050 = vpack.c.b16 %v3947, %v3946
      %v4051 = vpack.c.b16 %v3949, %v3948
      %v4052 = vpack.c.b16 %v3951, %v3950
      %v4053 = vpack.c.b16 %v3953, %v3952
      %v4054 = vpack.c.b16 %v3955, %v3954
      %v4055 = vpack.c.b16 %v3957, %v3956
      %v4056 = vpack.c.b16 %v3959, %v3958
      %v4057 = vpack.c.b16 %v3961, %v3960
      %v4058 = vpack.c.b16 %v3963, %v3962
      %v4059 = vpack.c.b16 %v3965, %v3964
      %v4060 = vpack.c.b16 %v3967, %v3966
      %v4061 = vpack.c.b16 %v3969, %v3968
      %v4062 = vpack.c.b16 %v3971, %v3970
      %v4063 = vpack.c.b16 %v3973, %v3972
      %v4064 = vpack.c.b16 %v3975, %v3974
      %v4065 = vpack.c.b16 %v3977, %v3976
      %v4066 = vpack.c.b16 %v3979, %v3978
      %v4067 = vpack.c.b16 %v3981, %v3980
      %v4068 = vpack.c.b16 %v3983, %v3982
      %v4069 = vpack.c.b16 %v3985, %v3984
      %v4070 = vpack.c.b16 %v3987, %v3986
      %v4071 = vpack.c.b16 %v3989, %v3988
      %v4072 = vpack.c.b16 %v3991, %v3990
      %v4073 = vpack.c.b16 %v3993, %v3992
      %v4074 = vpack.c.b16 %v3995, %v3994
      %v4075 = vpack.c.b16 %v3997, %v3996
      %v4076 = vpack.c.b16 %v3999, %v3998
      %v4077 = vpack.c.b16 %v4001, %v4000
      %v4078 = vpack.c.b16 %v4003, %v4002
      %v4079 = vpack.c.b16 %v4005, %v4004
      %v4080 = vpack.c.b16 %v4007, %v4006
      %v4081 = vpack.c.b16 %v4009, %v4008
      %4154 = vmatprep.subr.bf16.mxu0 0
      %4155 = vmatpush1.bf16.msra.mxu0 %v4010
      %4156 = vmatprep.subr.bf16.mxu0 0
      %4157 = vmatpush1.bf16.msra.mxu0 %v4011
      %4158 = vmatprep.subr.bf16.mxu0 0
      %4159 = vmatpush1.bf16.msra.mxu0 %v4012
      %4160 = vmatprep.subr.bf16.mxu0 0
      %4161 = vmatpush1.bf16.msra.mxu0 %v4013
      %4162 = vmatprep.subr.bf16.mxu0 0
      %4163 = vmatpush1.bf16.msra.mxu0 %v4014
      %4164 = vmatprep.subr.bf16.mxu0 0
      %4165 = vmatpush1.bf16.msra.mxu0 %v4015
      %4166 = vmatprep.subr.bf16.mxu0 0
      %4167 = vmatpush1.bf16.msra.mxu0 %v4016
      %4168 = vmatprep.subr.bf16.mxu0 0
      %4169 = vmatpush1.bf16.msra.mxu0 %v4017
      %4170 = vmatprep.subr.bf16.mxu0 0
      %4171 = vmatpush1.bf16.msra.mxu0 %v4018
      %4172 = vmatprep.subr.bf16.mxu0 0
      %4173 = vmatpush1.bf16.msra.mxu0 %v4019
      %4174 = vmatprep.subr.bf16.mxu0 0
      %4175 = vmatpush1.bf16.msra.mxu0 %v4020
      %4176 = vmatprep.subr.bf16.mxu0 0
      %4177 = vmatpush1.bf16.msra.mxu0 %v4021
      %4178 = vmatprep.subr.bf16.mxu0 0
      %4179 = vmatpush1.bf16.msra.mxu0 %v4022
      %4180 = vmatprep.subr.bf16.mxu0 0
      %4181 = vmatpush1.bf16.msra.mxu0 %v4023
      %4182 = vmatprep.subr.bf16.mxu0 0
      %4183 = vmatpush1.bf16.msra.mxu0 %v4024
      %4184 = vmatprep.subr.bf16.mxu0 0
      %4185 = vmatpush1.bf16.msra.mxu0 %v4025
      %4186 = vmatprep.mubr.bf16.mxu0 %v3459
      %4187 = vmatmul.mubr.bf16.gmra.mrb[0].mxu0 %v3441
      %v4188 = vpop.f32.mrb[0].mxu0
      %v4189 = vadd.f32 %v3720, %v4188
      %v4190 = vpop.f32.mrb[0].mxu0
      %v4191 = vpop.f32.mrb[0].mxu0
      %v4192 = vadd.f32 %v3720, %v4191
      %v4193 = vpop.f32.mrb[0].mxu0
      %4194 = vmatprep.mubr.bf16.mxu0 %v3460
      %4195 = vmatmul.mubr.bf16.gmra.mrb[0].mxu0 %v3442
      %v4196 = vpop.f32.mrb[0].mxu0
      %v4197 = vadd.f32 %v3720, %v4196
      %v4198 = vpop.f32.mrb[0].mxu0
      %v4199 = vpop.f32.mrb[0].mxu0
      %v4200 = vadd.f32 %v3720, %v4199
      %v4201 = vpop.f32.mrb[0].mxu0
      %4202 = vmatprep.mubr.bf16.mxu0 %v3461
      %4203 = vmatmul.mubr.bf16.gmra.mrb[0].mxu0 %v3443
      %v4204 = vpop.f32.mrb[0].mxu0
      %v4205 = vadd.f32 %v3720, %v4204
      %v4206 = vpop.f32.mrb[0].mxu0
      %v4207 = vpop.f32.mrb[0].mxu0
      %v4208 = vadd.f32 %v3720, %v4207
      %v4209 = vpop.f32.mrb[0].mxu0
      %4210 = vmatprep.mubr.bf16.mxu0 %v3462
      %4211 = vmatmul.mubr.bf16.gmra.mrb[0].mxu0 %v3444
      %v4212 = vpop.f32.mrb[0].mxu0
      %v4213 = vadd.f32 %v3720, %v4212
      %v4214 = vpop.f32.mrb[0].mxu0
      %v4215 = vpop.f32.mrb[0].mxu0
      %v4216 = vadd.f32 %v3720, %v4215
      %v4217 = vpop.f32.mrb[0].mxu0
      %4218 = vmatprep.mubr.bf16.mxu0 %v3463
      %4219 = vmatmul.mubr.bf16.gmra.mrb[0].mxu0 %v3445
      %v4220 = vpop.f32.mrb[0].mxu0
      %v4221 = vadd.f32 %v3720, %v4220
      %v4222 = vpop.f32.mrb[0].mxu0
      %v4223 = vpop.f32.mrb[0].mxu0
      %v4224 = vadd.f32 %v3720, %v4223
      %v4225 = vpop.f32.mrb[0].mxu0
      %4226 = vmatprep.mubr.bf16.mxu0 %v3464
      %4227 = vmatmul.mubr.bf16.gmra.mrb[0].mxu0 %v3446
      %v4228 = vpop.f32.mrb[0].mxu0
      %v4229 = vadd.f32 %v3720, %v4228
      %v4230 = vpop.f32.mrb[0].mxu0
      %v4231 = vpop.f32.mrb[0].mxu0
      %v4232 = vadd.f32 %v3720, %v4231
      %v4233 = vpop.f32.mrb[0].mxu0
      %4234 = vdwg.mxu0
      %4235 = vmatprep.subr.bf16.mxu0 0
      %4236 = vmatpush1.bf16.msra.mxu0 %v4026
      %4237 = vmatprep.subr.bf16.mxu0 0
      %4238 = vmatpush1.bf16.msra.mxu0 %v4027
      %4239 = vmatprep.subr.bf16.mxu0 0
      %4240 = vmatpush1.bf16.msra.mxu0 %v4028
      %4241 = vmatprep.subr.bf16.mxu0 0
      %4242 = vmatpush1.bf16.msra.mxu0 %v4029
      %4243 = vmatprep.subr.bf16.mxu0 0
      %4244 = vmatpush1.bf16.msra.mxu0 %v4030
      %4245 = vmatprep.subr.bf16.mxu0 0
      %4246 = vmatpush1.bf16.msra.mxu0 %v4031
      %4247 = vmatprep.subr.bf16.mxu0 0
      %4248 = vmatpush1.bf16.msra.mxu0 %v4032
      %4249 = vmatprep.subr.bf16.mxu0 0
      %4250 = vmatpush1.bf16.msra.mxu0 %v4033
      %4251 = vmatprep.subr.bf16.mxu0 0
      %4252 = vmatpush1.bf16.msra.mxu0 %v4034
      %4253 = vmatprep.subr.bf16.mxu0 0
      %4254 = vmatpush1.bf16.msra.mxu0 %v4035
      %4255 = vmatprep.subr.bf16.mxu0 0
      %4256 = vmatpush1.bf16.msra.mxu0 %v4036
      %4257 = vmatprep.subr.bf16.mxu0 0
      %4258 = vmatpush1.bf16.msra.mxu0 %v4037
      %4259 = vmatprep.subr.bf16.mxu0 0
      %4260 = vmatpush1.bf16.msra.mxu0 %v4038
      %4261 = vmatprep.subr.bf16.mxu0 0
      %4262 = vmatpush1.bf16.msra.mxu0 %v4039
      %4263 = vmatprep.subr.bf16.mxu0 0
      %4264 = vmatpush1.bf16.msra.mxu0 %v4040
      %4265 = vmatprep.subr.bf16.mxu0 0
      %4266 = vmatpush1.bf16.msra.mxu0 %v4041
      %4267 = vmatprep.mubr.bf16.mxu0 %v3485
      %4268 = vmatmul.mubr.bf16.gmra.mrb[0].mxu0 %v3477
      %v4269 = vpop.f32.mrb[0].mxu0
      %v4270 = vadd.f32 %v4189, %v4269
      %v4271 = vpop.f32.mrb[0].mxu0
      %v4272 = vpop.f32.mrb[0].mxu0
      %v4273 = vadd.f32 %v4192, %v4272
      %v4274 = vpop.f32.mrb[0].mxu0
      %4275 = vmatprep.mubr.bf16.mxu0 %v3486
      %4276 = vmatmul.mubr.bf16.gmra.mrb[0].mxu0 %v3478
      %v4277 = vpop.f32.mrb[0].mxu0
      %v4278 = vadd.f32 %v4197, %v4277
      %v4279 = vpop.f32.mrb[0].mxu0
      %v4280 = vpop.f32.mrb[0].mxu0
      %v4281 = vadd.f32 %v4200, %v4280
      %v4282 = vpop.f32.mrb[0].mxu0
      %4283 = vmatprep.mubr.bf16.mxu0 %v3487
      %4284 = vmatmul.mubr.bf16.gmra.mrb[0].mxu0 %v3479
      %v4285 = vpop.f32.mrb[0].mxu0
      %v4286 = vadd.f32 %v4205, %v4285
      %v4287 = vpop.f32.mrb[0].mxu0
      %v4288 = vpop.f32.mrb[0].mxu0
      %v4289 = vadd.f32 %v4208, %v4288
      %v4290 = vpop.f32.mrb[0].mxu0
      %4291 = vmatprep.mubr.bf16.mxu0 %v3488
      %4292 = vmatmul.mubr.bf16.gmra.mrb[0].mxu0 %v3480
      %v4293 = vpop.f32.mrb[0].mxu0
      %v4294 = vadd.f32 %v4213, %v4293
      %v4295 = vpop.f32.mrb[0].mxu0
      %v4296 = vpop.f32.mrb[0].mxu0
      %v4297 = vadd.f32 %v4216, %v4296
      %v4298 = vpop.f32.mrb[0].mxu0
      %4299 = vmatprep.mubr.bf16.mxu0 %v3489
      %4300 = vmatmul.mubr.bf16.gmra.mrb[0].mxu0 %v3481
      %v4301 = vpop.f32.mrb[0].mxu0
      %v4302 = vadd.f32 %v4221, %v4301
      %v4303 = vpop.f32.mrb[0].mxu0
      %v4304 = vpop.f32.mrb[0].mxu0
      %v4305 = vadd.f32 %v4224, %v4304
      %v4306 = vpop.f32.mrb[0].mxu0
      %4307 = vmatprep.mubr.bf16.mxu0 %v3490
      %4308 = vmatmul.mubr.bf16.gmra.mrb[0].mxu0 %v3482
      %v4309 = vpop.f32.mrb[0].mxu0
      %v4310 = vadd.f32 %v4229, %v4309
      %v4311 = vpop.f32.mrb[0].mxu0
      %v4312 = vpop.f32.mrb[0].mxu0
      %v4313 = vadd.f32 %v4232, %v4312
      %v4314 = vpop.f32.mrb[0].mxu0
      %4315 = vdwg.mxu0
      %4316 = vmatprep.subr.bf16.mxu0 0
      %4317 = vmatpush1.bf16.msra.mxu0 %v4042
      %4318 = vmatprep.subr.bf16.mxu0 0
      %4319 = vmatpush1.bf16.msra.mxu0 %v4043
      %4320 = vmatprep.subr.bf16.mxu0 0
      %4321 = vmatpush1.bf16.msra.mxu0 %v4044
      %4322 = vmatprep.subr.bf16.mxu0 0
      %4323 = vmatpush1.bf16.msra.mxu0 %v4045
      %4324 = vmatprep.subr.bf16.mxu0 0
      %4325 = vmatpush1.bf16.msra.mxu0 %v4046
      %4326 = vmatprep.subr.bf16.mxu0 0
      %4327 = vmatpush1.bf16.msra.mxu0 %v4047
      %4328 = vmatprep.subr.bf16.mxu0 0
      %4329 = vmatpush1.bf16.msra.mxu0 %v4048
      %4330 = vmatprep.subr.bf16.mxu0 0
      %4331 = vmatpush1.bf16.msra.mxu0 %v4049
      %4332 = vmatprep.subr.bf16.mxu0 0
      %4333 = vmatpush1.bf16.msra.mxu0 %v4050
      %4334 = vmatprep.subr.bf16.mxu0 0
      %4335 = vmatpush1.bf16.msra.mxu0 %v4051
      %4336 = vmatprep.subr.bf16.mxu0 0
      %4337 = vmatpush1.bf16.msra.mxu0 %v4052
      %4338 = vmatprep.subr.bf16.mxu0 0
      %4339 = vmatpush1.bf16.msra.mxu0 %v4053
      %4340 = vmatprep.subr.bf16.mxu0 0
      %4341 = vmatpush1.bf16.msra.mxu0 %v4054
      %4342 = vmatprep.subr.bf16.mxu0 0
      %4343 = vmatpush1.bf16.msra.mxu0 %v4055
      %4344 = vmatprep.subr.bf16.mxu0 0
      %4345 = vmatpush1.bf16.msra.mxu0 %v4056
      %4346 = vmatprep.subr.bf16.mxu0 0
      %4347 = vmatpush1.bf16.msra.mxu0 %v4057
      %4348 = vmatprep.mubr.bf16.mxu0 %v3521
      %4349 = vmatmul.mubr.bf16.gmra.mrb[0].mxu0 %v3503
      %v4350 = vpop.f32.mrb[0].mxu0
      %v4351 = vadd.f32 %v4270, %v4350
      %v4352 = vpop.f32.mrb[0].mxu0
      %v4353 = vpop.f32.mrb[0].mxu0
      %v4354 = vadd.f32 %v4273, %v4353
      %v4355 = vpop.f32.mrb[0].mxu0
      %4356 = vmatprep.mubr.bf16.mxu0 %v3522
      %4357 = vmatmul.mubr.bf16.gmra.mrb[0].mxu0 %v3504
      %v4358 = vpop.f32.mrb[0].mxu0
      %v4359 = vadd.f32 %v4278, %v4358
      %v4360 = vpop.f32.mrb[0].mxu0
      %v4361 = vpop.f32.mrb[0].mxu0
      %v4362 = vadd.f32 %v4281, %v4361
      %v4363 = vpop.f32.mrb[0].mxu0
      %4364 = vmatprep.mubr.bf16.mxu0 %v3523
      %4365 = vmatmul.mubr.bf16.gmra.mrb[0].mxu0 %v3505
      %v4366 = vpop.f32.mrb[0].mxu0
      %v4367 = vadd.f32 %v4286, %v4366
      %v4368 = vpop.f32.mrb[0].mxu0
      %v4369 = vpop.f32.mrb[0].mxu0
      %v4370 = vadd.f32 %v4289, %v4369
      %v4371 = vpop.f32.mrb[0].mxu0
      %4372 = vmatprep.mubr.bf16.mxu0 %v3524
      %4373 = vmatmul.mubr.bf16.gmra.mrb[0].mxu0 %v3506
      %v4374 = vpop.f32.mrb[0].mxu0
      %v4375 = vadd.f32 %v4294, %v4374
      %v4376 = vpop.f32.mrb[0].mxu0
      %v4377 = vpop.f32.mrb[0].mxu0
      %v4378 = vadd.f32 %v4297, %v4377
      %v4379 = vpop.f32.mrb[0].mxu0
      %4380 = vmatprep.mubr.bf16.mxu0 %v3525
      %4381 = vmatmul.mubr.bf16.gmra.mrb[0].mxu0 %v3507
      %v4382 = vpop.f32.mrb[0].mxu0
      %v4383 = vadd.f32 %v4302, %v4382
      %v4384 = vpop.f32.mrb[0].mxu0
      %v4385 = vpop.f32.mrb[0].mxu0
      %v4386 = vadd.f32 %v4305, %v4385
      %v4387 = vpop.f32.mrb[0].mxu0
      %4388 = vmatprep.mubr.bf16.mxu0 %v3526
      %4389 = vmatmul.mubr.bf16.gmra.mrb[0].mxu0 %v3508
      %v4390 = vpop.f32.mrb[0].mxu0
      %v4391 = vadd.f32 %v4310, %v4390
      %v4392 = vpop.f32.mrb[0].mxu0
      %v4393 = vpop.f32.mrb[0].mxu0
      %v4394 = vadd.f32 %v4313, %v4393
      %v4395 = vpop.f32.mrb[0].mxu0
      %4396 = vdwg.mxu0
      %4397 = vmatprep.subr.bf16.mxu0 0
      %4398 = vmatpush1.bf16.msra.mxu0 %v4058
      %4399 = vmatprep.subr.bf16.mxu0 0
      %4400 = vmatpush1.bf16.msra.mxu0 %v4059
      %4401 = vmatprep.subr.bf16.mxu0 0
      %4402 = vmatpush1.bf16.msra.mxu0 %v4060
      %4403 = vmatprep.subr.bf16.mxu0 0
      %4404 = vmatpush1.bf16.msra.mxu0 %v4061
      %4405 = vmatprep.subr.bf16.mxu0 0
      %4406 = vmatpush1.bf16.msra.mxu0 %v4062
      %4407 = vmatprep.subr.bf16.mxu0 0
      %4408 = vmatpush1.bf16.msra.mxu0 %v4063
      %4409 = vmatprep.subr.bf16.mxu0 0
      %4410 = vmatpush1.bf16.msra.mxu0 %v4064
      %4411 = vmatprep.subr.bf16.mxu0 0
      %4412 = vmatpush1.bf16.msra.mxu0 %v4065
      %4413 = vmatprep.subr.bf16.mxu0 0
      %4414 = vmatpush1.bf16.msra.mxu0 %v4066
      %4415 = vmatprep.subr.bf16.mxu0 0
      %4416 = vmatpush1.bf16.msra.mxu0 %v4067
      %4417 = vmatprep.subr.bf16.mxu0 0
      %4418 = vmatpush1.bf16.msra.mxu0 %v4068
      %4419 = vmatprep.subr.bf16.mxu0 0
      %4420 = vmatpush1.bf16.msra.mxu0 %v4069
      %4421 = vmatprep.subr.bf16.mxu0 0
      %4422 = vmatpush1.bf16.msra.mxu0 %v4070
      %4423 = vmatprep.subr.bf16.mxu0 0
      %4424 = vmatpush1.bf16.msra.mxu0 %v4071
      %4425 = vmatprep.subr.bf16.mxu0 0
      %4426 = vmatpush1.bf16.msra.mxu0 %v4072
      %4427 = vmatprep.subr.bf16.mxu0 0
      %4428 = vmatpush1.bf16.msra.mxu0 %v4073
      %4429 = vmatprep.mubr.bf16.mxu0 %v3547
      %4430 = vmatmul.mubr.bf16.gmra.mrb[0].mxu0 %v3529
      %v4431 = vpop.f32.mrb[0].mxu0
      %v4432 = vadd.f32 %v4351, %v4431
      %v4433 = vpop.f32.mrb[0].mxu0
      %v4434 = vpop.f32.mrb[0].mxu0
      %v4435 = vadd.f32 %v4354, %v4434
      %v4436 = vpop.f32.mrb[0].mxu0
      %4437 = vmatprep.mubr.bf16.mxu0 %v3548
      %4438 = vmatmul.mubr.bf16.gmra.mrb[0].mxu0 %v3530
      %v4439 = vpop.f32.mrb[0].mxu0
      %v4440 = vadd.f32 %v4359, %v4439
      %v4441 = vpop.f32.mrb[0].mxu0
      %v4442 = vpop.f32.mrb[0].mxu0
      %v4443 = vadd.f32 %v4362, %v4442
      %v4444 = vpop.f32.mrb[0].mxu0
      %4445 = vmatprep.mubr.bf16.mxu0 %v3549
      %4446 = vmatmul.mubr.bf16.gmra.mrb[0].mxu0 %v3531
      %v4447 = vpop.f32.mrb[0].mxu0
      %v4448 = vadd.f32 %v4367, %v4447
      %v4449 = vpop.f32.mrb[0].mxu0
      %v4450 = vpop.f32.mrb[0].mxu0
      %v4451 = vadd.f32 %v4370, %v4450
      %v4452 = vpop.f32.mrb[0].mxu0
      %4453 = vmatprep.mubr.bf16.mxu0 %v3550
      %4454 = vmatmul.mubr.bf16.gmra.mrb[0].mxu0 %v3532
      %v4455 = vpop.f32.mrb[0].mxu0
      %v4456 = vadd.f32 %v4375, %v4455
      %v4457 = vpop.f32.mrb[0].mxu0
      %v4458 = vpop.f32.mrb[0].mxu0
      %v4459 = vadd.f32 %v4378, %v4458
      %v4460 = vpop.f32.mrb[0].mxu0
      %4461 = vmatprep.mubr.bf16.mxu0 %v3551
      %4462 = vmatmul.mubr.bf16.gmra.mrb[0].mxu0 %v3533
      %v4463 = vpop.f32.mrb[0].mxu0
      %v4464 = vadd.f32 %v4383, %v4463
      %v4465 = vpop.f32.mrb[0].mxu0
      %v4466 = vpop.f32.mrb[0].mxu0
      %v4467 = vadd.f32 %v4386, %v4466
      %v4468 = vpop.f32.mrb[0].mxu0
      %4469 = vmatprep.mubr.bf16.mxu0 %v3552
      %4470 = vmatmul.mubr.bf16.gmra.mrb[0].mxu0 %v3534
      %v4471 = vpop.f32.mrb[0].mxu0
      %v4472 = vadd.f32 %v4391, %v4471
      %v4473 = vpop.f32.mrb[0].mxu0
      %v4474 = vpop.f32.mrb[0].mxu0
      %v4475 = vadd.f32 %v4394, %v4474
      %v4476 = vpop.f32.mrb[0].mxu0
      %4477 = vdwg.mxu0
      %4478 = vmatprep.subr.bf16.mxu0 0
      %4479 = vmatpush1.bf16.msra.mxu0 %v4074
      %4480 = vmatprep.subr.bf16.mxu0 0
      %4481 = vmatpush1.bf16.msra.mxu0 %v4075
      %4482 = vmatprep.subr.bf16.mxu0 0
      %4483 = vmatpush1.bf16.msra.mxu0 %v4076
      %4484 = vmatprep.subr.bf16.mxu0 0
      %4485 = vmatpush1.bf16.msra.mxu0 %v4077
      %4486 = vmatprep.subr.bf16.mxu0 0
      %4487 = vmatpush1.bf16.msra.mxu0 %v4078
      %4488 = vmatprep.subr.bf16.mxu0 0
      %4489 = vmatpush1.bf16.msra.mxu0 %v4079
      %4490 = vmatprep.subr.bf16.mxu0 0
      %4491 = vmatpush1.bf16.msra.mxu0 %v4080
      %4492 = vmatprep.subr.bf16.mxu0 0
      %4493 = vmatpush1.bf16.msra.mxu0 %v4081
      %4494 = vmatprep.subr.bf16.mxu0 0
      %4495 = vmatpush1.bf16.msra.mxu0 0
      %4496 = vmatprep.subr.bf16.mxu0 0
      %4497 = vmatpush1.bf16.msra.mxu0 0
      %4498 = vmatprep.subr.bf16.mxu0 0
      %4499 = vmatpush1.bf16.msra.mxu0 0
      %4500 = vmatprep.subr.bf16.mxu0 0
      %4501 = vmatpush1.bf16.msra.mxu0 0
      %4502 = vmatprep.subr.bf16.mxu0 0
      %4503 = vmatpush1.bf16.msra.mxu0 0
      %4504 = vmatprep.subr.bf16.mxu0 0
      %4505 = vmatpush1.bf16.msra.mxu0 0
      %4506 = vmatprep.subr.bf16.mxu0 0
      %4507 = vmatpush1.bf16.msra.mxu0 0
      %4508 = vmatprep.subr.bf16.mxu0 0
      %4509 = vmatpush1.bf16.msra.mxu0 0
      %4510 = vmatprep.mubr.bf16.mxu0 0
      %4511 = vmatmul.mubr.bf16.gmra.mrb[0].mxu0 %v3565
      %v4512 = vpop.f32.mrb[0].mxu0
      %v4513 = vadd.f32 %v4432, %v4512
      %v4514 = vpop.f32.mrb[0].mxu0
      %v4515 = vpop.f32.mrb[0].mxu0
      %v4516 = vadd.f32 %v4435, %v4515
      %v4517 = vpop.f32.mrb[0].mxu0
      %4518 = vmatprep.mubr.bf16.mxu0 0
      %4519 = vmatmul.mubr.bf16.gmra.mrb[0].mxu0 %v3566
      %v4520 = vpop.f32.mrb[0].mxu0
      %v4521 = vadd.f32 %v4440, %v4520
      %v4522 = vpop.f32.mrb[0].mxu0
      %v4523 = vpop.f32.mrb[0].mxu0
      %v4524 = vadd.f32 %v4443, %v4523
      %v4525 = vpop.f32.mrb[0].mxu0
      %4526 = vmatprep.mubr.bf16.mxu0 0
      %4527 = vmatmul.mubr.bf16.gmra.mrb[0].mxu0 %v3567
      %v4528 = vpop.f32.mrb[0].mxu0
      %v4529 = vadd.f32 %v4448, %v4528
      %v4530 = vpop.f32.mrb[0].mxu0
      %v4531 = vpop.f32.mrb[0].mxu0
      %v4532 = vadd.f32 %v4451, %v4531
      %v4533 = vpop.f32.mrb[0].mxu0
      %4534 = vmatprep.mubr.bf16.mxu0 0
      %4535 = vmatmul.mubr.bf16.gmra.mrb[0].mxu0 %v3568
      %v4536 = vpop.f32.mrb[0].mxu0
      %v4537 = vadd.f32 %v4456, %v4536
      %v4538 = vpop.f32.mrb[0].mxu0
      %v4539 = vpop.f32.mrb[0].mxu0
      %v4540 = vadd.f32 %v4459, %v4539
      %v4541 = vpop.f32.mrb[0].mxu0
      %4542 = vmatprep.mubr.bf16.mxu0 0
      %4543 = vmatmul.mubr.bf16.gmra.mrb[0].mxu0 %v3569
      %v4544 = vpop.f32.mrb[0].mxu0
      %v4545 = vadd.f32 %v4464, %v4544
      %v4546 = vpop.f32.mrb[0].mxu0
      %v4547 = vpop.f32.mrb[0].mxu0
      %v4548 = vadd.f32 %v4467, %v4547
      %v4549 = vpop.f32.mrb[0].mxu0
      %4550 = vmatprep.mubr.bf16.mxu0 0
      %4551 = vmatmul.mubr.bf16.gmra.mrb[0].mxu0 %v3570
      %v4552 = vpop.f32.mrb[0].mxu0
      %v4553 = vadd.f32 %v4472, %v4552
      %v4554 = vpop.f32.mrb[0].mxu0
      %v4555 = vpop.f32.mrb[0].mxu0
      %v4556 = vadd.f32 %v4475, %v4555
      %v4557 = vpop.f32.mrb[0].mxu0
      %4558 = vdwg.mxu0
      %v4559 = vmax.f32 %v4513, 0.0
      %v4560 = vmax.f32 %v4516, 0.0
      %v4561 = vmax.f32 %v4521, 0.0
      %v4562 = vmax.f32 %v4524, 0.0
      %v4563 = vmax.f32 %v4529, 0.0
      %v4564 = vmax.f32 %v4532, 0.0
      %v4565 = vmax.f32 %v4537, 0.0
      %v4566 = vmax.f32 %v4540, 0.0
      %v4567 = vmax.f32 %v4545, 0.0
      %v4568 = vmax.f32 %v4548, 0.0
      %v4569 = vmax.f32 %v4553, 0.0
      %v4570 = vmax.f32 %v4556, 0.0
      %v4583 = vrot.slane %v4559, 1
      %v4584 = vrot.slane %v4560, 1
      %v4585 = vsel %vm2831, %v4583, %v4584
      %v4586 = vrot.slane %v4561, 1
      %v4587 = vsel %vm2831, %v4584, %v4586
      %v4588 = vrot.slane %v4562, 1
      %v4589 = vsel %vm2831, %v4586, %v4588
      %v4590 = vrot.slane %v4563, 1
      %v4591 = vsel %vm2831, %v4588, %v4590
      %v4592 = vrot.slane %v4564, 1
      %v4593 = vsel %vm2831, %v4590, %v4592
      %v4594 = vrot.slane %v4565, 1
      %v4595 = vsel %vm2831, %v4592, %v4594
      %v4596 = vrot.slane %v4566, 1
      %v4597 = vsel %vm2831, %v4594, %v4596
      %v4598 = vrot.slane %v4567, 1
      %v4599 = vsel %vm2831, %v4596, %v4598
      %v4600 = vrot.slane %v4568, 1
      %v4601 = vsel %vm2831, %v4598, %v4600
      %v4602 = vrot.slane %v4569, 1
      %v4603 = vsel %vm2831, %v4600, %v4602
      %v4604 = vrot.slane %v4570, 1
      %v4605 = vsel %vm2831, %v4602, %v4604
      %v4618 = vmax.f32 %v4559, %v4585
      %v4619 = vmax.f32 %v4560, %v4587
      %v4620 = vmax.f32 %v4561, %v4589
      %v4621 = vmax.f32 %v4562, %v4591
      %v4622 = vmax.f32 %v4563, %v4593
      %v4623 = vmax.f32 %v4564, %v4595
      %v4624 = vmax.f32 %v4565, %v4597
      %v4625 = vmax.f32 %v4566, %v4599
      %v4626 = vmax.f32 %v4567, %v4601
      %v4627 = vmax.f32 %v4568, %v4603
      %v4628 = vmax.f32 %v4569, %v4605
      %v4629 = vmax.f32 %v4570, %v4604
      %v4641 = vrot.slane %v4619, 2
      %v4642 = vrot.slane %v4620, 2
      %v4643 = vsel %vm3024, %v4641, %v4642
      %v4644 = vrot.slane %v4621, 2
      %v4645 = vsel %vm3024, %v4642, %v4644
      %v4646 = vrot.slane %v4622, 2
      %v4647 = vsel %vm3024, %v4644, %v4646
      %v4648 = vrot.slane %v4623, 2
      %v4649 = vsel %vm3024, %v4646, %v4648
      %v4650 = vrot.slane %v4624, 2
      %v4651 = vsel %vm3024, %v4648, %v4650
      %v4652 = vrot.slane %v4625, 2
      %v4653 = vsel %vm3024, %v4650, %v4652
      %v4654 = vrot.slane %v4626, 2
      %v4655 = vsel %vm3024, %v4652, %v4654
      %v4656 = vrot.slane %v4627, 2
      %v4657 = vsel %vm3024, %v4654, %v4656
      %v4658 = vrot.slane %v4628, 2
      %v4659 = vsel %vm3024, %v4656, %v4658
      %v4660 = vrot.slane %v4629, 2
      %v4661 = vsel %vm3024, %v4658, %v4660
      %v4672 = vmax.f32 %v4618, %v4643
      %v4673 = vmax.f32 %v4619, %v4645
      %v4674 = vmax.f32 %v4620, %v4647
      %v4675 = vmax.f32 %v4621, %v4649
      %v4676 = vmax.f32 %v4622, %v4651
      %v4677 = vmax.f32 %v4623, %v4653
      %v4678 = vmax.f32 %v4624, %v4655
      %v4679 = vmax.f32 %v4625, %v4657
      %v4680 = vmax.f32 %v4626, %v4659
      %v4681 = vmax.f32 %v4627, %v4661
      %v4682 = vld [vmem:[%s8] sm:$0xf]
      %v4683 = vld [vmem:[%s8 + $0x4] sm:$0xf]
      %v4684 = vpack.c.bf16 %v4673, %v4672
      %v4685 = vpack.c.bf16 %v4675, %v4674
      %v4686 = vpack.c.bf16 %v4677, %v4676
      %v4687 = vpack.c.bf16 %v4679, %v4678
      %v4688 = vpack.c.bf16 %v4681, %v4680
      %v4691 = vunpack.c.l.b16 %v4682
      %v4692 = vunpack.c.l.b16 %v4683
      %v4693 = vpack.c.b16 %v4692, %v4691
      %vm4694 = vcmask 654336
      %v4696 = vsel %vm4694, %v4693, 0
      %4698 = vmatprep.subr.bf16.mxu0 0
      %4699 = vmatpush1.bf16.msra.mxu0 %v4684
      %4700 = vmatprep.subr.bf16.mxu0 0
      %4701 = vmatpush1.bf16.msra.mxu0 %v4685
      %4702 = vmatprep.subr.bf16.mxu0 0
      %4703 = vmatpush1.bf16.msra.mxu0 %v4686
      %4704 = vmatprep.subr.bf16.mxu0 0
      %4705 = vmatpush1.bf16.msra.mxu0 %v4687
      %4706 = vmatprep.subr.bf16.mxu0 0
      %4707 = vmatpush1.bf16.msra.mxu0 %v4688
      %4708 = vmatprep.subr.bf16.mxu0 0
      %4709 = vmatpush1.bf16.msra.mxu0 0
      %4710 = vmatprep.subr.bf16.mxu0 0
      %4711 = vmatpush1.bf16.msra.mxu0 0
      %4712 = vmatprep.subr.bf16.mxu0 0
      %4713 = vmatpush1.bf16.msra.mxu0 0
      %4714 = vmatprep.subr.bf16.mxu0 0
      %4715 = vmatpush1.bf16.msra.mxu0 0
      %4716 = vmatprep.subr.bf16.mxu0 0
      %4717 = vmatpush1.bf16.msra.mxu0 0
      %4718 = vmatprep.subr.bf16.mxu0 0
      %4719 = vmatpush1.bf16.msra.mxu0 0
      %4720 = vmatprep.subr.bf16.mxu0 0
      %4721 = vmatpush1.bf16.msra.mxu0 0
      %4722 = vmatprep.subr.bf16.mxu0 0
      %4723 = vmatpush1.bf16.msra.mxu0 0
      %4724 = vmatprep.subr.bf16.mxu0 0
      %4725 = vmatpush1.bf16.msra.mxu0 0
      %4726 = vmatprep.subr.bf16.mxu0 0
      %4727 = vmatpush1.bf16.msra.mxu0 0
      %4728 = vmatprep.subr.bf16.mxu0 0
      %4729 = vmatpush1.bf16.msra.mxu0 0
      %4730 = vmatprep.mubr.bf16.mxu0 0
      %4731 = vmatmul.mubr.bf16.gmra.mrb[0].mxu0 %v4696
      %v4732 = vpop.f32.mrb[0].mxu0
      %v4733 = vadd.f32 0.0, %v4732
      %v4734 = vpop.f32.mrb[0].mxu0
      %v4735 = vpop.f32.mrb[0].mxu0
      %v4736 = vadd.f32 0.0, %v4735
      %v4737 = vpop.f32.mrb[0].mxu0
      %4738 = vdwg.mxu0
      %v4739 = vpack.c.bf16 %v4736, %v4733
      %v4741 = vunpack.c.l.b16 %v4739
      %v4742 = vunpack.c.h.b16 %v4739
      %v4743 = vpack.c.b16 %v4741, %v4741
      %v4744 = vpack.c.b16 %v4742, %v4742
      %4747 = vst [vmem:[%s332] sm:$0xf] %v4743
      %4748 = vst [vmem:[%s332 + $0x4] sm:$0xf] %v4744
      %p4749 = scmp.lt.s32.totalorder %s20, 1
      %s4750 = scalar_select %p4749, %s20, 1
      %s4751 = smul.addr %s4750, 2
      %s4752 = smul.addr %s4751, 4
      %s4753 = scalar_lea.vmem %s9, %s4752
      // Predicated region
      $region57: #{img_encoder_forward.2} parent=55 // pred_check
        %p4754 = pneg %p232
      $region58: #{img_encoder_forward.2} parent=55 // pred_check_branch
        %4756 = sbr.rel (%p4754) target = $region60
      $region59: #{img_encoder_forward.2} parent=55 // pred_region
        _
      $region60: #{img_encoder_forward.2} parent=55 // pred_fallthru
        _
    $region56: #{img_encoder_forward.2} parent=5 // pred_fallthru
      _
    %p4757 = scmp.le.s32.totalorder 2, %s15
    // Predicated region
    $region61: #{img_encoder_forward.2} parent=5 // pred_check
      %p4758 = pneg %p4757
    $region62: #{img_encoder_forward.2} parent=5 // pred_check_branch
      %4760 = sbr.rel (%p4758) target = $region64
    $region63: #{img_encoder_forward.2} parent=5 // pred_region
      %s4761 = ssub.s32 %s15, 2
      // Predicated region
      $region65: #{img_encoder_forward.2} parent=63 // pred_check
        %p4762 = pneg %p238
      $region66: #{img_encoder_forward.2} parent=63 // pred_check_branch
        %4764 = sbr.rel (%p4762) target = $region68
      $region67: #{img_encoder_forward.2} parent=63 // pred_region
        %p4765 = scmp.lt.s32.totalorder %s21, 1
        %s4766 = scalar_select %p4765, %s21, 1
        %s4767 = smul.addr %s4766, 2
        %s4768 = smul.addr %s4767, 4
        %s4769 = scalar_lea.vmem %s9, %s4768
      $region68: #{img_encoder_forward.2} parent=63 // pred_fallthru
        _
    $region64: #{img_encoder_forward.2} parent=5 // pred_fallthru
      _
  $region6: #{img_encoder_forward.2} parent=0 // loop_footer
    %s19 = sadd.s32 1, %s15
  $region7: #{img_encoder_forward.2} parent=0 // loop_footer_branch
    %14 = sbr.rel target = $region3
  $region8: #{img_encoder_forward.2} parent=0 // loop_exit
    _

</llo_original>
